<compile_context>
chip_gen: v5e
topology: v5e:2x2
jax: 0.10.0
libtpu: 0.0.40
codegen_flags: <defaults>
</compile_context>

<pallas_src>
import jax
import jax.numpy as jnp
from jax import lax
from jax.experimental import pallas as pl
from jax.experimental.pallas import tpu as pltpu


# ------------------------- fused Pallas kernel -------------------------

def classifier_branches_kernel(cols1_ref, w1_ref, b1_ref, w2_ref, b2_ref,
                               wp_ref, bp_ref, ws_ref, bs_ref,
                               mfirst_ref, mlast_ref, o_ref):
    """Whole Classifier forward for one (branch, batch-block) grid step.

    cols1_ref : (1, 4*BF, 3*512) bf16.  BF = B_blk*F.  Rows are grouped
                group-major / element-major:  row g*BF + b*F + p  holds the
                conv1 im2col row of batch element b at conv position 4p+g.
    w1/w2/wp  : (1, K, N) bf16 per-branch matmul matrices (BN folded in).
    b1/b2/bp  : (1, 1, N) f32 folded biases.
    ws        : (1, S, F) f32 ;  bs: (1, S, 1) f32.
    mfirst/mlast : (BF, 1) f32 masks, 0.0 at each element's first / last
                pooled position, 1.0 elsewhere (conv2 zero padding).
    o_ref     : (1, B_blk, S, P) f32.
    """
    s, f = ws_ref.shape[1], ws_ref.shape[2]
    bf = cols1_ref.shape[1] // 4                    # B_blk * F
    b_blk = bf // f

    # ---- conv1 (+folded BN) + ReLU over the whole batch block --------------
    cols1 = cols1_ref[0]                                              # (4BF, 1536)
    y1 = jnp.dot(cols1, w1_ref[0], preferred_element_type=jnp.float32)
    y1 = jnp.maximum(y1 + b1_ref[0], 0.0)                             # (4BF, 256)

    # ---- maxpool1: group-major rows -> tile-aligned contiguous slices -------
    h1_even = jnp.maximum(y1[0:bf], y1[bf:2 * bf])          # pooled pos 2p
    h1_odd = jnp.maximum(y1[2 * bf:3 * bf], y1[3 * bf:])    # pooled pos 2p+1

    # ---- conv2 im2col: neighbours via XLU roll + per-element boundary mask --
    # prev_odd[row b*F+p] = h1_odd[b, p-1]  (0 at p == 0)
    # next_even[row b*F+p] = h1_even[b, p+1] (0 at p == F-1)
    prev_odd = pltpu.roll(h1_odd, 1, axis=0) * mfirst_ref[...]
    next_even = pltpu.roll(h1_even, bf - 1, axis=0) * mlast_ref[...]
    cols2 = jnp.concatenate(
        [jnp.concatenate([prev_odd, h1_even, h1_odd], axis=-1),   # even out pos
         jnp.concatenate([h1_even, h1_odd, next_even], axis=-1)], # odd  out pos
        axis=0).astype(jnp.bfloat16)                              # (2BF, 768)

    # ---- conv2 (+folded BN) + ReLU + maxpool2 --------------------------------
    y2 = jnp.dot(cols2, w2_ref[0], preferred_element_type=jnp.float32)
    y2 = jnp.maximum(y2 + b2_ref[0], 0.0)                             # (2BF, 512)
    h2 = jnp.maximum(y2[0:bf], y2[bf:])                               # (BF, 512)

    # ---- head 1 (1x1 conv 512->P) over the whole block -----------------------
    a = jnp.dot(h2.astype(jnp.bfloat16), wp_ref[0],
                preferred_element_type=jnp.float32) + bp_ref[0]       # (BF, P)

    # ---- head 2 (1x1 conv F->S) per element: native [S,F]@[F,P] matmul -------
    ws_t = ws_ref[0]                                                  # (S, F)
    bs = bs_ref[0]                                                    # (S, 1)
    for b in range(b_blk):
        a_b = a[b * f:(b + 1) * f, :]                                 # (F, P)
        o_ref[0, b] = (jnp.dot(ws_t, a_b, preferred_element_type=jnp.float32)
                       + bs).astype(o_ref.dtype)                      # (S, P)


# ------------------------- wrapper / glue -------------------------

def _conv1_cols_grouped_blocked(x_nlc, k, stride, pad, b_blk):
    """im2col for conv1 (tap-major columns), batch-blocked and row-grouped so
    that in each block row  g*(B_blk*F) + b*F + p  holds element b's im2col
    row for conv output position 4p+g  (p = 0..F-1, g = 0..3)."""
    n, l, c = x_nlc.shape
    xp = jnp.pad(x_nlc, ((0, 0), (pad, pad), (0, 0)))
    l_out = (l + 2 * pad - k) // stride + 1
    cols = jnp.concatenate(
        [xp[:, t:t + stride * (l_out - 1) + 1:stride, :] for t in range(k)], axis=-1)
    assert l_out % 4 == 0, "conv1 output length must be divisible by 4"
    assert n % b_blk == 0
    f = l_out // 4
    nb = n // b_blk
    cols = cols.reshape(nb, b_blk, f, 4, k * c)     # (nb, b, p, g, KC)
    cols = cols.transpose(0, 3, 1, 2, 4)            # (nb, g, b, p, KC)
    return cols.reshape(nb, 4 * b_blk * f, k * c), f


def classifiers_forward(x_ncl, params, *, b_blk=8):
    """All Classifier branches fused into one pallas_call.

    x_ncl : (N, 512, L) as in PyTorch.
    Returns (N, P, n_branches*S) — i.e. torch.cat([clf_i(x)], dim=2).
    """
    n = x_ncl.shape[0]
    n_br, kc1, c1 = params["W1"].shape
    _, kc2, c2 = params["W2"].shape
    p = params["Wp"].shape[2]
    s, f = params["Ws"].shape[1], params["Ws"].shape[2]

    b_blk = max(1, min(b_blk, n))
    n_pad = pl.cdiv(n, b_blk) * b_blk
    x = jnp.transpose(x_ncl, (0, 2, 1)).astype(jnp.bfloat16)          # (N, L, 512)
    if n_pad != n:
        x = jnp.pad(x, ((0, n_pad - n), (0, 0), (0, 0)))

    cols1, f_chk = _conv1_cols_grouped_blocked(x, k=3, stride=2, pad=1, b_blk=b_blk)
    assert f_chk == f, (f_chk, f)
    n_blocks = n_pad // b_blk
    bf = b_blk * f

    # conv2 boundary masks (host-built; avoids in-kernel iota/mod).
    pos = jnp.arange(bf, dtype=jnp.int32) % f
    mask_first = (pos != 0).astype(jnp.float32).reshape(bf, 1)
    mask_last = (pos != f - 1).astype(jnp.float32).reshape(bf, 1)

    out = pl.pallas_call(
        classifier_branches_kernel,
        out_shape=jax.ShapeDtypeStruct((n_br, n_pad, s, p), jnp.float32),
        grid=(n_br, n_blocks),            # branch outer (weights resident), batch inner
        in_specs=[
            pl.BlockSpec((1, 4 * bf, kc1), lambda br, blk: (blk, 0, 0)),  # activations
            pl.BlockSpec((1, kc1, c1), lambda br, blk: (br, 0, 0)),       # W1  (per branch)
            pl.BlockSpec((1, 1, c1), lambda br, blk: (br, 0, 0)),         # b1
            pl.BlockSpec((1, kc2, c2), lambda br, blk: (br, 0, 0)),       # W2
            pl.BlockSpec((1, 1, c2), lambda br, blk: (br, 0, 0)),         # b2
            pl.BlockSpec((1, c2, p), lambda br, blk: (br, 0, 0)),         # Wp
            pl.BlockSpec((1, 1, p), lambda br, blk: (br, 0, 0)),          # bp
            pl.BlockSpec((1, s, f), lambda br, blk: (br, 0, 0)),          # Ws (S,F)
            pl.BlockSpec((1, s, 1), lambda br, blk: (br, 0, 0)),          # bs
            pl.BlockSpec((bf, 1), lambda br, blk: (0, 0)),                # mask_first
            pl.BlockSpec((bf, 1), lambda br, blk: (0, 0)),                # mask_last
        ],
        out_specs=pl.BlockSpec((1, b_blk, s, p), lambda br, blk: (br, blk, 0, 0)),
        compiler_params=pltpu.CompilerParams(
            dimension_semantics=("parallel", "parallel")),
    )(cols1, params["W1"], params["b1"], params["W2"], params["b2"],
      params["Wp"], params["bp"], params["Ws"], params["bs"],
      mask_first, mask_last)

    # (br, n, s, p) -> (n, p, br, s) -> (n, p, br*s), drop batch padding.
    out = jnp.transpose(out, (1, 3, 0, 2)).reshape(n_pad, p, n_br * s)
    return out[:n]


# ------------------------- parameters (deterministic) -------------------------

def _bn_affine(c, eps, gamma=None, beta=None, mean=None, var=None):
    # TODO(synk): a trained checkpoint must feed real gamma/beta/running stats.
    gamma = jnp.ones((c,), jnp.float32) if gamma is None else gamma
    beta = jnp.zeros((c,), jnp.float32) if beta is None else beta
    mean = jnp.zeros((c,), jnp.float32) if mean is None else mean
    var = jnp.ones((c,), jnp.float32) if var is None else var
    scale = gamma / jnp.sqrt(var + eps)
    shift = beta - mean * scale
    return scale, shift


def make_params(key, n_branches, pred_length, status_num, input_length):
    feature_dim = input_length // 128
    gain = 0.02
    eps = 1e-5
    scale1, shift1 = _bn_affine(256, eps)
    scale2, shift2 = _bn_affine(512, eps)

    stacks = {k: [] for k in ("W1", "b1", "W2", "b2", "Wp", "bp", "Ws", "bs")}
    torch_like = []
    for bk in jax.random.split(key, n_branches):
        k1, k2, k3, k4 = jax.random.split(bk, 4)
        # PyTorch-shaped weights (Cout, Cin, K); init_weights('normal', 0.02), bias=0.
        w1 = gain * jax.random.normal(k1, (256, 512, 3), jnp.float32)
        w2 = gain * jax.random.normal(k2, (512, 256, 3), jnp.float32)
        wp = gain * jax.random.normal(k3, (pred_length, 512, 1), jnp.float32)
        ws = gain * jax.random.normal(k4, (status_num, feature_dim, 1), jnp.float32)
        b1 = jnp.zeros((256,), jnp.float32)
        b2 = jnp.zeros((512,), jnp.float32)
        bp = jnp.zeros((pred_length,), jnp.float32)
        bs = jnp.zeros((status_num,), jnp.float32)

        # im2col matmul matrices (K*Cin, Cout), column = tap*Cin + cin, BN folded.
        stacks["W1"].append(
            (jnp.transpose(w1, (2, 1, 0)).reshape(3 * 512, 256)
             * scale1[None, :]).astype(jnp.bfloat16))
        stacks["W2"].append(
            (jnp.transpose(w2, (2, 1, 0)).reshape(3 * 256, 512)
             * scale2[None, :]).astype(jnp.bfloat16))
        stacks["b1"].append((b1 * scale1 + shift1)[None, :])
        stacks["b2"].append((b2 * scale2 + shift2)[None, :])
        stacks["Wp"].append(wp[:, :, 0].T.astype(jnp.bfloat16))    # (512, P)
        stacks["bp"].append(bp[None, :])                           # (1, P)
        stacks["Ws"].append(ws[:, :, 0])                           # (S, F) f32
        stacks["bs"].append(bs[:, None])                           # (S, 1)
        torch_like.append({"w1": w1, "b1": b1, "w2": w2, "b2": b2,
                           "wp": wp, "bp": bp, "ws": ws, "bs": bs, "eps": eps})

    params = {k: jnp.stack(v) for k, v in stacks.items()}
    return params, torch_like


# ------------------------- pure-JAX reference -------------------------

def ref_classifier(x_ncl, t):
    def conv1d(x, w, b, stride, pad):
        y = lax.conv_general_dilated(x, w, (stride,), [(pad, pad)],
                                     dimension_numbers=("NCH", "OIH", "NCH"),
                                     precision=lax.Precision.HIGHEST)
        return y + b[None, :, None]

    def bn_eval(x):
        return x / jnp.sqrt(1.0 + t["eps"])   # gamma=1, beta=0, mean=0, var=1

    def maxpool2(x):
        n, c, l = x.shape
        return jnp.max(x.reshape(n, c, l // 2, 2), axis=-1)

    h = maxpool2(jnp.maximum(bn_eval(conv1d(x_ncl, t["w1"], t["b1"], 2, 1)), 0.0))
    h = maxpool2(jnp.maximum(bn_eval(conv1d(h, t["w2"], t["b2"], 1, 1)), 0.0))
    a = conv1d(h, t["wp"], t["bp"], 1, 0)          # (N, P, F)
    a = jnp.transpose(a, (0, 2, 1))                # (N, F, P)
    o = conv1d(a, t["ws"], t["bs"], 1, 0)          # (N, S, P)
    return jnp.transpose(o, (0, 2, 1))             # (N, P, S)


# ------------------------- main -------------------------

if __name__ == "__main__":
    pred_length = 8
    status_num = 3
    n_branches = 4                      # TODO(synk): real StatusPredictor uses 23
    input_length = 1024                 # feature_dim = 1024 // 128 = 8
    N = 12
    L = input_length // 16              # Classifier input length after ShareConv

    key = jax.random.PRNGKey(0)
    kx, kp = jax.random.split(key)
    x = jax.random.normal(kx, (N, 512, L), jnp.float32)      # PyTorch NCL input

    params, torch_like = make_params(kp, n_branches, pred_length,
                                     status_num, input_length)

    out = jax.block_until_ready(jax.jit(classifiers_forward)(x, params))
    assert out.shape == (N, pred_length, n_branches * status_num), out.shape

    ref = jnp.concatenate([ref_classifier(x, t) for t in torch_like], axis=2)
    ref = jax.block_until_ready(ref)
    err = float(jnp.max(jnp.abs(out - ref)))
    tol = 5e-2 * float(jnp.max(jnp.abs(ref))) + 1e-5
    assert err <= tol, (err, tol)
    print("KERNEL_OK")
</pallas_src>

<mosaic_0001>
module attributes {stable_mosaic.version = 11 : i64} {
  func.func @classifier_branches_kernel(%arg0: i32, %arg1: i32, %arg2: memref<1x256x1536xbf16, #tpu.memory_space<vmem>>, %arg3: memref<1x1536x256xbf16, #tpu.memory_space<vmem>>, %arg4: memref<1x1x256xf32, #tpu.memory_space<vmem>>, %arg5: memref<1x768x512xbf16, #tpu.memory_space<vmem>>, %arg6: memref<1x1x512xf32, #tpu.memory_space<vmem>>, %arg7: memref<1x512x8xbf16, #tpu.memory_space<vmem>>, %arg8: memref<1x1x8xf32, #tpu.memory_space<vmem>>, %arg9: memref<1x3x8xf32, #tpu.memory_space<vmem>>, %arg10: memref<1x3x1xf32, #tpu.memory_space<vmem>>, %arg11: memref<64x1xf32, #tpu.memory_space<vmem>>, %arg12: memref<64x1xf32, #tpu.memory_space<vmem>>, %arg13: memref<1x8x3x8xf32, #tpu.memory_space<vmem>>) attributes {dimension_semantics = [#tpu.dimension_semantics<parallel>, #tpu.dimension_semantics<parallel>], iteration_bounds = array<i64: 4, 2>, scalar_prefetch = 0 : i64, scratch_operands = 0 : i64, tpu.core_type = #tpu.core_type<tc>, window_params = [{transform_indices = @transform_0, window_bounds = array<i64: 1, 256, 1536>}, {transform_indices = @transform_1, window_bounds = array<i64: 1, 1536, 256>}, {transform_indices = @transform_2, window_bounds = array<i64: 1, 1, 256>}, {transform_indices = @transform_3, window_bounds = array<i64: 1, 768, 512>}, {transform_indices = @transform_4, window_bounds = array<i64: 1, 1, 512>}, {transform_indices = @transform_5, window_bounds = array<i64: 1, 512, 8>}, {transform_indices = @transform_6, window_bounds = array<i64: 1, 1, 8>}, {transform_indices = @transform_7, window_bounds = array<i64: 1, 3, 8>}, {transform_indices = @transform_8, window_bounds = array<i64: 1, 3, 1>}, {pipeline_mode = #tpu.pipeline_mode<synchronous>, transform_indices = @transform_9, window_bounds = array<i64: 64, 1>}, {pipeline_mode = #tpu.pipeline_mode<synchronous>, transform_indices = @transform_10, window_bounds = array<i64: 64, 1>}, {transform_indices = @transform_11, window_bounds = array<i64: 1, 8, 3, 8>}]} {
    %c0 = arith.constant 0 : index
    %c0_0 = arith.constant 0 : index
    %c0_1 = arith.constant 0 : index
    %0 = vector.load %arg2[%c0, %c0_0, %c0_1] : memref<1x256x1536xbf16, #tpu.memory_space<vmem>>, vector<1x256x1536xbf16>
    %1 = vector.shape_cast %0 : vector<1x256x1536xbf16> to vector<256x1536xbf16>
    %c0_2 = arith.constant 0 : index
    %c0_3 = arith.constant 0 : index
    %c0_4 = arith.constant 0 : index
    %2 = vector.load %arg3[%c0_2, %c0_3, %c0_4] : memref<1x1536x256xbf16, #tpu.memory_space<vmem>>, vector<1x1536x256xbf16>
    %3 = vector.shape_cast %2 : vector<1x1536x256xbf16> to vector<1536x256xbf16>
    %cst = arith.constant dense<0.000000e+00> : vector<256x256xf32>
    %4 = tpu.matmul %1, %3, %cst {dimension_numbers = #tpu.dot_dimension_numbers<[1], [0], [0], [1], [0, 0, 1, 1], [], []>} : vector<256x1536xbf16>, vector<1536x256xbf16>, vector<256x256xf32> -> vector<256x256xf32>
    %c0_5 = arith.constant 0 : index
    %c0_6 = arith.constant 0 : index
    %c0_7 = arith.constant 0 : index
    %5 = vector.load %arg4[%c0_5, %c0_6, %c0_7] : memref<1x1x256xf32, #tpu.memory_space<vmem>>, vector<1x1x256xf32>
    %6 = vector.shape_cast %5 : vector<1x1x256xf32> to vector<1x256xf32>
    %7 = vector.broadcast %6 : vector<1x256xf32> to vector<256x256xf32>
    %8 = arith.addf %4, %7 : vector<256x256xf32>
    %cst_8 = arith.constant 0.000000e+00 : f32
    %9 = vector.broadcast %cst_8 : f32 to vector<256x256xf32>
    %10 = arith.maximumf %8, %9 : vector<256x256xf32>
    %11 = vector.extract_strided_slice %10 {offsets = [0, 0], sizes = [64, 256], strides = [1, 1]} : vector<256x256xf32> to vector<64x256xf32>
    %12 = vector.extract_strided_slice %10 {offsets = [64, 0], sizes = [64, 256], strides = [1, 1]} : vector<256x256xf32> to vector<64x256xf32>
    %13 = arith.maximumf %11, %12 : vector<64x256xf32>
    %14 = vector.extract_strided_slice %10 {offsets = [128, 0], sizes = [64, 256], strides = [1, 1]} : vector<256x256xf32> to vector<64x256xf32>
    %15 = vector.extract_strided_slice %10 {offsets = [192, 0], sizes = [64, 256], strides = [1, 1]} : vector<256x256xf32> to vector<64x256xf32>
    %16 = arith.maximumf %14, %15 : vector<64x256xf32>
    %c1_i32 = arith.constant 1 : i32
    %17 = tpu.dynamic_rotate %16 by %c1_i32 dim 0 : vector<64x256xf32>, i32 -> vector<64x256xf32>
    %c0_9 = arith.constant 0 : index
    %c0_10 = arith.constant 0 : index
    %18 = vector.load %arg11[%c0_9, %c0_10] : memref<64x1xf32, #tpu.memory_space<vmem>>, vector<64x1xf32>
    %19 = vector.broadcast %18 : vector<64x1xf32> to vector<64x256xf32>
    %20 = arith.mulf %17, %19 : vector<64x256xf32>
    %c63_i32 = arith.constant 63 : i32
    %21 = tpu.dynamic_rotate %13 by %c63_i32 dim 0 : vector<64x256xf32>, i32 -> vector<64x256xf32>
    %c0_11 = arith.constant 0 : index
    %c0_12 = arith.constant 0 : index
    %22 = vector.load %arg12[%c0_11, %c0_12] : memref<64x1xf32, #tpu.memory_space<vmem>>, vector<64x1xf32>
    %23 = vector.broadcast %22 : vector<64x1xf32> to vector<64x256xf32>
    %24 = arith.mulf %21, %23 : vector<64x256xf32>
    %25 = tpu.concatenate %20, %13, %16 in 1 : vector<64x256xf32>, vector<64x256xf32>, vector<64x256xf32> -> vector<64x768xf32>
    %26 = tpu.concatenate %13, %16, %24 in 1 : vector<64x256xf32>, vector<64x256xf32>, vector<64x256xf32> -> vector<64x768xf32>
    %27 = tpu.concatenate %25, %26 in 0 : vector<64x768xf32>, vector<64x768xf32> -> vector<128x768xf32>
    %28 = arith.truncf %27 : vector<128x768xf32> to vector<128x768xbf16>
    %c0_13 = arith.constant 0 : index
    %c0_14 = arith.constant 0 : index
    %c0_15 = arith.constant 0 : index
    %29 = vector.load %arg5[%c0_13, %c0_14, %c0_15] : memref<1x768x512xbf16, #tpu.memory_space<vmem>>, vector<1x768x512xbf16>
    %30 = vector.shape_cast %29 : vector<1x768x512xbf16> to vector<768x512xbf16>
    %cst_16 = arith.constant dense<0.000000e+00> : vector<128x512xf32>
    %31 = tpu.matmul %28, %30, %cst_16 {dimension_numbers = #tpu.dot_dimension_numbers<[1], [0], [0], [1], [0, 0, 1, 1], [], []>} : vector<128x768xbf16>, vector<768x512xbf16>, vector<128x512xf32> -> vector<128x512xf32>
    %c0_17 = arith.constant 0 : index
    %c0_18 = arith.constant 0 : index
    %c0_19 = arith.constant 0 : index
    %32 = vector.load %arg6[%c0_17, %c0_18, %c0_19] : memref<1x1x512xf32, #tpu.memory_space<vmem>>, vector<1x1x512xf32>
    %33 = vector.shape_cast %32 : vector<1x1x512xf32> to vector<1x512xf32>
    %34 = vector.broadcast %33 : vector<1x512xf32> to vector<128x512xf32>
    %35 = arith.addf %31, %34 : vector<128x512xf32>
    %cst_20 = arith.constant 0.000000e+00 : f32
    %36 = vector.broadcast %cst_20 : f32 to vector<128x512xf32>
    %37 = arith.maximumf %35, %36 : vector<128x512xf32>
    %38 = vector.extract_strided_slice %37 {offsets = [0, 0], sizes = [64, 512], strides = [1, 1]} : vector<128x512xf32> to vector<64x512xf32>
    %39 = vector.extract_strided_slice %37 {offsets = [64, 0], sizes = [64, 512], strides = [1, 1]} : vector<128x512xf32> to vector<64x512xf32>
    %40 = arith.maximumf %38, %39 : vector<64x512xf32>
    %41 = arith.truncf %40 : vector<64x512xf32> to vector<64x512xbf16>
    %c0_21 = arith.constant 0 : index
    %c0_22 = arith.constant 0 : index
    %c0_23 = arith.constant 0 : index
    %42 = vector.load %arg7[%c0_21, %c0_22, %c0_23] : memref<1x512x8xbf16, #tpu.memory_space<vmem>>, vector<1x512x8xbf16>
    %43 = vector.shape_cast %42 : vector<1x512x8xbf16> to vector<512x8xbf16>
    %cst_24 = arith.constant dense<0.000000e+00> : vector<64x8xf32>
    %44 = tpu.matmul %41, %43, %cst_24 {dimension_numbers = #tpu.dot_dimension_numbers<[1], [0], [0], [1], [0, 0, 1, 1], [], []>} : vector<64x512xbf16>, vector<512x8xbf16>, vector<64x8xf32> -> vector<64x8xf32>
    %c0_25 = arith.constant 0 : index
    %c0_26 = arith.constant 0 : index
    %c0_27 = arith.constant 0 : index
    %45 = vector.load %arg8[%c0_25, %c0_26, %c0_27] : memref<1x1x8xf32, #tpu.memory_space<vmem>>, vector<1x1x8xf32>
    %46 = vector.shape_cast %45 : vector<1x1x8xf32> to vector<1x8xf32>
    %47 = vector.broadcast %46 : vector<1x8xf32> to vector<64x8xf32>
    %48 = arith.addf %44, %47 : vector<64x8xf32>
    %c0_28 = arith.constant 0 : index
    %c0_29 = arith.constant 0 : index
    %c0_30 = arith.constant 0 : index
    %49 = vector.load %arg9[%c0_28, %c0_29, %c0_30] : memref<1x3x8xf32, #tpu.memory_space<vmem>>, vector<1x3x8xf32>
    %50 = vector.shape_cast %49 : vector<1x3x8xf32> to vector<3x8xf32>
    %c0_31 = arith.constant 0 : index
    %c0_32 = arith.constant 0 : index
    %c0_33 = arith.constant 0 : index
    %51 = vector.load %arg10[%c0_31, %c0_32, %c0_33] : memref<1x3x1xf32, #tpu.memory_space<vmem>>, vector<1x3x1xf32>
    %52 = vector.shape_cast %51 : vector<1x3x1xf32> to vector<3x1xf32>
    %53 = vector.extract_strided_slice %48 {offsets = [0, 0], sizes = [8, 8], strides = [1, 1]} : vector<64x8xf32> to vector<8x8xf32>
    %cst_34 = arith.constant dense<0.000000e+00> : vector<3x8xf32>
    %54 = tpu.matmul %50, %53, %cst_34 {dimension_numbers = #tpu.dot_dimension_numbers<[1], [0], [0], [1], [0, 0, 1, 1], [], []>} : vector<3x8xf32>, vector<8x8xf32>, vector<3x8xf32> -> vector<3x8xf32>
    %55 = vector.broadcast %52 : vector<3x1xf32> to vector<3x8xf32>
    %56 = arith.addf %54, %55 : vector<3x8xf32>
    %c0_35 = arith.constant 0 : index
    %c0_36 = arith.constant 0 : index
    %c0_37 = arith.constant 0 : index
    %c0_38 = arith.constant 0 : index
    %57 = vector.load %arg13[%c0_35, %c0_36, %c0_37, %c0_38] : memref<1x8x3x8xf32, #tpu.memory_space<vmem>>, vector<1x1x3x8xf32>
    %58 = vector.shape_cast %57 : vector<1x1x3x8xf32> to vector<3x8xf32>
    %59 = vector.shape_cast %56 : vector<3x8xf32> to vector<1x1x3x8xf32>
    tpu.vector_store %arg13[%c0_35, %c0_36, %c0_37, %c0_38], %59 {strides = array<i32>} : memref<1x8x3x8xf32, #tpu.memory_space<vmem>>, vector<1x1x3x8xf32>,
    %60 = vector.extract_strided_slice %48 {offsets = [8, 0], sizes = [8, 8], strides = [1, 1]} : vector<64x8xf32> to vector<8x8xf32>
    %cst_39 = arith.constant dense<0.000000e+00> : vector<3x8xf32>
    %61 = tpu.matmul %50, %60, %cst_39 {dimension_numbers = #tpu.dot_dimension_numbers<[1], [0], [0], [1], [0, 0, 1, 1], [], []>} : vector<3x8xf32>, vector<8x8xf32>, vector<3x8xf32> -> vector<3x8xf32>
    %62 = vector.broadcast %52 : vector<3x1xf32> to vector<3x8xf32>
    %63 = arith.addf %61, %62 : vector<3x8xf32>
    %c0_40 = arith.constant 0 : index
    %c1 = arith.constant 1 : index
    %c0_41 = arith.constant 0 : index
    %c0_42 = arith.constant 0 : index
    %64 = vector.load %arg13[%c0_40, %c1, %c0_41, %c0_42] : memref<1x8x3x8xf32, #tpu.memory_space<vmem>>, vector<1x1x3x8xf32>
    %65 = vector.shape_cast %64 : vector<1x1x3x8xf32> to vector<3x8xf32>
    %66 = vector.shape_cast %63 : vector<3x8xf32> to vector<1x1x3x8xf32>
    tpu.vector_store %arg13[%c0_40, %c1, %c0_41, %c0_42], %66 {strides = array<i32>} : memref<1x8x3x8xf32, #tpu.memory_space<vmem>>, vector<1x1x3x8xf32>,
    %67 = vector.extract_strided_slice %48 {offsets = [16, 0], sizes = [8, 8], strides = [1, 1]} : vector<64x8xf32> to vector<8x8xf32>
    %cst_43 = arith.constant dense<0.000000e+00> : vector<3x8xf32>
    %68 = tpu.matmul %50, %67, %cst_43 {dimension_numbers = #tpu.dot_dimension_numbers<[1], [0], [0], [1], [0, 0, 1, 1], [], []>} : vector<3x8xf32>, vector<8x8xf32>, vector<3x8xf32> -> vector<3x8xf32>
    %69 = vector.broadcast %52 : vector<3x1xf32> to vector<3x8xf32>
    %70 = arith.addf %68, %69 : vector<3x8xf32>
    %c0_44 = arith.constant 0 : index
    %c2 = arith.constant 2 : index
    %c0_45 = arith.constant 0 : index
    %c0_46 = arith.constant 0 : index
    %71 = vector.load %arg13[%c0_44, %c2, %c0_45, %c0_46] : memref<1x8x3x8xf32, #tpu.memory_space<vmem>>, vector<1x1x3x8xf32>
    %72 = vector.shape_cast %71 : vector<1x1x3x8xf32> to vector<3x8xf32>
    %73 = vector.shape_cast %70 : vector<3x8xf32> to vector<1x1x3x8xf32>
    tpu.vector_store %arg13[%c0_44, %c2, %c0_45, %c0_46], %73 {strides = array<i32>} : memref<1x8x3x8xf32, #tpu.memory_space<vmem>>, vector<1x1x3x8xf32>,
    %74 = vector.extract_strided_slice %48 {offsets = [24, 0], sizes = [8, 8], strides = [1, 1]} : vector<64x8xf32> to vector<8x8xf32>
    %cst_47 = arith.constant dense<0.000000e+00> : vector<3x8xf32>
    %75 = tpu.matmul %50, %74, %cst_47 {dimension_numbers = #tpu.dot_dimension_numbers<[1], [0], [0], [1], [0, 0, 1, 1], [], []>} : vector<3x8xf32>, vector<8x8xf32>, vector<3x8xf32> -> vector<3x8xf32>
    %76 = vector.broadcast %52 : vector<3x1xf32> to vector<3x8xf32>
    %77 = arith.addf %75, %76 : vector<3x8xf32>
    %c0_48 = arith.constant 0 : index
    %c3 = arith.constant 3 : index
    %c0_49 = arith.constant 0 : index
    %c0_50 = arith.constant 0 : index
    %78 = vector.load %arg13[%c0_48, %c3, %c0_49, %c0_50] : memref<1x8x3x8xf32, #tpu.memory_space<vmem>>, vector<1x1x3x8xf32>
    %79 = vector.shape_cast %78 : vector<1x1x3x8xf32> to vector<3x8xf32>
    %80 = vector.shape_cast %77 : vector<3x8xf32> to vector<1x1x3x8xf32>
    tpu.vector_store %arg13[%c0_48, %c3, %c0_49, %c0_50], %80 {strides = array<i32>} : memref<1x8x3x8xf32, #tpu.memory_space<vmem>>, vector<1x1x3x8xf32>,
    %81 = vector.extract_strided_slice %48 {offsets = [32, 0], sizes = [8, 8], strides = [1, 1]} : vector<64x8xf32> to vector<8x8xf32>
    %cst_51 = arith.constant dense<0.000000e+00> : vector<3x8xf32>
    %82 = tpu.matmul %50, %81, %cst_51 {dimension_numbers = #tpu.dot_dimension_numbers<[1], [0], [0], [1], [0, 0, 1, 1], [], []>} : vector<3x8xf32>, vector<8x8xf32>, vector<3x8xf32> -> vector<3x8xf32>
    %83 = vector.broadcast %52 : vector<3x1xf32> to vector<3x8xf32>
    %84 = arith.addf %82, %83 : vector<3x8xf32>
    %c0_52 = arith.constant 0 : index
    %c4 = arith.constant 4 : index
    %c0_53 = arith.constant 0 : index
    %c0_54 = arith.constant 0 : index
    %85 = vector.load %arg13[%c0_52, %c4, %c0_53, %c0_54] : memref<1x8x3x8xf32, #tpu.memory_space<vmem>>, vector<1x1x3x8xf32>
    %86 = vector.shape_cast %85 : vector<1x1x3x8xf32> to vector<3x8xf32>
    %87 = vector.shape_cast %84 : vector<3x8xf32> to vector<1x1x3x8xf32>
    tpu.vector_store %arg13[%c0_52, %c4, %c0_53, %c0_54], %87 {strides = array<i32>} : memref<1x8x3x8xf32, #tpu.memory_space<vmem>>, vector<1x1x3x8xf32>,
    %88 = vector.extract_strided_slice %48 {offsets = [40, 0], sizes = [8, 8], strides = [1, 1]} : vector<64x8xf32> to vector<8x8xf32>
    %cst_55 = arith.constant dense<0.000000e+00> : vector<3x8xf32>
    %89 = tpu.matmul %50, %88, %cst_55 {dimension_numbers = #tpu.dot_dimension_numbers<[1], [0], [0], [1], [0, 0, 1, 1], [], []>} : vector<3x8xf32>, vector<8x8xf32>, vector<3x8xf32> -> vector<3x8xf32>
    %90 = vector.broadcast %52 : vector<3x1xf32> to vector<3x8xf32>
    %91 = arith.addf %89, %90 : vector<3x8xf32>
    %c0_56 = arith.constant 0 : index
    %c5 = arith.constant 5 : index
    %c0_57 = arith.constant 0 : index
    %c0_58 = arith.constant 0 : index
    %92 = vector.load %arg13[%c0_56, %c5, %c0_57, %c0_58] : memref<1x8x3x8xf32, #tpu.memory_space<vmem>>, vector<1x1x3x8xf32>
    %93 = vector.shape_cast %92 : vector<1x1x3x8xf32> to vector<3x8xf32>
    %94 = vector.shape_cast %91 : vector<3x8xf32> to vector<1x1x3x8xf32>
    tpu.vector_store %arg13[%c0_56, %c5, %c0_57, %c0_58], %94 {strides = array<i32>} : memref<1x8x3x8xf32, #tpu.memory_space<vmem>>, vector<1x1x3x8xf32>,
    %95 = vector.extract_strided_slice %48 {offsets = [48, 0], sizes = [8, 8], strides = [1, 1]} : vector<64x8xf32> to vector<8x8xf32>
    %cst_59 = arith.constant dense<0.000000e+00> : vector<3x8xf32>
    %96 = tpu.matmul %50, %95, %cst_59 {dimension_numbers = #tpu.dot_dimension_numbers<[1], [0], [0], [1], [0, 0, 1, 1], [], []>} : vector<3x8xf32>, vector<8x8xf32>, vector<3x8xf32> -> vector<3x8xf32>
    %97 = vector.broadcast %52 : vector<3x1xf32> to vector<3x8xf32>
    %98 = arith.addf %96, %97 : vector<3x8xf32>
    %c0_60 = arith.constant 0 : index
    %c6 = arith.constant 6 : index
    %c0_61 = arith.constant 0 : index
    %c0_62 = arith.constant 0 : index
    %99 = vector.load %arg13[%c0_60, %c6, %c0_61, %c0_62] : memref<1x8x3x8xf32, #tpu.memory_space<vmem>>, vector<1x1x3x8xf32>
    %100 = vector.shape_cast %99 : vector<1x1x3x8xf32> to vector<3x8xf32>
    %101 = vector.shape_cast %98 : vector<3x8xf32> to vector<1x1x3x8xf32>
    tpu.vector_store %arg13[%c0_60, %c6, %c0_61, %c0_62], %101 {strides = array<i32>} : memref<1x8x3x8xf32, #tpu.memory_space<vmem>>, vector<1x1x3x8xf32>,
    %102 = vector.extract_strided_slice %48 {offsets = [56, 0], sizes = [8, 8], strides = [1, 1]} : vector<64x8xf32> to vector<8x8xf32>
    %cst_63 = arith.constant dense<0.000000e+00> : vector<3x8xf32>
    %103 = tpu.matmul %50, %102, %cst_63 {dimension_numbers = #tpu.dot_dimension_numbers<[1], [0], [0], [1], [0, 0, 1, 1], [], []>} : vector<3x8xf32>, vector<8x8xf32>, vector<3x8xf32> -> vector<3x8xf32>
    %104 = vector.broadcast %52 : vector<3x1xf32> to vector<3x8xf32>
    %105 = arith.addf %103, %104 : vector<3x8xf32>
    %c0_64 = arith.constant 0 : index
    %c7 = arith.constant 7 : index
    %c0_65 = arith.constant 0 : index
    %c0_66 = arith.constant 0 : index
    %106 = vector.load %arg13[%c0_64, %c7, %c0_65, %c0_66] : memref<1x8x3x8xf32, #tpu.memory_space<vmem>>, vector<1x1x3x8xf32>
    %107 = vector.shape_cast %106 : vector<1x1x3x8xf32> to vector<3x8xf32>
    %108 = vector.shape_cast %105 : vector<3x8xf32> to vector<1x1x3x8xf32>
    tpu.vector_store %arg13[%c0_64, %c7, %c0_65, %c0_66], %108 {strides = array<i32>} : memref<1x8x3x8xf32, #tpu.memory_space<vmem>>, vector<1x1x3x8xf32>,
    return
  }
  func.func @transform_0(%arg0: i32, %arg1: i32) -> (i32, i32, i32) {
    %c0_i32 = arith.constant 0 : i32
    %c0_i32_0 = arith.constant 0 : i32
    %c0_i32_1 = arith.constant 0 : i32
    return %arg1, %c0_i32, %c0_i32_0 : i32, i32, i32
  }
  func.func @transform_1(%arg0: i32, %arg1: i32) -> (i32, i32, i32) {
    %c0_i32 = arith.constant 0 : i32
    %c0_i32_0 = arith.constant 0 : i32
    %c0_i32_1 = arith.constant 0 : i32
    return %arg0, %c0_i32, %c0_i32_0 : i32, i32, i32
  }
  func.func @transform_2(%arg0: i32, %arg1: i32) -> (i32, i32, i32) {
    %c0_i32 = arith.constant 0 : i32
    %c0_i32_0 = arith.constant 0 : i32
    %c0_i32_1 = arith.constant 0 : i32
    return %arg0, %c0_i32, %c0_i32_0 : i32, i32, i32
  }
  func.func @transform_3(%arg0: i32, %arg1: i32) -> (i32, i32, i32) {
    %c0_i32 = arith.constant 0 : i32
    %c0_i32_0 = arith.constant 0 : i32
    %c0_i32_1 = arith.constant 0 : i32
    return %arg0, %c0_i32, %c0_i32_0 : i32, i32, i32
  }
  func.func @transform_4(%arg0: i32, %arg1: i32) -> (i32, i32, i32) {
    %c0_i32 = arith.constant 0 : i32
    %c0_i32_0 = arith.constant 0 : i32
    %c0_i32_1 = arith.constant 0 : i32
    return %arg0, %c0_i32, %c0_i32_0 : i32, i32, i32
  }
  func.func @transform_5(%arg0: i32, %arg1: i32) -> (i32, i32, i32) {
    %c0_i32 = arith.constant 0 : i32
    %c0_i32_0 = arith.constant 0 : i32
    %c0_i32_1 = arith.constant 0 : i32
    return %arg0, %c0_i32, %c0_i32_0 : i32, i32, i32
  }
  func.func @transform_6(%arg0: i32, %arg1: i32) -> (i32, i32, i32) {
    %c0_i32 = arith.constant 0 : i32
    %c0_i32_0 = arith.constant 0 : i32
    %c0_i32_1 = arith.constant 0 : i32
    return %arg0, %c0_i32, %c0_i32_0 : i32, i32, i32
  }
  func.func @transform_7(%arg0: i32, %arg1: i32) -> (i32, i32, i32) {
    %c0_i32 = arith.constant 0 : i32
    %c0_i32_0 = arith.constant 0 : i32
    %c0_i32_1 = arith.constant 0 : i32
    return %arg0, %c0_i32, %c0_i32_0 : i32, i32, i32
  }
  func.func @transform_8(%arg0: i32, %arg1: i32) -> (i32, i32, i32) {
    %c0_i32 = arith.constant 0 : i32
    %c0_i32_0 = arith.constant 0 : i32
    %c0_i32_1 = arith.constant 0 : i32
    return %arg0, %c0_i32, %c0_i32_0 : i32, i32, i32
  }
  func.func @transform_9(%arg0: i32, %arg1: i32) -> (i32, i32) {
    %c0_i32 = arith.constant 0 : i32
    %c0_i32_0 = arith.constant 0 : i32
    %c0_i32_1 = arith.constant 0 : i32
    return %c0_i32, %c0_i32_0 : i32, i32
  }
  func.func @transform_10(%arg0: i32, %arg1: i32) -> (i32, i32) {
    %c0_i32 = arith.constant 0 : i32
    %c0_i32_0 = arith.constant 0 : i32
    %c0_i32_1 = arith.constant 0 : i32
    return %c0_i32, %c0_i32_0 : i32, i32
  }
  func.func @transform_11(%arg0: i32, %arg1: i32) -> (i32, i32, i32, i32) {
    %c0_i32 = arith.constant 0 : i32
    %c0_i32_0 = arith.constant 0 : i32
    %c0_i32_1 = arith.constant 0 : i32
    return %arg0, %arg1, %c0_i32, %c0_i32_0 : i32, i32, i32, i32
  }
}

</mosaic_0001>

<llo_original>
// kernel: classifiers_forward.1
$region0: #{classifiers_forward.1}
  #allocation0 [shape = 'u32[]', space=smem, size = 0x4, offset = 0x4, fixed_abs, tag = 'smem constant byte address 0x4 - core index']
  #allocation1 [shape = 'u32[72,128]{1,0:T(1,128)}', space=vmem, size = 0x9000, scoped, tag = 'internal scratch']
  %s0 = inlined_call_operand.vmem [shape: bf16[2,256,1536], index: 0, kind: input, shape index: {}]
  %s1 = inlined_call_operand.vmem [shape: bf16[4,1536,256], index: 1, kind: input, shape index: {}]
  %s2 = inlined_call_operand.vmem [shape: f32[4,1,256], index: 2, kind: input, shape index: {}]
  %s3 = inlined_call_operand.vmem [shape: bf16[4,768,512], index: 3, kind: input, shape index: {}]
  %s4 = inlined_call_operand.vmem [shape: f32[4,1,512], index: 4, kind: input, shape index: {}]
  %s5 = inlined_call_operand.vmem [shape: bf16[4,512,8], index: 5, kind: input, shape index: {}]
  %s6 = inlined_call_operand.vmem [shape: f32[4,1,8], index: 6, kind: input, shape index: {}]
  %s7 = inlined_call_operand.vmem [shape: f32[4,3,8], index: 7, kind: input, shape index: {}]
  %s8 = inlined_call_operand.vmem [shape: f32[4,3,1], index: 8, kind: input, shape index: {}]
  %s9 = inlined_call_operand.vmem [shape: f32[64,1], index: 9, kind: input, shape index: {}]
  %s10 = inlined_call_operand.vmem [shape: f32[64,1], index: 10, kind: input, shape index: {}]
  %s11 = inlined_call_operand.vmem [shape: f32[4,16,3,8], index: 11, kind: output, shape index: {}]
  %s12 = sld [smem:[#allocation0]]
  $region77: #{classifiers_forward.1} parent=0
    _
  %s14 = ssub.s32 1, %s12
  %s15 = scalar_select 0, %s14, %s12
  loop: start=0, step=1, limit=10
  $region2: #{classifiers_forward.1} parent=0 // loop_pre_header
    _
  $region3: #{classifiers_forward.1} parent=0 // loop_header
    %s17 = sphi 0, %s21
    %p18 = scmp.ge.s32.totalorder %s17, 10
    %s24 = sphi 0, %s36
    %s25 = sphi 0, %s32
    %s26 = sphi 0, %s24
    %s27 = sphi 0, %s25
    %s28 = sphi 0, %s26
    %s29 = sphi 0, %s27
    %s39 = sphi 0, %s41
    %s42 = sphi 0, %s39
    %s43 = sphi 0, %s42
    %s59 = sphi 0, %s43
    %s65 = sphi 0, %s67
    %s68 = sphi 0, %s65
    %s69 = sphi 0, %s68
    %s85 = sphi 0, %s69
    %s91 = sphi 0, %s93
    %s94 = sphi 0, %s91
    %s95 = sphi 0, %s94
    %s111 = sphi 0, %s95
    %s117 = sphi 0, %s119
    %s120 = sphi 0, %s117
    %s121 = sphi 0, %s120
    %s137 = sphi 0, %s121
    %s143 = sphi 0, %s145
    %s146 = sphi 0, %s143
    %s147 = sphi 0, %s146
    %s163 = sphi 0, %s147
    %s169 = sphi 0, %s171
    %s172 = sphi 0, %s169
    %s173 = sphi 0, %s172
    %s189 = sphi 0, %s173
    %s195 = sphi 0, %s197
    %s198 = sphi 0, %s195
    %s199 = sphi 0, %s198
    %s215 = sphi 0, %s199
    %s221 = sphi 0, %s223
    %s224 = sphi 0, %s221
    %s225 = sphi 0, %s224
    %s241 = sphi 0, %s225
    %s247 = sphi 0, %s249
    %s250 = sphi 0, %s247
    %s251 = sphi 0, %s250
    %s267 = sphi 0, %s251
    %s271 = sphi 0, %s271
    %s273 = sphi 0, %s271
    %s274 = sphi 0, %s273
    %s288 = sphi 0, %s274
    %s292 = sphi 0, %s292
    %s294 = sphi 0, %s292
    %s295 = sphi 0, %s294
    %s309 = sphi 0, %s295
    %s317 = sphi 0, %s319
    %s320 = sphi 0, %s317
    %s321 = sphi 0, %s320
    %s337 = sphi 0, %s321
  $region4: #{classifiers_forward.1} parent=0 // loop_header_branch
    %20 = sbr.rel (%p18) target = $region8
  $region5: #{classifiers_forward.1} parent=0 // loop_body
    %s22 = ssub.s32 %s17, 1
    %s23 = ssub.s32 %s17, 2
    %s30 = sadd.s32 1, %s25
    %p31 = scmp.ge.s32.totalorder %s30, 2
    %s32 = scalar_select %p31, 0, %s30
    %s33 = sadd.s32 1, %s24
    %s34 = scalar_select %p31, %s33, %s24
    %p35 = scmp.ge.s32.totalorder %s34, 4
    %s36 = scalar_select %p35, 0, %s34
    %s37 = ssub.s32 %s25, %s32
    %p38 = scmp.eq.s32.totalorder %s37, 0
    %s40 = sadd.s32 %s39, 1
    %s41 = scalar_select %p38, %s39, %s40
    %p44 = pneg %p38
    %p45 = scmp.eq.s32.totalorder %s17, 7
    %p46 = por %p44, %p45
    %p47 = scmp.ne.s32.totalorder %s39, %s42
    %p48 = scmp.eq.s32.totalorder %s17, 0
    %p49 = por %p47, %p48
    %p50 = scmp.ne.s32.totalorder %s39, %s42
    %p51 = scmp.eq.s32.totalorder %s22, 7
    %p52 = por %p50, %p51
    %p53 = scmp.ne.s32.totalorder %s42, %s43
    %p54 = scmp.eq.s32.totalorder %s22, 0
    %p55 = por %p53, %p54
    %p56 = scmp.ne.s32.totalorder %s42, %s43
    %p57 = scmp.eq.s32.totalorder %s23, 7
    %p58 = por %p56, %p57
    %p60 = scmp.ne.s32.totalorder %s43, %s59
    %p61 = scmp.eq.s32.totalorder %s23, 0
    %p62 = por %p60, %p61
    %s63 = ssub.s32 %s24, %s36
    %p64 = scmp.eq.s32.totalorder %s63, 0
    %s66 = sadd.s32 %s65, 1
    %s67 = scalar_select %p64, %s65, %s66
    %p70 = pneg %p64
    %p71 = scmp.eq.s32.totalorder %s17, 7
    %p72 = por %p70, %p71
    %p73 = scmp.ne.s32.totalorder %s65, %s68
    %p74 = scmp.eq.s32.totalorder %s17, 0
    %p75 = por %p73, %p74
    %p76 = scmp.ne.s32.totalorder %s65, %s68
    %p77 = scmp.eq.s32.totalorder %s22, 7
    %p78 = por %p76, %p77
    %p79 = scmp.ne.s32.totalorder %s68, %s69
    %p80 = scmp.eq.s32.totalorder %s22, 0
    %p81 = por %p79, %p80
    %p82 = scmp.ne.s32.totalorder %s68, %s69
    %p83 = scmp.eq.s32.totalorder %s23, 7
    %p84 = por %p82, %p83
    %p86 = scmp.ne.s32.totalorder %s69, %s85
    %p87 = scmp.eq.s32.totalorder %s23, 0
    %p88 = por %p86, %p87
    %s89 = ssub.s32 %s24, %s36
    %p90 = scmp.eq.s32.totalorder %s89, 0
    %s92 = sadd.s32 %s91, 1
    %s93 = scalar_select %p90, %s91, %s92
    %p96 = pneg %p90
    %p97 = scmp.eq.s32.totalorder %s17, 7
    %p98 = por %p96, %p97
    %p99 = scmp.ne.s32.totalorder %s91, %s94
    %p100 = scmp.eq.s32.totalorder %s17, 0
    %p101 = por %p99, %p100
    %p102 = scmp.ne.s32.totalorder %s91, %s94
    %p103 = scmp.eq.s32.totalorder %s22, 7
    %p104 = por %p102, %p103
    %p105 = scmp.ne.s32.totalorder %s94, %s95
    %p106 = scmp.eq.s32.totalorder %s22, 0
    %p107 = por %p105, %p106
    %p108 = scmp.ne.s32.totalorder %s94, %s95
    %p109 = scmp.eq.s32.totalorder %s23, 7
    %p110 = por %p108, %p109
    %p112 = scmp.ne.s32.totalorder %s95, %s111
    %p113 = scmp.eq.s32.totalorder %s23, 0
    %p114 = por %p112, %p113
    %s115 = ssub.s32 %s24, %s36
    %p116 = scmp.eq.s32.totalorder %s115, 0
    %s118 = sadd.s32 %s117, 1
    %s119 = scalar_select %p116, %s117, %s118
    %p122 = pneg %p116
    %p123 = scmp.eq.s32.totalorder %s17, 7
    %p124 = por %p122, %p123
    %p125 = scmp.ne.s32.totalorder %s117, %s120
    %p126 = scmp.eq.s32.totalorder %s17, 0
    %p127 = por %p125, %p126
    %p128 = scmp.ne.s32.totalorder %s117, %s120
    %p129 = scmp.eq.s32.totalorder %s22, 7
    %p130 = por %p128, %p129
    %p131 = scmp.ne.s32.totalorder %s120, %s121
    %p132 = scmp.eq.s32.totalorder %s22, 0
    %p133 = por %p131, %p132
    %p134 = scmp.ne.s32.totalorder %s120, %s121
    %p135 = scmp.eq.s32.totalorder %s23, 7
    %p136 = por %p134, %p135
    %p138 = scmp.ne.s32.totalorder %s121, %s137
    %p139 = scmp.eq.s32.totalorder %s23, 0
    %p140 = por %p138, %p139
    %s141 = ssub.s32 %s24, %s36
    %p142 = scmp.eq.s32.totalorder %s141, 0
    %s144 = sadd.s32 %s143, 1
    %s145 = scalar_select %p142, %s143, %s144
    %p148 = pneg %p142
    %p149 = scmp.eq.s32.totalorder %s17, 7
    %p150 = por %p148, %p149
    %p151 = scmp.ne.s32.totalorder %s143, %s146
    %p152 = scmp.eq.s32.totalorder %s17, 0
    %p153 = por %p151, %p152
    %p154 = scmp.ne.s32.totalorder %s143, %s146
    %p155 = scmp.eq.s32.totalorder %s22, 7
    %p156 = por %p154, %p155
    %p157 = scmp.ne.s32.totalorder %s146, %s147
    %p158 = scmp.eq.s32.totalorder %s22, 0
    %p159 = por %p157, %p158
    %p160 = scmp.ne.s32.totalorder %s146, %s147
    %p161 = scmp.eq.s32.totalorder %s23, 7
    %p162 = por %p160, %p161
    %p164 = scmp.ne.s32.totalorder %s147, %s163
    %p165 = scmp.eq.s32.totalorder %s23, 0
    %p166 = por %p164, %p165
    %s167 = ssub.s32 %s24, %s36
    %p168 = scmp.eq.s32.totalorder %s167, 0
    %s170 = sadd.s32 %s169, 1
    %s171 = scalar_select %p168, %s169, %s170
    %p174 = pneg %p168
    %p175 = scmp.eq.s32.totalorder %s17, 7
    %p176 = por %p174, %p175
    %p177 = scmp.ne.s32.totalorder %s169, %s172
    %p178 = scmp.eq.s32.totalorder %s17, 0
    %p179 = por %p177, %p178
    %p180 = scmp.ne.s32.totalorder %s169, %s172
    %p181 = scmp.eq.s32.totalorder %s22, 7
    %p182 = por %p180, %p181
    %p183 = scmp.ne.s32.totalorder %s172, %s173
    %p184 = scmp.eq.s32.totalorder %s22, 0
    %p185 = por %p183, %p184
    %p186 = scmp.ne.s32.totalorder %s172, %s173
    %p187 = scmp.eq.s32.totalorder %s23, 7
    %p188 = por %p186, %p187
    %p190 = scmp.ne.s32.totalorder %s173, %s189
    %p191 = scmp.eq.s32.totalorder %s23, 0
    %p192 = por %p190, %p191
    %s193 = ssub.s32 %s24, %s36
    %p194 = scmp.eq.s32.totalorder %s193, 0
    %s196 = sadd.s32 %s195, 1
    %s197 = scalar_select %p194, %s195, %s196
    %p200 = pneg %p194
    %p201 = scmp.eq.s32.totalorder %s17, 7
    %p202 = por %p200, %p201
    %p203 = scmp.ne.s32.totalorder %s195, %s198
    %p204 = scmp.eq.s32.totalorder %s17, 0
    %p205 = por %p203, %p204
    %p206 = scmp.ne.s32.totalorder %s195, %s198
    %p207 = scmp.eq.s32.totalorder %s22, 7
    %p208 = por %p206, %p207
    %p209 = scmp.ne.s32.totalorder %s198, %s199
    %p210 = scmp.eq.s32.totalorder %s22, 0
    %p211 = por %p209, %p210
    %p212 = scmp.ne.s32.totalorder %s198, %s199
    %p213 = scmp.eq.s32.totalorder %s23, 7
    %p214 = por %p212, %p213
    %p216 = scmp.ne.s32.totalorder %s199, %s215
    %p217 = scmp.eq.s32.totalorder %s23, 0
    %p218 = por %p216, %p217
    %s219 = ssub.s32 %s24, %s36
    %p220 = scmp.eq.s32.totalorder %s219, 0
    %s222 = sadd.s32 %s221, 1
    %s223 = scalar_select %p220, %s221, %s222
    %p226 = pneg %p220
    %p227 = scmp.eq.s32.totalorder %s17, 7
    %p228 = por %p226, %p227
    %p229 = scmp.ne.s32.totalorder %s221, %s224
    %p230 = scmp.eq.s32.totalorder %s17, 0
    %p231 = por %p229, %p230
    %p232 = scmp.ne.s32.totalorder %s221, %s224
    %p233 = scmp.eq.s32.totalorder %s22, 7
    %p234 = por %p232, %p233
    %p235 = scmp.ne.s32.totalorder %s224, %s225
    %p236 = scmp.eq.s32.totalorder %s22, 0
    %p237 = por %p235, %p236
    %p238 = scmp.ne.s32.totalorder %s224, %s225
    %p239 = scmp.eq.s32.totalorder %s23, 7
    %p240 = por %p238, %p239
    %p242 = scmp.ne.s32.totalorder %s225, %s241
    %p243 = scmp.eq.s32.totalorder %s23, 0
    %p244 = por %p242, %p243
    %s245 = ssub.s32 %s24, %s36
    %p246 = scmp.eq.s32.totalorder %s245, 0
    %s248 = sadd.s32 %s247, 1
    %s249 = scalar_select %p246, %s247, %s248
    %p252 = pneg %p246
    %p253 = scmp.eq.s32.totalorder %s17, 7
    %p254 = por %p252, %p253
    %p255 = scmp.ne.s32.totalorder %s247, %s250
    %p256 = scmp.eq.s32.totalorder %s17, 0
    %p257 = por %p255, %p256
    %p258 = scmp.ne.s32.totalorder %s247, %s250
    %p259 = scmp.eq.s32.totalorder %s22, 7
    %p260 = por %p258, %p259
    %p261 = scmp.ne.s32.totalorder %s250, %s251
    %p262 = scmp.eq.s32.totalorder %s22, 0
    %p263 = por %p261, %p262
    %p264 = scmp.ne.s32.totalorder %s250, %s251
    %p265 = scmp.eq.s32.totalorder %s23, 7
    %p266 = por %p264, %p265
    %p268 = scmp.ne.s32.totalorder %s251, %s267
    %p269 = scmp.eq.s32.totalorder %s23, 0
    %p270 = por %p268, %p269
    %s272 = sadd.s32 %s271, 1
    %p275 = scmp.eq.s32.totalorder %s17, 7
    %p276 = scmp.ne.s32.totalorder %s271, %s273
    %p277 = scmp.eq.s32.totalorder %s17, 0
    %p278 = por %p276, %p277
    %p279 = scmp.ne.s32.totalorder %s271, %s273
    %p280 = scmp.eq.s32.totalorder %s22, 7
    %p281 = por %p279, %p280
    %p282 = scmp.ne.s32.totalorder %s273, %s274
    %p283 = scmp.eq.s32.totalorder %s22, 0
    %p284 = por %p282, %p283
    %p285 = scmp.ne.s32.totalorder %s273, %s274
    %p286 = scmp.eq.s32.totalorder %s23, 7
    %p287 = por %p285, %p286
    %p289 = scmp.ne.s32.totalorder %s274, %s288
    %p290 = scmp.eq.s32.totalorder %s23, 0
    %p291 = por %p289, %p290
    %s293 = sadd.s32 %s292, 1
    %p296 = scmp.eq.s32.totalorder %s17, 7
    %p297 = scmp.ne.s32.totalorder %s292, %s294
    %p298 = scmp.eq.s32.totalorder %s17, 0
    %p299 = por %p297, %p298
    %p300 = scmp.ne.s32.totalorder %s292, %s294
    %p301 = scmp.eq.s32.totalorder %s22, 7
    %p302 = por %p300, %p301
    %p303 = scmp.ne.s32.totalorder %s294, %s295
    %p304 = scmp.eq.s32.totalorder %s22, 0
    %p305 = por %p303, %p304
    %p306 = scmp.ne.s32.totalorder %s294, %s295
    %p307 = scmp.eq.s32.totalorder %s23, 7
    %p308 = por %p306, %p307
    %p310 = scmp.ne.s32.totalorder %s295, %s309
    %p311 = scmp.eq.s32.totalorder %s23, 0
    %p312 = por %p310, %p311
    %s313 = ssub.s32 %s24, %s36
    %s314 = ssub.s32 %s25, %s32
    %s315 = sor.u32 %s313, %s314
    %p316 = scmp.eq.s32.totalorder %s315, 0
    %s318 = sadd.s32 %s317, 1
    %s319 = scalar_select %p316, %s317, %s318
    %p322 = pneg %p316
    %p323 = scmp.eq.s32.totalorder %s17, 7
    %p324 = por %p322, %p323
    %p325 = scmp.ne.s32.totalorder %s317, %s320
    %p326 = scmp.eq.s32.totalorder %s17, 0
    %p327 = por %p325, %p326
    %p328 = scmp.ne.s32.totalorder %s317, %s320
    %p329 = scmp.eq.s32.totalorder %s22, 7
    %p330 = por %p328, %p329
    %p331 = scmp.ne.s32.totalorder %s320, %s321
    %p332 = scmp.eq.s32.totalorder %s22, 0
    %p333 = por %p331, %p332
    %p334 = scmp.ne.s32.totalorder %s320, %s321
    %p335 = scmp.eq.s32.totalorder %s23, 7
    %p336 = por %p334, %p335
    %p338 = scmp.ne.s32.totalorder %s321, %s337
    %p339 = scmp.eq.s32.totalorder %s23, 0
    %p340 = por %p338, %p339
    %p341 = scmp.le.s32.totalorder 1, %s17
    %p342 = scmp.lt.s32.totalorder %s17, 9
    %p343 = pnand %p341, %p342
    %p344 = pneg %p343
    // Predicated region
    $region9: #{classifiers_forward.1} parent=5 // pred_check
      _
    $region10: #{classifiers_forward.1} parent=5 // pred_check_branch
      %346 = sbr.rel (%p343) target = $region12
    $region11: #{classifiers_forward.1} parent=5 // pred_region
      %s347 = ssub.s32 %s17, 1
      // Predicated region
      $region13: #{classifiers_forward.1} parent=11 // pred_check
        %p348 = pneg %p284
      $region14: #{classifiers_forward.1} parent=11 // pred_check_branch
        %350 = sbr.rel (%p348) target = $region16
      $region15: #{classifiers_forward.1} parent=11 // pred_region
        _
      $region16: #{classifiers_forward.1} parent=11 // pred_fallthru
        _
      // Predicated region
      $region17: #{classifiers_forward.1} parent=11 // pred_check
        %p351 = pneg %p305
      $region18: #{classifiers_forward.1} parent=11 // pred_check_branch
        %353 = sbr.rel (%p351) target = $region20
      $region19: #{classifiers_forward.1} parent=11 // pred_region
        _
      $region20: #{classifiers_forward.1} parent=11 // pred_fallthru
        _
    $region12: #{classifiers_forward.1} parent=5 // pred_fallthru
      _
    %p354 = scmp.lt.s32.totalorder %s17, 8
    // Predicated region
    $region21: #{classifiers_forward.1} parent=5 // pred_check
      %p355 = pneg %p354
    $region22: #{classifiers_forward.1} parent=5 // pred_check_branch
      %357 = sbr.rel (%p355) target = $region24
    $region23: #{classifiers_forward.1} parent=5 // pred_region
      // Predicated region
      $region25: #{classifiers_forward.1} parent=23 // pred_check
        %p358 = pneg %p49
      $region26: #{classifiers_forward.1} parent=23 // pred_check_branch
        %360 = sbr.rel (%p358) target = $region28
      $region27: #{classifiers_forward.1} parent=23 // pred_region
        %p361 = scmp.lt.s32.totalorder %s25, 1
        %s362 = scalar_select %p361, %s25, 1
        %s363 = smul.addr %s362, 384
        %s364 = smul.addr %s363, 4
        %s365 = scalar_lea.vmem %s0, %s364
      $region28: #{classifiers_forward.1} parent=23 // pred_fallthru
        _
      // Predicated region
      $region29: #{classifiers_forward.1} parent=23 // pred_check
        %p366 = pneg %p75
      $region30: #{classifiers_forward.1} parent=23 // pred_check_branch
        %368 = sbr.rel (%p366) target = $region32
      $region31: #{classifiers_forward.1} parent=23 // pred_region
        %p369 = scmp.lt.s32.totalorder %s24, 3
        %s370 = scalar_select %p369, %s24, 3
        %s371 = smul.addr %s370, 384
        %s372 = smul.addr %s371, 4
        %s373 = scalar_lea.vmem %s1, %s372
      $region32: #{classifiers_forward.1} parent=23 // pred_fallthru
        _
      // Predicated region
      $region33: #{classifiers_forward.1} parent=23 // pred_check
        %p374 = pneg %p101
      $region34: #{classifiers_forward.1} parent=23 // pred_check_branch
        %376 = sbr.rel (%p374) target = $region36
      $region35: #{classifiers_forward.1} parent=23 // pred_region
        %p377 = scmp.lt.s32.totalorder %s24, 3
        %s378 = scalar_select %p377, %s24, 3
        %s379 = smul.addr %s378, 2
        %s380 = scalar_lea.vmem %s2, %s379
      $region36: #{classifiers_forward.1} parent=23 // pred_fallthru
        _
      // Predicated region
      $region37: #{classifiers_forward.1} parent=23 // pred_check
        %p381 = pneg %p127
      $region38: #{classifiers_forward.1} parent=23 // pred_check_branch
        %383 = sbr.rel (%p381) target = $region40
      $region39: #{classifiers_forward.1} parent=23 // pred_region
        %p384 = scmp.lt.s32.totalorder %s24, 3
        %s385 = scalar_select %p384, %s24, 3
        %s386 = smul.addr %s385, 384
        %s387 = smul.addr %s386, 4
        %s388 = scalar_lea.vmem %s3, %s387
      $region40: #{classifiers_forward.1} parent=23 // pred_fallthru
        _
      // Predicated region
      $region41: #{classifiers_forward.1} parent=23 // pred_check
        %p389 = pneg %p153
      $region42: #{classifiers_forward.1} parent=23 // pred_check_branch
        %391 = sbr.rel (%p389) target = $region44
      $region43: #{classifiers_forward.1} parent=23 // pred_region
        %p392 = scmp.lt.s32.totalorder %s24, 3
        %s393 = scalar_select %p392, %s24, 3
        %s394 = smul.addr %s393, 4
        %s395 = scalar_lea.vmem %s4, %s394
      $region44: #{classifiers_forward.1} parent=23 // pred_fallthru
        _
      // Predicated region
      $region45: #{classifiers_forward.1} parent=23 // pred_check
        %p396 = pneg %p179
      $region46: #{classifiers_forward.1} parent=23 // pred_check_branch
        %398 = sbr.rel (%p396) target = $region48
      $region47: #{classifiers_forward.1} parent=23 // pred_region
        %p399 = scmp.lt.s32.totalorder %s24, 3
        %s400 = scalar_select %p399, %s24, 3
        %s401 = smul.addr %s400, 64
        %s402 = smul.addr %s401, 4
        %s403 = scalar_lea.vmem %s5, %s402
      $region48: #{classifiers_forward.1} parent=23 // pred_fallthru
        _
      // Predicated region
      $region49: #{classifiers_forward.1} parent=23 // pred_check
        %p404 = pneg %p205
      $region50: #{classifiers_forward.1} parent=23 // pred_check_branch
        %406 = sbr.rel (%p404) target = $region52
      $region51: #{classifiers_forward.1} parent=23 // pred_region
        %p407 = scmp.lt.s32.totalorder %s24, 3
        %s408 = scalar_select %p407, %s24, 3
        %s409 = scalar_lea.vmem %s6, %s408
      $region52: #{classifiers_forward.1} parent=23 // pred_fallthru
        _
      // Predicated region
      $region53: #{classifiers_forward.1} parent=23 // pred_check
        %p410 = pneg %p231
      $region54: #{classifiers_forward.1} parent=23 // pred_check_branch
        %412 = sbr.rel (%p410) target = $region56
      $region55: #{classifiers_forward.1} parent=23 // pred_region
        %p413 = scmp.lt.s32.totalorder %s24, 3
        %s414 = scalar_select %p413, %s24, 3
        %s415 = smul.addr %s414, 4
        %s416 = scalar_lea.vmem %s7, %s415
      $region56: #{classifiers_forward.1} parent=23 // pred_fallthru
        _
      // Predicated region
      $region57: #{classifiers_forward.1} parent=23 // pred_check
        %p417 = pneg %p257
      $region58: #{classifiers_forward.1} parent=23 // pred_check_branch
        %419 = sbr.rel (%p417) target = $region60
      $region59: #{classifiers_forward.1} parent=23 // pred_region
        %p420 = scmp.lt.s32.totalorder %s24, 3
        %s421 = scalar_select %p420, %s24, 3
        %s422 = smul.addr %s421, 4
        %s423 = scalar_lea.vmem %s8, %s422
      $region60: #{classifiers_forward.1} parent=23 // pred_fallthru
        _
    $region24: #{classifiers_forward.1} parent=5 // pred_fallthru
      _
    %p424 = scmp.le.s32.totalorder 1, %s17
    %p425 = scmp.lt.s32.totalorder %s17, 9
    %p426 = pnand %p424, %p425
    %p427 = pneg %p426
    // Predicated region
    $region61: #{classifiers_forward.1} parent=5 // pred_check
      _
    $region62: #{classifiers_forward.1} parent=5 // pred_check_branch
      %429 = sbr.rel (%p426) target = $region64
    $region63: #{classifiers_forward.1} parent=5 // pred_region
      %s430 = ssub.s32 %s17, 1
      %p431 = scmp.lt.s32.totalorder %s27, 1
      %s432 = scalar_select %p431, %s27, 1
      %s433 = smul.addr %s432, 384
      %s434 = smul.addr %s433, 4
      %s435 = scalar_lea.vmem %s0, %s434
      %p436 = pneg %p55
      %p437 = pneg %p52
      %p438 = scmp.lt.s32.totalorder %s26, 3
      %s439 = scalar_select %p438, %s26, 3
      %s440 = smul.addr %s439, 384
      %s441 = smul.addr %s440, 4
      %s442 = scalar_lea.vmem %s1, %s441
      %p443 = pneg %p81
      %p444 = pneg %p78
      %p445 = scmp.lt.s32.totalorder %s26, 3
      %s446 = scalar_select %p445, %s26, 3
      %s447 = smul.addr %s446, 2
      %s448 = scalar_lea.vmem %s2, %s447
      %p449 = pneg %p107
      %p450 = pneg %p104
      %p451 = scmp.lt.s32.totalorder %s26, 3
      %s452 = scalar_select %p451, %s26, 3
      %s453 = smul.addr %s452, 384
      %s454 = smul.addr %s453, 4
      %s455 = scalar_lea.vmem %s3, %s454
      %p456 = pneg %p133
      %p457 = pneg %p130
      %p458 = scmp.lt.s32.totalorder %s26, 3
      %s459 = scalar_select %p458, %s26, 3
      %s460 = smul.addr %s459, 4
      %s461 = scalar_lea.vmem %s4, %s460
      %p462 = pneg %p159
      %p463 = pneg %p156
      %p464 = scmp.lt.s32.totalorder %s26, 3
      %s465 = scalar_select %p464, %s26, 3
      %s466 = smul.addr %s465, 64
      %s467 = smul.addr %s466, 4
      %s468 = scalar_lea.vmem %s5, %s467
      %p469 = pneg %p185
      %p470 = pneg %p182
      %p471 = scmp.lt.s32.totalorder %s26, 3
      %s472 = scalar_select %p471, %s26, 3
      %s473 = scalar_lea.vmem %s6, %s472
      %p474 = pneg %p211
      %p475 = pneg %p208
      %p476 = scmp.lt.s32.totalorder %s26, 3
      %s477 = scalar_select %p476, %s26, 3
      %s478 = smul.addr %s477, 4
      %s479 = scalar_lea.vmem %s7, %s478
      %p480 = pneg %p237
      %p481 = pneg %p234
      %p482 = scmp.lt.s32.totalorder %s26, 3
      %s483 = scalar_select %p482, %s26, 3
      %s484 = smul.addr %s483, 4
      %s485 = scalar_lea.vmem %s8, %s484
      %p486 = pneg %p263
      %p487 = pneg %p260
      %p488 = pneg %p284
      %p489 = pneg %p281
      %p490 = pneg %p305
      %p491 = pneg %p302
      %p492 = pneg %p333
      %p493 = pneg %p330
      %s494 = smul.u32 8, %s27
      %p495 = scmp.lt.s32.totalorder %s26, 3
      %s496 = scalar_select %p495, %s26, 3
      %p497 = scmp.lt.s32.totalorder %s494, 15
      %s498 = scalar_select %p497, %s494, 15
      %s499 = smul.addr %s496, 16
      %s500 = sadd.s32 %s498, %s499
      %s501 = smul.addr %s500, 4
      %s502 = scalar_lea.vmem %s11, %s501
      %p503 = scmp.lt.s32.totalorder %s27, 1
      %s504 = scalar_select %p503, %s27, 1
      %s505 = smul.addr %s504, 384
      %s506 = smul.addr %s505, 4
      %s507 = scalar_lea.vmem %s0, %s506
      %p508 = scmp.lt.s32.totalorder %s26, 3
      %s509 = scalar_select %p508, %s26, 3
      %s510 = smul.addr %s509, 384
      %s511 = smul.addr %s510, 4
      %s512 = scalar_lea.vmem %s1, %s511
      %p513 = scmp.lt.s32.totalorder %s26, 3
      %s514 = scalar_select %p513, %s26, 3
      %s515 = smul.addr %s514, 2
      %s516 = scalar_lea.vmem %s2, %s515
      %p517 = scmp.lt.s32.totalorder %s26, 3
      %s518 = scalar_select %p517, %s26, 3
      %s519 = smul.addr %s518, 384
      %s520 = smul.addr %s519, 4
      %s521 = scalar_lea.vmem %s3, %s520
      %p522 = scmp.lt.s32.totalorder %s26, 3
      %s523 = scalar_select %p522, %s26, 3
      %s524 = smul.addr %s523, 4
      %s525 = scalar_lea.vmem %s4, %s524
      %p526 = scmp.lt.s32.totalorder %s26, 3
      %s527 = scalar_select %p526, %s26, 3
      %s528 = smul.addr %s527, 64
      %s529 = smul.addr %s528, 4
      %s530 = scalar_lea.vmem %s5, %s529
      %p531 = scmp.lt.s32.totalorder %s26, 3
      %s532 = scalar_select %p531, %s26, 3
      %s533 = scalar_lea.vmem %s6, %s532
      %p534 = scmp.lt.s32.totalorder %s26, 3
      %s535 = scalar_select %p534, %s26, 3
      %s536 = smul.addr %s535, 4
      %s537 = scalar_lea.vmem %s7, %s536
      %p538 = scmp.lt.s32.totalorder %s26, 3
      %s539 = scalar_select %p538, %s26, 3
      %s540 = smul.addr %s539, 4
      %s541 = scalar_lea.vmem %s8, %s540
      %s542 = smul.u32 8, %s27
      %p543 = scmp.lt.s32.totalorder %s26, 3
      %s544 = scalar_select %p543, %s26, 3
      %p545 = scmp.lt.s32.totalorder %s542, 15
      %s546 = scalar_select %p545, %s542, 15
      %s547 = smul.addr %s544, 16
      %s548 = sadd.s32 %s546, %s547
      %s549 = smul.addr %s548, 4
      %s550 = scalar_lea.vmem %s11, %s549
      %s551 = smul.u32 8, %s27
      %v552 = vld [vmem:[%s507] sm:$0xff]
      %v553 = vld [vmem:[%s507 + $0x8] sm:$0xff]
      %v554 = vld [vmem:[%s507 + $0x10] sm:$0xff]
      %v555 = vld [vmem:[%s507 + $0x18] sm:$0xff]
      %v556 = vld [vmem:[%s507 + $0x20] sm:$0xff]
      %v557 = vld [vmem:[%s507 + $0x28] sm:$0xff]
      %v558 = vld [vmem:[%s507 + $0x30] sm:$0xff]
      %v559 = vld [vmem:[%s507 + $0x38] sm:$0xff]
      %v560 = vld [vmem:[%s507 + $0x40] sm:$0xff]
      %v561 = vld [vmem:[%s507 + $0x48] sm:$0xff]
      %v562 = vld [vmem:[%s507 + $0x50] sm:$0xff]
      %v563 = vld [vmem:[%s507 + $0x58] sm:$0xff]
      %v564 = vld [vmem:[%s507 + $0x60] sm:$0xff]
      %v565 = vld [vmem:[%s507 + $0x68] sm:$0xff]
      %v566 = vld [vmem:[%s507 + $0x70] sm:$0xff]
      %v567 = vld [vmem:[%s507 + $0x78] sm:$0xff]
      %v568 = vld [vmem:[%s507 + $0x80] sm:$0xff]
      %v569 = vld [vmem:[%s507 + $0x88] sm:$0xff]
      %v570 = vld [vmem:[%s507 + $0x90] sm:$0xff]
      %v571 = vld [vmem:[%s507 + $0x98] sm:$0xff]
      %v572 = vld [vmem:[%s507 + $0xa0] sm:$0xff]
      %v573 = vld [vmem:[%s507 + $0xa8] sm:$0xff]
      %v574 = vld [vmem:[%s507 + $0xb0] sm:$0xff]
      %v575 = vld [vmem:[%s507 + $0xb8] sm:$0xff]
      %v576 = vld [vmem:[%s507 + $0xc0] sm:$0xff]
      %v577 = vld [vmem:[%s507 + $0xc8] sm:$0xff]
      %v578 = vld [vmem:[%s507 + $0xd0] sm:$0xff]
      %v579 = vld [vmem:[%s507 + $0xd8] sm:$0xff]
      %v580 = vld [vmem:[%s507 + $0xe0] sm:$0xff]
      %v581 = vld [vmem:[%s507 + $0xe8] sm:$0xff]
      %v582 = vld [vmem:[%s507 + $0xf0] sm:$0xff]
      %v583 = vld [vmem:[%s507 + $0xf8] sm:$0xff]
      %v584 = vld [vmem:[%s507 + $0x100] sm:$0xff]
      %v585 = vld [vmem:[%s507 + $0x108] sm:$0xff]
      %v586 = vld [vmem:[%s507 + $0x110] sm:$0xff]
      %v587 = vld [vmem:[%s507 + $0x118] sm:$0xff]
      %v588 = vld [vmem:[%s507 + $0x120] sm:$0xff]
      %v589 = vld [vmem:[%s507 + $0x128] sm:$0xff]
      %v590 = vld [vmem:[%s507 + $0x130] sm:$0xff]
      %v591 = vld [vmem:[%s507 + $0x138] sm:$0xff]
      %v592 = vld [vmem:[%s507 + $0x140] sm:$0xff]
      %v593 = vld [vmem:[%s507 + $0x148] sm:$0xff]
      %v594 = vld [vmem:[%s507 + $0x150] sm:$0xff]
      %v595 = vld [vmem:[%s507 + $0x158] sm:$0xff]
      %v596 = vld [vmem:[%s507 + $0x160] sm:$0xff]
      %v597 = vld [vmem:[%s507 + $0x168] sm:$0xff]
      %v598 = vld [vmem:[%s507 + $0x170] sm:$0xff]
      %v599 = vld [vmem:[%s507 + $0x178] sm:$0xff]
      %v600 = vld [vmem:[%s507 + $0x180] sm:$0xff]
      %v601 = vld [vmem:[%s507 + $0x188] sm:$0xff]
      %v602 = vld [vmem:[%s507 + $0x190] sm:$0xff]
      %v603 = vld [vmem:[%s507 + $0x198] sm:$0xff]
      %v604 = vld [vmem:[%s507 + $0x1a0] sm:$0xff]
      %v605 = vld [vmem:[%s507 + $0x1a8] sm:$0xff]
      %v606 = vld [vmem:[%s507 + $0x1b0] sm:$0xff]
      %v607 = vld [vmem:[%s507 + $0x1b8] sm:$0xff]
      %v608 = vld [vmem:[%s507 + $0x1c0] sm:$0xff]
      %v609 = vld [vmem:[%s507 + $0x1c8] sm:$0xff]
      %v610 = vld [vmem:[%s507 + $0x1d0] sm:$0xff]
      %v611 = vld [vmem:[%s507 + $0x1d8] sm:$0xff]
      %v612 = vld [vmem:[%s507 + $0x1e0] sm:$0xff]
      %v613 = vld [vmem:[%s507 + $0x1e8] sm:$0xff]
      %v614 = vld [vmem:[%s507 + $0x1f0] sm:$0xff]
      %v615 = vld [vmem:[%s507 + $0x1f8] sm:$0xff]
      %v616 = vld [vmem:[%s507 + $0x200] sm:$0xff]
      %v617 = vld [vmem:[%s507 + $0x208] sm:$0xff]
      %v618 = vld [vmem:[%s507 + $0x210] sm:$0xff]
      %v619 = vld [vmem:[%s507 + $0x218] sm:$0xff]
      %v620 = vld [vmem:[%s507 + $0x220] sm:$0xff]
      %v621 = vld [vmem:[%s507 + $0x228] sm:$0xff]
      %v622 = vld [vmem:[%s507 + $0x230] sm:$0xff]
      %v623 = vld [vmem:[%s507 + $0x238] sm:$0xff]
      %v624 = vld [vmem:[%s507 + $0x240] sm:$0xff]
      %v625 = vld [vmem:[%s507 + $0x248] sm:$0xff]
      %v626 = vld [vmem:[%s507 + $0x250] sm:$0xff]
      %v627 = vld [vmem:[%s507 + $0x258] sm:$0xff]
      %v628 = vld [vmem:[%s507 + $0x260] sm:$0xff]
      %v629 = vld [vmem:[%s507 + $0x268] sm:$0xff]
      %v630 = vld [vmem:[%s507 + $0x270] sm:$0xff]
      %v631 = vld [vmem:[%s507 + $0x278] sm:$0xff]
      %v632 = vld [vmem:[%s507 + $0x280] sm:$0xff]
      %v633 = vld [vmem:[%s507 + $0x288] sm:$0xff]
      %v634 = vld [vmem:[%s507 + $0x290] sm:$0xff]
      %v635 = vld [vmem:[%s507 + $0x298] sm:$0xff]
      %v636 = vld [vmem:[%s507 + $0x2a0] sm:$0xff]
      %v637 = vld [vmem:[%s507 + $0x2a8] sm:$0xff]
      %v638 = vld [vmem:[%s507 + $0x2b0] sm:$0xff]
      %v639 = vld [vmem:[%s507 + $0x2b8] sm:$0xff]
      %v640 = vld [vmem:[%s507 + $0x2c0] sm:$0xff]
      %v641 = vld [vmem:[%s507 + $0x2c8] sm:$0xff]
      %v642 = vld [vmem:[%s507 + $0x2d0] sm:$0xff]
      %v643 = vld [vmem:[%s507 + $0x2d8] sm:$0xff]
      %v644 = vld [vmem:[%s507 + $0x2e0] sm:$0xff]
      %v645 = vld [vmem:[%s507 + $0x2e8] sm:$0xff]
      %v646 = vld [vmem:[%s507 + $0x2f0] sm:$0xff]
      %v647 = vld [vmem:[%s507 + $0x2f8] sm:$0xff]
      %v648 = vld [vmem:[%s507 + $0x300] sm:$0xff]
      %v649 = vld [vmem:[%s507 + $0x308] sm:$0xff]
      %v650 = vld [vmem:[%s507 + $0x310] sm:$0xff]
      %v651 = vld [vmem:[%s507 + $0x318] sm:$0xff]
      %v652 = vld [vmem:[%s507 + $0x320] sm:$0xff]
      %v653 = vld [vmem:[%s507 + $0x328] sm:$0xff]
      %v654 = vld [vmem:[%s507 + $0x330] sm:$0xff]
      %v655 = vld [vmem:[%s507 + $0x338] sm:$0xff]
      %v656 = vld [vmem:[%s507 + $0x340] sm:$0xff]
      %v657 = vld [vmem:[%s507 + $0x348] sm:$0xff]
      %v658 = vld [vmem:[%s507 + $0x350] sm:$0xff]
      %v659 = vld [vmem:[%s507 + $0x358] sm:$0xff]
      %v660 = vld [vmem:[%s507 + $0x360] sm:$0xff]
      %v661 = vld [vmem:[%s507 + $0x368] sm:$0xff]
      %v662 = vld [vmem:[%s507 + $0x370] sm:$0xff]
      %v663 = vld [vmem:[%s507 + $0x378] sm:$0xff]
      %v664 = vld [vmem:[%s507 + $0x380] sm:$0xff]
      %v665 = vld [vmem:[%s507 + $0x388] sm:$0xff]
      %v666 = vld [vmem:[%s507 + $0x390] sm:$0xff]
      %v667 = vld [vmem:[%s507 + $0x398] sm:$0xff]
      %v668 = vld [vmem:[%s507 + $0x3a0] sm:$0xff]
      %v669 = vld [vmem:[%s507 + $0x3a8] sm:$0xff]
      %v670 = vld [vmem:[%s507 + $0x3b0] sm:$0xff]
      %v671 = vld [vmem:[%s507 + $0x3b8] sm:$0xff]
      %v672 = vld [vmem:[%s507 + $0x3c0] sm:$0xff]
      %v673 = vld [vmem:[%s507 + $0x3c8] sm:$0xff]
      %v674 = vld [vmem:[%s507 + $0x3d0] sm:$0xff]
      %v675 = vld [vmem:[%s507 + $0x3d8] sm:$0xff]
      %v676 = vld [vmem:[%s507 + $0x3e0] sm:$0xff]
      %v677 = vld [vmem:[%s507 + $0x3e8] sm:$0xff]
      %v678 = vld [vmem:[%s507 + $0x3f0] sm:$0xff]
      %v679 = vld [vmem:[%s507 + $0x3f8] sm:$0xff]
      %v680 = vld [vmem:[%s507 + $0x400] sm:$0xff]
      %v681 = vld [vmem:[%s507 + $0x408] sm:$0xff]
      %v682 = vld [vmem:[%s507 + $0x410] sm:$0xff]
      %v683 = vld [vmem:[%s507 + $0x418] sm:$0xff]
      %v684 = vld [vmem:[%s507 + $0x420] sm:$0xff]
      %v685 = vld [vmem:[%s507 + $0x428] sm:$0xff]
      %v686 = vld [vmem:[%s507 + $0x430] sm:$0xff]
      %v687 = vld [vmem:[%s507 + $0x438] sm:$0xff]
      %v688 = vld [vmem:[%s507 + $0x440] sm:$0xff]
      %v689 = vld [vmem:[%s507 + $0x448] sm:$0xff]
      %v690 = vld [vmem:[%s507 + $0x450] sm:$0xff]
      %v691 = vld [vmem:[%s507 + $0x458] sm:$0xff]
      %v692 = vld [vmem:[%s507 + $0x460] sm:$0xff]
      %v693 = vld [vmem:[%s507 + $0x468] sm:$0xff]
      %v694 = vld [vmem:[%s507 + $0x470] sm:$0xff]
      %v695 = vld [vmem:[%s507 + $0x478] sm:$0xff]
      %v696 = vld [vmem:[%s507 + $0x480] sm:$0xff]
      %v697 = vld [vmem:[%s507 + $0x488] sm:$0xff]
      %v698 = vld [vmem:[%s507 + $0x490] sm:$0xff]
      %v699 = vld [vmem:[%s507 + $0x498] sm:$0xff]
      %v700 = vld [vmem:[%s507 + $0x4a0] sm:$0xff]
      %v701 = vld [vmem:[%s507 + $0x4a8] sm:$0xff]
      %v702 = vld [vmem:[%s507 + $0x4b0] sm:$0xff]
      %v703 = vld [vmem:[%s507 + $0x4b8] sm:$0xff]
      %v704 = vld [vmem:[%s507 + $0x4c0] sm:$0xff]
      %v705 = vld [vmem:[%s507 + $0x4c8] sm:$0xff]
      %v706 = vld [vmem:[%s507 + $0x4d0] sm:$0xff]
      %v707 = vld [vmem:[%s507 + $0x4d8] sm:$0xff]
      %v708 = vld [vmem:[%s507 + $0x4e0] sm:$0xff]
      %v709 = vld [vmem:[%s507 + $0x4e8] sm:$0xff]
      %v710 = vld [vmem:[%s507 + $0x4f0] sm:$0xff]
      %v711 = vld [vmem:[%s507 + $0x4f8] sm:$0xff]
      %v712 = vld [vmem:[%s507 + $0x500] sm:$0xff]
      %v713 = vld [vmem:[%s507 + $0x508] sm:$0xff]
      %v714 = vld [vmem:[%s507 + $0x510] sm:$0xff]
      %v715 = vld [vmem:[%s507 + $0x518] sm:$0xff]
      %v716 = vld [vmem:[%s507 + $0x520] sm:$0xff]
      %v717 = vld [vmem:[%s507 + $0x528] sm:$0xff]
      %v718 = vld [vmem:[%s507 + $0x530] sm:$0xff]
      %v719 = vld [vmem:[%s507 + $0x538] sm:$0xff]
      %v720 = vld [vmem:[%s507 + $0x540] sm:$0xff]
      %v721 = vld [vmem:[%s507 + $0x548] sm:$0xff]
      %v722 = vld [vmem:[%s507 + $0x550] sm:$0xff]
      %v723 = vld [vmem:[%s507 + $0x558] sm:$0xff]
      %v724 = vld [vmem:[%s507 + $0x560] sm:$0xff]
      %v725 = vld [vmem:[%s507 + $0x568] sm:$0xff]
      %v726 = vld [vmem:[%s507 + $0x570] sm:$0xff]
      %v727 = vld [vmem:[%s507 + $0x578] sm:$0xff]
      %v728 = vld [vmem:[%s507 + $0x580] sm:$0xff]
      %v729 = vld [vmem:[%s507 + $0x588] sm:$0xff]
      %v730 = vld [vmem:[%s507 + $0x590] sm:$0xff]
      %v731 = vld [vmem:[%s507 + $0x598] sm:$0xff]
      %v732 = vld [vmem:[%s507 + $0x5a0] sm:$0xff]
      %v733 = vld [vmem:[%s507 + $0x5a8] sm:$0xff]
      %v734 = vld [vmem:[%s507 + $0x5b0] sm:$0xff]
      %v735 = vld [vmem:[%s507 + $0x5b8] sm:$0xff]
      %v736 = vld [vmem:[%s507 + $0x5c0] sm:$0xff]
      %v737 = vld [vmem:[%s507 + $0x5c8] sm:$0xff]
      %v738 = vld [vmem:[%s507 + $0x5d0] sm:$0xff]
      %v739 = vld [vmem:[%s507 + $0x5d8] sm:$0xff]
      %v740 = vld [vmem:[%s507 + $0x5e0] sm:$0xff]
      %v741 = vld [vmem:[%s507 + $0x5e8] sm:$0xff]
      %v742 = vld [vmem:[%s507 + $0x5f0] sm:$0xff]
      %v743 = vld [vmem:[%s507 + $0x5f8] sm:$0xff]
      %v744 = vld [vmem:[%s512] sm:$0xff]
      %v745 = vld [vmem:[%s512 + $0x8] sm:$0xff]
      %v746 = vld [vmem:[%s512 + $0x10] sm:$0xff]
      %v747 = vld [vmem:[%s512 + $0x18] sm:$0xff]
      %v748 = vld [vmem:[%s512 + $0x20] sm:$0xff]
      %v749 = vld [vmem:[%s512 + $0x28] sm:$0xff]
      %v750 = vld [vmem:[%s512 + $0x30] sm:$0xff]
      %v751 = vld [vmem:[%s512 + $0x38] sm:$0xff]
      %v752 = vld [vmem:[%s512 + $0x40] sm:$0xff]
      %v753 = vld [vmem:[%s512 + $0x48] sm:$0xff]
      %v754 = vld [vmem:[%s512 + $0x50] sm:$0xff]
      %v755 = vld [vmem:[%s512 + $0x58] sm:$0xff]
      %v756 = vld [vmem:[%s512 + $0x60] sm:$0xff]
      %v757 = vld [vmem:[%s512 + $0x68] sm:$0xff]
      %v758 = vld [vmem:[%s512 + $0x70] sm:$0xff]
      %v759 = vld [vmem:[%s512 + $0x78] sm:$0xff]
      %v760 = vld [vmem:[%s512 + $0x80] sm:$0xff]
      %v761 = vld [vmem:[%s512 + $0x88] sm:$0xff]
      %v762 = vld [vmem:[%s512 + $0x90] sm:$0xff]
      %v763 = vld [vmem:[%s512 + $0x98] sm:$0xff]
      %v764 = vld [vmem:[%s512 + $0xa0] sm:$0xff]
      %v765 = vld [vmem:[%s512 + $0xa8] sm:$0xff]
      %v766 = vld [vmem:[%s512 + $0xb0] sm:$0xff]
      %v767 = vld [vmem:[%s512 + $0xb8] sm:$0xff]
      %v768 = vld [vmem:[%s512 + $0xc0] sm:$0xff]
      %v769 = vld [vmem:[%s512 + $0xc8] sm:$0xff]
      %v770 = vld [vmem:[%s512 + $0xd0] sm:$0xff]
      %v771 = vld [vmem:[%s512 + $0xd8] sm:$0xff]
      %v772 = vld [vmem:[%s512 + $0xe0] sm:$0xff]
      %v773 = vld [vmem:[%s512 + $0xe8] sm:$0xff]
      %v774 = vld [vmem:[%s512 + $0xf0] sm:$0xff]
      %v775 = vld [vmem:[%s512 + $0xf8] sm:$0xff]
      %v776 = vld [vmem:[%s512 + $0x100] sm:$0xff]
      %v777 = vld [vmem:[%s512 + $0x108] sm:$0xff]
      %v778 = vld [vmem:[%s512 + $0x110] sm:$0xff]
      %v779 = vld [vmem:[%s512 + $0x118] sm:$0xff]
      %v780 = vld [vmem:[%s512 + $0x120] sm:$0xff]
      %v781 = vld [vmem:[%s512 + $0x128] sm:$0xff]
      %v782 = vld [vmem:[%s512 + $0x130] sm:$0xff]
      %v783 = vld [vmem:[%s512 + $0x138] sm:$0xff]
      %v784 = vld [vmem:[%s512 + $0x140] sm:$0xff]
      %v785 = vld [vmem:[%s512 + $0x148] sm:$0xff]
      %v786 = vld [vmem:[%s512 + $0x150] sm:$0xff]
      %v787 = vld [vmem:[%s512 + $0x158] sm:$0xff]
      %v788 = vld [vmem:[%s512 + $0x160] sm:$0xff]
      %v789 = vld [vmem:[%s512 + $0x168] sm:$0xff]
      %v790 = vld [vmem:[%s512 + $0x170] sm:$0xff]
      %v791 = vld [vmem:[%s512 + $0x178] sm:$0xff]
      %v792 = vld [vmem:[%s512 + $0x180] sm:$0xff]
      %v793 = vld [vmem:[%s512 + $0x188] sm:$0xff]
      %v794 = vld [vmem:[%s512 + $0x190] sm:$0xff]
      %v795 = vld [vmem:[%s512 + $0x198] sm:$0xff]
      %v796 = vld [vmem:[%s512 + $0x1a0] sm:$0xff]
      %v797 = vld [vmem:[%s512 + $0x1a8] sm:$0xff]
      %v798 = vld [vmem:[%s512 + $0x1b0] sm:$0xff]
      %v799 = vld [vmem:[%s512 + $0x1b8] sm:$0xff]
      %v800 = vld [vmem:[%s512 + $0x1c0] sm:$0xff]
      %v801 = vld [vmem:[%s512 + $0x1c8] sm:$0xff]
      %v802 = vld [vmem:[%s512 + $0x1d0] sm:$0xff]
      %v803 = vld [vmem:[%s512 + $0x1d8] sm:$0xff]
      %v804 = vld [vmem:[%s512 + $0x1e0] sm:$0xff]
      %v805 = vld [vmem:[%s512 + $0x1e8] sm:$0xff]
      %v806 = vld [vmem:[%s512 + $0x1f0] sm:$0xff]
      %v807 = vld [vmem:[%s512 + $0x1f8] sm:$0xff]
      %v808 = vld [vmem:[%s512 + $0x200] sm:$0xff]
      %v809 = vld [vmem:[%s512 + $0x208] sm:$0xff]
      %v810 = vld [vmem:[%s512 + $0x210] sm:$0xff]
      %v811 = vld [vmem:[%s512 + $0x218] sm:$0xff]
      %v812 = vld [vmem:[%s512 + $0x220] sm:$0xff]
      %v813 = vld [vmem:[%s512 + $0x228] sm:$0xff]
      %v814 = vld [vmem:[%s512 + $0x230] sm:$0xff]
      %v815 = vld [vmem:[%s512 + $0x238] sm:$0xff]
      %v816 = vld [vmem:[%s512 + $0x240] sm:$0xff]
      %v817 = vld [vmem:[%s512 + $0x248] sm:$0xff]
      %v818 = vld [vmem:[%s512 + $0x250] sm:$0xff]
      %v819 = vld [vmem:[%s512 + $0x258] sm:$0xff]
      %v820 = vld [vmem:[%s512 + $0x260] sm:$0xff]
      %v821 = vld [vmem:[%s512 + $0x268] sm:$0xff]
      %v822 = vld [vmem:[%s512 + $0x270] sm:$0xff]
      %v823 = vld [vmem:[%s512 + $0x278] sm:$0xff]
      %v824 = vld [vmem:[%s512 + $0x280] sm:$0xff]
      %v825 = vld [vmem:[%s512 + $0x288] sm:$0xff]
      %v826 = vld [vmem:[%s512 + $0x290] sm:$0xff]
      %v827 = vld [vmem:[%s512 + $0x298] sm:$0xff]
      %v828 = vld [vmem:[%s512 + $0x2a0] sm:$0xff]
      %v829 = vld [vmem:[%s512 + $0x2a8] sm:$0xff]
      %v830 = vld [vmem:[%s512 + $0x2b0] sm:$0xff]
      %v831 = vld [vmem:[%s512 + $0x2b8] sm:$0xff]
      %v832 = vld [vmem:[%s512 + $0x2c0] sm:$0xff]
      %v833 = vld [vmem:[%s512 + $0x2c8] sm:$0xff]
      %v834 = vld [vmem:[%s512 + $0x2d0] sm:$0xff]
      %v835 = vld [vmem:[%s512 + $0x2d8] sm:$0xff]
      %v836 = vld [vmem:[%s512 + $0x2e0] sm:$0xff]
      %v837 = vld [vmem:[%s512 + $0x2e8] sm:$0xff]
      %v838 = vld [vmem:[%s512 + $0x2f0] sm:$0xff]
      %v839 = vld [vmem:[%s512 + $0x2f8] sm:$0xff]
      %v840 = vld [vmem:[%s512 + $0x300] sm:$0xff]
      %v841 = vld [vmem:[%s512 + $0x308] sm:$0xff]
      %v842 = vld [vmem:[%s512 + $0x310] sm:$0xff]
      %v843 = vld [vmem:[%s512 + $0x318] sm:$0xff]
      %v844 = vld [vmem:[%s512 + $0x320] sm:$0xff]
      %v845 = vld [vmem:[%s512 + $0x328] sm:$0xff]
      %v846 = vld [vmem:[%s512 + $0x330] sm:$0xff]
      %v847 = vld [vmem:[%s512 + $0x338] sm:$0xff]
      %v848 = vld [vmem:[%s512 + $0x340] sm:$0xff]
      %v849 = vld [vmem:[%s512 + $0x348] sm:$0xff]
      %v850 = vld [vmem:[%s512 + $0x350] sm:$0xff]
      %v851 = vld [vmem:[%s512 + $0x358] sm:$0xff]
      %v852 = vld [vmem:[%s512 + $0x360] sm:$0xff]
      %v853 = vld [vmem:[%s512 + $0x368] sm:$0xff]
      %v854 = vld [vmem:[%s512 + $0x370] sm:$0xff]
      %v855 = vld [vmem:[%s512 + $0x378] sm:$0xff]
      %v856 = vld [vmem:[%s512 + $0x380] sm:$0xff]
      %v857 = vld [vmem:[%s512 + $0x388] sm:$0xff]
      %v858 = vld [vmem:[%s512 + $0x390] sm:$0xff]
      %v859 = vld [vmem:[%s512 + $0x398] sm:$0xff]
      %v860 = vld [vmem:[%s512 + $0x3a0] sm:$0xff]
      %v861 = vld [vmem:[%s512 + $0x3a8] sm:$0xff]
      %v862 = vld [vmem:[%s512 + $0x3b0] sm:$0xff]
      %v863 = vld [vmem:[%s512 + $0x3b8] sm:$0xff]
      %v864 = vld [vmem:[%s512 + $0x3c0] sm:$0xff]
      %v865 = vld [vmem:[%s512 + $0x3c8] sm:$0xff]
      %v866 = vld [vmem:[%s512 + $0x3d0] sm:$0xff]
      %v867 = vld [vmem:[%s512 + $0x3d8] sm:$0xff]
      %v868 = vld [vmem:[%s512 + $0x3e0] sm:$0xff]
      %v869 = vld [vmem:[%s512 + $0x3e8] sm:$0xff]
      %v870 = vld [vmem:[%s512 + $0x3f0] sm:$0xff]
      %v871 = vld [vmem:[%s512 + $0x3f8] sm:$0xff]
      %v872 = vld [vmem:[%s512 + $0x400] sm:$0xff]
      %v873 = vld [vmem:[%s512 + $0x408] sm:$0xff]
      %v874 = vld [vmem:[%s512 + $0x410] sm:$0xff]
      %v875 = vld [vmem:[%s512 + $0x418] sm:$0xff]
      %v876 = vld [vmem:[%s512 + $0x420] sm:$0xff]
      %v877 = vld [vmem:[%s512 + $0x428] sm:$0xff]
      %v878 = vld [vmem:[%s512 + $0x430] sm:$0xff]
      %v879 = vld [vmem:[%s512 + $0x438] sm:$0xff]
      %v880 = vld [vmem:[%s512 + $0x440] sm:$0xff]
      %v881 = vld [vmem:[%s512 + $0x448] sm:$0xff]
      %v882 = vld [vmem:[%s512 + $0x450] sm:$0xff]
      %v883 = vld [vmem:[%s512 + $0x458] sm:$0xff]
      %v884 = vld [vmem:[%s512 + $0x460] sm:$0xff]
      %v885 = vld [vmem:[%s512 + $0x468] sm:$0xff]
      %v886 = vld [vmem:[%s512 + $0x470] sm:$0xff]
      %v887 = vld [vmem:[%s512 + $0x478] sm:$0xff]
      %v888 = vld [vmem:[%s512 + $0x480] sm:$0xff]
      %v889 = vld [vmem:[%s512 + $0x488] sm:$0xff]
      %v890 = vld [vmem:[%s512 + $0x490] sm:$0xff]
      %v891 = vld [vmem:[%s512 + $0x498] sm:$0xff]
      %v892 = vld [vmem:[%s512 + $0x4a0] sm:$0xff]
      %v893 = vld [vmem:[%s512 + $0x4a8] sm:$0xff]
      %v894 = vld [vmem:[%s512 + $0x4b0] sm:$0xff]
      %v895 = vld [vmem:[%s512 + $0x4b8] sm:$0xff]
      %v896 = vld [vmem:[%s512 + $0x4c0] sm:$0xff]
      %v897 = vld [vmem:[%s512 + $0x4c8] sm:$0xff]
      %v898 = vld [vmem:[%s512 + $0x4d0] sm:$0xff]
      %v899 = vld [vmem:[%s512 + $0x4d8] sm:$0xff]
      %v900 = vld [vmem:[%s512 + $0x4e0] sm:$0xff]
      %v901 = vld [vmem:[%s512 + $0x4e8] sm:$0xff]
      %v902 = vld [vmem:[%s512 + $0x4f0] sm:$0xff]
      %v903 = vld [vmem:[%s512 + $0x4f8] sm:$0xff]
      %v904 = vld [vmem:[%s512 + $0x500] sm:$0xff]
      %v905 = vld [vmem:[%s512 + $0x508] sm:$0xff]
      %v906 = vld [vmem:[%s512 + $0x510] sm:$0xff]
      %v907 = vld [vmem:[%s512 + $0x518] sm:$0xff]
      %v908 = vld [vmem:[%s512 + $0x520] sm:$0xff]
      %v909 = vld [vmem:[%s512 + $0x528] sm:$0xff]
      %v910 = vld [vmem:[%s512 + $0x530] sm:$0xff]
      %v911 = vld [vmem:[%s512 + $0x538] sm:$0xff]
      %v912 = vld [vmem:[%s512 + $0x540] sm:$0xff]
      %v913 = vld [vmem:[%s512 + $0x548] sm:$0xff]
      %v914 = vld [vmem:[%s512 + $0x550] sm:$0xff]
      %v915 = vld [vmem:[%s512 + $0x558] sm:$0xff]
      %v916 = vld [vmem:[%s512 + $0x560] sm:$0xff]
      %v917 = vld [vmem:[%s512 + $0x568] sm:$0xff]
      %v918 = vld [vmem:[%s512 + $0x570] sm:$0xff]
      %v919 = vld [vmem:[%s512 + $0x578] sm:$0xff]
      %v920 = vld [vmem:[%s512 + $0x580] sm:$0xff]
      %v921 = vld [vmem:[%s512 + $0x588] sm:$0xff]
      %v922 = vld [vmem:[%s512 + $0x590] sm:$0xff]
      %v923 = vld [vmem:[%s512 + $0x598] sm:$0xff]
      %v924 = vld [vmem:[%s512 + $0x5a0] sm:$0xff]
      %v925 = vld [vmem:[%s512 + $0x5a8] sm:$0xff]
      %v926 = vld [vmem:[%s512 + $0x5b0] sm:$0xff]
      %v927 = vld [vmem:[%s512 + $0x5b8] sm:$0xff]
      %v928 = vld [vmem:[%s512 + $0x5c0] sm:$0xff]
      %v929 = vld [vmem:[%s512 + $0x5c8] sm:$0xff]
      %v930 = vld [vmem:[%s512 + $0x5d0] sm:$0xff]
      %v931 = vld [vmem:[%s512 + $0x5d8] sm:$0xff]
      %v932 = vld [vmem:[%s512 + $0x5e0] sm:$0xff]
      %v933 = vld [vmem:[%s512 + $0x5e8] sm:$0xff]
      %v934 = vld [vmem:[%s512 + $0x5f0] sm:$0xff]
      %v935 = vld [vmem:[%s512 + $0x5f8] sm:$0xff]
      %v936 = vld [vmem:[%s516] sm:$0x3]
      %v938 = vperm.slane %v936, 0
      %v939 = vperm.slane %v936, 1
      %v1134 = vunpack.c.l.b16 %v552
      %v1135 = vunpack.c.h.b16 %v552
      %v1136 = vunpack.c.l.b16 %v553
      %v1137 = vunpack.c.h.b16 %v553
      %v1138 = vunpack.c.l.b16 %v554
      %v1139 = vunpack.c.h.b16 %v554
      %v1140 = vunpack.c.l.b16 %v555
      %v1141 = vunpack.c.h.b16 %v555
      %v1142 = vunpack.c.l.b16 %v556
      %v1143 = vunpack.c.h.b16 %v556
      %v1144 = vunpack.c.l.b16 %v557
      %v1145 = vunpack.c.h.b16 %v557
      %v1146 = vunpack.c.l.b16 %v558
      %v1147 = vunpack.c.h.b16 %v558
      %v1148 = vunpack.c.l.b16 %v559
      %v1149 = vunpack.c.h.b16 %v559
      %v1150 = vunpack.c.l.b16 %v560
      %v1151 = vunpack.c.h.b16 %v560
      %v1152 = vunpack.c.l.b16 %v561
      %v1153 = vunpack.c.h.b16 %v561
      %v1154 = vunpack.c.l.b16 %v562
      %v1155 = vunpack.c.h.b16 %v562
      %v1156 = vunpack.c.l.b16 %v563
      %v1157 = vunpack.c.h.b16 %v563
      %v1158 = vunpack.c.l.b16 %v564
      %v1159 = vunpack.c.h.b16 %v564
      %v1160 = vunpack.c.l.b16 %v565
      %v1161 = vunpack.c.h.b16 %v565
      %v1162 = vunpack.c.l.b16 %v566
      %v1163 = vunpack.c.h.b16 %v566
      %v1164 = vunpack.c.l.b16 %v567
      %v1165 = vunpack.c.h.b16 %v567
      %v1166 = vunpack.c.l.b16 %v568
      %v1167 = vunpack.c.h.b16 %v568
      %v1168 = vunpack.c.l.b16 %v569
      %v1169 = vunpack.c.h.b16 %v569
      %v1170 = vunpack.c.l.b16 %v570
      %v1171 = vunpack.c.h.b16 %v570
      %v1172 = vunpack.c.l.b16 %v571
      %v1173 = vunpack.c.h.b16 %v571
      %v1174 = vunpack.c.l.b16 %v572
      %v1175 = vunpack.c.h.b16 %v572
      %v1176 = vunpack.c.l.b16 %v573
      %v1177 = vunpack.c.h.b16 %v573
      %v1178 = vunpack.c.l.b16 %v574
      %v1179 = vunpack.c.h.b16 %v574
      %v1180 = vunpack.c.l.b16 %v575
      %v1181 = vunpack.c.h.b16 %v575
      %v1182 = vunpack.c.l.b16 %v576
      %v1183 = vunpack.c.h.b16 %v576
      %v1184 = vunpack.c.l.b16 %v577
      %v1185 = vunpack.c.h.b16 %v577
      %v1186 = vunpack.c.l.b16 %v578
      %v1187 = vunpack.c.h.b16 %v578
      %v1188 = vunpack.c.l.b16 %v579
      %v1189 = vunpack.c.h.b16 %v579
      %v1190 = vunpack.c.l.b16 %v580
      %v1191 = vunpack.c.h.b16 %v580
      %v1192 = vunpack.c.l.b16 %v581
      %v1193 = vunpack.c.h.b16 %v581
      %v1194 = vunpack.c.l.b16 %v582
      %v1195 = vunpack.c.h.b16 %v582
      %v1196 = vunpack.c.l.b16 %v583
      %v1197 = vunpack.c.h.b16 %v583
      %v1198 = vunpack.c.l.b16 %v584
      %v1199 = vunpack.c.h.b16 %v584
      %v1200 = vunpack.c.l.b16 %v585
      %v1201 = vunpack.c.h.b16 %v585
      %v1202 = vunpack.c.l.b16 %v586
      %v1203 = vunpack.c.h.b16 %v586
      %v1204 = vunpack.c.l.b16 %v587
      %v1205 = vunpack.c.h.b16 %v587
      %v1206 = vunpack.c.l.b16 %v588
      %v1207 = vunpack.c.h.b16 %v588
      %v1208 = vunpack.c.l.b16 %v589
      %v1209 = vunpack.c.h.b16 %v589
      %v1210 = vunpack.c.l.b16 %v590
      %v1211 = vunpack.c.h.b16 %v590
      %v1212 = vunpack.c.l.b16 %v591
      %v1213 = vunpack.c.h.b16 %v591
      %v1214 = vunpack.c.l.b16 %v592
      %v1215 = vunpack.c.h.b16 %v592
      %v1216 = vunpack.c.l.b16 %v593
      %v1217 = vunpack.c.h.b16 %v593
      %v1218 = vunpack.c.l.b16 %v594
      %v1219 = vunpack.c.h.b16 %v594
      %v1220 = vunpack.c.l.b16 %v595
      %v1221 = vunpack.c.h.b16 %v595
      %v1222 = vunpack.c.l.b16 %v596
      %v1223 = vunpack.c.h.b16 %v596
      %v1224 = vunpack.c.l.b16 %v597
      %v1225 = vunpack.c.h.b16 %v597
      %v1226 = vunpack.c.l.b16 %v598
      %v1227 = vunpack.c.h.b16 %v598
      %v1228 = vunpack.c.l.b16 %v599
      %v1229 = vunpack.c.h.b16 %v599
      %v1230 = vunpack.c.l.b16 %v600
      %v1231 = vunpack.c.h.b16 %v600
      %v1232 = vunpack.c.l.b16 %v601
      %v1233 = vunpack.c.h.b16 %v601
      %v1234 = vunpack.c.l.b16 %v602
      %v1235 = vunpack.c.h.b16 %v602
      %v1236 = vunpack.c.l.b16 %v603
      %v1237 = vunpack.c.h.b16 %v603
      %v1238 = vunpack.c.l.b16 %v604
      %v1239 = vunpack.c.h.b16 %v604
      %v1240 = vunpack.c.l.b16 %v605
      %v1241 = vunpack.c.h.b16 %v605
      %v1242 = vunpack.c.l.b16 %v606
      %v1243 = vunpack.c.h.b16 %v606
      %v1244 = vunpack.c.l.b16 %v607
      %v1245 = vunpack.c.h.b16 %v607
      %v1246 = vunpack.c.l.b16 %v608
      %v1247 = vunpack.c.h.b16 %v608
      %v1248 = vunpack.c.l.b16 %v609
      %v1249 = vunpack.c.h.b16 %v609
      %v1250 = vunpack.c.l.b16 %v610
      %v1251 = vunpack.c.h.b16 %v610
      %v1252 = vunpack.c.l.b16 %v611
      %v1253 = vunpack.c.h.b16 %v611
      %v1254 = vunpack.c.l.b16 %v612
      %v1255 = vunpack.c.h.b16 %v612
      %v1256 = vunpack.c.l.b16 %v613
      %v1257 = vunpack.c.h.b16 %v613
      %v1258 = vunpack.c.l.b16 %v614
      %v1259 = vunpack.c.h.b16 %v614
      %v1260 = vunpack.c.l.b16 %v615
      %v1261 = vunpack.c.h.b16 %v615
      %v1262 = vunpack.c.l.b16 %v616
      %v1263 = vunpack.c.h.b16 %v616
      %v1264 = vunpack.c.l.b16 %v617
      %v1265 = vunpack.c.h.b16 %v617
      %v1266 = vunpack.c.l.b16 %v618
      %v1267 = vunpack.c.h.b16 %v618
      %v1268 = vunpack.c.l.b16 %v619
      %v1269 = vunpack.c.h.b16 %v619
      %v1270 = vunpack.c.l.b16 %v620
      %v1271 = vunpack.c.h.b16 %v620
      %v1272 = vunpack.c.l.b16 %v621
      %v1273 = vunpack.c.h.b16 %v621
      %v1274 = vunpack.c.l.b16 %v622
      %v1275 = vunpack.c.h.b16 %v622
      %v1276 = vunpack.c.l.b16 %v623
      %v1277 = vunpack.c.h.b16 %v623
      %v1278 = vunpack.c.l.b16 %v624
      %v1279 = vunpack.c.h.b16 %v624
      %v1280 = vunpack.c.l.b16 %v625
      %v1281 = vunpack.c.h.b16 %v625
      %v1282 = vunpack.c.l.b16 %v626
      %v1283 = vunpack.c.h.b16 %v626
      %v1284 = vunpack.c.l.b16 %v627
      %v1285 = vunpack.c.h.b16 %v627
      %v1286 = vunpack.c.l.b16 %v628
      %v1287 = vunpack.c.h.b16 %v628
      %v1288 = vunpack.c.l.b16 %v629
      %v1289 = vunpack.c.h.b16 %v629
      %v1290 = vunpack.c.l.b16 %v630
      %v1291 = vunpack.c.h.b16 %v630
      %v1292 = vunpack.c.l.b16 %v631
      %v1293 = vunpack.c.h.b16 %v631
      %v1294 = vunpack.c.l.b16 %v632
      %v1295 = vunpack.c.h.b16 %v632
      %v1296 = vunpack.c.l.b16 %v633
      %v1297 = vunpack.c.h.b16 %v633
      %v1298 = vunpack.c.l.b16 %v634
      %v1299 = vunpack.c.h.b16 %v634
      %v1300 = vunpack.c.l.b16 %v635
      %v1301 = vunpack.c.h.b16 %v635
      %v1302 = vunpack.c.l.b16 %v636
      %v1303 = vunpack.c.h.b16 %v636
      %v1304 = vunpack.c.l.b16 %v637
      %v1305 = vunpack.c.h.b16 %v637
      %v1306 = vunpack.c.l.b16 %v638
      %v1307 = vunpack.c.h.b16 %v638
      %v1308 = vunpack.c.l.b16 %v639
      %v1309 = vunpack.c.h.b16 %v639
      %v1310 = vunpack.c.l.b16 %v640
      %v1311 = vunpack.c.h.b16 %v640
      %v1312 = vunpack.c.l.b16 %v641
      %v1313 = vunpack.c.h.b16 %v641
      %v1314 = vunpack.c.l.b16 %v642
      %v1315 = vunpack.c.h.b16 %v642
      %v1316 = vunpack.c.l.b16 %v643
      %v1317 = vunpack.c.h.b16 %v643
      %v1318 = vunpack.c.l.b16 %v644
      %v1319 = vunpack.c.h.b16 %v644
      %v1320 = vunpack.c.l.b16 %v645
      %v1321 = vunpack.c.h.b16 %v645
      %v1322 = vunpack.c.l.b16 %v646
      %v1323 = vunpack.c.h.b16 %v646
      %v1324 = vunpack.c.l.b16 %v647
      %v1325 = vunpack.c.h.b16 %v647
      %v1326 = vunpack.c.l.b16 %v648
      %v1327 = vunpack.c.h.b16 %v648
      %v1328 = vunpack.c.l.b16 %v649
      %v1329 = vunpack.c.h.b16 %v649
      %v1330 = vunpack.c.l.b16 %v650
      %v1331 = vunpack.c.h.b16 %v650
      %v1332 = vunpack.c.l.b16 %v651
      %v1333 = vunpack.c.h.b16 %v651
      %v1334 = vunpack.c.l.b16 %v652
      %v1335 = vunpack.c.h.b16 %v652
      %v1336 = vunpack.c.l.b16 %v653
      %v1337 = vunpack.c.h.b16 %v653
      %v1338 = vunpack.c.l.b16 %v654
      %v1339 = vunpack.c.h.b16 %v654
      %v1340 = vunpack.c.l.b16 %v655
      %v1341 = vunpack.c.h.b16 %v655
      %v1342 = vunpack.c.l.b16 %v656
      %v1343 = vunpack.c.h.b16 %v656
      %v1344 = vunpack.c.l.b16 %v657
      %v1345 = vunpack.c.h.b16 %v657
      %v1346 = vunpack.c.l.b16 %v658
      %v1347 = vunpack.c.h.b16 %v658
      %v1348 = vunpack.c.l.b16 %v659
      %v1349 = vunpack.c.h.b16 %v659
      %v1350 = vunpack.c.l.b16 %v660
      %v1351 = vunpack.c.h.b16 %v660
      %v1352 = vunpack.c.l.b16 %v661
      %v1353 = vunpack.c.h.b16 %v661
      %v1354 = vunpack.c.l.b16 %v662
      %v1355 = vunpack.c.h.b16 %v662
      %v1356 = vunpack.c.l.b16 %v663
      %v1357 = vunpack.c.h.b16 %v663
      %v1358 = vunpack.c.l.b16 %v664
      %v1359 = vunpack.c.h.b16 %v664
      %v1360 = vunpack.c.l.b16 %v665
      %v1361 = vunpack.c.h.b16 %v665
      %v1362 = vunpack.c.l.b16 %v666
      %v1363 = vunpack.c.h.b16 %v666
      %v1364 = vunpack.c.l.b16 %v667
      %v1365 = vunpack.c.h.b16 %v667
      %v1366 = vunpack.c.l.b16 %v668
      %v1367 = vunpack.c.h.b16 %v668
      %v1368 = vunpack.c.l.b16 %v669
      %v1369 = vunpack.c.h.b16 %v669
      %v1370 = vunpack.c.l.b16 %v670
      %v1371 = vunpack.c.h.b16 %v670
      %v1372 = vunpack.c.l.b16 %v671
      %v1373 = vunpack.c.h.b16 %v671
      %v1374 = vunpack.c.l.b16 %v672
      %v1375 = vunpack.c.h.b16 %v672
      %v1376 = vunpack.c.l.b16 %v673
      %v1377 = vunpack.c.h.b16 %v673
      %v1378 = vunpack.c.l.b16 %v674
      %v1379 = vunpack.c.h.b16 %v674
      %v1380 = vunpack.c.l.b16 %v675
      %v1381 = vunpack.c.h.b16 %v675
      %v1382 = vunpack.c.l.b16 %v676
      %v1383 = vunpack.c.h.b16 %v676
      %v1384 = vunpack.c.l.b16 %v677
      %v1385 = vunpack.c.h.b16 %v677
      %v1386 = vunpack.c.l.b16 %v678
      %v1387 = vunpack.c.h.b16 %v678
      %v1388 = vunpack.c.l.b16 %v679
      %v1389 = vunpack.c.h.b16 %v679
      %v1390 = vunpack.c.l.b16 %v680
      %v1391 = vunpack.c.h.b16 %v680
      %v1392 = vunpack.c.l.b16 %v681
      %v1393 = vunpack.c.h.b16 %v681
      %v1394 = vunpack.c.l.b16 %v682
      %v1395 = vunpack.c.h.b16 %v682
      %v1396 = vunpack.c.l.b16 %v683
      %v1397 = vunpack.c.h.b16 %v683
      %v1398 = vunpack.c.l.b16 %v684
      %v1399 = vunpack.c.h.b16 %v684
      %v1400 = vunpack.c.l.b16 %v685
      %v1401 = vunpack.c.h.b16 %v685
      %v1402 = vunpack.c.l.b16 %v686
      %v1403 = vunpack.c.h.b16 %v686
      %v1404 = vunpack.c.l.b16 %v687
      %v1405 = vunpack.c.h.b16 %v687
      %v1406 = vunpack.c.l.b16 %v688
      %v1407 = vunpack.c.h.b16 %v688
      %v1408 = vunpack.c.l.b16 %v689
      %v1409 = vunpack.c.h.b16 %v689
      %v1410 = vunpack.c.l.b16 %v690
      %v1411 = vunpack.c.h.b16 %v690
      %v1412 = vunpack.c.l.b16 %v691
      %v1413 = vunpack.c.h.b16 %v691
      %v1414 = vunpack.c.l.b16 %v692
      %v1415 = vunpack.c.h.b16 %v692
      %v1416 = vunpack.c.l.b16 %v693
      %v1417 = vunpack.c.h.b16 %v693
      %v1418 = vunpack.c.l.b16 %v694
      %v1419 = vunpack.c.h.b16 %v694
      %v1420 = vunpack.c.l.b16 %v695
      %v1421 = vunpack.c.h.b16 %v695
      %v1422 = vunpack.c.l.b16 %v696
      %v1423 = vunpack.c.h.b16 %v696
      %v1424 = vunpack.c.l.b16 %v697
      %v1425 = vunpack.c.h.b16 %v697
      %v1426 = vunpack.c.l.b16 %v698
      %v1427 = vunpack.c.h.b16 %v698
      %v1428 = vunpack.c.l.b16 %v699
      %v1429 = vunpack.c.h.b16 %v699
      %v1430 = vunpack.c.l.b16 %v700
      %v1431 = vunpack.c.h.b16 %v700
      %v1432 = vunpack.c.l.b16 %v701
      %v1433 = vunpack.c.h.b16 %v701
      %v1434 = vunpack.c.l.b16 %v702
      %v1435 = vunpack.c.h.b16 %v702
      %v1436 = vunpack.c.l.b16 %v703
      %v1437 = vunpack.c.h.b16 %v703
      %v1438 = vunpack.c.l.b16 %v704
      %v1439 = vunpack.c.h.b16 %v704
      %v1440 = vunpack.c.l.b16 %v705
      %v1441 = vunpack.c.h.b16 %v705
      %v1442 = vunpack.c.l.b16 %v706
      %v1443 = vunpack.c.h.b16 %v706
      %v1444 = vunpack.c.l.b16 %v707
      %v1445 = vunpack.c.h.b16 %v707
      %v1446 = vunpack.c.l.b16 %v708
      %v1447 = vunpack.c.h.b16 %v708
      %v1448 = vunpack.c.l.b16 %v709
      %v1449 = vunpack.c.h.b16 %v709
      %v1450 = vunpack.c.l.b16 %v710
      %v1451 = vunpack.c.h.b16 %v710
      %v1452 = vunpack.c.l.b16 %v711
      %v1453 = vunpack.c.h.b16 %v711
      %v1454 = vunpack.c.l.b16 %v712
      %v1455 = vunpack.c.h.b16 %v712
      %v1456 = vunpack.c.l.b16 %v713
      %v1457 = vunpack.c.h.b16 %v713
      %v1458 = vunpack.c.l.b16 %v714
      %v1459 = vunpack.c.h.b16 %v714
      %v1460 = vunpack.c.l.b16 %v715
      %v1461 = vunpack.c.h.b16 %v715
      %v1462 = vunpack.c.l.b16 %v716
      %v1463 = vunpack.c.h.b16 %v716
      %v1464 = vunpack.c.l.b16 %v717
      %v1465 = vunpack.c.h.b16 %v717
      %v1466 = vunpack.c.l.b16 %v718
      %v1467 = vunpack.c.h.b16 %v718
      %v1468 = vunpack.c.l.b16 %v719
      %v1469 = vunpack.c.h.b16 %v719
      %v1470 = vunpack.c.l.b16 %v720
      %v1471 = vunpack.c.h.b16 %v720
      %v1472 = vunpack.c.l.b16 %v721
      %v1473 = vunpack.c.h.b16 %v721
      %v1474 = vunpack.c.l.b16 %v722
      %v1475 = vunpack.c.h.b16 %v722
      %v1476 = vunpack.c.l.b16 %v723
      %v1477 = vunpack.c.h.b16 %v723
      %v1478 = vunpack.c.l.b16 %v724
      %v1479 = vunpack.c.h.b16 %v724
      %v1480 = vunpack.c.l.b16 %v725
      %v1481 = vunpack.c.h.b16 %v725
      %v1482 = vunpack.c.l.b16 %v726
      %v1483 = vunpack.c.h.b16 %v726
      %v1484 = vunpack.c.l.b16 %v727
      %v1485 = vunpack.c.h.b16 %v727
      %v1486 = vunpack.c.l.b16 %v728
      %v1487 = vunpack.c.h.b16 %v728
      %v1488 = vunpack.c.l.b16 %v729
      %v1489 = vunpack.c.h.b16 %v729
      %v1490 = vunpack.c.l.b16 %v730
      %v1491 = vunpack.c.h.b16 %v730
      %v1492 = vunpack.c.l.b16 %v731
      %v1493 = vunpack.c.h.b16 %v731
      %v1494 = vunpack.c.l.b16 %v732
      %v1495 = vunpack.c.h.b16 %v732
      %v1496 = vunpack.c.l.b16 %v733
      %v1497 = vunpack.c.h.b16 %v733
      %v1498 = vunpack.c.l.b16 %v734
      %v1499 = vunpack.c.h.b16 %v734
      %v1500 = vunpack.c.l.b16 %v735
      %v1501 = vunpack.c.h.b16 %v735
      %v1502 = vunpack.c.l.b16 %v736
      %v1503 = vunpack.c.h.b16 %v736
      %v1504 = vunpack.c.l.b16 %v737
      %v1505 = vunpack.c.h.b16 %v737
      %v1506 = vunpack.c.l.b16 %v738
      %v1507 = vunpack.c.h.b16 %v738
      %v1508 = vunpack.c.l.b16 %v739
      %v1509 = vunpack.c.h.b16 %v739
      %v1510 = vunpack.c.l.b16 %v740
      %v1511 = vunpack.c.h.b16 %v740
      %v1512 = vunpack.c.l.b16 %v741
      %v1513 = vunpack.c.h.b16 %v741
      %v1514 = vunpack.c.l.b16 %v742
      %v1515 = vunpack.c.h.b16 %v742
      %v1516 = vunpack.c.l.b16 %v743
      %v1517 = vunpack.c.h.b16 %v743
      %v1518 = vpack.c.b16 %v1146, %v1134
      %v1519 = vpack.c.b16 %v1147, %v1135
      %v1520 = vpack.c.b16 %v1148, %v1136
      %v1521 = vpack.c.b16 %v1149, %v1137
      %v1522 = vpack.c.b16 %v1150, %v1138
      %v1523 = vpack.c.b16 %v1151, %v1139
      %v1524 = vpack.c.b16 %v1152, %v1140
      %v1525 = vpack.c.b16 %v1153, %v1141
      %v1526 = vpack.c.b16 %v1154, %v1142
      %v1527 = vpack.c.b16 %v1155, %v1143
      %v1528 = vpack.c.b16 %v1156, %v1144
      %v1529 = vpack.c.b16 %v1157, %v1145
      %v1530 = vpack.c.b16 %v1170, %v1158
      %v1531 = vpack.c.b16 %v1171, %v1159
      %v1532 = vpack.c.b16 %v1172, %v1160
      %v1533 = vpack.c.b16 %v1173, %v1161
      %v1534 = vpack.c.b16 %v1174, %v1162
      %v1535 = vpack.c.b16 %v1175, %v1163
      %v1536 = vpack.c.b16 %v1176, %v1164
      %v1537 = vpack.c.b16 %v1177, %v1165
      %v1538 = vpack.c.b16 %v1178, %v1166
      %v1539 = vpack.c.b16 %v1179, %v1167
      %v1540 = vpack.c.b16 %v1180, %v1168
      %v1541 = vpack.c.b16 %v1181, %v1169
      %v1542 = vpack.c.b16 %v1194, %v1182
      %v1543 = vpack.c.b16 %v1195, %v1183
      %v1544 = vpack.c.b16 %v1196, %v1184
      %v1545 = vpack.c.b16 %v1197, %v1185
      %v1546 = vpack.c.b16 %v1198, %v1186
      %v1547 = vpack.c.b16 %v1199, %v1187
      %v1548 = vpack.c.b16 %v1200, %v1188
      %v1549 = vpack.c.b16 %v1201, %v1189
      %v1550 = vpack.c.b16 %v1202, %v1190
      %v1551 = vpack.c.b16 %v1203, %v1191
      %v1552 = vpack.c.b16 %v1204, %v1192
      %v1553 = vpack.c.b16 %v1205, %v1193
      %v1554 = vpack.c.b16 %v1218, %v1206
      %v1555 = vpack.c.b16 %v1219, %v1207
      %v1556 = vpack.c.b16 %v1220, %v1208
      %v1557 = vpack.c.b16 %v1221, %v1209
      %v1558 = vpack.c.b16 %v1222, %v1210
      %v1559 = vpack.c.b16 %v1223, %v1211
      %v1560 = vpack.c.b16 %v1224, %v1212
      %v1561 = vpack.c.b16 %v1225, %v1213
      %v1562 = vpack.c.b16 %v1226, %v1214
      %v1563 = vpack.c.b16 %v1227, %v1215
      %v1564 = vpack.c.b16 %v1228, %v1216
      %v1565 = vpack.c.b16 %v1229, %v1217
      %v1566 = vpack.c.b16 %v1242, %v1230
      %v1567 = vpack.c.b16 %v1243, %v1231
      %v1568 = vpack.c.b16 %v1244, %v1232
      %v1569 = vpack.c.b16 %v1245, %v1233
      %v1570 = vpack.c.b16 %v1246, %v1234
      %v1571 = vpack.c.b16 %v1247, %v1235
      %v1572 = vpack.c.b16 %v1248, %v1236
      %v1573 = vpack.c.b16 %v1249, %v1237
      %v1574 = vpack.c.b16 %v1250, %v1238
      %v1575 = vpack.c.b16 %v1251, %v1239
      %v1576 = vpack.c.b16 %v1252, %v1240
      %v1577 = vpack.c.b16 %v1253, %v1241
      %v1578 = vpack.c.b16 %v1266, %v1254
      %v1579 = vpack.c.b16 %v1267, %v1255
      %v1580 = vpack.c.b16 %v1268, %v1256
      %v1581 = vpack.c.b16 %v1269, %v1257
      %v1582 = vpack.c.b16 %v1270, %v1258
      %v1583 = vpack.c.b16 %v1271, %v1259
      %v1584 = vpack.c.b16 %v1272, %v1260
      %v1585 = vpack.c.b16 %v1273, %v1261
      %v1586 = vpack.c.b16 %v1274, %v1262
      %v1587 = vpack.c.b16 %v1275, %v1263
      %v1588 = vpack.c.b16 %v1276, %v1264
      %v1589 = vpack.c.b16 %v1277, %v1265
      %v1590 = vpack.c.b16 %v1290, %v1278
      %v1591 = vpack.c.b16 %v1291, %v1279
      %v1592 = vpack.c.b16 %v1292, %v1280
      %v1593 = vpack.c.b16 %v1293, %v1281
      %v1594 = vpack.c.b16 %v1294, %v1282
      %v1595 = vpack.c.b16 %v1295, %v1283
      %v1596 = vpack.c.b16 %v1296, %v1284
      %v1597 = vpack.c.b16 %v1297, %v1285
      %v1598 = vpack.c.b16 %v1298, %v1286
      %v1599 = vpack.c.b16 %v1299, %v1287
      %v1600 = vpack.c.b16 %v1300, %v1288
      %v1601 = vpack.c.b16 %v1301, %v1289
      %v1602 = vpack.c.b16 %v1314, %v1302
      %v1603 = vpack.c.b16 %v1315, %v1303
      %v1604 = vpack.c.b16 %v1316, %v1304
      %v1605 = vpack.c.b16 %v1317, %v1305
      %v1606 = vpack.c.b16 %v1318, %v1306
      %v1607 = vpack.c.b16 %v1319, %v1307
      %v1608 = vpack.c.b16 %v1320, %v1308
      %v1609 = vpack.c.b16 %v1321, %v1309
      %v1610 = vpack.c.b16 %v1322, %v1310
      %v1611 = vpack.c.b16 %v1323, %v1311
      %v1612 = vpack.c.b16 %v1324, %v1312
      %v1613 = vpack.c.b16 %v1325, %v1313
      %v1614 = vpack.c.b16 %v1338, %v1326
      %v1615 = vpack.c.b16 %v1339, %v1327
      %v1616 = vpack.c.b16 %v1340, %v1328
      %v1617 = vpack.c.b16 %v1341, %v1329
      %v1618 = vpack.c.b16 %v1342, %v1330
      %v1619 = vpack.c.b16 %v1343, %v1331
      %v1620 = vpack.c.b16 %v1344, %v1332
      %v1621 = vpack.c.b16 %v1345, %v1333
      %v1622 = vpack.c.b16 %v1346, %v1334
      %v1623 = vpack.c.b16 %v1347, %v1335
      %v1624 = vpack.c.b16 %v1348, %v1336
      %v1625 = vpack.c.b16 %v1349, %v1337
      %v1626 = vpack.c.b16 %v1362, %v1350
      %v1627 = vpack.c.b16 %v1363, %v1351
      %v1628 = vpack.c.b16 %v1364, %v1352
      %v1629 = vpack.c.b16 %v1365, %v1353
      %v1630 = vpack.c.b16 %v1366, %v1354
      %v1631 = vpack.c.b16 %v1367, %v1355
      %v1632 = vpack.c.b16 %v1368, %v1356
      %v1633 = vpack.c.b16 %v1369, %v1357
      %v1634 = vpack.c.b16 %v1370, %v1358
      %v1635 = vpack.c.b16 %v1371, %v1359
      %v1636 = vpack.c.b16 %v1372, %v1360
      %v1637 = vpack.c.b16 %v1373, %v1361
      %v1638 = vpack.c.b16 %v1386, %v1374
      %v1639 = vpack.c.b16 %v1387, %v1375
      %v1640 = vpack.c.b16 %v1388, %v1376
      %v1641 = vpack.c.b16 %v1389, %v1377
      %v1642 = vpack.c.b16 %v1390, %v1378
      %v1643 = vpack.c.b16 %v1391, %v1379
      %v1644 = vpack.c.b16 %v1392, %v1380
      %v1645 = vpack.c.b16 %v1393, %v1381
      %v1646 = vpack.c.b16 %v1394, %v1382
      %v1647 = vpack.c.b16 %v1395, %v1383
      %v1648 = vpack.c.b16 %v1396, %v1384
      %v1649 = vpack.c.b16 %v1397, %v1385
      %v1650 = vpack.c.b16 %v1410, %v1398
      %v1651 = vpack.c.b16 %v1411, %v1399
      %v1652 = vpack.c.b16 %v1412, %v1400
      %v1653 = vpack.c.b16 %v1413, %v1401
      %v1654 = vpack.c.b16 %v1414, %v1402
      %v1655 = vpack.c.b16 %v1415, %v1403
      %v1656 = vpack.c.b16 %v1416, %v1404
      %v1657 = vpack.c.b16 %v1417, %v1405
      %v1658 = vpack.c.b16 %v1418, %v1406
      %v1659 = vpack.c.b16 %v1419, %v1407
      %v1660 = vpack.c.b16 %v1420, %v1408
      %v1661 = vpack.c.b16 %v1421, %v1409
      %v1662 = vpack.c.b16 %v1434, %v1422
      %v1663 = vpack.c.b16 %v1435, %v1423
      %v1664 = vpack.c.b16 %v1436, %v1424
      %v1665 = vpack.c.b16 %v1437, %v1425
      %v1666 = vpack.c.b16 %v1438, %v1426
      %v1667 = vpack.c.b16 %v1439, %v1427
      %v1668 = vpack.c.b16 %v1440, %v1428
      %v1669 = vpack.c.b16 %v1441, %v1429
      %v1670 = vpack.c.b16 %v1442, %v1430
      %v1671 = vpack.c.b16 %v1443, %v1431
      %v1672 = vpack.c.b16 %v1444, %v1432
      %v1673 = vpack.c.b16 %v1445, %v1433
      %v1674 = vpack.c.b16 %v1458, %v1446
      %v1675 = vpack.c.b16 %v1459, %v1447
      %v1676 = vpack.c.b16 %v1460, %v1448
      %v1677 = vpack.c.b16 %v1461, %v1449
      %v1678 = vpack.c.b16 %v1462, %v1450
      %v1679 = vpack.c.b16 %v1463, %v1451
      %v1680 = vpack.c.b16 %v1464, %v1452
      %v1681 = vpack.c.b16 %v1465, %v1453
      %v1682 = vpack.c.b16 %v1466, %v1454
      %v1683 = vpack.c.b16 %v1467, %v1455
      %v1684 = vpack.c.b16 %v1468, %v1456
      %v1685 = vpack.c.b16 %v1469, %v1457
      %v1686 = vpack.c.b16 %v1482, %v1470
      %v1687 = vpack.c.b16 %v1483, %v1471
      %v1688 = vpack.c.b16 %v1484, %v1472
      %v1689 = vpack.c.b16 %v1485, %v1473
      %v1690 = vpack.c.b16 %v1486, %v1474
      %v1691 = vpack.c.b16 %v1487, %v1475
      %v1692 = vpack.c.b16 %v1488, %v1476
      %v1693 = vpack.c.b16 %v1489, %v1477
      %v1694 = vpack.c.b16 %v1490, %v1478
      %v1695 = vpack.c.b16 %v1491, %v1479
      %v1696 = vpack.c.b16 %v1492, %v1480
      %v1697 = vpack.c.b16 %v1493, %v1481
      %v1698 = vpack.c.b16 %v1506, %v1494
      %v1699 = vpack.c.b16 %v1507, %v1495
      %v1700 = vpack.c.b16 %v1508, %v1496
      %v1701 = vpack.c.b16 %v1509, %v1497
      %v1702 = vpack.c.b16 %v1510, %v1498
      %v1703 = vpack.c.b16 %v1511, %v1499
      %v1704 = vpack.c.b16 %v1512, %v1500
      %v1705 = vpack.c.b16 %v1513, %v1501
      %v1706 = vpack.c.b16 %v1514, %v1502
      %v1707 = vpack.c.b16 %v1515, %v1503
      %v1708 = vpack.c.b16 %v1516, %v1504
      %v1709 = vpack.c.b16 %v1517, %v1505
      %v2094 = vunpack.c.l.b16 %v744
      %v2095 = vunpack.c.h.b16 %v744
      %v2096 = vunpack.c.l.b16 %v745
      %v2097 = vunpack.c.h.b16 %v745
      %v2098 = vunpack.c.l.b16 %v746
      %v2099 = vunpack.c.h.b16 %v746
      %v2100 = vunpack.c.l.b16 %v747
      %v2101 = vunpack.c.h.b16 %v747
      %v2102 = vunpack.c.l.b16 %v748
      %v2103 = vunpack.c.h.b16 %v748
      %v2104 = vunpack.c.l.b16 %v749
      %v2105 = vunpack.c.h.b16 %v749
      %v2106 = vunpack.c.l.b16 %v750
      %v2107 = vunpack.c.h.b16 %v750
      %v2108 = vunpack.c.l.b16 %v751
      %v2109 = vunpack.c.h.b16 %v751
      %v2110 = vunpack.c.l.b16 %v752
      %v2111 = vunpack.c.h.b16 %v752
      %v2112 = vunpack.c.l.b16 %v753
      %v2113 = vunpack.c.h.b16 %v753
      %v2114 = vunpack.c.l.b16 %v754
      %v2115 = vunpack.c.h.b16 %v754
      %v2116 = vunpack.c.l.b16 %v755
      %v2117 = vunpack.c.h.b16 %v755
      %v2118 = vunpack.c.l.b16 %v756
      %v2119 = vunpack.c.h.b16 %v756
      %v2120 = vunpack.c.l.b16 %v757
      %v2121 = vunpack.c.h.b16 %v757
      %v2122 = vunpack.c.l.b16 %v758
      %v2123 = vunpack.c.h.b16 %v758
      %v2124 = vunpack.c.l.b16 %v759
      %v2125 = vunpack.c.h.b16 %v759
      %v2126 = vunpack.c.l.b16 %v760
      %v2127 = vunpack.c.h.b16 %v760
      %v2128 = vunpack.c.l.b16 %v761
      %v2129 = vunpack.c.h.b16 %v761
      %v2130 = vunpack.c.l.b16 %v762
      %v2131 = vunpack.c.h.b16 %v762
      %v2132 = vunpack.c.l.b16 %v763
      %v2133 = vunpack.c.h.b16 %v763
      %v2134 = vunpack.c.l.b16 %v764
      %v2135 = vunpack.c.h.b16 %v764
      %v2136 = vunpack.c.l.b16 %v765
      %v2137 = vunpack.c.h.b16 %v765
      %v2138 = vunpack.c.l.b16 %v766
      %v2139 = vunpack.c.h.b16 %v766
      %v2140 = vunpack.c.l.b16 %v767
      %v2141 = vunpack.c.h.b16 %v767
      %v2142 = vunpack.c.l.b16 %v768
      %v2143 = vunpack.c.h.b16 %v768
      %v2144 = vunpack.c.l.b16 %v769
      %v2145 = vunpack.c.h.b16 %v769
      %v2146 = vunpack.c.l.b16 %v770
      %v2147 = vunpack.c.h.b16 %v770
      %v2148 = vunpack.c.l.b16 %v771
      %v2149 = vunpack.c.h.b16 %v771
      %v2150 = vunpack.c.l.b16 %v772
      %v2151 = vunpack.c.h.b16 %v772
      %v2152 = vunpack.c.l.b16 %v773
      %v2153 = vunpack.c.h.b16 %v773
      %v2154 = vunpack.c.l.b16 %v774
      %v2155 = vunpack.c.h.b16 %v774
      %v2156 = vunpack.c.l.b16 %v775
      %v2157 = vunpack.c.h.b16 %v775
      %v2158 = vunpack.c.l.b16 %v776
      %v2159 = vunpack.c.h.b16 %v776
      %v2160 = vunpack.c.l.b16 %v777
      %v2161 = vunpack.c.h.b16 %v777
      %v2162 = vunpack.c.l.b16 %v778
      %v2163 = vunpack.c.h.b16 %v778
      %v2164 = vunpack.c.l.b16 %v779
      %v2165 = vunpack.c.h.b16 %v779
      %v2166 = vunpack.c.l.b16 %v780
      %v2167 = vunpack.c.h.b16 %v780
      %v2168 = vunpack.c.l.b16 %v781
      %v2169 = vunpack.c.h.b16 %v781
      %v2170 = vunpack.c.l.b16 %v782
      %v2171 = vunpack.c.h.b16 %v782
      %v2172 = vunpack.c.l.b16 %v783
      %v2173 = vunpack.c.h.b16 %v783
      %v2174 = vunpack.c.l.b16 %v784
      %v2175 = vunpack.c.h.b16 %v784
      %v2176 = vunpack.c.l.b16 %v785
      %v2177 = vunpack.c.h.b16 %v785
      %v2178 = vunpack.c.l.b16 %v786
      %v2179 = vunpack.c.h.b16 %v786
      %v2180 = vunpack.c.l.b16 %v787
      %v2181 = vunpack.c.h.b16 %v787
      %v2182 = vunpack.c.l.b16 %v788
      %v2183 = vunpack.c.h.b16 %v788
      %v2184 = vunpack.c.l.b16 %v789
      %v2185 = vunpack.c.h.b16 %v789
      %v2186 = vunpack.c.l.b16 %v790
      %v2187 = vunpack.c.h.b16 %v790
      %v2188 = vunpack.c.l.b16 %v791
      %v2189 = vunpack.c.h.b16 %v791
      %v2190 = vunpack.c.l.b16 %v792
      %v2191 = vunpack.c.h.b16 %v792
      %v2192 = vunpack.c.l.b16 %v793
      %v2193 = vunpack.c.h.b16 %v793
      %v2194 = vunpack.c.l.b16 %v794
      %v2195 = vunpack.c.h.b16 %v794
      %v2196 = vunpack.c.l.b16 %v795
      %v2197 = vunpack.c.h.b16 %v795
      %v2198 = vunpack.c.l.b16 %v796
      %v2199 = vunpack.c.h.b16 %v796
      %v2200 = vunpack.c.l.b16 %v797
      %v2201 = vunpack.c.h.b16 %v797
      %v2202 = vunpack.c.l.b16 %v798
      %v2203 = vunpack.c.h.b16 %v798
      %v2204 = vunpack.c.l.b16 %v799
      %v2205 = vunpack.c.h.b16 %v799
      %v2206 = vunpack.c.l.b16 %v800
      %v2207 = vunpack.c.h.b16 %v800
      %v2208 = vunpack.c.l.b16 %v801
      %v2209 = vunpack.c.h.b16 %v801
      %v2210 = vunpack.c.l.b16 %v802
      %v2211 = vunpack.c.h.b16 %v802
      %v2212 = vunpack.c.l.b16 %v803
      %v2213 = vunpack.c.h.b16 %v803
      %v2214 = vunpack.c.l.b16 %v804
      %v2215 = vunpack.c.h.b16 %v804
      %v2216 = vunpack.c.l.b16 %v805
      %v2217 = vunpack.c.h.b16 %v805
      %v2218 = vunpack.c.l.b16 %v806
      %v2219 = vunpack.c.h.b16 %v806
      %v2220 = vunpack.c.l.b16 %v807
      %v2221 = vunpack.c.h.b16 %v807
      %v2222 = vunpack.c.l.b16 %v808
      %v2223 = vunpack.c.h.b16 %v808
      %v2224 = vunpack.c.l.b16 %v809
      %v2225 = vunpack.c.h.b16 %v809
      %v2226 = vunpack.c.l.b16 %v810
      %v2227 = vunpack.c.h.b16 %v810
      %v2228 = vunpack.c.l.b16 %v811
      %v2229 = vunpack.c.h.b16 %v811
      %v2230 = vunpack.c.l.b16 %v812
      %v2231 = vunpack.c.h.b16 %v812
      %v2232 = vunpack.c.l.b16 %v813
      %v2233 = vunpack.c.h.b16 %v813
      %v2234 = vunpack.c.l.b16 %v814
      %v2235 = vunpack.c.h.b16 %v814
      %v2236 = vunpack.c.l.b16 %v815
      %v2237 = vunpack.c.h.b16 %v815
      %v2238 = vunpack.c.l.b16 %v816
      %v2239 = vunpack.c.h.b16 %v816
      %v2240 = vunpack.c.l.b16 %v817
      %v2241 = vunpack.c.h.b16 %v817
      %v2242 = vunpack.c.l.b16 %v818
      %v2243 = vunpack.c.h.b16 %v818
      %v2244 = vunpack.c.l.b16 %v819
      %v2245 = vunpack.c.h.b16 %v819
      %v2246 = vunpack.c.l.b16 %v820
      %v2247 = vunpack.c.h.b16 %v820
      %v2248 = vunpack.c.l.b16 %v821
      %v2249 = vunpack.c.h.b16 %v821
      %v2250 = vunpack.c.l.b16 %v822
      %v2251 = vunpack.c.h.b16 %v822
      %v2252 = vunpack.c.l.b16 %v823
      %v2253 = vunpack.c.h.b16 %v823
      %v2254 = vunpack.c.l.b16 %v824
      %v2255 = vunpack.c.h.b16 %v824
      %v2256 = vunpack.c.l.b16 %v825
      %v2257 = vunpack.c.h.b16 %v825
      %v2258 = vunpack.c.l.b16 %v826
      %v2259 = vunpack.c.h.b16 %v826
      %v2260 = vunpack.c.l.b16 %v827
      %v2261 = vunpack.c.h.b16 %v827
      %v2262 = vunpack.c.l.b16 %v828
      %v2263 = vunpack.c.h.b16 %v828
      %v2264 = vunpack.c.l.b16 %v829
      %v2265 = vunpack.c.h.b16 %v829
      %v2266 = vunpack.c.l.b16 %v830
      %v2267 = vunpack.c.h.b16 %v830
      %v2268 = vunpack.c.l.b16 %v831
      %v2269 = vunpack.c.h.b16 %v831
      %v2270 = vunpack.c.l.b16 %v832
      %v2271 = vunpack.c.h.b16 %v832
      %v2272 = vunpack.c.l.b16 %v833
      %v2273 = vunpack.c.h.b16 %v833
      %v2274 = vunpack.c.l.b16 %v834
      %v2275 = vunpack.c.h.b16 %v834
      %v2276 = vunpack.c.l.b16 %v835
      %v2277 = vunpack.c.h.b16 %v835
      %v2278 = vunpack.c.l.b16 %v836
      %v2279 = vunpack.c.h.b16 %v836
      %v2280 = vunpack.c.l.b16 %v837
      %v2281 = vunpack.c.h.b16 %v837
      %v2282 = vunpack.c.l.b16 %v838
      %v2283 = vunpack.c.h.b16 %v838
      %v2284 = vunpack.c.l.b16 %v839
      %v2285 = vunpack.c.h.b16 %v839
      %v2286 = vunpack.c.l.b16 %v840
      %v2287 = vunpack.c.h.b16 %v840
      %v2288 = vunpack.c.l.b16 %v841
      %v2289 = vunpack.c.h.b16 %v841
      %v2290 = vunpack.c.l.b16 %v842
      %v2291 = vunpack.c.h.b16 %v842
      %v2292 = vunpack.c.l.b16 %v843
      %v2293 = vunpack.c.h.b16 %v843
      %v2294 = vunpack.c.l.b16 %v844
      %v2295 = vunpack.c.h.b16 %v844
      %v2296 = vunpack.c.l.b16 %v845
      %v2297 = vunpack.c.h.b16 %v845
      %v2298 = vunpack.c.l.b16 %v846
      %v2299 = vunpack.c.h.b16 %v846
      %v2300 = vunpack.c.l.b16 %v847
      %v2301 = vunpack.c.h.b16 %v847
      %v2302 = vunpack.c.l.b16 %v848
      %v2303 = vunpack.c.h.b16 %v848
      %v2304 = vunpack.c.l.b16 %v849
      %v2305 = vunpack.c.h.b16 %v849
      %v2306 = vunpack.c.l.b16 %v850
      %v2307 = vunpack.c.h.b16 %v850
      %v2308 = vunpack.c.l.b16 %v851
      %v2309 = vunpack.c.h.b16 %v851
      %v2310 = vunpack.c.l.b16 %v852
      %v2311 = vunpack.c.h.b16 %v852
      %v2312 = vunpack.c.l.b16 %v853
      %v2313 = vunpack.c.h.b16 %v853
      %v2314 = vunpack.c.l.b16 %v854
      %v2315 = vunpack.c.h.b16 %v854
      %v2316 = vunpack.c.l.b16 %v855
      %v2317 = vunpack.c.h.b16 %v855
      %v2318 = vunpack.c.l.b16 %v856
      %v2319 = vunpack.c.h.b16 %v856
      %v2320 = vunpack.c.l.b16 %v857
      %v2321 = vunpack.c.h.b16 %v857
      %v2322 = vunpack.c.l.b16 %v858
      %v2323 = vunpack.c.h.b16 %v858
      %v2324 = vunpack.c.l.b16 %v859
      %v2325 = vunpack.c.h.b16 %v859
      %v2326 = vunpack.c.l.b16 %v860
      %v2327 = vunpack.c.h.b16 %v860
      %v2328 = vunpack.c.l.b16 %v861
      %v2329 = vunpack.c.h.b16 %v861
      %v2330 = vunpack.c.l.b16 %v862
      %v2331 = vunpack.c.h.b16 %v862
      %v2332 = vunpack.c.l.b16 %v863
      %v2333 = vunpack.c.h.b16 %v863
      %v2334 = vunpack.c.l.b16 %v864
      %v2335 = vunpack.c.h.b16 %v864
      %v2336 = vunpack.c.l.b16 %v865
      %v2337 = vunpack.c.h.b16 %v865
      %v2338 = vunpack.c.l.b16 %v866
      %v2339 = vunpack.c.h.b16 %v866
      %v2340 = vunpack.c.l.b16 %v867
      %v2341 = vunpack.c.h.b16 %v867
      %v2342 = vunpack.c.l.b16 %v868
      %v2343 = vunpack.c.h.b16 %v868
      %v2344 = vunpack.c.l.b16 %v869
      %v2345 = vunpack.c.h.b16 %v869
      %v2346 = vunpack.c.l.b16 %v870
      %v2347 = vunpack.c.h.b16 %v870
      %v2348 = vunpack.c.l.b16 %v871
      %v2349 = vunpack.c.h.b16 %v871
      %v2350 = vunpack.c.l.b16 %v872
      %v2351 = vunpack.c.h.b16 %v872
      %v2352 = vunpack.c.l.b16 %v873
      %v2353 = vunpack.c.h.b16 %v873
      %v2354 = vunpack.c.l.b16 %v874
      %v2355 = vunpack.c.h.b16 %v874
      %v2356 = vunpack.c.l.b16 %v875
      %v2357 = vunpack.c.h.b16 %v875
      %v2358 = vunpack.c.l.b16 %v876
      %v2359 = vunpack.c.h.b16 %v876
      %v2360 = vunpack.c.l.b16 %v877
      %v2361 = vunpack.c.h.b16 %v877
      %v2362 = vunpack.c.l.b16 %v878
      %v2363 = vunpack.c.h.b16 %v878
      %v2364 = vunpack.c.l.b16 %v879
      %v2365 = vunpack.c.h.b16 %v879
      %v2366 = vunpack.c.l.b16 %v880
      %v2367 = vunpack.c.h.b16 %v880
      %v2368 = vunpack.c.l.b16 %v881
      %v2369 = vunpack.c.h.b16 %v881
      %v2370 = vunpack.c.l.b16 %v882
      %v2371 = vunpack.c.h.b16 %v882
      %v2372 = vunpack.c.l.b16 %v883
      %v2373 = vunpack.c.h.b16 %v883
      %v2374 = vunpack.c.l.b16 %v884
      %v2375 = vunpack.c.h.b16 %v884
      %v2376 = vunpack.c.l.b16 %v885
      %v2377 = vunpack.c.h.b16 %v885
      %v2378 = vunpack.c.l.b16 %v886
      %v2379 = vunpack.c.h.b16 %v886
      %v2380 = vunpack.c.l.b16 %v887
      %v2381 = vunpack.c.h.b16 %v887
      %v2382 = vunpack.c.l.b16 %v888
      %v2383 = vunpack.c.h.b16 %v888
      %v2384 = vunpack.c.l.b16 %v889
      %v2385 = vunpack.c.h.b16 %v889
      %v2386 = vunpack.c.l.b16 %v890
      %v2387 = vunpack.c.h.b16 %v890
      %v2388 = vunpack.c.l.b16 %v891
      %v2389 = vunpack.c.h.b16 %v891
      %v2390 = vunpack.c.l.b16 %v892
      %v2391 = vunpack.c.h.b16 %v892
      %v2392 = vunpack.c.l.b16 %v893
      %v2393 = vunpack.c.h.b16 %v893
      %v2394 = vunpack.c.l.b16 %v894
      %v2395 = vunpack.c.h.b16 %v894
      %v2396 = vunpack.c.l.b16 %v895
      %v2397 = vunpack.c.h.b16 %v895
      %v2398 = vunpack.c.l.b16 %v896
      %v2399 = vunpack.c.h.b16 %v896
      %v2400 = vunpack.c.l.b16 %v897
      %v2401 = vunpack.c.h.b16 %v897
      %v2402 = vunpack.c.l.b16 %v898
      %v2403 = vunpack.c.h.b16 %v898
      %v2404 = vunpack.c.l.b16 %v899
      %v2405 = vunpack.c.h.b16 %v899
      %v2406 = vunpack.c.l.b16 %v900
      %v2407 = vunpack.c.h.b16 %v900
      %v2408 = vunpack.c.l.b16 %v901
      %v2409 = vunpack.c.h.b16 %v901
      %v2410 = vunpack.c.l.b16 %v902
      %v2411 = vunpack.c.h.b16 %v902
      %v2412 = vunpack.c.l.b16 %v903
      %v2413 = vunpack.c.h.b16 %v903
      %v2414 = vunpack.c.l.b16 %v904
      %v2415 = vunpack.c.h.b16 %v904
      %v2416 = vunpack.c.l.b16 %v905
      %v2417 = vunpack.c.h.b16 %v905
      %v2418 = vunpack.c.l.b16 %v906
      %v2419 = vunpack.c.h.b16 %v906
      %v2420 = vunpack.c.l.b16 %v907
      %v2421 = vunpack.c.h.b16 %v907
      %v2422 = vunpack.c.l.b16 %v908
      %v2423 = vunpack.c.h.b16 %v908
      %v2424 = vunpack.c.l.b16 %v909
      %v2425 = vunpack.c.h.b16 %v909
      %v2426 = vunpack.c.l.b16 %v910
      %v2427 = vunpack.c.h.b16 %v910
      %v2428 = vunpack.c.l.b16 %v911
      %v2429 = vunpack.c.h.b16 %v911
      %v2430 = vunpack.c.l.b16 %v912
      %v2431 = vunpack.c.h.b16 %v912
      %v2432 = vunpack.c.l.b16 %v913
      %v2433 = vunpack.c.h.b16 %v913
      %v2434 = vunpack.c.l.b16 %v914
      %v2435 = vunpack.c.h.b16 %v914
      %v2436 = vunpack.c.l.b16 %v915
      %v2437 = vunpack.c.h.b16 %v915
      %v2438 = vunpack.c.l.b16 %v916
      %v2439 = vunpack.c.h.b16 %v916
      %v2440 = vunpack.c.l.b16 %v917
      %v2441 = vunpack.c.h.b16 %v917
      %v2442 = vunpack.c.l.b16 %v918
      %v2443 = vunpack.c.h.b16 %v918
      %v2444 = vunpack.c.l.b16 %v919
      %v2445 = vunpack.c.h.b16 %v919
      %v2446 = vunpack.c.l.b16 %v920
      %v2447 = vunpack.c.h.b16 %v920
      %v2448 = vunpack.c.l.b16 %v921
      %v2449 = vunpack.c.h.b16 %v921
      %v2450 = vunpack.c.l.b16 %v922
      %v2451 = vunpack.c.h.b16 %v922
      %v2452 = vunpack.c.l.b16 %v923
      %v2453 = vunpack.c.h.b16 %v923
      %v2454 = vunpack.c.l.b16 %v924
      %v2455 = vunpack.c.h.b16 %v924
      %v2456 = vunpack.c.l.b16 %v925
      %v2457 = vunpack.c.h.b16 %v925
      %v2458 = vunpack.c.l.b16 %v926
      %v2459 = vunpack.c.h.b16 %v926
      %v2460 = vunpack.c.l.b16 %v927
      %v2461 = vunpack.c.h.b16 %v927
      %v2462 = vunpack.c.l.b16 %v928
      %v2463 = vunpack.c.h.b16 %v928
      %v2464 = vunpack.c.l.b16 %v929
      %v2465 = vunpack.c.h.b16 %v929
      %v2466 = vunpack.c.l.b16 %v930
      %v2467 = vunpack.c.h.b16 %v930
      %v2468 = vunpack.c.l.b16 %v931
      %v2469 = vunpack.c.h.b16 %v931
      %v2470 = vunpack.c.l.b16 %v932
      %v2471 = vunpack.c.h.b16 %v932
      %v2472 = vunpack.c.l.b16 %v933
      %v2473 = vunpack.c.h.b16 %v933
      %v2474 = vunpack.c.l.b16 %v934
      %v2475 = vunpack.c.h.b16 %v934
      %v2476 = vunpack.c.l.b16 %v935
      %v2477 = vunpack.c.h.b16 %v935
      %v2478 = vpack.c.b16 %v2096, %v2094
      %v2479 = vpack.c.b16 %v2097, %v2095
      %v2480 = vpack.c.b16 %v2100, %v2098
      %v2481 = vpack.c.b16 %v2101, %v2099
      %v2482 = vpack.c.b16 %v2104, %v2102
      %v2483 = vpack.c.b16 %v2105, %v2103
      %v2484 = vpack.c.b16 %v2108, %v2106
      %v2485 = vpack.c.b16 %v2109, %v2107
      %v2486 = vpack.c.b16 %v2112, %v2110
      %v2487 = vpack.c.b16 %v2113, %v2111
      %v2488 = vpack.c.b16 %v2116, %v2114
      %v2489 = vpack.c.b16 %v2117, %v2115
      %v2490 = vpack.c.b16 %v2120, %v2118
      %v2491 = vpack.c.b16 %v2121, %v2119
      %v2492 = vpack.c.b16 %v2124, %v2122
      %v2493 = vpack.c.b16 %v2125, %v2123
      %v2494 = vpack.c.b16 %v2128, %v2126
      %v2495 = vpack.c.b16 %v2129, %v2127
      %v2496 = vpack.c.b16 %v2132, %v2130
      %v2497 = vpack.c.b16 %v2133, %v2131
      %v2498 = vpack.c.b16 %v2136, %v2134
      %v2499 = vpack.c.b16 %v2137, %v2135
      %v2500 = vpack.c.b16 %v2140, %v2138
      %v2501 = vpack.c.b16 %v2141, %v2139
      %v2502 = vpack.c.b16 %v2144, %v2142
      %v2503 = vpack.c.b16 %v2145, %v2143
      %v2504 = vpack.c.b16 %v2148, %v2146
      %v2505 = vpack.c.b16 %v2149, %v2147
      %v2506 = vpack.c.b16 %v2152, %v2150
      %v2507 = vpack.c.b16 %v2153, %v2151
      %v2508 = vpack.c.b16 %v2156, %v2154
      %v2509 = vpack.c.b16 %v2157, %v2155
      %v2510 = vpack.c.b16 %v2160, %v2158
      %v2511 = vpack.c.b16 %v2161, %v2159
      %v2512 = vpack.c.b16 %v2164, %v2162
      %v2513 = vpack.c.b16 %v2165, %v2163
      %v2514 = vpack.c.b16 %v2168, %v2166
      %v2515 = vpack.c.b16 %v2169, %v2167
      %v2516 = vpack.c.b16 %v2172, %v2170
      %v2517 = vpack.c.b16 %v2173, %v2171
      %v2518 = vpack.c.b16 %v2176, %v2174
      %v2519 = vpack.c.b16 %v2177, %v2175
      %v2520 = vpack.c.b16 %v2180, %v2178
      %v2521 = vpack.c.b16 %v2181, %v2179
      %v2522 = vpack.c.b16 %v2184, %v2182
      %v2523 = vpack.c.b16 %v2185, %v2183
      %v2524 = vpack.c.b16 %v2188, %v2186
      %v2525 = vpack.c.b16 %v2189, %v2187
      %v2526 = vpack.c.b16 %v2192, %v2190
      %v2527 = vpack.c.b16 %v2193, %v2191
      %v2528 = vpack.c.b16 %v2196, %v2194
      %v2529 = vpack.c.b16 %v2197, %v2195
      %v2530 = vpack.c.b16 %v2200, %v2198
      %v2531 = vpack.c.b16 %v2201, %v2199
      %v2532 = vpack.c.b16 %v2204, %v2202
      %v2533 = vpack.c.b16 %v2205, %v2203
      %v2534 = vpack.c.b16 %v2208, %v2206
      %v2535 = vpack.c.b16 %v2209, %v2207
      %v2536 = vpack.c.b16 %v2212, %v2210
      %v2537 = vpack.c.b16 %v2213, %v2211
      %v2538 = vpack.c.b16 %v2216, %v2214
      %v2539 = vpack.c.b16 %v2217, %v2215
      %v2540 = vpack.c.b16 %v2220, %v2218
      %v2541 = vpack.c.b16 %v2221, %v2219
      %v2542 = vpack.c.b16 %v2224, %v2222
      %v2543 = vpack.c.b16 %v2225, %v2223
      %v2544 = vpack.c.b16 %v2228, %v2226
      %v2545 = vpack.c.b16 %v2229, %v2227
      %v2546 = vpack.c.b16 %v2232, %v2230
      %v2547 = vpack.c.b16 %v2233, %v2231
      %v2548 = vpack.c.b16 %v2236, %v2234
      %v2549 = vpack.c.b16 %v2237, %v2235
      %v2550 = vpack.c.b16 %v2240, %v2238
      %v2551 = vpack.c.b16 %v2241, %v2239
      %v2552 = vpack.c.b16 %v2244, %v2242
      %v2553 = vpack.c.b16 %v2245, %v2243
      %v2554 = vpack.c.b16 %v2248, %v2246
      %v2555 = vpack.c.b16 %v2249, %v2247
      %v2556 = vpack.c.b16 %v2252, %v2250
      %v2557 = vpack.c.b16 %v2253, %v2251
      %v2558 = vpack.c.b16 %v2256, %v2254
      %v2559 = vpack.c.b16 %v2257, %v2255
      %v2560 = vpack.c.b16 %v2260, %v2258
      %v2561 = vpack.c.b16 %v2261, %v2259
      %v2562 = vpack.c.b16 %v2264, %v2262
      %v2563 = vpack.c.b16 %v2265, %v2263
      %v2564 = vpack.c.b16 %v2268, %v2266
      %v2565 = vpack.c.b16 %v2269, %v2267
      %v2566 = vpack.c.b16 %v2272, %v2270
      %v2567 = vpack.c.b16 %v2273, %v2271
      %v2568 = vpack.c.b16 %v2276, %v2274
      %v2569 = vpack.c.b16 %v2277, %v2275
      %v2570 = vpack.c.b16 %v2280, %v2278
      %v2571 = vpack.c.b16 %v2281, %v2279
      %v2572 = vpack.c.b16 %v2284, %v2282
      %v2573 = vpack.c.b16 %v2285, %v2283
      %v2574 = vpack.c.b16 %v2288, %v2286
      %v2575 = vpack.c.b16 %v2289, %v2287
      %v2576 = vpack.c.b16 %v2292, %v2290
      %v2577 = vpack.c.b16 %v2293, %v2291
      %v2578 = vpack.c.b16 %v2296, %v2294
      %v2579 = vpack.c.b16 %v2297, %v2295
      %v2580 = vpack.c.b16 %v2300, %v2298
      %v2581 = vpack.c.b16 %v2301, %v2299
      %v2582 = vpack.c.b16 %v2304, %v2302
      %v2583 = vpack.c.b16 %v2305, %v2303
      %v2584 = vpack.c.b16 %v2308, %v2306
      %v2585 = vpack.c.b16 %v2309, %v2307
      %v2586 = vpack.c.b16 %v2312, %v2310
      %v2587 = vpack.c.b16 %v2313, %v2311
      %v2588 = vpack.c.b16 %v2316, %v2314
      %v2589 = vpack.c.b16 %v2317, %v2315
      %v2590 = vpack.c.b16 %v2320, %v2318
      %v2591 = vpack.c.b16 %v2321, %v2319
      %v2592 = vpack.c.b16 %v2324, %v2322
      %v2593 = vpack.c.b16 %v2325, %v2323
      %v2594 = vpack.c.b16 %v2328, %v2326
      %v2595 = vpack.c.b16 %v2329, %v2327
      %v2596 = vpack.c.b16 %v2332, %v2330
      %v2597 = vpack.c.b16 %v2333, %v2331
      %v2598 = vpack.c.b16 %v2336, %v2334
      %v2599 = vpack.c.b16 %v2337, %v2335
      %v2600 = vpack.c.b16 %v2340, %v2338
      %v2601 = vpack.c.b16 %v2341, %v2339
      %v2602 = vpack.c.b16 %v2344, %v2342
      %v2603 = vpack.c.b16 %v2345, %v2343
      %v2604 = vpack.c.b16 %v2348, %v2346
      %v2605 = vpack.c.b16 %v2349, %v2347
      %v2606 = vpack.c.b16 %v2352, %v2350
      %v2607 = vpack.c.b16 %v2353, %v2351
      %v2608 = vpack.c.b16 %v2356, %v2354
      %v2609 = vpack.c.b16 %v2357, %v2355
      %v2610 = vpack.c.b16 %v2360, %v2358
      %v2611 = vpack.c.b16 %v2361, %v2359
      %v2612 = vpack.c.b16 %v2364, %v2362
      %v2613 = vpack.c.b16 %v2365, %v2363
      %v2614 = vpack.c.b16 %v2368, %v2366
      %v2615 = vpack.c.b16 %v2369, %v2367
      %v2616 = vpack.c.b16 %v2372, %v2370
      %v2617 = vpack.c.b16 %v2373, %v2371
      %v2618 = vpack.c.b16 %v2376, %v2374
      %v2619 = vpack.c.b16 %v2377, %v2375
      %v2620 = vpack.c.b16 %v2380, %v2378
      %v2621 = vpack.c.b16 %v2381, %v2379
      %v2622 = vpack.c.b16 %v2384, %v2382
      %v2623 = vpack.c.b16 %v2385, %v2383
      %v2624 = vpack.c.b16 %v2388, %v2386
      %v2625 = vpack.c.b16 %v2389, %v2387
      %v2626 = vpack.c.b16 %v2392, %v2390
      %v2627 = vpack.c.b16 %v2393, %v2391
      %v2628 = vpack.c.b16 %v2396, %v2394
      %v2629 = vpack.c.b16 %v2397, %v2395
      %v2630 = vpack.c.b16 %v2400, %v2398
      %v2631 = vpack.c.b16 %v2401, %v2399
      %v2632 = vpack.c.b16 %v2404, %v2402
      %v2633 = vpack.c.b16 %v2405, %v2403
      %v2634 = vpack.c.b16 %v2408, %v2406
      %v2635 = vpack.c.b16 %v2409, %v2407
      %v2636 = vpack.c.b16 %v2412, %v2410
      %v2637 = vpack.c.b16 %v2413, %v2411
      %v2638 = vpack.c.b16 %v2416, %v2414
      %v2639 = vpack.c.b16 %v2417, %v2415
      %v2640 = vpack.c.b16 %v2420, %v2418
      %v2641 = vpack.c.b16 %v2421, %v2419
      %v2642 = vpack.c.b16 %v2424, %v2422
      %v2643 = vpack.c.b16 %v2425, %v2423
      %v2644 = vpack.c.b16 %v2428, %v2426
      %v2645 = vpack.c.b16 %v2429, %v2427
      %v2646 = vpack.c.b16 %v2432, %v2430
      %v2647 = vpack.c.b16 %v2433, %v2431
      %v2648 = vpack.c.b16 %v2436, %v2434
      %v2649 = vpack.c.b16 %v2437, %v2435
      %v2650 = vpack.c.b16 %v2440, %v2438
      %v2651 = vpack.c.b16 %v2441, %v2439
      %v2652 = vpack.c.b16 %v2444, %v2442
      %v2653 = vpack.c.b16 %v2445, %v2443
      %v2654 = vpack.c.b16 %v2448, %v2446
      %v2655 = vpack.c.b16 %v2449, %v2447
      %v2656 = vpack.c.b16 %v2452, %v2450
      %v2657 = vpack.c.b16 %v2453, %v2451
      %v2658 = vpack.c.b16 %v2456, %v2454
      %v2659 = vpack.c.b16 %v2457, %v2455
      %v2660 = vpack.c.b16 %v2460, %v2458
      %v2661 = vpack.c.b16 %v2461, %v2459
      %v2662 = vpack.c.b16 %v2464, %v2462
      %v2663 = vpack.c.b16 %v2465, %v2463
      %v2664 = vpack.c.b16 %v2468, %v2466
      %v2665 = vpack.c.b16 %v2469, %v2467
      %v2666 = vpack.c.b16 %v2472, %v2470
      %v2667 = vpack.c.b16 %v2473, %v2471
      %v2668 = vpack.c.b16 %v2476, %v2474
      %v2669 = vpack.c.b16 %v2477, %v2475
      %2862 = vmatpush.bf16.msra.mxu0 %v2492
      %2863 = vmatpush.bf16.msra.mxu0 %v2490
      %2864 = vmatpush.bf16.msra.mxu0 %v2488
      %2865 = vmatpush.bf16.msra.mxu0 %v2486
      %2866 = vmatpush.bf16.msra.mxu0 %v2484
      %2867 = vmatpush.bf16.msra.mxu0 %v2482
      %2868 = vmatpush.bf16.msra.mxu0 %v2480
      %2869 = vmatpush.bf16.msra.mxu0 %v2478
      %2870 = vmatmul.bf16.gmra.mxu0 %v1518
      %v2871 = vpop.f32.mrf.mxu0
      %v2872 = vadd.f32 %v938, %v2871
      %v2873 = vpop.f32.mrf.mxu0
      %v2874 = vadd.f32 %v938, %v2873
      %2875 = vmatmul.bf16.gmra.mxu0 %v1530
      %v2876 = vpop.f32.mrf.mxu0
      %v2877 = vadd.f32 %v938, %v2876
      %v2878 = vpop.f32.mrf.mxu0
      %v2879 = vadd.f32 %v938, %v2878
      %2880 = vmatmul.bf16.gmra.mxu0 %v1542
      %v2881 = vpop.f32.mrf.mxu0
      %v2882 = vadd.f32 %v938, %v2881
      %v2883 = vpop.f32.mrf.mxu0
      %v2884 = vadd.f32 %v938, %v2883
      %2885 = vmatmul.bf16.gmra.mxu0 %v1554
      %v2886 = vpop.f32.mrf.mxu0
      %v2887 = vadd.f32 %v938, %v2886
      %v2888 = vpop.f32.mrf.mxu0
      %v2889 = vadd.f32 %v938, %v2888
      %2890 = vmatmul.bf16.gmra.mxu0 %v1566
      %v2891 = vpop.f32.mrf.mxu0
      %v2892 = vadd.f32 %v938, %v2891
      %v2893 = vpop.f32.mrf.mxu0
      %v2894 = vadd.f32 %v938, %v2893
      %2895 = vmatmul.bf16.gmra.mxu0 %v1578
      %v2896 = vpop.f32.mrf.mxu0
      %v2897 = vadd.f32 %v938, %v2896
      %v2898 = vpop.f32.mrf.mxu0
      %v2899 = vadd.f32 %v938, %v2898
      %2900 = vmatmul.bf16.gmra.mxu0 %v1590
      %v2901 = vpop.f32.mrf.mxu0
      %v2902 = vadd.f32 %v938, %v2901
      %v2903 = vpop.f32.mrf.mxu0
      %v2904 = vadd.f32 %v938, %v2903
      %2905 = vmatmul.bf16.gmra.mxu0 %v1602
      %v2906 = vpop.f32.mrf.mxu0
      %v2907 = vadd.f32 %v938, %v2906
      %v2908 = vpop.f32.mrf.mxu0
      %v2909 = vadd.f32 %v938, %v2908
      %2910 = vmatmul.bf16.gmra.mxu0 %v1614
      %v2911 = vpop.f32.mrf.mxu0
      %v2912 = vadd.f32 %v938, %v2911
      %v2913 = vpop.f32.mrf.mxu0
      %v2914 = vadd.f32 %v938, %v2913
      %2915 = vmatmul.bf16.gmra.mxu0 %v1626
      %v2916 = vpop.f32.mrf.mxu0
      %v2917 = vadd.f32 %v938, %v2916
      %v2918 = vpop.f32.mrf.mxu0
      %v2919 = vadd.f32 %v938, %v2918
      %2920 = vmatmul.bf16.gmra.mxu0 %v1638
      %v2921 = vpop.f32.mrf.mxu0
      %v2922 = vadd.f32 %v938, %v2921
      %v2923 = vpop.f32.mrf.mxu0
      %v2924 = vadd.f32 %v938, %v2923
      %2925 = vmatmul.bf16.gmra.mxu0 %v1650
      %v2926 = vpop.f32.mrf.mxu0
      %v2927 = vadd.f32 %v938, %v2926
      %v2928 = vpop.f32.mrf.mxu0
      %v2929 = vadd.f32 %v938, %v2928
      %2930 = vmatmul.bf16.gmra.mxu0 %v1662
      %v2931 = vpop.f32.mrf.mxu0
      %v2932 = vadd.f32 %v938, %v2931
      %v2933 = vpop.f32.mrf.mxu0
      %v2934 = vadd.f32 %v938, %v2933
      %2935 = vmatmul.bf16.gmra.mxu0 %v1674
      %v2936 = vpop.f32.mrf.mxu0
      %v2937 = vadd.f32 %v938, %v2936
      %v2938 = vpop.f32.mrf.mxu0
      %v2939 = vadd.f32 %v938, %v2938
      %2940 = vmatmul.bf16.gmra.mxu0 %v1686
      %v2941 = vpop.f32.mrf.mxu0
      %v2942 = vadd.f32 %v938, %v2941
      %v2943 = vpop.f32.mrf.mxu0
      %v2944 = vadd.f32 %v938, %v2943
      %2945 = vmatmul.bf16.gmra.mxu0 %v1698
      %v2946 = vpop.f32.mrf.mxu0
      %v2947 = vadd.f32 %v938, %v2946
      %v2948 = vpop.f32.mrf.mxu0
      %v2949 = vadd.f32 %v938, %v2948
      %2950 = vdwg.mxu0
      %2951 = vmatpush.bf16.msra.mxu0 %v2508
      %2952 = vmatpush.bf16.msra.mxu0 %v2506
      %2953 = vmatpush.bf16.msra.mxu0 %v2504
      %2954 = vmatpush.bf16.msra.mxu0 %v2502
      %2955 = vmatpush.bf16.msra.mxu0 %v2500
      %2956 = vmatpush.bf16.msra.mxu0 %v2498
      %2957 = vmatpush.bf16.msra.mxu0 %v2496
      %2958 = vmatpush.bf16.msra.mxu0 %v2494
      %2959 = vmatmul.bf16.gmra.mxu0 %v1519
      %v2960 = vpop.f32.mrf.mxu0
      %v2961 = vadd.f32 %v2872, %v2960
      %v2962 = vpop.f32.mrf.mxu0
      %v2963 = vadd.f32 %v2874, %v2962
      %2964 = vmatmul.bf16.gmra.mxu0 %v1531
      %v2965 = vpop.f32.mrf.mxu0
      %v2966 = vadd.f32 %v2877, %v2965
      %v2967 = vpop.f32.mrf.mxu0
      %v2968 = vadd.f32 %v2879, %v2967
      %2969 = vmatmul.bf16.gmra.mxu0 %v1543
      %v2970 = vpop.f32.mrf.mxu0
      %v2971 = vadd.f32 %v2882, %v2970
      %v2972 = vpop.f32.mrf.mxu0
      %v2973 = vadd.f32 %v2884, %v2972
      %2974 = vmatmul.bf16.gmra.mxu0 %v1555
      %v2975 = vpop.f32.mrf.mxu0
      %v2976 = vadd.f32 %v2887, %v2975
      %v2977 = vpop.f32.mrf.mxu0
      %v2978 = vadd.f32 %v2889, %v2977
      %2979 = vmatmul.bf16.gmra.mxu0 %v1567
      %v2980 = vpop.f32.mrf.mxu0
      %v2981 = vadd.f32 %v2892, %v2980
      %v2982 = vpop.f32.mrf.mxu0
      %v2983 = vadd.f32 %v2894, %v2982
      %2984 = vmatmul.bf16.gmra.mxu0 %v1579
      %v2985 = vpop.f32.mrf.mxu0
      %v2986 = vadd.f32 %v2897, %v2985
      %v2987 = vpop.f32.mrf.mxu0
      %v2988 = vadd.f32 %v2899, %v2987
      %2989 = vmatmul.bf16.gmra.mxu0 %v1591
      %v2990 = vpop.f32.mrf.mxu0
      %v2991 = vadd.f32 %v2902, %v2990
      %v2992 = vpop.f32.mrf.mxu0
      %v2993 = vadd.f32 %v2904, %v2992
      %2994 = vmatmul.bf16.gmra.mxu0 %v1603
      %v2995 = vpop.f32.mrf.mxu0
      %v2996 = vadd.f32 %v2907, %v2995
      %v2997 = vpop.f32.mrf.mxu0
      %v2998 = vadd.f32 %v2909, %v2997
      %2999 = vmatmul.bf16.gmra.mxu0 %v1615
      %v3000 = vpop.f32.mrf.mxu0
      %v3001 = vadd.f32 %v2912, %v3000
      %v3002 = vpop.f32.mrf.mxu0
      %v3003 = vadd.f32 %v2914, %v3002
      %3004 = vmatmul.bf16.gmra.mxu0 %v1627
      %v3005 = vpop.f32.mrf.mxu0
      %v3006 = vadd.f32 %v2917, %v3005
      %v3007 = vpop.f32.mrf.mxu0
      %v3008 = vadd.f32 %v2919, %v3007
      %3009 = vmatmul.bf16.gmra.mxu0 %v1639
      %v3010 = vpop.f32.mrf.mxu0
      %v3011 = vadd.f32 %v2922, %v3010
      %v3012 = vpop.f32.mrf.mxu0
      %v3013 = vadd.f32 %v2924, %v3012
      %3014 = vmatmul.bf16.gmra.mxu0 %v1651
      %v3015 = vpop.f32.mrf.mxu0
      %v3016 = vadd.f32 %v2927, %v3015
      %v3017 = vpop.f32.mrf.mxu0
      %v3018 = vadd.f32 %v2929, %v3017
      %3019 = vmatmul.bf16.gmra.mxu0 %v1663
      %v3020 = vpop.f32.mrf.mxu0
      %v3021 = vadd.f32 %v2932, %v3020
      %v3022 = vpop.f32.mrf.mxu0
      %v3023 = vadd.f32 %v2934, %v3022
      %3024 = vmatmul.bf16.gmra.mxu0 %v1675
      %v3025 = vpop.f32.mrf.mxu0
      %v3026 = vadd.f32 %v2937, %v3025
      %v3027 = vpop.f32.mrf.mxu0
      %v3028 = vadd.f32 %v2939, %v3027
      %3029 = vmatmul.bf16.gmra.mxu0 %v1687
      %v3030 = vpop.f32.mrf.mxu0
      %v3031 = vadd.f32 %v2942, %v3030
      %v3032 = vpop.f32.mrf.mxu0
      %v3033 = vadd.f32 %v2944, %v3032
      %3034 = vmatmul.bf16.gmra.mxu0 %v1699
      %v3035 = vpop.f32.mrf.mxu0
      %v3036 = vadd.f32 %v2947, %v3035
      %v3037 = vpop.f32.mrf.mxu0
      %v3038 = vadd.f32 %v2949, %v3037
      %3039 = vdwg.mxu0
      %3040 = vmatpush.bf16.msra.mxu0 %v2524
      %3041 = vmatpush.bf16.msra.mxu0 %v2522
      %3042 = vmatpush.bf16.msra.mxu0 %v2520
      %3043 = vmatpush.bf16.msra.mxu0 %v2518
      %3044 = vmatpush.bf16.msra.mxu0 %v2516
      %3045 = vmatpush.bf16.msra.mxu0 %v2514
      %3046 = vmatpush.bf16.msra.mxu0 %v2512
      %3047 = vmatpush.bf16.msra.mxu0 %v2510
      %3048 = vmatmul.bf16.gmra.mxu0 %v1520
      %v3049 = vpop.f32.mrf.mxu0
      %v3050 = vadd.f32 %v2961, %v3049
      %v3051 = vpop.f32.mrf.mxu0
      %v3052 = vadd.f32 %v2963, %v3051
      %3053 = vmatmul.bf16.gmra.mxu0 %v1532
      %v3054 = vpop.f32.mrf.mxu0
      %v3055 = vadd.f32 %v2966, %v3054
      %v3056 = vpop.f32.mrf.mxu0
      %v3057 = vadd.f32 %v2968, %v3056
      %3058 = vmatmul.bf16.gmra.mxu0 %v1544
      %v3059 = vpop.f32.mrf.mxu0
      %v3060 = vadd.f32 %v2971, %v3059
      %v3061 = vpop.f32.mrf.mxu0
      %v3062 = vadd.f32 %v2973, %v3061
      %3063 = vmatmul.bf16.gmra.mxu0 %v1556
      %v3064 = vpop.f32.mrf.mxu0
      %v3065 = vadd.f32 %v2976, %v3064
      %v3066 = vpop.f32.mrf.mxu0
      %v3067 = vadd.f32 %v2978, %v3066
      %3068 = vmatmul.bf16.gmra.mxu0 %v1568
      %v3069 = vpop.f32.mrf.mxu0
      %v3070 = vadd.f32 %v2981, %v3069
      %v3071 = vpop.f32.mrf.mxu0
      %v3072 = vadd.f32 %v2983, %v3071
      %3073 = vmatmul.bf16.gmra.mxu0 %v1580
      %v3074 = vpop.f32.mrf.mxu0
      %v3075 = vadd.f32 %v2986, %v3074
      %v3076 = vpop.f32.mrf.mxu0
      %v3077 = vadd.f32 %v2988, %v3076
      %3078 = vmatmul.bf16.gmra.mxu0 %v1592
      %v3079 = vpop.f32.mrf.mxu0
      %v3080 = vadd.f32 %v2991, %v3079
      %v3081 = vpop.f32.mrf.mxu0
      %v3082 = vadd.f32 %v2993, %v3081
      %3083 = vmatmul.bf16.gmra.mxu0 %v1604
      %v3084 = vpop.f32.mrf.mxu0
      %v3085 = vadd.f32 %v2996, %v3084
      %v3086 = vpop.f32.mrf.mxu0
      %v3087 = vadd.f32 %v2998, %v3086
      %3088 = vmatmul.bf16.gmra.mxu0 %v1616
      %v3089 = vpop.f32.mrf.mxu0
      %v3090 = vadd.f32 %v3001, %v3089
      %v3091 = vpop.f32.mrf.mxu0
      %v3092 = vadd.f32 %v3003, %v3091
      %3093 = vmatmul.bf16.gmra.mxu0 %v1628
      %v3094 = vpop.f32.mrf.mxu0
      %v3095 = vadd.f32 %v3006, %v3094
      %v3096 = vpop.f32.mrf.mxu0
      %v3097 = vadd.f32 %v3008, %v3096
      %3098 = vmatmul.bf16.gmra.mxu0 %v1640
      %v3099 = vpop.f32.mrf.mxu0
      %v3100 = vadd.f32 %v3011, %v3099
      %v3101 = vpop.f32.mrf.mxu0
      %v3102 = vadd.f32 %v3013, %v3101
      %3103 = vmatmul.bf16.gmra.mxu0 %v1652
      %v3104 = vpop.f32.mrf.mxu0
      %v3105 = vadd.f32 %v3016, %v3104
      %v3106 = vpop.f32.mrf.mxu0
      %v3107 = vadd.f32 %v3018, %v3106
      %3108 = vmatmul.bf16.gmra.mxu0 %v1664
      %v3109 = vpop.f32.mrf.mxu0
      %v3110 = vadd.f32 %v3021, %v3109
      %v3111 = vpop.f32.mrf.mxu0
      %v3112 = vadd.f32 %v3023, %v3111
      %3113 = vmatmul.bf16.gmra.mxu0 %v1676
      %v3114 = vpop.f32.mrf.mxu0
      %v3115 = vadd.f32 %v3026, %v3114
      %v3116 = vpop.f32.mrf.mxu0
      %v3117 = vadd.f32 %v3028, %v3116
      %3118 = vmatmul.bf16.gmra.mxu0 %v1688
      %v3119 = vpop.f32.mrf.mxu0
      %v3120 = vadd.f32 %v3031, %v3119
      %v3121 = vpop.f32.mrf.mxu0
      %v3122 = vadd.f32 %v3033, %v3121
      %3123 = vmatmul.bf16.gmra.mxu0 %v1700
      %v3124 = vpop.f32.mrf.mxu0
      %v3125 = vadd.f32 %v3036, %v3124
      %v3126 = vpop.f32.mrf.mxu0
      %v3127 = vadd.f32 %v3038, %v3126
      %3128 = vdwg.mxu0
      %3129 = vmatpush.bf16.msra.mxu0 %v2540
      %3130 = vmatpush.bf16.msra.mxu0 %v2538
      %3131 = vmatpush.bf16.msra.mxu0 %v2536
      %3132 = vmatpush.bf16.msra.mxu0 %v2534
      %3133 = vmatpush.bf16.msra.mxu0 %v2532
      %3134 = vmatpush.bf16.msra.mxu0 %v2530
      %3135 = vmatpush.bf16.msra.mxu0 %v2528
      %3136 = vmatpush.bf16.msra.mxu0 %v2526
      %3137 = vmatmul.bf16.gmra.mxu0 %v1521
      %v3138 = vpop.f32.mrf.mxu0
      %v3139 = vadd.f32 %v3050, %v3138
      %v3140 = vpop.f32.mrf.mxu0
      %v3141 = vadd.f32 %v3052, %v3140
      %3142 = vmatmul.bf16.gmra.mxu0 %v1533
      %v3143 = vpop.f32.mrf.mxu0
      %v3144 = vadd.f32 %v3055, %v3143
      %v3145 = vpop.f32.mrf.mxu0
      %v3146 = vadd.f32 %v3057, %v3145
      %3147 = vmatmul.bf16.gmra.mxu0 %v1545
      %v3148 = vpop.f32.mrf.mxu0
      %v3149 = vadd.f32 %v3060, %v3148
      %v3150 = vpop.f32.mrf.mxu0
      %v3151 = vadd.f32 %v3062, %v3150
      %3152 = vmatmul.bf16.gmra.mxu0 %v1557
      %v3153 = vpop.f32.mrf.mxu0
      %v3154 = vadd.f32 %v3065, %v3153
      %v3155 = vpop.f32.mrf.mxu0
      %v3156 = vadd.f32 %v3067, %v3155
      %3157 = vmatmul.bf16.gmra.mxu0 %v1569
      %v3158 = vpop.f32.mrf.mxu0
      %v3159 = vadd.f32 %v3070, %v3158
      %v3160 = vpop.f32.mrf.mxu0
      %v3161 = vadd.f32 %v3072, %v3160
      %3162 = vmatmul.bf16.gmra.mxu0 %v1581
      %v3163 = vpop.f32.mrf.mxu0
      %v3164 = vadd.f32 %v3075, %v3163
      %v3165 = vpop.f32.mrf.mxu0
      %v3166 = vadd.f32 %v3077, %v3165
      %3167 = vmatmul.bf16.gmra.mxu0 %v1593
      %v3168 = vpop.f32.mrf.mxu0
      %v3169 = vadd.f32 %v3080, %v3168
      %v3170 = vpop.f32.mrf.mxu0
      %v3171 = vadd.f32 %v3082, %v3170
      %3172 = vmatmul.bf16.gmra.mxu0 %v1605
      %v3173 = vpop.f32.mrf.mxu0
      %v3174 = vadd.f32 %v3085, %v3173
      %v3175 = vpop.f32.mrf.mxu0
      %v3176 = vadd.f32 %v3087, %v3175
      %3177 = vmatmul.bf16.gmra.mxu0 %v1617
      %v3178 = vpop.f32.mrf.mxu0
      %v3179 = vadd.f32 %v3090, %v3178
      %v3180 = vpop.f32.mrf.mxu0
      %v3181 = vadd.f32 %v3092, %v3180
      %3182 = vmatmul.bf16.gmra.mxu0 %v1629
      %v3183 = vpop.f32.mrf.mxu0
      %v3184 = vadd.f32 %v3095, %v3183
      %v3185 = vpop.f32.mrf.mxu0
      %v3186 = vadd.f32 %v3097, %v3185
      %3187 = vmatmul.bf16.gmra.mxu0 %v1641
      %v3188 = vpop.f32.mrf.mxu0
      %v3189 = vadd.f32 %v3100, %v3188
      %v3190 = vpop.f32.mrf.mxu0
      %v3191 = vadd.f32 %v3102, %v3190
      %3192 = vmatmul.bf16.gmra.mxu0 %v1653
      %v3193 = vpop.f32.mrf.mxu0
      %v3194 = vadd.f32 %v3105, %v3193
      %v3195 = vpop.f32.mrf.mxu0
      %v3196 = vadd.f32 %v3107, %v3195
      %3197 = vmatmul.bf16.gmra.mxu0 %v1665
      %v3198 = vpop.f32.mrf.mxu0
      %v3199 = vadd.f32 %v3110, %v3198
      %v3200 = vpop.f32.mrf.mxu0
      %v3201 = vadd.f32 %v3112, %v3200
      %3202 = vmatmul.bf16.gmra.mxu0 %v1677
      %v3203 = vpop.f32.mrf.mxu0
      %v3204 = vadd.f32 %v3115, %v3203
      %v3205 = vpop.f32.mrf.mxu0
      %v3206 = vadd.f32 %v3117, %v3205
      %3207 = vmatmul.bf16.gmra.mxu0 %v1689
      %v3208 = vpop.f32.mrf.mxu0
      %v3209 = vadd.f32 %v3120, %v3208
      %v3210 = vpop.f32.mrf.mxu0
      %v3211 = vadd.f32 %v3122, %v3210
      %3212 = vmatmul.bf16.gmra.mxu0 %v1701
      %v3213 = vpop.f32.mrf.mxu0
      %v3214 = vadd.f32 %v3125, %v3213
      %v3215 = vpop.f32.mrf.mxu0
      %v3216 = vadd.f32 %v3127, %v3215
      %3217 = vdwg.mxu0
      %3218 = vmatpush.bf16.msra.mxu0 %v2556
      %3219 = vmatpush.bf16.msra.mxu0 %v2554
      %3220 = vmatpush.bf16.msra.mxu0 %v2552
      %3221 = vmatpush.bf16.msra.mxu0 %v2550
      %3222 = vmatpush.bf16.msra.mxu0 %v2548
      %3223 = vmatpush.bf16.msra.mxu0 %v2546
      %3224 = vmatpush.bf16.msra.mxu0 %v2544
      %3225 = vmatpush.bf16.msra.mxu0 %v2542
      %3226 = vmatmul.bf16.gmra.mxu0 %v1522
      %v3227 = vpop.f32.mrf.mxu0
      %v3228 = vadd.f32 %v3139, %v3227
      %v3229 = vpop.f32.mrf.mxu0
      %v3230 = vadd.f32 %v3141, %v3229
      %3231 = vmatmul.bf16.gmra.mxu0 %v1534
      %v3232 = vpop.f32.mrf.mxu0
      %v3233 = vadd.f32 %v3144, %v3232
      %v3234 = vpop.f32.mrf.mxu0
      %v3235 = vadd.f32 %v3146, %v3234
      %3236 = vmatmul.bf16.gmra.mxu0 %v1546
      %v3237 = vpop.f32.mrf.mxu0
      %v3238 = vadd.f32 %v3149, %v3237
      %v3239 = vpop.f32.mrf.mxu0
      %v3240 = vadd.f32 %v3151, %v3239
      %3241 = vmatmul.bf16.gmra.mxu0 %v1558
      %v3242 = vpop.f32.mrf.mxu0
      %v3243 = vadd.f32 %v3154, %v3242
      %v3244 = vpop.f32.mrf.mxu0
      %v3245 = vadd.f32 %v3156, %v3244
      %3246 = vmatmul.bf16.gmra.mxu0 %v1570
      %v3247 = vpop.f32.mrf.mxu0
      %v3248 = vadd.f32 %v3159, %v3247
      %v3249 = vpop.f32.mrf.mxu0
      %v3250 = vadd.f32 %v3161, %v3249
      %3251 = vmatmul.bf16.gmra.mxu0 %v1582
      %v3252 = vpop.f32.mrf.mxu0
      %v3253 = vadd.f32 %v3164, %v3252
      %v3254 = vpop.f32.mrf.mxu0
      %v3255 = vadd.f32 %v3166, %v3254
      %3256 = vmatmul.bf16.gmra.mxu0 %v1594
      %v3257 = vpop.f32.mrf.mxu0
      %v3258 = vadd.f32 %v3169, %v3257
      %v3259 = vpop.f32.mrf.mxu0
      %v3260 = vadd.f32 %v3171, %v3259
      %3261 = vmatmul.bf16.gmra.mxu0 %v1606
      %v3262 = vpop.f32.mrf.mxu0
      %v3263 = vadd.f32 %v3174, %v3262
      %v3264 = vpop.f32.mrf.mxu0
      %v3265 = vadd.f32 %v3176, %v3264
      %3266 = vmatmul.bf16.gmra.mxu0 %v1618
      %v3267 = vpop.f32.mrf.mxu0
      %v3268 = vadd.f32 %v3179, %v3267
      %v3269 = vpop.f32.mrf.mxu0
      %v3270 = vadd.f32 %v3181, %v3269
      %3271 = vmatmul.bf16.gmra.mxu0 %v1630
      %v3272 = vpop.f32.mrf.mxu0
      %v3273 = vadd.f32 %v3184, %v3272
      %v3274 = vpop.f32.mrf.mxu0
      %v3275 = vadd.f32 %v3186, %v3274
      %3276 = vmatmul.bf16.gmra.mxu0 %v1642
      %v3277 = vpop.f32.mrf.mxu0
      %v3278 = vadd.f32 %v3189, %v3277
      %v3279 = vpop.f32.mrf.mxu0
      %v3280 = vadd.f32 %v3191, %v3279
      %3281 = vmatmul.bf16.gmra.mxu0 %v1654
      %v3282 = vpop.f32.mrf.mxu0
      %v3283 = vadd.f32 %v3194, %v3282
      %v3284 = vpop.f32.mrf.mxu0
      %v3285 = vadd.f32 %v3196, %v3284
      %3286 = vmatmul.bf16.gmra.mxu0 %v1666
      %v3287 = vpop.f32.mrf.mxu0
      %v3288 = vadd.f32 %v3199, %v3287
      %v3289 = vpop.f32.mrf.mxu0
      %v3290 = vadd.f32 %v3201, %v3289
      %3291 = vmatmul.bf16.gmra.mxu0 %v1678
      %v3292 = vpop.f32.mrf.mxu0
      %v3293 = vadd.f32 %v3204, %v3292
      %v3294 = vpop.f32.mrf.mxu0
      %v3295 = vadd.f32 %v3206, %v3294
      %3296 = vmatmul.bf16.gmra.mxu0 %v1690
      %v3297 = vpop.f32.mrf.mxu0
      %v3298 = vadd.f32 %v3209, %v3297
      %v3299 = vpop.f32.mrf.mxu0
      %v3300 = vadd.f32 %v3211, %v3299
      %3301 = vmatmul.bf16.gmra.mxu0 %v1702
      %v3302 = vpop.f32.mrf.mxu0
      %v3303 = vadd.f32 %v3214, %v3302
      %v3304 = vpop.f32.mrf.mxu0
      %v3305 = vadd.f32 %v3216, %v3304
      %3306 = vdwg.mxu0
      %3307 = vmatpush.bf16.msra.mxu0 %v2572
      %3308 = vmatpush.bf16.msra.mxu0 %v2570
      %3309 = vmatpush.bf16.msra.mxu0 %v2568
      %3310 = vmatpush.bf16.msra.mxu0 %v2566
      %3311 = vmatpush.bf16.msra.mxu0 %v2564
      %3312 = vmatpush.bf16.msra.mxu0 %v2562
      %3313 = vmatpush.bf16.msra.mxu0 %v2560
      %3314 = vmatpush.bf16.msra.mxu0 %v2558
      %3315 = vmatmul.bf16.gmra.mxu0 %v1523
      %v3316 = vpop.f32.mrf.mxu0
      %v3317 = vadd.f32 %v3228, %v3316
      %v3318 = vpop.f32.mrf.mxu0
      %v3319 = vadd.f32 %v3230, %v3318
      %3320 = vmatmul.bf16.gmra.mxu0 %v1535
      %v3321 = vpop.f32.mrf.mxu0
      %v3322 = vadd.f32 %v3233, %v3321
      %v3323 = vpop.f32.mrf.mxu0
      %v3324 = vadd.f32 %v3235, %v3323
      %3325 = vmatmul.bf16.gmra.mxu0 %v1547
      %v3326 = vpop.f32.mrf.mxu0
      %v3327 = vadd.f32 %v3238, %v3326
      %v3328 = vpop.f32.mrf.mxu0
      %v3329 = vadd.f32 %v3240, %v3328
      %3330 = vmatmul.bf16.gmra.mxu0 %v1559
      %v3331 = vpop.f32.mrf.mxu0
      %v3332 = vadd.f32 %v3243, %v3331
      %v3333 = vpop.f32.mrf.mxu0
      %v3334 = vadd.f32 %v3245, %v3333
      %3335 = vmatmul.bf16.gmra.mxu0 %v1571
      %v3336 = vpop.f32.mrf.mxu0
      %v3337 = vadd.f32 %v3248, %v3336
      %v3338 = vpop.f32.mrf.mxu0
      %v3339 = vadd.f32 %v3250, %v3338
      %3340 = vmatmul.bf16.gmra.mxu0 %v1583
      %v3341 = vpop.f32.mrf.mxu0
      %v3342 = vadd.f32 %v3253, %v3341
      %v3343 = vpop.f32.mrf.mxu0
      %v3344 = vadd.f32 %v3255, %v3343
      %3345 = vmatmul.bf16.gmra.mxu0 %v1595
      %v3346 = vpop.f32.mrf.mxu0
      %v3347 = vadd.f32 %v3258, %v3346
      %v3348 = vpop.f32.mrf.mxu0
      %v3349 = vadd.f32 %v3260, %v3348
      %3350 = vmatmul.bf16.gmra.mxu0 %v1607
      %v3351 = vpop.f32.mrf.mxu0
      %v3352 = vadd.f32 %v3263, %v3351
      %v3353 = vpop.f32.mrf.mxu0
      %v3354 = vadd.f32 %v3265, %v3353
      %3355 = vmatmul.bf16.gmra.mxu0 %v1619
      %v3356 = vpop.f32.mrf.mxu0
      %v3357 = vadd.f32 %v3268, %v3356
      %v3358 = vpop.f32.mrf.mxu0
      %v3359 = vadd.f32 %v3270, %v3358
      %3360 = vmatmul.bf16.gmra.mxu0 %v1631
      %v3361 = vpop.f32.mrf.mxu0
      %v3362 = vadd.f32 %v3273, %v3361
      %v3363 = vpop.f32.mrf.mxu0
      %v3364 = vadd.f32 %v3275, %v3363
      %3365 = vmatmul.bf16.gmra.mxu0 %v1643
      %v3366 = vpop.f32.mrf.mxu0
      %v3367 = vadd.f32 %v3278, %v3366
      %v3368 = vpop.f32.mrf.mxu0
      %v3369 = vadd.f32 %v3280, %v3368
      %3370 = vmatmul.bf16.gmra.mxu0 %v1655
      %v3371 = vpop.f32.mrf.mxu0
      %v3372 = vadd.f32 %v3283, %v3371
      %v3373 = vpop.f32.mrf.mxu0
      %v3374 = vadd.f32 %v3285, %v3373
      %3375 = vmatmul.bf16.gmra.mxu0 %v1667
      %v3376 = vpop.f32.mrf.mxu0
      %v3377 = vadd.f32 %v3288, %v3376
      %v3378 = vpop.f32.mrf.mxu0
      %v3379 = vadd.f32 %v3290, %v3378
      %3380 = vmatmul.bf16.gmra.mxu0 %v1679
      %v3381 = vpop.f32.mrf.mxu0
      %v3382 = vadd.f32 %v3293, %v3381
      %v3383 = vpop.f32.mrf.mxu0
      %v3384 = vadd.f32 %v3295, %v3383
      %3385 = vmatmul.bf16.gmra.mxu0 %v1691
      %v3386 = vpop.f32.mrf.mxu0
      %v3387 = vadd.f32 %v3298, %v3386
      %v3388 = vpop.f32.mrf.mxu0
      %v3389 = vadd.f32 %v3300, %v3388
      %3390 = vmatmul.bf16.gmra.mxu0 %v1703
      %v3391 = vpop.f32.mrf.mxu0
      %v3392 = vadd.f32 %v3303, %v3391
      %v3393 = vpop.f32.mrf.mxu0
      %v3394 = vadd.f32 %v3305, %v3393
      %3395 = vdwg.mxu0
      %3396 = vmatpush.bf16.msra.mxu0 %v2588
      %3397 = vmatpush.bf16.msra.mxu0 %v2586
      %3398 = vmatpush.bf16.msra.mxu0 %v2584
      %3399 = vmatpush.bf16.msra.mxu0 %v2582
      %3400 = vmatpush.bf16.msra.mxu0 %v2580
      %3401 = vmatpush.bf16.msra.mxu0 %v2578
      %3402 = vmatpush.bf16.msra.mxu0 %v2576
      %3403 = vmatpush.bf16.msra.mxu0 %v2574
      %3404 = vmatmul.bf16.gmra.mxu0 %v1524
      %v3405 = vpop.f32.mrf.mxu0
      %v3406 = vadd.f32 %v3317, %v3405
      %v3407 = vpop.f32.mrf.mxu0
      %v3408 = vadd.f32 %v3319, %v3407
      %3409 = vmatmul.bf16.gmra.mxu0 %v1536
      %v3410 = vpop.f32.mrf.mxu0
      %v3411 = vadd.f32 %v3322, %v3410
      %v3412 = vpop.f32.mrf.mxu0
      %v3413 = vadd.f32 %v3324, %v3412
      %3414 = vmatmul.bf16.gmra.mxu0 %v1548
      %v3415 = vpop.f32.mrf.mxu0
      %v3416 = vadd.f32 %v3327, %v3415
      %v3417 = vpop.f32.mrf.mxu0
      %v3418 = vadd.f32 %v3329, %v3417
      %3419 = vmatmul.bf16.gmra.mxu0 %v1560
      %v3420 = vpop.f32.mrf.mxu0
      %v3421 = vadd.f32 %v3332, %v3420
      %v3422 = vpop.f32.mrf.mxu0
      %v3423 = vadd.f32 %v3334, %v3422
      %3424 = vmatmul.bf16.gmra.mxu0 %v1572
      %v3425 = vpop.f32.mrf.mxu0
      %v3426 = vadd.f32 %v3337, %v3425
      %v3427 = vpop.f32.mrf.mxu0
      %v3428 = vadd.f32 %v3339, %v3427
      %3429 = vmatmul.bf16.gmra.mxu0 %v1584
      %v3430 = vpop.f32.mrf.mxu0
      %v3431 = vadd.f32 %v3342, %v3430
      %v3432 = vpop.f32.mrf.mxu0
      %v3433 = vadd.f32 %v3344, %v3432
      %3434 = vmatmul.bf16.gmra.mxu0 %v1596
      %v3435 = vpop.f32.mrf.mxu0
      %v3436 = vadd.f32 %v3347, %v3435
      %v3437 = vpop.f32.mrf.mxu0
      %v3438 = vadd.f32 %v3349, %v3437
      %3439 = vmatmul.bf16.gmra.mxu0 %v1608
      %v3440 = vpop.f32.mrf.mxu0
      %v3441 = vadd.f32 %v3352, %v3440
      %v3442 = vpop.f32.mrf.mxu0
      %v3443 = vadd.f32 %v3354, %v3442
      %3444 = vmatmul.bf16.gmra.mxu0 %v1620
      %v3445 = vpop.f32.mrf.mxu0
      %v3446 = vadd.f32 %v3357, %v3445
      %v3447 = vpop.f32.mrf.mxu0
      %v3448 = vadd.f32 %v3359, %v3447
      %3449 = vmatmul.bf16.gmra.mxu0 %v1632
      %v3450 = vpop.f32.mrf.mxu0
      %v3451 = vadd.f32 %v3362, %v3450
      %v3452 = vpop.f32.mrf.mxu0
      %v3453 = vadd.f32 %v3364, %v3452
      %3454 = vmatmul.bf16.gmra.mxu0 %v1644
      %v3455 = vpop.f32.mrf.mxu0
      %v3456 = vadd.f32 %v3367, %v3455
      %v3457 = vpop.f32.mrf.mxu0
      %v3458 = vadd.f32 %v3369, %v3457
      %3459 = vmatmul.bf16.gmra.mxu0 %v1656
      %v3460 = vpop.f32.mrf.mxu0
      %v3461 = vadd.f32 %v3372, %v3460
      %v3462 = vpop.f32.mrf.mxu0
      %v3463 = vadd.f32 %v3374, %v3462
      %3464 = vmatmul.bf16.gmra.mxu0 %v1668
      %v3465 = vpop.f32.mrf.mxu0
      %v3466 = vadd.f32 %v3377, %v3465
      %v3467 = vpop.f32.mrf.mxu0
      %v3468 = vadd.f32 %v3379, %v3467
      %3469 = vmatmul.bf16.gmra.mxu0 %v1680
      %v3470 = vpop.f32.mrf.mxu0
      %v3471 = vadd.f32 %v3382, %v3470
      %v3472 = vpop.f32.mrf.mxu0
      %v3473 = vadd.f32 %v3384, %v3472
      %3474 = vmatmul.bf16.gmra.mxu0 %v1692
      %v3475 = vpop.f32.mrf.mxu0
      %v3476 = vadd.f32 %v3387, %v3475
      %v3477 = vpop.f32.mrf.mxu0
      %v3478 = vadd.f32 %v3389, %v3477
      %3479 = vmatmul.bf16.gmra.mxu0 %v1704
      %v3480 = vpop.f32.mrf.mxu0
      %v3481 = vadd.f32 %v3392, %v3480
      %v3482 = vpop.f32.mrf.mxu0
      %v3483 = vadd.f32 %v3394, %v3482
      %3484 = vdwg.mxu0
      %3485 = vmatpush.bf16.msra.mxu0 %v2604
      %3486 = vmatpush.bf16.msra.mxu0 %v2602
      %3487 = vmatpush.bf16.msra.mxu0 %v2600
      %3488 = vmatpush.bf16.msra.mxu0 %v2598
      %3489 = vmatpush.bf16.msra.mxu0 %v2596
      %3490 = vmatpush.bf16.msra.mxu0 %v2594
      %3491 = vmatpush.bf16.msra.mxu0 %v2592
      %3492 = vmatpush.bf16.msra.mxu0 %v2590
      %3493 = vmatmul.bf16.gmra.mxu0 %v1525
      %v3494 = vpop.f32.mrf.mxu0
      %v3495 = vadd.f32 %v3406, %v3494
      %v3496 = vpop.f32.mrf.mxu0
      %v3497 = vadd.f32 %v3408, %v3496
      %3498 = vmatmul.bf16.gmra.mxu0 %v1537
      %v3499 = vpop.f32.mrf.mxu0
      %v3500 = vadd.f32 %v3411, %v3499
      %v3501 = vpop.f32.mrf.mxu0
      %v3502 = vadd.f32 %v3413, %v3501
      %3503 = vmatmul.bf16.gmra.mxu0 %v1549
      %v3504 = vpop.f32.mrf.mxu0
      %v3505 = vadd.f32 %v3416, %v3504
      %v3506 = vpop.f32.mrf.mxu0
      %v3507 = vadd.f32 %v3418, %v3506
      %3508 = vmatmul.bf16.gmra.mxu0 %v1561
      %v3509 = vpop.f32.mrf.mxu0
      %v3510 = vadd.f32 %v3421, %v3509
      %v3511 = vpop.f32.mrf.mxu0
      %v3512 = vadd.f32 %v3423, %v3511
      %3513 = vmatmul.bf16.gmra.mxu0 %v1573
      %v3514 = vpop.f32.mrf.mxu0
      %v3515 = vadd.f32 %v3426, %v3514
      %v3516 = vpop.f32.mrf.mxu0
      %v3517 = vadd.f32 %v3428, %v3516
      %3518 = vmatmul.bf16.gmra.mxu0 %v1585
      %v3519 = vpop.f32.mrf.mxu0
      %v3520 = vadd.f32 %v3431, %v3519
      %v3521 = vpop.f32.mrf.mxu0
      %v3522 = vadd.f32 %v3433, %v3521
      %3523 = vmatmul.bf16.gmra.mxu0 %v1597
      %v3524 = vpop.f32.mrf.mxu0
      %v3525 = vadd.f32 %v3436, %v3524
      %v3526 = vpop.f32.mrf.mxu0
      %v3527 = vadd.f32 %v3438, %v3526
      %3528 = vmatmul.bf16.gmra.mxu0 %v1609
      %v3529 = vpop.f32.mrf.mxu0
      %v3530 = vadd.f32 %v3441, %v3529
      %v3531 = vpop.f32.mrf.mxu0
      %v3532 = vadd.f32 %v3443, %v3531
      %3533 = vmatmul.bf16.gmra.mxu0 %v1621
      %v3534 = vpop.f32.mrf.mxu0
      %v3535 = vadd.f32 %v3446, %v3534
      %v3536 = vpop.f32.mrf.mxu0
      %v3537 = vadd.f32 %v3448, %v3536
      %3538 = vmatmul.bf16.gmra.mxu0 %v1633
      %v3539 = vpop.f32.mrf.mxu0
      %v3540 = vadd.f32 %v3451, %v3539
      %v3541 = vpop.f32.mrf.mxu0
      %v3542 = vadd.f32 %v3453, %v3541
      %3543 = vmatmul.bf16.gmra.mxu0 %v1645
      %v3544 = vpop.f32.mrf.mxu0
      %v3545 = vadd.f32 %v3456, %v3544
      %v3546 = vpop.f32.mrf.mxu0
      %v3547 = vadd.f32 %v3458, %v3546
      %3548 = vmatmul.bf16.gmra.mxu0 %v1657
      %v3549 = vpop.f32.mrf.mxu0
      %v3550 = vadd.f32 %v3461, %v3549
      %v3551 = vpop.f32.mrf.mxu0
      %v3552 = vadd.f32 %v3463, %v3551
      %3553 = vmatmul.bf16.gmra.mxu0 %v1669
      %v3554 = vpop.f32.mrf.mxu0
      %v3555 = vadd.f32 %v3466, %v3554
      %v3556 = vpop.f32.mrf.mxu0
      %v3557 = vadd.f32 %v3468, %v3556
      %3558 = vmatmul.bf16.gmra.mxu0 %v1681
      %v3559 = vpop.f32.mrf.mxu0
      %v3560 = vadd.f32 %v3471, %v3559
      %v3561 = vpop.f32.mrf.mxu0
      %v3562 = vadd.f32 %v3473, %v3561
      %3563 = vmatmul.bf16.gmra.mxu0 %v1693
      %v3564 = vpop.f32.mrf.mxu0
      %v3565 = vadd.f32 %v3476, %v3564
      %v3566 = vpop.f32.mrf.mxu0
      %v3567 = vadd.f32 %v3478, %v3566
      %3568 = vmatmul.bf16.gmra.mxu0 %v1705
      %v3569 = vpop.f32.mrf.mxu0
      %v3570 = vadd.f32 %v3481, %v3569
      %v3571 = vpop.f32.mrf.mxu0
      %v3572 = vadd.f32 %v3483, %v3571
      %3573 = vdwg.mxu0
      %3574 = vmatpush.bf16.msra.mxu0 %v2620
      %3575 = vmatpush.bf16.msra.mxu0 %v2618
      %3576 = vmatpush.bf16.msra.mxu0 %v2616
      %3577 = vmatpush.bf16.msra.mxu0 %v2614
      %3578 = vmatpush.bf16.msra.mxu0 %v2612
      %3579 = vmatpush.bf16.msra.mxu0 %v2610
      %3580 = vmatpush.bf16.msra.mxu0 %v2608
      %3581 = vmatpush.bf16.msra.mxu0 %v2606
      %3582 = vmatmul.bf16.gmra.mxu0 %v1526
      %v3583 = vpop.f32.mrf.mxu0
      %v3584 = vadd.f32 %v3495, %v3583
      %v3585 = vpop.f32.mrf.mxu0
      %v3586 = vadd.f32 %v3497, %v3585
      %3587 = vmatmul.bf16.gmra.mxu0 %v1538
      %v3588 = vpop.f32.mrf.mxu0
      %v3589 = vadd.f32 %v3500, %v3588
      %v3590 = vpop.f32.mrf.mxu0
      %v3591 = vadd.f32 %v3502, %v3590
      %3592 = vmatmul.bf16.gmra.mxu0 %v1550
      %v3593 = vpop.f32.mrf.mxu0
      %v3594 = vadd.f32 %v3505, %v3593
      %v3595 = vpop.f32.mrf.mxu0
      %v3596 = vadd.f32 %v3507, %v3595
      %3597 = vmatmul.bf16.gmra.mxu0 %v1562
      %v3598 = vpop.f32.mrf.mxu0
      %v3599 = vadd.f32 %v3510, %v3598
      %v3600 = vpop.f32.mrf.mxu0
      %v3601 = vadd.f32 %v3512, %v3600
      %3602 = vmatmul.bf16.gmra.mxu0 %v1574
      %v3603 = vpop.f32.mrf.mxu0
      %v3604 = vadd.f32 %v3515, %v3603
      %v3605 = vpop.f32.mrf.mxu0
      %v3606 = vadd.f32 %v3517, %v3605
      %3607 = vmatmul.bf16.gmra.mxu0 %v1586
      %v3608 = vpop.f32.mrf.mxu0
      %v3609 = vadd.f32 %v3520, %v3608
      %v3610 = vpop.f32.mrf.mxu0
      %v3611 = vadd.f32 %v3522, %v3610
      %3612 = vmatmul.bf16.gmra.mxu0 %v1598
      %v3613 = vpop.f32.mrf.mxu0
      %v3614 = vadd.f32 %v3525, %v3613
      %v3615 = vpop.f32.mrf.mxu0
      %v3616 = vadd.f32 %v3527, %v3615
      %3617 = vmatmul.bf16.gmra.mxu0 %v1610
      %v3618 = vpop.f32.mrf.mxu0
      %v3619 = vadd.f32 %v3530, %v3618
      %v3620 = vpop.f32.mrf.mxu0
      %v3621 = vadd.f32 %v3532, %v3620
      %3622 = vmatmul.bf16.gmra.mxu0 %v1622
      %v3623 = vpop.f32.mrf.mxu0
      %v3624 = vadd.f32 %v3535, %v3623
      %v3625 = vpop.f32.mrf.mxu0
      %v3626 = vadd.f32 %v3537, %v3625
      %3627 = vmatmul.bf16.gmra.mxu0 %v1634
      %v3628 = vpop.f32.mrf.mxu0
      %v3629 = vadd.f32 %v3540, %v3628
      %v3630 = vpop.f32.mrf.mxu0
      %v3631 = vadd.f32 %v3542, %v3630
      %3632 = vmatmul.bf16.gmra.mxu0 %v1646
      %v3633 = vpop.f32.mrf.mxu0
      %v3634 = vadd.f32 %v3545, %v3633
      %v3635 = vpop.f32.mrf.mxu0
      %v3636 = vadd.f32 %v3547, %v3635
      %3637 = vmatmul.bf16.gmra.mxu0 %v1658
      %v3638 = vpop.f32.mrf.mxu0
      %v3639 = vadd.f32 %v3550, %v3638
      %v3640 = vpop.f32.mrf.mxu0
      %v3641 = vadd.f32 %v3552, %v3640
      %3642 = vmatmul.bf16.gmra.mxu0 %v1670
      %v3643 = vpop.f32.mrf.mxu0
      %v3644 = vadd.f32 %v3555, %v3643
      %v3645 = vpop.f32.mrf.mxu0
      %v3646 = vadd.f32 %v3557, %v3645
      %3647 = vmatmul.bf16.gmra.mxu0 %v1682
      %v3648 = vpop.f32.mrf.mxu0
      %v3649 = vadd.f32 %v3560, %v3648
      %v3650 = vpop.f32.mrf.mxu0
      %v3651 = vadd.f32 %v3562, %v3650
      %3652 = vmatmul.bf16.gmra.mxu0 %v1694
      %v3653 = vpop.f32.mrf.mxu0
      %v3654 = vadd.f32 %v3565, %v3653
      %v3655 = vpop.f32.mrf.mxu0
      %v3656 = vadd.f32 %v3567, %v3655
      %3657 = vmatmul.bf16.gmra.mxu0 %v1706
      %v3658 = vpop.f32.mrf.mxu0
      %v3659 = vadd.f32 %v3570, %v3658
      %v3660 = vpop.f32.mrf.mxu0
      %v3661 = vadd.f32 %v3572, %v3660
      %3662 = vdwg.mxu0
      %3663 = vmatpush.bf16.msra.mxu0 %v2636
      %3664 = vmatpush.bf16.msra.mxu0 %v2634
      %3665 = vmatpush.bf16.msra.mxu0 %v2632
      %3666 = vmatpush.bf16.msra.mxu0 %v2630
      %3667 = vmatpush.bf16.msra.mxu0 %v2628
      %3668 = vmatpush.bf16.msra.mxu0 %v2626
      %3669 = vmatpush.bf16.msra.mxu0 %v2624
      %3670 = vmatpush.bf16.msra.mxu0 %v2622
      %3671 = vmatmul.bf16.gmra.mxu0 %v1527
      %v3672 = vpop.f32.mrf.mxu0
      %v3673 = vadd.f32 %v3584, %v3672
      %v3674 = vpop.f32.mrf.mxu0
      %v3675 = vadd.f32 %v3586, %v3674
      %3676 = vmatmul.bf16.gmra.mxu0 %v1539
      %v3677 = vpop.f32.mrf.mxu0
      %v3678 = vadd.f32 %v3589, %v3677
      %v3679 = vpop.f32.mrf.mxu0
      %v3680 = vadd.f32 %v3591, %v3679
      %3681 = vmatmul.bf16.gmra.mxu0 %v1551
      %v3682 = vpop.f32.mrf.mxu0
      %v3683 = vadd.f32 %v3594, %v3682
      %v3684 = vpop.f32.mrf.mxu0
      %v3685 = vadd.f32 %v3596, %v3684
      %3686 = vmatmul.bf16.gmra.mxu0 %v1563
      %v3687 = vpop.f32.mrf.mxu0
      %v3688 = vadd.f32 %v3599, %v3687
      %v3689 = vpop.f32.mrf.mxu0
      %v3690 = vadd.f32 %v3601, %v3689
      %3691 = vmatmul.bf16.gmra.mxu0 %v1575
      %v3692 = vpop.f32.mrf.mxu0
      %v3693 = vadd.f32 %v3604, %v3692
      %v3694 = vpop.f32.mrf.mxu0
      %v3695 = vadd.f32 %v3606, %v3694
      %3696 = vmatmul.bf16.gmra.mxu0 %v1587
      %v3697 = vpop.f32.mrf.mxu0
      %v3698 = vadd.f32 %v3609, %v3697
      %v3699 = vpop.f32.mrf.mxu0
      %v3700 = vadd.f32 %v3611, %v3699
      %3701 = vmatmul.bf16.gmra.mxu0 %v1599
      %v3702 = vpop.f32.mrf.mxu0
      %v3703 = vadd.f32 %v3614, %v3702
      %v3704 = vpop.f32.mrf.mxu0
      %v3705 = vadd.f32 %v3616, %v3704
      %3706 = vmatmul.bf16.gmra.mxu0 %v1611
      %v3707 = vpop.f32.mrf.mxu0
      %v3708 = vadd.f32 %v3619, %v3707
      %v3709 = vpop.f32.mrf.mxu0
      %v3710 = vadd.f32 %v3621, %v3709
      %3711 = vmatmul.bf16.gmra.mxu0 %v1623
      %v3712 = vpop.f32.mrf.mxu0
      %v3713 = vadd.f32 %v3624, %v3712
      %v3714 = vpop.f32.mrf.mxu0
      %v3715 = vadd.f32 %v3626, %v3714
      %3716 = vmatmul.bf16.gmra.mxu0 %v1635
      %v3717 = vpop.f32.mrf.mxu0
      %v3718 = vadd.f32 %v3629, %v3717
      %v3719 = vpop.f32.mrf.mxu0
      %v3720 = vadd.f32 %v3631, %v3719
      %3721 = vmatmul.bf16.gmra.mxu0 %v1647
      %v3722 = vpop.f32.mrf.mxu0
      %v3723 = vadd.f32 %v3634, %v3722
      %v3724 = vpop.f32.mrf.mxu0
      %v3725 = vadd.f32 %v3636, %v3724
      %3726 = vmatmul.bf16.gmra.mxu0 %v1659
      %v3727 = vpop.f32.mrf.mxu0
      %v3728 = vadd.f32 %v3639, %v3727
      %v3729 = vpop.f32.mrf.mxu0
      %v3730 = vadd.f32 %v3641, %v3729
      %3731 = vmatmul.bf16.gmra.mxu0 %v1671
      %v3732 = vpop.f32.mrf.mxu0
      %v3733 = vadd.f32 %v3644, %v3732
      %v3734 = vpop.f32.mrf.mxu0
      %v3735 = vadd.f32 %v3646, %v3734
      %3736 = vmatmul.bf16.gmra.mxu0 %v1683
      %v3737 = vpop.f32.mrf.mxu0
      %v3738 = vadd.f32 %v3649, %v3737
      %v3739 = vpop.f32.mrf.mxu0
      %v3740 = vadd.f32 %v3651, %v3739
      %3741 = vmatmul.bf16.gmra.mxu0 %v1695
      %v3742 = vpop.f32.mrf.mxu0
      %v3743 = vadd.f32 %v3654, %v3742
      %v3744 = vpop.f32.mrf.mxu0
      %v3745 = vadd.f32 %v3656, %v3744
      %3746 = vmatmul.bf16.gmra.mxu0 %v1707
      %v3747 = vpop.f32.mrf.mxu0
      %v3748 = vadd.f32 %v3659, %v3747
      %v3749 = vpop.f32.mrf.mxu0
      %v3750 = vadd.f32 %v3661, %v3749
      %3751 = vdwg.mxu0
      %3752 = vmatpush.bf16.msra.mxu0 %v2652
      %3753 = vmatpush.bf16.msra.mxu0 %v2650
      %3754 = vmatpush.bf16.msra.mxu0 %v2648
      %3755 = vmatpush.bf16.msra.mxu0 %v2646
      %3756 = vmatpush.bf16.msra.mxu0 %v2644
      %3757 = vmatpush.bf16.msra.mxu0 %v2642
      %3758 = vmatpush.bf16.msra.mxu0 %v2640
      %3759 = vmatpush.bf16.msra.mxu0 %v2638
      %3760 = vmatmul.bf16.gmra.mxu0 %v1528
      %v3761 = vpop.f32.mrf.mxu0
      %v3762 = vadd.f32 %v3673, %v3761
      %v3763 = vpop.f32.mrf.mxu0
      %v3764 = vadd.f32 %v3675, %v3763
      %3765 = vmatmul.bf16.gmra.mxu0 %v1540
      %v3766 = vpop.f32.mrf.mxu0
      %v3767 = vadd.f32 %v3678, %v3766
      %v3768 = vpop.f32.mrf.mxu0
      %v3769 = vadd.f32 %v3680, %v3768
      %3770 = vmatmul.bf16.gmra.mxu0 %v1552
      %v3771 = vpop.f32.mrf.mxu0
      %v3772 = vadd.f32 %v3683, %v3771
      %v3773 = vpop.f32.mrf.mxu0
      %v3774 = vadd.f32 %v3685, %v3773
      %3775 = vmatmul.bf16.gmra.mxu0 %v1564
      %v3776 = vpop.f32.mrf.mxu0
      %v3777 = vadd.f32 %v3688, %v3776
      %v3778 = vpop.f32.mrf.mxu0
      %v3779 = vadd.f32 %v3690, %v3778
      %3780 = vmatmul.bf16.gmra.mxu0 %v1576
      %v3781 = vpop.f32.mrf.mxu0
      %v3782 = vadd.f32 %v3693, %v3781
      %v3783 = vpop.f32.mrf.mxu0
      %v3784 = vadd.f32 %v3695, %v3783
      %3785 = vmatmul.bf16.gmra.mxu0 %v1588
      %v3786 = vpop.f32.mrf.mxu0
      %v3787 = vadd.f32 %v3698, %v3786
      %v3788 = vpop.f32.mrf.mxu0
      %v3789 = vadd.f32 %v3700, %v3788
      %3790 = vmatmul.bf16.gmra.mxu0 %v1600
      %v3791 = vpop.f32.mrf.mxu0
      %v3792 = vadd.f32 %v3703, %v3791
      %v3793 = vpop.f32.mrf.mxu0
      %v3794 = vadd.f32 %v3705, %v3793
      %3795 = vmatmul.bf16.gmra.mxu0 %v1612
      %v3796 = vpop.f32.mrf.mxu0
      %v3797 = vadd.f32 %v3708, %v3796
      %v3798 = vpop.f32.mrf.mxu0
      %v3799 = vadd.f32 %v3710, %v3798
      %3800 = vmatmul.bf16.gmra.mxu0 %v1624
      %v3801 = vpop.f32.mrf.mxu0
      %v3802 = vadd.f32 %v3713, %v3801
      %v3803 = vpop.f32.mrf.mxu0
      %v3804 = vadd.f32 %v3715, %v3803
      %3805 = vmatmul.bf16.gmra.mxu0 %v1636
      %v3806 = vpop.f32.mrf.mxu0
      %v3807 = vadd.f32 %v3718, %v3806
      %v3808 = vpop.f32.mrf.mxu0
      %v3809 = vadd.f32 %v3720, %v3808
      %3810 = vmatmul.bf16.gmra.mxu0 %v1648
      %v3811 = vpop.f32.mrf.mxu0
      %v3812 = vadd.f32 %v3723, %v3811
      %v3813 = vpop.f32.mrf.mxu0
      %v3814 = vadd.f32 %v3725, %v3813
      %3815 = vmatmul.bf16.gmra.mxu0 %v1660
      %v3816 = vpop.f32.mrf.mxu0
      %v3817 = vadd.f32 %v3728, %v3816
      %v3818 = vpop.f32.mrf.mxu0
      %v3819 = vadd.f32 %v3730, %v3818
      %3820 = vmatmul.bf16.gmra.mxu0 %v1672
      %v3821 = vpop.f32.mrf.mxu0
      %v3822 = vadd.f32 %v3733, %v3821
      %v3823 = vpop.f32.mrf.mxu0
      %v3824 = vadd.f32 %v3735, %v3823
      %3825 = vmatmul.bf16.gmra.mxu0 %v1684
      %v3826 = vpop.f32.mrf.mxu0
      %v3827 = vadd.f32 %v3738, %v3826
      %v3828 = vpop.f32.mrf.mxu0
      %v3829 = vadd.f32 %v3740, %v3828
      %3830 = vmatmul.bf16.gmra.mxu0 %v1696
      %v3831 = vpop.f32.mrf.mxu0
      %v3832 = vadd.f32 %v3743, %v3831
      %v3833 = vpop.f32.mrf.mxu0
      %v3834 = vadd.f32 %v3745, %v3833
      %3835 = vmatmul.bf16.gmra.mxu0 %v1708
      %v3836 = vpop.f32.mrf.mxu0
      %v3837 = vadd.f32 %v3748, %v3836
      %v3838 = vpop.f32.mrf.mxu0
      %v3839 = vadd.f32 %v3750, %v3838
      %3840 = vdwg.mxu0
      %3841 = vmatpush.bf16.msra.mxu0 %v2668
      %3842 = vmatpush.bf16.msra.mxu0 %v2666
      %3843 = vmatpush.bf16.msra.mxu0 %v2664
      %3844 = vmatpush.bf16.msra.mxu0 %v2662
      %3845 = vmatpush.bf16.msra.mxu0 %v2660
      %3846 = vmatpush.bf16.msra.mxu0 %v2658
      %3847 = vmatpush.bf16.msra.mxu0 %v2656
      %3848 = vmatpush.bf16.msra.mxu0 %v2654
      %3849 = vmatmul.bf16.gmra.mxu0 %v1529
      %v3850 = vpop.f32.mrf.mxu0
      %v3851 = vadd.f32 %v3762, %v3850
      %v3852 = vpop.f32.mrf.mxu0
      %v3853 = vadd.f32 %v3764, %v3852
      %3854 = vmatmul.bf16.gmra.mxu0 %v1541
      %v3855 = vpop.f32.mrf.mxu0
      %v3856 = vadd.f32 %v3767, %v3855
      %v3857 = vpop.f32.mrf.mxu0
      %v3858 = vadd.f32 %v3769, %v3857
      %3859 = vmatmul.bf16.gmra.mxu0 %v1553
      %v3860 = vpop.f32.mrf.mxu0
      %v3861 = vadd.f32 %v3772, %v3860
      %v3862 = vpop.f32.mrf.mxu0
      %v3863 = vadd.f32 %v3774, %v3862
      %3864 = vmatmul.bf16.gmra.mxu0 %v1565
      %v3865 = vpop.f32.mrf.mxu0
      %v3866 = vadd.f32 %v3777, %v3865
      %v3867 = vpop.f32.mrf.mxu0
      %v3868 = vadd.f32 %v3779, %v3867
      %3869 = vmatmul.bf16.gmra.mxu0 %v1577
      %v3870 = vpop.f32.mrf.mxu0
      %v3871 = vadd.f32 %v3782, %v3870
      %v3872 = vpop.f32.mrf.mxu0
      %v3873 = vadd.f32 %v3784, %v3872
      %3874 = vmatmul.bf16.gmra.mxu0 %v1589
      %v3875 = vpop.f32.mrf.mxu0
      %v3876 = vadd.f32 %v3787, %v3875
      %v3877 = vpop.f32.mrf.mxu0
      %v3878 = vadd.f32 %v3789, %v3877
      %3879 = vmatmul.bf16.gmra.mxu0 %v1601
      %v3880 = vpop.f32.mrf.mxu0
      %v3881 = vadd.f32 %v3792, %v3880
      %v3882 = vpop.f32.mrf.mxu0
      %v3883 = vadd.f32 %v3794, %v3882
      %3884 = vmatmul.bf16.gmra.mxu0 %v1613
      %v3885 = vpop.f32.mrf.mxu0
      %v3886 = vadd.f32 %v3797, %v3885
      %v3887 = vpop.f32.mrf.mxu0
      %v3888 = vadd.f32 %v3799, %v3887
      %3889 = vmatmul.bf16.gmra.mxu0 %v1625
      %v3890 = vpop.f32.mrf.mxu0
      %v3891 = vadd.f32 %v3802, %v3890
      %v3892 = vpop.f32.mrf.mxu0
      %v3893 = vadd.f32 %v3804, %v3892
      %3894 = vmatmul.bf16.gmra.mxu0 %v1637
      %v3895 = vpop.f32.mrf.mxu0
      %v3896 = vadd.f32 %v3807, %v3895
      %v3897 = vpop.f32.mrf.mxu0
      %v3898 = vadd.f32 %v3809, %v3897
      %3899 = vmatmul.bf16.gmra.mxu0 %v1649
      %v3900 = vpop.f32.mrf.mxu0
      %v3901 = vadd.f32 %v3812, %v3900
      %v3902 = vpop.f32.mrf.mxu0
      %v3903 = vadd.f32 %v3814, %v3902
      %3904 = vmatmul.bf16.gmra.mxu0 %v1661
      %v3905 = vpop.f32.mrf.mxu0
      %v3906 = vadd.f32 %v3817, %v3905
      %v3907 = vpop.f32.mrf.mxu0
      %v3908 = vadd.f32 %v3819, %v3907
      %3909 = vmatmul.bf16.gmra.mxu0 %v1673
      %v3910 = vpop.f32.mrf.mxu0
      %v3911 = vadd.f32 %v3822, %v3910
      %v3912 = vpop.f32.mrf.mxu0
      %v3913 = vadd.f32 %v3824, %v3912
      %3914 = vmatmul.bf16.gmra.mxu0 %v1685
      %v3915 = vpop.f32.mrf.mxu0
      %v3916 = vadd.f32 %v3827, %v3915
      %v3917 = vpop.f32.mrf.mxu0
      %v3918 = vadd.f32 %v3829, %v3917
      %3919 = vmatmul.bf16.gmra.mxu0 %v1697
      %v3920 = vpop.f32.mrf.mxu0
      %v3921 = vadd.f32 %v3832, %v3920
      %v3922 = vpop.f32.mrf.mxu0
      %v3923 = vadd.f32 %v3834, %v3922
      %3924 = vmatmul.bf16.gmra.mxu0 %v1709
      %v3925 = vpop.f32.mrf.mxu0
      %v3926 = vadd.f32 %v3837, %v3925
      %v3927 = vpop.f32.mrf.mxu0
      %v3928 = vadd.f32 %v3839, %v3927
      %3929 = vdwg.mxu0
      %3930 = vmatpush.bf16.msra.mxu0 %v2493
      %3931 = vmatpush.bf16.msra.mxu0 %v2491
      %3932 = vmatpush.bf16.msra.mxu0 %v2489
      %3933 = vmatpush.bf16.msra.mxu0 %v2487
      %3934 = vmatpush.bf16.msra.mxu0 %v2485
      %3935 = vmatpush.bf16.msra.mxu0 %v2483
      %3936 = vmatpush.bf16.msra.mxu0 %v2481
      %3937 = vmatpush.bf16.msra.mxu0 %v2479
      %3938 = vmatmul.bf16.gmra.mxu0 %v1518
      %v3939 = vpop.f32.mrf.mxu0
      %v3940 = vadd.f32 %v939, %v3939
      %v3941 = vpop.f32.mrf.mxu0
      %v3942 = vadd.f32 %v939, %v3941
      %3943 = vmatmul.bf16.gmra.mxu0 %v1530
      %v3944 = vpop.f32.mrf.mxu0
      %v3945 = vadd.f32 %v939, %v3944
      %v3946 = vpop.f32.mrf.mxu0
      %v3947 = vadd.f32 %v939, %v3946
      %3948 = vmatmul.bf16.gmra.mxu0 %v1542
      %v3949 = vpop.f32.mrf.mxu0
      %v3950 = vadd.f32 %v939, %v3949
      %v3951 = vpop.f32.mrf.mxu0
      %v3952 = vadd.f32 %v939, %v3951
      %3953 = vmatmul.bf16.gmra.mxu0 %v1554
      %v3954 = vpop.f32.mrf.mxu0
      %v3955 = vadd.f32 %v939, %v3954
      %v3956 = vpop.f32.mrf.mxu0
      %v3957 = vadd.f32 %v939, %v3956
      %3958 = vmatmul.bf16.gmra.mxu0 %v1566
      %v3959 = vpop.f32.mrf.mxu0
      %v3960 = vadd.f32 %v939, %v3959
      %v3961 = vpop.f32.mrf.mxu0
      %v3962 = vadd.f32 %v939, %v3961
      %3963 = vmatmul.bf16.gmra.mxu0 %v1578
      %v3964 = vpop.f32.mrf.mxu0
      %v3965 = vadd.f32 %v939, %v3964
      %v3966 = vpop.f32.mrf.mxu0
      %v3967 = vadd.f32 %v939, %v3966
      %3968 = vmatmul.bf16.gmra.mxu0 %v1590
      %v3969 = vpop.f32.mrf.mxu0
      %v3970 = vadd.f32 %v939, %v3969
      %v3971 = vpop.f32.mrf.mxu0
      %v3972 = vadd.f32 %v939, %v3971
      %3973 = vmatmul.bf16.gmra.mxu0 %v1602
      %v3974 = vpop.f32.mrf.mxu0
      %v3975 = vadd.f32 %v939, %v3974
      %v3976 = vpop.f32.mrf.mxu0
      %v3977 = vadd.f32 %v939, %v3976
      %3978 = vmatmul.bf16.gmra.mxu0 %v1614
      %v3979 = vpop.f32.mrf.mxu0
      %v3980 = vadd.f32 %v939, %v3979
      %v3981 = vpop.f32.mrf.mxu0
      %v3982 = vadd.f32 %v939, %v3981
      %3983 = vmatmul.bf16.gmra.mxu0 %v1626
      %v3984 = vpop.f32.mrf.mxu0
      %v3985 = vadd.f32 %v939, %v3984
      %v3986 = vpop.f32.mrf.mxu0
      %v3987 = vadd.f32 %v939, %v3986
      %3988 = vmatmul.bf16.gmra.mxu0 %v1638
      %v3989 = vpop.f32.mrf.mxu0
      %v3990 = vadd.f32 %v939, %v3989
      %v3991 = vpop.f32.mrf.mxu0
      %v3992 = vadd.f32 %v939, %v3991
      %3993 = vmatmul.bf16.gmra.mxu0 %v1650
      %v3994 = vpop.f32.mrf.mxu0
      %v3995 = vadd.f32 %v939, %v3994
      %v3996 = vpop.f32.mrf.mxu0
      %v3997 = vadd.f32 %v939, %v3996
      %3998 = vmatmul.bf16.gmra.mxu0 %v1662
      %v3999 = vpop.f32.mrf.mxu0
      %v4000 = vadd.f32 %v939, %v3999
      %v4001 = vpop.f32.mrf.mxu0
      %v4002 = vadd.f32 %v939, %v4001
      %4003 = vmatmul.bf16.gmra.mxu0 %v1674
      %v4004 = vpop.f32.mrf.mxu0
      %v4005 = vadd.f32 %v939, %v4004
      %v4006 = vpop.f32.mrf.mxu0
      %v4007 = vadd.f32 %v939, %v4006
      %4008 = vmatmul.bf16.gmra.mxu0 %v1686
      %v4009 = vpop.f32.mrf.mxu0
      %v4010 = vadd.f32 %v939, %v4009
      %v4011 = vpop.f32.mrf.mxu0
      %v4012 = vadd.f32 %v939, %v4011
      %4013 = vmatmul.bf16.gmra.mxu0 %v1698
      %v4014 = vpop.f32.mrf.mxu0
      %v4015 = vadd.f32 %v939, %v4014
      %v4016 = vpop.f32.mrf.mxu0
      %v4017 = vadd.f32 %v939, %v4016
      %4018 = vdwg.mxu0
      %4019 = vmatpush.bf16.msra.mxu0 %v2509
      %4020 = vmatpush.bf16.msra.mxu0 %v2507
      %4021 = vmatpush.bf16.msra.mxu0 %v2505
      %4022 = vmatpush.bf16.msra.mxu0 %v2503
      %4023 = vmatpush.bf16.msra.mxu0 %v2501
      %4024 = vmatpush.bf16.msra.mxu0 %v2499
      %4025 = vmatpush.bf16.msra.mxu0 %v2497
      %4026 = vmatpush.bf16.msra.mxu0 %v2495
      %4027 = vmatmul.bf16.gmra.mxu0 %v1519
      %v4028 = vpop.f32.mrf.mxu0
      %v4029 = vadd.f32 %v3940, %v4028
      %v4030 = vpop.f32.mrf.mxu0
      %v4031 = vadd.f32 %v3942, %v4030
      %4032 = vmatmul.bf16.gmra.mxu0 %v1531
      %v4033 = vpop.f32.mrf.mxu0
      %v4034 = vadd.f32 %v3945, %v4033
      %v4035 = vpop.f32.mrf.mxu0
      %v4036 = vadd.f32 %v3947, %v4035
      %4037 = vmatmul.bf16.gmra.mxu0 %v1543
      %v4038 = vpop.f32.mrf.mxu0
      %v4039 = vadd.f32 %v3950, %v4038
      %v4040 = vpop.f32.mrf.mxu0
      %v4041 = vadd.f32 %v3952, %v4040
      %4042 = vmatmul.bf16.gmra.mxu0 %v1555
      %v4043 = vpop.f32.mrf.mxu0
      %v4044 = vadd.f32 %v3955, %v4043
      %v4045 = vpop.f32.mrf.mxu0
      %v4046 = vadd.f32 %v3957, %v4045
      %4047 = vmatmul.bf16.gmra.mxu0 %v1567
      %v4048 = vpop.f32.mrf.mxu0
      %v4049 = vadd.f32 %v3960, %v4048
      %v4050 = vpop.f32.mrf.mxu0
      %v4051 = vadd.f32 %v3962, %v4050
      %4052 = vmatmul.bf16.gmra.mxu0 %v1579
      %v4053 = vpop.f32.mrf.mxu0
      %v4054 = vadd.f32 %v3965, %v4053
      %v4055 = vpop.f32.mrf.mxu0
      %v4056 = vadd.f32 %v3967, %v4055
      %4057 = vmatmul.bf16.gmra.mxu0 %v1591
      %v4058 = vpop.f32.mrf.mxu0
      %v4059 = vadd.f32 %v3970, %v4058
      %v4060 = vpop.f32.mrf.mxu0
      %v4061 = vadd.f32 %v3972, %v4060
      %4062 = vmatmul.bf16.gmra.mxu0 %v1603
      %v4063 = vpop.f32.mrf.mxu0
      %v4064 = vadd.f32 %v3975, %v4063
      %v4065 = vpop.f32.mrf.mxu0
      %v4066 = vadd.f32 %v3977, %v4065
      %4067 = vmatmul.bf16.gmra.mxu0 %v1615
      %v4068 = vpop.f32.mrf.mxu0
      %v4069 = vadd.f32 %v3980, %v4068
      %v4070 = vpop.f32.mrf.mxu0
      %v4071 = vadd.f32 %v3982, %v4070
      %4072 = vmatmul.bf16.gmra.mxu0 %v1627
      %v4073 = vpop.f32.mrf.mxu0
      %v4074 = vadd.f32 %v3985, %v4073
      %v4075 = vpop.f32.mrf.mxu0
      %v4076 = vadd.f32 %v3987, %v4075
      %4077 = vmatmul.bf16.gmra.mxu0 %v1639
      %v4078 = vpop.f32.mrf.mxu0
      %v4079 = vadd.f32 %v3990, %v4078
      %v4080 = vpop.f32.mrf.mxu0
      %v4081 = vadd.f32 %v3992, %v4080
      %4082 = vmatmul.bf16.gmra.mxu0 %v1651
      %v4083 = vpop.f32.mrf.mxu0
      %v4084 = vadd.f32 %v3995, %v4083
      %v4085 = vpop.f32.mrf.mxu0
      %v4086 = vadd.f32 %v3997, %v4085
      %4087 = vmatmul.bf16.gmra.mxu0 %v1663
      %v4088 = vpop.f32.mrf.mxu0
      %v4089 = vadd.f32 %v4000, %v4088
      %v4090 = vpop.f32.mrf.mxu0
      %v4091 = vadd.f32 %v4002, %v4090
      %4092 = vmatmul.bf16.gmra.mxu0 %v1675
      %v4093 = vpop.f32.mrf.mxu0
      %v4094 = vadd.f32 %v4005, %v4093
      %v4095 = vpop.f32.mrf.mxu0
      %v4096 = vadd.f32 %v4007, %v4095
      %4097 = vmatmul.bf16.gmra.mxu0 %v1687
      %v4098 = vpop.f32.mrf.mxu0
      %v4099 = vadd.f32 %v4010, %v4098
      %v4100 = vpop.f32.mrf.mxu0
      %v4101 = vadd.f32 %v4012, %v4100
      %4102 = vmatmul.bf16.gmra.mxu0 %v1699
      %v4103 = vpop.f32.mrf.mxu0
      %v4104 = vadd.f32 %v4015, %v4103
      %v4105 = vpop.f32.mrf.mxu0
      %v4106 = vadd.f32 %v4017, %v4105
      %4107 = vdwg.mxu0
      %4108 = vmatpush.bf16.msra.mxu0 %v2525
      %4109 = vmatpush.bf16.msra.mxu0 %v2523
      %4110 = vmatpush.bf16.msra.mxu0 %v2521
      %4111 = vmatpush.bf16.msra.mxu0 %v2519
      %4112 = vmatpush.bf16.msra.mxu0 %v2517
      %4113 = vmatpush.bf16.msra.mxu0 %v2515
      %4114 = vmatpush.bf16.msra.mxu0 %v2513
      %4115 = vmatpush.bf16.msra.mxu0 %v2511
      %4116 = vmatmul.bf16.gmra.mxu0 %v1520
      %v4117 = vpop.f32.mrf.mxu0
      %v4118 = vadd.f32 %v4029, %v4117
      %v4119 = vpop.f32.mrf.mxu0
      %v4120 = vadd.f32 %v4031, %v4119
      %4121 = vmatmul.bf16.gmra.mxu0 %v1532
      %v4122 = vpop.f32.mrf.mxu0
      %v4123 = vadd.f32 %v4034, %v4122
      %v4124 = vpop.f32.mrf.mxu0
      %v4125 = vadd.f32 %v4036, %v4124
      %4126 = vmatmul.bf16.gmra.mxu0 %v1544
      %v4127 = vpop.f32.mrf.mxu0
      %v4128 = vadd.f32 %v4039, %v4127
      %v4129 = vpop.f32.mrf.mxu0
      %v4130 = vadd.f32 %v4041, %v4129
      %4131 = vmatmul.bf16.gmra.mxu0 %v1556
      %v4132 = vpop.f32.mrf.mxu0
      %v4133 = vadd.f32 %v4044, %v4132
      %v4134 = vpop.f32.mrf.mxu0
      %v4135 = vadd.f32 %v4046, %v4134
      %4136 = vmatmul.bf16.gmra.mxu0 %v1568
      %v4137 = vpop.f32.mrf.mxu0
      %v4138 = vadd.f32 %v4049, %v4137
      %v4139 = vpop.f32.mrf.mxu0
      %v4140 = vadd.f32 %v4051, %v4139
      %4141 = vmatmul.bf16.gmra.mxu0 %v1580
      %v4142 = vpop.f32.mrf.mxu0
      %v4143 = vadd.f32 %v4054, %v4142
      %v4144 = vpop.f32.mrf.mxu0
      %v4145 = vadd.f32 %v4056, %v4144
      %4146 = vmatmul.bf16.gmra.mxu0 %v1592
      %v4147 = vpop.f32.mrf.mxu0
      %v4148 = vadd.f32 %v4059, %v4147
      %v4149 = vpop.f32.mrf.mxu0
      %v4150 = vadd.f32 %v4061, %v4149
      %4151 = vmatmul.bf16.gmra.mxu0 %v1604
      %v4152 = vpop.f32.mrf.mxu0
      %v4153 = vadd.f32 %v4064, %v4152
      %v4154 = vpop.f32.mrf.mxu0
      %v4155 = vadd.f32 %v4066, %v4154
      %4156 = vmatmul.bf16.gmra.mxu0 %v1616
      %v4157 = vpop.f32.mrf.mxu0
      %v4158 = vadd.f32 %v4069, %v4157
      %v4159 = vpop.f32.mrf.mxu0
      %v4160 = vadd.f32 %v4071, %v4159
      %4161 = vmatmul.bf16.gmra.mxu0 %v1628
      %v4162 = vpop.f32.mrf.mxu0
      %v4163 = vadd.f32 %v4074, %v4162
      %v4164 = vpop.f32.mrf.mxu0
      %v4165 = vadd.f32 %v4076, %v4164
      %4166 = vmatmul.bf16.gmra.mxu0 %v1640
      %v4167 = vpop.f32.mrf.mxu0
      %v4168 = vadd.f32 %v4079, %v4167
      %v4169 = vpop.f32.mrf.mxu0
      %v4170 = vadd.f32 %v4081, %v4169
      %4171 = vmatmul.bf16.gmra.mxu0 %v1652
      %v4172 = vpop.f32.mrf.mxu0
      %v4173 = vadd.f32 %v4084, %v4172
      %v4174 = vpop.f32.mrf.mxu0
      %v4175 = vadd.f32 %v4086, %v4174
      %4176 = vmatmul.bf16.gmra.mxu0 %v1664
      %v4177 = vpop.f32.mrf.mxu0
      %v4178 = vadd.f32 %v4089, %v4177
      %v4179 = vpop.f32.mrf.mxu0
      %v4180 = vadd.f32 %v4091, %v4179
      %4181 = vmatmul.bf16.gmra.mxu0 %v1676
      %v4182 = vpop.f32.mrf.mxu0
      %v4183 = vadd.f32 %v4094, %v4182
      %v4184 = vpop.f32.mrf.mxu0
      %v4185 = vadd.f32 %v4096, %v4184
      %4186 = vmatmul.bf16.gmra.mxu0 %v1688
      %v4187 = vpop.f32.mrf.mxu0
      %v4188 = vadd.f32 %v4099, %v4187
      %v4189 = vpop.f32.mrf.mxu0
      %v4190 = vadd.f32 %v4101, %v4189
      %4191 = vmatmul.bf16.gmra.mxu0 %v1700
      %v4192 = vpop.f32.mrf.mxu0
      %v4193 = vadd.f32 %v4104, %v4192
      %v4194 = vpop.f32.mrf.mxu0
      %v4195 = vadd.f32 %v4106, %v4194
      %4196 = vdwg.mxu0
      %4197 = vmatpush.bf16.msra.mxu0 %v2541
      %4198 = vmatpush.bf16.msra.mxu0 %v2539
      %4199 = vmatpush.bf16.msra.mxu0 %v2537
      %4200 = vmatpush.bf16.msra.mxu0 %v2535
      %4201 = vmatpush.bf16.msra.mxu0 %v2533
      %4202 = vmatpush.bf16.msra.mxu0 %v2531
      %4203 = vmatpush.bf16.msra.mxu0 %v2529
      %4204 = vmatpush.bf16.msra.mxu0 %v2527
      %4205 = vmatmul.bf16.gmra.mxu0 %v1521
      %v4206 = vpop.f32.mrf.mxu0
      %v4207 = vadd.f32 %v4118, %v4206
      %v4208 = vpop.f32.mrf.mxu0
      %v4209 = vadd.f32 %v4120, %v4208
      %4210 = vmatmul.bf16.gmra.mxu0 %v1533
      %v4211 = vpop.f32.mrf.mxu0
      %v4212 = vadd.f32 %v4123, %v4211
      %v4213 = vpop.f32.mrf.mxu0
      %v4214 = vadd.f32 %v4125, %v4213
      %4215 = vmatmul.bf16.gmra.mxu0 %v1545
      %v4216 = vpop.f32.mrf.mxu0
      %v4217 = vadd.f32 %v4128, %v4216
      %v4218 = vpop.f32.mrf.mxu0
      %v4219 = vadd.f32 %v4130, %v4218
      %4220 = vmatmul.bf16.gmra.mxu0 %v1557
      %v4221 = vpop.f32.mrf.mxu0
      %v4222 = vadd.f32 %v4133, %v4221
      %v4223 = vpop.f32.mrf.mxu0
      %v4224 = vadd.f32 %v4135, %v4223
      %4225 = vmatmul.bf16.gmra.mxu0 %v1569
      %v4226 = vpop.f32.mrf.mxu0
      %v4227 = vadd.f32 %v4138, %v4226
      %v4228 = vpop.f32.mrf.mxu0
      %v4229 = vadd.f32 %v4140, %v4228
      %4230 = vmatmul.bf16.gmra.mxu0 %v1581
      %v4231 = vpop.f32.mrf.mxu0
      %v4232 = vadd.f32 %v4143, %v4231
      %v4233 = vpop.f32.mrf.mxu0
      %v4234 = vadd.f32 %v4145, %v4233
      %4235 = vmatmul.bf16.gmra.mxu0 %v1593
      %v4236 = vpop.f32.mrf.mxu0
      %v4237 = vadd.f32 %v4148, %v4236
      %v4238 = vpop.f32.mrf.mxu0
      %v4239 = vadd.f32 %v4150, %v4238
      %4240 = vmatmul.bf16.gmra.mxu0 %v1605
      %v4241 = vpop.f32.mrf.mxu0
      %v4242 = vadd.f32 %v4153, %v4241
      %v4243 = vpop.f32.mrf.mxu0
      %v4244 = vadd.f32 %v4155, %v4243
      %4245 = vmatmul.bf16.gmra.mxu0 %v1617
      %v4246 = vpop.f32.mrf.mxu0
      %v4247 = vadd.f32 %v4158, %v4246
      %v4248 = vpop.f32.mrf.mxu0
      %v4249 = vadd.f32 %v4160, %v4248
      %4250 = vmatmul.bf16.gmra.mxu0 %v1629
      %v4251 = vpop.f32.mrf.mxu0
      %v4252 = vadd.f32 %v4163, %v4251
      %v4253 = vpop.f32.mrf.mxu0
      %v4254 = vadd.f32 %v4165, %v4253
      %4255 = vmatmul.bf16.gmra.mxu0 %v1641
      %v4256 = vpop.f32.mrf.mxu0
      %v4257 = vadd.f32 %v4168, %v4256
      %v4258 = vpop.f32.mrf.mxu0
      %v4259 = vadd.f32 %v4170, %v4258
      %4260 = vmatmul.bf16.gmra.mxu0 %v1653
      %v4261 = vpop.f32.mrf.mxu0
      %v4262 = vadd.f32 %v4173, %v4261
      %v4263 = vpop.f32.mrf.mxu0
      %v4264 = vadd.f32 %v4175, %v4263
      %4265 = vmatmul.bf16.gmra.mxu0 %v1665
      %v4266 = vpop.f32.mrf.mxu0
      %v4267 = vadd.f32 %v4178, %v4266
      %v4268 = vpop.f32.mrf.mxu0
      %v4269 = vadd.f32 %v4180, %v4268
      %4270 = vmatmul.bf16.gmra.mxu0 %v1677
      %v4271 = vpop.f32.mrf.mxu0
      %v4272 = vadd.f32 %v4183, %v4271
      %v4273 = vpop.f32.mrf.mxu0
      %v4274 = vadd.f32 %v4185, %v4273
      %4275 = vmatmul.bf16.gmra.mxu0 %v1689
      %v4276 = vpop.f32.mrf.mxu0
      %v4277 = vadd.f32 %v4188, %v4276
      %v4278 = vpop.f32.mrf.mxu0
      %v4279 = vadd.f32 %v4190, %v4278
      %4280 = vmatmul.bf16.gmra.mxu0 %v1701
      %v4281 = vpop.f32.mrf.mxu0
      %v4282 = vadd.f32 %v4193, %v4281
      %v4283 = vpop.f32.mrf.mxu0
      %v4284 = vadd.f32 %v4195, %v4283
      %4285 = vdwg.mxu0
      %4286 = vmatpush.bf16.msra.mxu0 %v2557
      %4287 = vmatpush.bf16.msra.mxu0 %v2555
      %4288 = vmatpush.bf16.msra.mxu0 %v2553
      %4289 = vmatpush.bf16.msra.mxu0 %v2551
      %4290 = vmatpush.bf16.msra.mxu0 %v2549
      %4291 = vmatpush.bf16.msra.mxu0 %v2547
      %4292 = vmatpush.bf16.msra.mxu0 %v2545
      %4293 = vmatpush.bf16.msra.mxu0 %v2543
      %4294 = vmatmul.bf16.gmra.mxu0 %v1522
      %v4295 = vpop.f32.mrf.mxu0
      %v4296 = vadd.f32 %v4207, %v4295
      %v4297 = vpop.f32.mrf.mxu0
      %v4298 = vadd.f32 %v4209, %v4297
      %4299 = vmatmul.bf16.gmra.mxu0 %v1534
      %v4300 = vpop.f32.mrf.mxu0
      %v4301 = vadd.f32 %v4212, %v4300
      %v4302 = vpop.f32.mrf.mxu0
      %v4303 = vadd.f32 %v4214, %v4302
      %4304 = vmatmul.bf16.gmra.mxu0 %v1546
      %v4305 = vpop.f32.mrf.mxu0
      %v4306 = vadd.f32 %v4217, %v4305
      %v4307 = vpop.f32.mrf.mxu0
      %v4308 = vadd.f32 %v4219, %v4307
      %4309 = vmatmul.bf16.gmra.mxu0 %v1558
      %v4310 = vpop.f32.mrf.mxu0
      %v4311 = vadd.f32 %v4222, %v4310
      %v4312 = vpop.f32.mrf.mxu0
      %v4313 = vadd.f32 %v4224, %v4312
      %4314 = vmatmul.bf16.gmra.mxu0 %v1570
      %v4315 = vpop.f32.mrf.mxu0
      %v4316 = vadd.f32 %v4227, %v4315
      %v4317 = vpop.f32.mrf.mxu0
      %v4318 = vadd.f32 %v4229, %v4317
      %4319 = vmatmul.bf16.gmra.mxu0 %v1582
      %v4320 = vpop.f32.mrf.mxu0
      %v4321 = vadd.f32 %v4232, %v4320
      %v4322 = vpop.f32.mrf.mxu0
      %v4323 = vadd.f32 %v4234, %v4322
      %4324 = vmatmul.bf16.gmra.mxu0 %v1594
      %v4325 = vpop.f32.mrf.mxu0
      %v4326 = vadd.f32 %v4237, %v4325
      %v4327 = vpop.f32.mrf.mxu0
      %v4328 = vadd.f32 %v4239, %v4327
      %4329 = vmatmul.bf16.gmra.mxu0 %v1606
      %v4330 = vpop.f32.mrf.mxu0
      %v4331 = vadd.f32 %v4242, %v4330
      %v4332 = vpop.f32.mrf.mxu0
      %v4333 = vadd.f32 %v4244, %v4332
      %4334 = vmatmul.bf16.gmra.mxu0 %v1618
      %v4335 = vpop.f32.mrf.mxu0
      %v4336 = vadd.f32 %v4247, %v4335
      %v4337 = vpop.f32.mrf.mxu0
      %v4338 = vadd.f32 %v4249, %v4337
      %4339 = vmatmul.bf16.gmra.mxu0 %v1630
      %v4340 = vpop.f32.mrf.mxu0
      %v4341 = vadd.f32 %v4252, %v4340
      %v4342 = vpop.f32.mrf.mxu0
      %v4343 = vadd.f32 %v4254, %v4342
      %4344 = vmatmul.bf16.gmra.mxu0 %v1642
      %v4345 = vpop.f32.mrf.mxu0
      %v4346 = vadd.f32 %v4257, %v4345
      %v4347 = vpop.f32.mrf.mxu0
      %v4348 = vadd.f32 %v4259, %v4347
      %4349 = vmatmul.bf16.gmra.mxu0 %v1654
      %v4350 = vpop.f32.mrf.mxu0
      %v4351 = vadd.f32 %v4262, %v4350
      %v4352 = vpop.f32.mrf.mxu0
      %v4353 = vadd.f32 %v4264, %v4352
      %4354 = vmatmul.bf16.gmra.mxu0 %v1666
      %v4355 = vpop.f32.mrf.mxu0
      %v4356 = vadd.f32 %v4267, %v4355
      %v4357 = vpop.f32.mrf.mxu0
      %v4358 = vadd.f32 %v4269, %v4357
      %4359 = vmatmul.bf16.gmra.mxu0 %v1678
      %v4360 = vpop.f32.mrf.mxu0
      %v4361 = vadd.f32 %v4272, %v4360
      %v4362 = vpop.f32.mrf.mxu0
      %v4363 = vadd.f32 %v4274, %v4362
      %4364 = vmatmul.bf16.gmra.mxu0 %v1690
      %v4365 = vpop.f32.mrf.mxu0
      %v4366 = vadd.f32 %v4277, %v4365
      %v4367 = vpop.f32.mrf.mxu0
      %v4368 = vadd.f32 %v4279, %v4367
      %4369 = vmatmul.bf16.gmra.mxu0 %v1702
      %v4370 = vpop.f32.mrf.mxu0
      %v4371 = vadd.f32 %v4282, %v4370
      %v4372 = vpop.f32.mrf.mxu0
      %v4373 = vadd.f32 %v4284, %v4372
      %4374 = vdwg.mxu0
      %4375 = vmatpush.bf16.msra.mxu0 %v2573
      %4376 = vmatpush.bf16.msra.mxu0 %v2571
      %4377 = vmatpush.bf16.msra.mxu0 %v2569
      %4378 = vmatpush.bf16.msra.mxu0 %v2567
      %4379 = vmatpush.bf16.msra.mxu0 %v2565
      %4380 = vmatpush.bf16.msra.mxu0 %v2563
      %4381 = vmatpush.bf16.msra.mxu0 %v2561
      %4382 = vmatpush.bf16.msra.mxu0 %v2559
      %4383 = vmatmul.bf16.gmra.mxu0 %v1523
      %v4384 = vpop.f32.mrf.mxu0
      %v4385 = vadd.f32 %v4296, %v4384
      %v4386 = vpop.f32.mrf.mxu0
      %v4387 = vadd.f32 %v4298, %v4386
      %4388 = vmatmul.bf16.gmra.mxu0 %v1535
      %v4389 = vpop.f32.mrf.mxu0
      %v4390 = vadd.f32 %v4301, %v4389
      %v4391 = vpop.f32.mrf.mxu0
      %v4392 = vadd.f32 %v4303, %v4391
      %4393 = vmatmul.bf16.gmra.mxu0 %v1547
      %v4394 = vpop.f32.mrf.mxu0
      %v4395 = vadd.f32 %v4306, %v4394
      %v4396 = vpop.f32.mrf.mxu0
      %v4397 = vadd.f32 %v4308, %v4396
      %4398 = vmatmul.bf16.gmra.mxu0 %v1559
      %v4399 = vpop.f32.mrf.mxu0
      %v4400 = vadd.f32 %v4311, %v4399
      %v4401 = vpop.f32.mrf.mxu0
      %v4402 = vadd.f32 %v4313, %v4401
      %4403 = vmatmul.bf16.gmra.mxu0 %v1571
      %v4404 = vpop.f32.mrf.mxu0
      %v4405 = vadd.f32 %v4316, %v4404
      %v4406 = vpop.f32.mrf.mxu0
      %v4407 = vadd.f32 %v4318, %v4406
      %4408 = vmatmul.bf16.gmra.mxu0 %v1583
      %v4409 = vpop.f32.mrf.mxu0
      %v4410 = vadd.f32 %v4321, %v4409
      %v4411 = vpop.f32.mrf.mxu0
      %v4412 = vadd.f32 %v4323, %v4411
      %4413 = vmatmul.bf16.gmra.mxu0 %v1595
      %v4414 = vpop.f32.mrf.mxu0
      %v4415 = vadd.f32 %v4326, %v4414
      %v4416 = vpop.f32.mrf.mxu0
      %v4417 = vadd.f32 %v4328, %v4416
      %4418 = vmatmul.bf16.gmra.mxu0 %v1607
      %v4419 = vpop.f32.mrf.mxu0
      %v4420 = vadd.f32 %v4331, %v4419
      %v4421 = vpop.f32.mrf.mxu0
      %v4422 = vadd.f32 %v4333, %v4421
      %4423 = vmatmul.bf16.gmra.mxu0 %v1619
      %v4424 = vpop.f32.mrf.mxu0
      %v4425 = vadd.f32 %v4336, %v4424
      %v4426 = vpop.f32.mrf.mxu0
      %v4427 = vadd.f32 %v4338, %v4426
      %4428 = vmatmul.bf16.gmra.mxu0 %v1631
      %v4429 = vpop.f32.mrf.mxu0
      %v4430 = vadd.f32 %v4341, %v4429
      %v4431 = vpop.f32.mrf.mxu0
      %v4432 = vadd.f32 %v4343, %v4431
      %4433 = vmatmul.bf16.gmra.mxu0 %v1643
      %v4434 = vpop.f32.mrf.mxu0
      %v4435 = vadd.f32 %v4346, %v4434
      %v4436 = vpop.f32.mrf.mxu0
      %v4437 = vadd.f32 %v4348, %v4436
      %4438 = vmatmul.bf16.gmra.mxu0 %v1655
      %v4439 = vpop.f32.mrf.mxu0
      %v4440 = vadd.f32 %v4351, %v4439
      %v4441 = vpop.f32.mrf.mxu0
      %v4442 = vadd.f32 %v4353, %v4441
      %4443 = vmatmul.bf16.gmra.mxu0 %v1667
      %v4444 = vpop.f32.mrf.mxu0
      %v4445 = vadd.f32 %v4356, %v4444
      %v4446 = vpop.f32.mrf.mxu0
      %v4447 = vadd.f32 %v4358, %v4446
      %4448 = vmatmul.bf16.gmra.mxu0 %v1679
      %v4449 = vpop.f32.mrf.mxu0
      %v4450 = vadd.f32 %v4361, %v4449
      %v4451 = vpop.f32.mrf.mxu0
      %v4452 = vadd.f32 %v4363, %v4451
      %4453 = vmatmul.bf16.gmra.mxu0 %v1691
      %v4454 = vpop.f32.mrf.mxu0
      %v4455 = vadd.f32 %v4366, %v4454
      %v4456 = vpop.f32.mrf.mxu0
      %v4457 = vadd.f32 %v4368, %v4456
      %4458 = vmatmul.bf16.gmra.mxu0 %v1703
      %v4459 = vpop.f32.mrf.mxu0
      %v4460 = vadd.f32 %v4371, %v4459
      %v4461 = vpop.f32.mrf.mxu0
      %v4462 = vadd.f32 %v4373, %v4461
      %4463 = vdwg.mxu0
      %4464 = vmatpush.bf16.msra.mxu0 %v2589
      %4465 = vmatpush.bf16.msra.mxu0 %v2587
      %4466 = vmatpush.bf16.msra.mxu0 %v2585
      %4467 = vmatpush.bf16.msra.mxu0 %v2583
      %4468 = vmatpush.bf16.msra.mxu0 %v2581
      %4469 = vmatpush.bf16.msra.mxu0 %v2579
      %4470 = vmatpush.bf16.msra.mxu0 %v2577
      %4471 = vmatpush.bf16.msra.mxu0 %v2575
      %4472 = vmatmul.bf16.gmra.mxu0 %v1524
      %v4473 = vpop.f32.mrf.mxu0
      %v4474 = vadd.f32 %v4385, %v4473
      %v4475 = vpop.f32.mrf.mxu0
      %v4476 = vadd.f32 %v4387, %v4475
      %4477 = vmatmul.bf16.gmra.mxu0 %v1536
      %v4478 = vpop.f32.mrf.mxu0
      %v4479 = vadd.f32 %v4390, %v4478
      %v4480 = vpop.f32.mrf.mxu0
      %v4481 = vadd.f32 %v4392, %v4480
      %4482 = vmatmul.bf16.gmra.mxu0 %v1548
      %v4483 = vpop.f32.mrf.mxu0
      %v4484 = vadd.f32 %v4395, %v4483
      %v4485 = vpop.f32.mrf.mxu0
      %v4486 = vadd.f32 %v4397, %v4485
      %4487 = vmatmul.bf16.gmra.mxu0 %v1560
      %v4488 = vpop.f32.mrf.mxu0
      %v4489 = vadd.f32 %v4400, %v4488
      %v4490 = vpop.f32.mrf.mxu0
      %v4491 = vadd.f32 %v4402, %v4490
      %4492 = vmatmul.bf16.gmra.mxu0 %v1572
      %v4493 = vpop.f32.mrf.mxu0
      %v4494 = vadd.f32 %v4405, %v4493
      %v4495 = vpop.f32.mrf.mxu0
      %v4496 = vadd.f32 %v4407, %v4495
      %4497 = vmatmul.bf16.gmra.mxu0 %v1584
      %v4498 = vpop.f32.mrf.mxu0
      %v4499 = vadd.f32 %v4410, %v4498
      %v4500 = vpop.f32.mrf.mxu0
      %v4501 = vadd.f32 %v4412, %v4500
      %4502 = vmatmul.bf16.gmra.mxu0 %v1596
      %v4503 = vpop.f32.mrf.mxu0
      %v4504 = vadd.f32 %v4415, %v4503
      %v4505 = vpop.f32.mrf.mxu0
      %v4506 = vadd.f32 %v4417, %v4505
      %4507 = vmatmul.bf16.gmra.mxu0 %v1608
      %v4508 = vpop.f32.mrf.mxu0
      %v4509 = vadd.f32 %v4420, %v4508
      %v4510 = vpop.f32.mrf.mxu0
      %v4511 = vadd.f32 %v4422, %v4510
      %4512 = vmatmul.bf16.gmra.mxu0 %v1620
      %v4513 = vpop.f32.mrf.mxu0
      %v4514 = vadd.f32 %v4425, %v4513
      %v4515 = vpop.f32.mrf.mxu0
      %v4516 = vadd.f32 %v4427, %v4515
      %4517 = vmatmul.bf16.gmra.mxu0 %v1632
      %v4518 = vpop.f32.mrf.mxu0
      %v4519 = vadd.f32 %v4430, %v4518
      %v4520 = vpop.f32.mrf.mxu0
      %v4521 = vadd.f32 %v4432, %v4520
      %4522 = vmatmul.bf16.gmra.mxu0 %v1644
      %v4523 = vpop.f32.mrf.mxu0
      %v4524 = vadd.f32 %v4435, %v4523
      %v4525 = vpop.f32.mrf.mxu0
      %v4526 = vadd.f32 %v4437, %v4525
      %4527 = vmatmul.bf16.gmra.mxu0 %v1656
      %v4528 = vpop.f32.mrf.mxu0
      %v4529 = vadd.f32 %v4440, %v4528
      %v4530 = vpop.f32.mrf.mxu0
      %v4531 = vadd.f32 %v4442, %v4530
      %4532 = vmatmul.bf16.gmra.mxu0 %v1668
      %v4533 = vpop.f32.mrf.mxu0
      %v4534 = vadd.f32 %v4445, %v4533
      %v4535 = vpop.f32.mrf.mxu0
      %v4536 = vadd.f32 %v4447, %v4535
      %4537 = vmatmul.bf16.gmra.mxu0 %v1680
      %v4538 = vpop.f32.mrf.mxu0
      %v4539 = vadd.f32 %v4450, %v4538
      %v4540 = vpop.f32.mrf.mxu0
      %v4541 = vadd.f32 %v4452, %v4540
      %4542 = vmatmul.bf16.gmra.mxu0 %v1692
      %v4543 = vpop.f32.mrf.mxu0
      %v4544 = vadd.f32 %v4455, %v4543
      %v4545 = vpop.f32.mrf.mxu0
      %v4546 = vadd.f32 %v4457, %v4545
      %4547 = vmatmul.bf16.gmra.mxu0 %v1704
      %v4548 = vpop.f32.mrf.mxu0
      %v4549 = vadd.f32 %v4460, %v4548
      %v4550 = vpop.f32.mrf.mxu0
      %v4551 = vadd.f32 %v4462, %v4550
      %4552 = vdwg.mxu0
      %4553 = vmatpush.bf16.msra.mxu0 %v2605
      %4554 = vmatpush.bf16.msra.mxu0 %v2603
      %4555 = vmatpush.bf16.msra.mxu0 %v2601
      %4556 = vmatpush.bf16.msra.mxu0 %v2599
      %4557 = vmatpush.bf16.msra.mxu0 %v2597
      %4558 = vmatpush.bf16.msra.mxu0 %v2595
      %4559 = vmatpush.bf16.msra.mxu0 %v2593
      %4560 = vmatpush.bf16.msra.mxu0 %v2591
      %4561 = vmatmul.bf16.gmra.mxu0 %v1525
      %v4562 = vpop.f32.mrf.mxu0
      %v4563 = vadd.f32 %v4474, %v4562
      %v4564 = vpop.f32.mrf.mxu0
      %v4565 = vadd.f32 %v4476, %v4564
      %4566 = vmatmul.bf16.gmra.mxu0 %v1537
      %v4567 = vpop.f32.mrf.mxu0
      %v4568 = vadd.f32 %v4479, %v4567
      %v4569 = vpop.f32.mrf.mxu0
      %v4570 = vadd.f32 %v4481, %v4569
      %4571 = vmatmul.bf16.gmra.mxu0 %v1549
      %v4572 = vpop.f32.mrf.mxu0
      %v4573 = vadd.f32 %v4484, %v4572
      %v4574 = vpop.f32.mrf.mxu0
      %v4575 = vadd.f32 %v4486, %v4574
      %4576 = vmatmul.bf16.gmra.mxu0 %v1561
      %v4577 = vpop.f32.mrf.mxu0
      %v4578 = vadd.f32 %v4489, %v4577
      %v4579 = vpop.f32.mrf.mxu0
      %v4580 = vadd.f32 %v4491, %v4579
      %4581 = vmatmul.bf16.gmra.mxu0 %v1573
      %v4582 = vpop.f32.mrf.mxu0
      %v4583 = vadd.f32 %v4494, %v4582
      %v4584 = vpop.f32.mrf.mxu0
      %v4585 = vadd.f32 %v4496, %v4584
      %4586 = vmatmul.bf16.gmra.mxu0 %v1585
      %v4587 = vpop.f32.mrf.mxu0
      %v4588 = vadd.f32 %v4499, %v4587
      %v4589 = vpop.f32.mrf.mxu0
      %v4590 = vadd.f32 %v4501, %v4589
      %4591 = vmatmul.bf16.gmra.mxu0 %v1597
      %v4592 = vpop.f32.mrf.mxu0
      %v4593 = vadd.f32 %v4504, %v4592
      %v4594 = vpop.f32.mrf.mxu0
      %v4595 = vadd.f32 %v4506, %v4594
      %4596 = vmatmul.bf16.gmra.mxu0 %v1609
      %v4597 = vpop.f32.mrf.mxu0
      %v4598 = vadd.f32 %v4509, %v4597
      %v4599 = vpop.f32.mrf.mxu0
      %v4600 = vadd.f32 %v4511, %v4599
      %4601 = vmatmul.bf16.gmra.mxu0 %v1621
      %v4602 = vpop.f32.mrf.mxu0
      %v4603 = vadd.f32 %v4514, %v4602
      %v4604 = vpop.f32.mrf.mxu0
      %v4605 = vadd.f32 %v4516, %v4604
      %4606 = vmatmul.bf16.gmra.mxu0 %v1633
      %v4607 = vpop.f32.mrf.mxu0
      %v4608 = vadd.f32 %v4519, %v4607
      %v4609 = vpop.f32.mrf.mxu0
      %v4610 = vadd.f32 %v4521, %v4609
      %4611 = vmatmul.bf16.gmra.mxu0 %v1645
      %v4612 = vpop.f32.mrf.mxu0
      %v4613 = vadd.f32 %v4524, %v4612
      %v4614 = vpop.f32.mrf.mxu0
      %v4615 = vadd.f32 %v4526, %v4614
      %4616 = vmatmul.bf16.gmra.mxu0 %v1657
      %v4617 = vpop.f32.mrf.mxu0
      %v4618 = vadd.f32 %v4529, %v4617
      %v4619 = vpop.f32.mrf.mxu0
      %v4620 = vadd.f32 %v4531, %v4619
      %4621 = vmatmul.bf16.gmra.mxu0 %v1669
      %v4622 = vpop.f32.mrf.mxu0
      %v4623 = vadd.f32 %v4534, %v4622
      %v4624 = vpop.f32.mrf.mxu0
      %v4625 = vadd.f32 %v4536, %v4624
      %4626 = vmatmul.bf16.gmra.mxu0 %v1681
      %v4627 = vpop.f32.mrf.mxu0
      %v4628 = vadd.f32 %v4539, %v4627
      %v4629 = vpop.f32.mrf.mxu0
      %v4630 = vadd.f32 %v4541, %v4629
      %4631 = vmatmul.bf16.gmra.mxu0 %v1693
      %v4632 = vpop.f32.mrf.mxu0
      %v4633 = vadd.f32 %v4544, %v4632
      %v4634 = vpop.f32.mrf.mxu0
      %v4635 = vadd.f32 %v4546, %v4634
      %4636 = vmatmul.bf16.gmra.mxu0 %v1705
      %v4637 = vpop.f32.mrf.mxu0
      %v4638 = vadd.f32 %v4549, %v4637
      %v4639 = vpop.f32.mrf.mxu0
      %v4640 = vadd.f32 %v4551, %v4639
      %4641 = vdwg.mxu0
      %4642 = vmatpush.bf16.msra.mxu0 %v2621
      %4643 = vmatpush.bf16.msra.mxu0 %v2619
      %4644 = vmatpush.bf16.msra.mxu0 %v2617
      %4645 = vmatpush.bf16.msra.mxu0 %v2615
      %4646 = vmatpush.bf16.msra.mxu0 %v2613
      %4647 = vmatpush.bf16.msra.mxu0 %v2611
      %4648 = vmatpush.bf16.msra.mxu0 %v2609
      %4649 = vmatpush.bf16.msra.mxu0 %v2607
      %4650 = vmatmul.bf16.gmra.mxu0 %v1526
      %v4651 = vpop.f32.mrf.mxu0
      %v4652 = vadd.f32 %v4563, %v4651
      %v4653 = vpop.f32.mrf.mxu0
      %v4654 = vadd.f32 %v4565, %v4653
      %4655 = vmatmul.bf16.gmra.mxu0 %v1538
      %v4656 = vpop.f32.mrf.mxu0
      %v4657 = vadd.f32 %v4568, %v4656
      %v4658 = vpop.f32.mrf.mxu0
      %v4659 = vadd.f32 %v4570, %v4658
      %4660 = vmatmul.bf16.gmra.mxu0 %v1550
      %v4661 = vpop.f32.mrf.mxu0
      %v4662 = vadd.f32 %v4573, %v4661
      %v4663 = vpop.f32.mrf.mxu0
      %v4664 = vadd.f32 %v4575, %v4663
      %4665 = vmatmul.bf16.gmra.mxu0 %v1562
      %v4666 = vpop.f32.mrf.mxu0
      %v4667 = vadd.f32 %v4578, %v4666
      %v4668 = vpop.f32.mrf.mxu0
      %v4669 = vadd.f32 %v4580, %v4668
      %4670 = vmatmul.bf16.gmra.mxu0 %v1574
      %v4671 = vpop.f32.mrf.mxu0
      %v4672 = vadd.f32 %v4583, %v4671
      %v4673 = vpop.f32.mrf.mxu0
      %v4674 = vadd.f32 %v4585, %v4673
      %4675 = vmatmul.bf16.gmra.mxu0 %v1586
      %v4676 = vpop.f32.mrf.mxu0
      %v4677 = vadd.f32 %v4588, %v4676
      %v4678 = vpop.f32.mrf.mxu0
      %v4679 = vadd.f32 %v4590, %v4678
      %4680 = vmatmul.bf16.gmra.mxu0 %v1598
      %v4681 = vpop.f32.mrf.mxu0
      %v4682 = vadd.f32 %v4593, %v4681
      %v4683 = vpop.f32.mrf.mxu0
      %v4684 = vadd.f32 %v4595, %v4683
      %4685 = vmatmul.bf16.gmra.mxu0 %v1610
      %v4686 = vpop.f32.mrf.mxu0
      %v4687 = vadd.f32 %v4598, %v4686
      %v4688 = vpop.f32.mrf.mxu0
      %v4689 = vadd.f32 %v4600, %v4688
      %4690 = vmatmul.bf16.gmra.mxu0 %v1622
      %v4691 = vpop.f32.mrf.mxu0
      %v4692 = vadd.f32 %v4603, %v4691
      %v4693 = vpop.f32.mrf.mxu0
      %v4694 = vadd.f32 %v4605, %v4693
      %4695 = vmatmul.bf16.gmra.mxu0 %v1634
      %v4696 = vpop.f32.mrf.mxu0
      %v4697 = vadd.f32 %v4608, %v4696
      %v4698 = vpop.f32.mrf.mxu0
      %v4699 = vadd.f32 %v4610, %v4698
      %4700 = vmatmul.bf16.gmra.mxu0 %v1646
      %v4701 = vpop.f32.mrf.mxu0
      %v4702 = vadd.f32 %v4613, %v4701
      %v4703 = vpop.f32.mrf.mxu0
      %v4704 = vadd.f32 %v4615, %v4703
      %4705 = vmatmul.bf16.gmra.mxu0 %v1658
      %v4706 = vpop.f32.mrf.mxu0
      %v4707 = vadd.f32 %v4618, %v4706
      %v4708 = vpop.f32.mrf.mxu0
      %v4709 = vadd.f32 %v4620, %v4708
      %4710 = vmatmul.bf16.gmra.mxu0 %v1670
      %v4711 = vpop.f32.mrf.mxu0
      %v4712 = vadd.f32 %v4623, %v4711
      %v4713 = vpop.f32.mrf.mxu0
      %v4714 = vadd.f32 %v4625, %v4713
      %4715 = vmatmul.bf16.gmra.mxu0 %v1682
      %v4716 = vpop.f32.mrf.mxu0
      %v4717 = vadd.f32 %v4628, %v4716
      %v4718 = vpop.f32.mrf.mxu0
      %v4719 = vadd.f32 %v4630, %v4718
      %4720 = vmatmul.bf16.gmra.mxu0 %v1694
      %v4721 = vpop.f32.mrf.mxu0
      %v4722 = vadd.f32 %v4633, %v4721
      %v4723 = vpop.f32.mrf.mxu0
      %v4724 = vadd.f32 %v4635, %v4723
      %4725 = vmatmul.bf16.gmra.mxu0 %v1706
      %v4726 = vpop.f32.mrf.mxu0
      %v4727 = vadd.f32 %v4638, %v4726
      %v4728 = vpop.f32.mrf.mxu0
      %v4729 = vadd.f32 %v4640, %v4728
      %4730 = vdwg.mxu0
      %4731 = vmatpush.bf16.msra.mxu0 %v2637
      %4732 = vmatpush.bf16.msra.mxu0 %v2635
      %4733 = vmatpush.bf16.msra.mxu0 %v2633
      %4734 = vmatpush.bf16.msra.mxu0 %v2631
      %4735 = vmatpush.bf16.msra.mxu0 %v2629
      %4736 = vmatpush.bf16.msra.mxu0 %v2627
      %4737 = vmatpush.bf16.msra.mxu0 %v2625
      %4738 = vmatpush.bf16.msra.mxu0 %v2623
      %4739 = vmatmul.bf16.gmra.mxu0 %v1527
      %v4740 = vpop.f32.mrf.mxu0
      %v4741 = vadd.f32 %v4652, %v4740
      %v4742 = vpop.f32.mrf.mxu0
      %v4743 = vadd.f32 %v4654, %v4742
      %4744 = vmatmul.bf16.gmra.mxu0 %v1539
      %v4745 = vpop.f32.mrf.mxu0
      %v4746 = vadd.f32 %v4657, %v4745
      %v4747 = vpop.f32.mrf.mxu0
      %v4748 = vadd.f32 %v4659, %v4747
      %4749 = vmatmul.bf16.gmra.mxu0 %v1551
      %v4750 = vpop.f32.mrf.mxu0
      %v4751 = vadd.f32 %v4662, %v4750
      %v4752 = vpop.f32.mrf.mxu0
      %v4753 = vadd.f32 %v4664, %v4752
      %4754 = vmatmul.bf16.gmra.mxu0 %v1563
      %v4755 = vpop.f32.mrf.mxu0
      %v4756 = vadd.f32 %v4667, %v4755
      %v4757 = vpop.f32.mrf.mxu0
      %v4758 = vadd.f32 %v4669, %v4757
      %4759 = vmatmul.bf16.gmra.mxu0 %v1575
      %v4760 = vpop.f32.mrf.mxu0
      %v4761 = vadd.f32 %v4672, %v4760
      %v4762 = vpop.f32.mrf.mxu0
      %v4763 = vadd.f32 %v4674, %v4762
      %4764 = vmatmul.bf16.gmra.mxu0 %v1587
      %v4765 = vpop.f32.mrf.mxu0
      %v4766 = vadd.f32 %v4677, %v4765
      %v4767 = vpop.f32.mrf.mxu0
      %v4768 = vadd.f32 %v4679, %v4767
      %4769 = vmatmul.bf16.gmra.mxu0 %v1599
      %v4770 = vpop.f32.mrf.mxu0
      %v4771 = vadd.f32 %v4682, %v4770
      %v4772 = vpop.f32.mrf.mxu0
      %v4773 = vadd.f32 %v4684, %v4772
      %4774 = vmatmul.bf16.gmra.mxu0 %v1611
      %v4775 = vpop.f32.mrf.mxu0
      %v4776 = vadd.f32 %v4687, %v4775
      %v4777 = vpop.f32.mrf.mxu0
      %v4778 = vadd.f32 %v4689, %v4777
      %4779 = vmatmul.bf16.gmra.mxu0 %v1623
      %v4780 = vpop.f32.mrf.mxu0
      %v4781 = vadd.f32 %v4692, %v4780
      %v4782 = vpop.f32.mrf.mxu0
      %v4783 = vadd.f32 %v4694, %v4782
      %4784 = vmatmul.bf16.gmra.mxu0 %v1635
      %v4785 = vpop.f32.mrf.mxu0
      %v4786 = vadd.f32 %v4697, %v4785
      %v4787 = vpop.f32.mrf.mxu0
      %v4788 = vadd.f32 %v4699, %v4787
      %4789 = vmatmul.bf16.gmra.mxu0 %v1647
      %v4790 = vpop.f32.mrf.mxu0
      %v4791 = vadd.f32 %v4702, %v4790
      %v4792 = vpop.f32.mrf.mxu0
      %v4793 = vadd.f32 %v4704, %v4792
      %4794 = vmatmul.bf16.gmra.mxu0 %v1659
      %v4795 = vpop.f32.mrf.mxu0
      %v4796 = vadd.f32 %v4707, %v4795
      %v4797 = vpop.f32.mrf.mxu0
      %v4798 = vadd.f32 %v4709, %v4797
      %4799 = vmatmul.bf16.gmra.mxu0 %v1671
      %v4800 = vpop.f32.mrf.mxu0
      %v4801 = vadd.f32 %v4712, %v4800
      %v4802 = vpop.f32.mrf.mxu0
      %v4803 = vadd.f32 %v4714, %v4802
      %4804 = vmatmul.bf16.gmra.mxu0 %v1683
      %v4805 = vpop.f32.mrf.mxu0
      %v4806 = vadd.f32 %v4717, %v4805
      %v4807 = vpop.f32.mrf.mxu0
      %v4808 = vadd.f32 %v4719, %v4807
      %4809 = vmatmul.bf16.gmra.mxu0 %v1695
      %v4810 = vpop.f32.mrf.mxu0
      %v4811 = vadd.f32 %v4722, %v4810
      %v4812 = vpop.f32.mrf.mxu0
      %v4813 = vadd.f32 %v4724, %v4812
      %4814 = vmatmul.bf16.gmra.mxu0 %v1707
      %v4815 = vpop.f32.mrf.mxu0
      %v4816 = vadd.f32 %v4727, %v4815
      %v4817 = vpop.f32.mrf.mxu0
      %v4818 = vadd.f32 %v4729, %v4817
      %4819 = vdwg.mxu0
      %4820 = vmatpush.bf16.msra.mxu0 %v2653
      %4821 = vmatpush.bf16.msra.mxu0 %v2651
      %4822 = vmatpush.bf16.msra.mxu0 %v2649
      %4823 = vmatpush.bf16.msra.mxu0 %v2647
      %4824 = vmatpush.bf16.msra.mxu0 %v2645
      %4825 = vmatpush.bf16.msra.mxu0 %v2643
      %4826 = vmatpush.bf16.msra.mxu0 %v2641
      %4827 = vmatpush.bf16.msra.mxu0 %v2639
      %4828 = vmatmul.bf16.gmra.mxu0 %v1528
      %v4829 = vpop.f32.mrf.mxu0
      %v4830 = vadd.f32 %v4741, %v4829
      %v4831 = vpop.f32.mrf.mxu0
      %v4832 = vadd.f32 %v4743, %v4831
      %4833 = vmatmul.bf16.gmra.mxu0 %v1540
      %v4834 = vpop.f32.mrf.mxu0
      %v4835 = vadd.f32 %v4746, %v4834
      %v4836 = vpop.f32.mrf.mxu0
      %v4837 = vadd.f32 %v4748, %v4836
      %4838 = vmatmul.bf16.gmra.mxu0 %v1552
      %v4839 = vpop.f32.mrf.mxu0
      %v4840 = vadd.f32 %v4751, %v4839
      %v4841 = vpop.f32.mrf.mxu0
      %v4842 = vadd.f32 %v4753, %v4841
      %4843 = vmatmul.bf16.gmra.mxu0 %v1564
      %v4844 = vpop.f32.mrf.mxu0
      %v4845 = vadd.f32 %v4756, %v4844
      %v4846 = vpop.f32.mrf.mxu0
      %v4847 = vadd.f32 %v4758, %v4846
      %4848 = vmatmul.bf16.gmra.mxu0 %v1576
      %v4849 = vpop.f32.mrf.mxu0
      %v4850 = vadd.f32 %v4761, %v4849
      %v4851 = vpop.f32.mrf.mxu0
      %v4852 = vadd.f32 %v4763, %v4851
      %4853 = vmatmul.bf16.gmra.mxu0 %v1588
      %v4854 = vpop.f32.mrf.mxu0
      %v4855 = vadd.f32 %v4766, %v4854
      %v4856 = vpop.f32.mrf.mxu0
      %v4857 = vadd.f32 %v4768, %v4856
      %4858 = vmatmul.bf16.gmra.mxu0 %v1600
      %v4859 = vpop.f32.mrf.mxu0
      %v4860 = vadd.f32 %v4771, %v4859
      %v4861 = vpop.f32.mrf.mxu0
      %v4862 = vadd.f32 %v4773, %v4861
      %4863 = vmatmul.bf16.gmra.mxu0 %v1612
      %v4864 = vpop.f32.mrf.mxu0
      %v4865 = vadd.f32 %v4776, %v4864
      %v4866 = vpop.f32.mrf.mxu0
      %v4867 = vadd.f32 %v4778, %v4866
      %4868 = vmatmul.bf16.gmra.mxu0 %v1624
      %v4869 = vpop.f32.mrf.mxu0
      %v4870 = vadd.f32 %v4781, %v4869
      %v4871 = vpop.f32.mrf.mxu0
      %v4872 = vadd.f32 %v4783, %v4871
      %4873 = vmatmul.bf16.gmra.mxu0 %v1636
      %v4874 = vpop.f32.mrf.mxu0
      %v4875 = vadd.f32 %v4786, %v4874
      %v4876 = vpop.f32.mrf.mxu0
      %v4877 = vadd.f32 %v4788, %v4876
      %4878 = vmatmul.bf16.gmra.mxu0 %v1648
      %v4879 = vpop.f32.mrf.mxu0
      %v4880 = vadd.f32 %v4791, %v4879
      %v4881 = vpop.f32.mrf.mxu0
      %v4882 = vadd.f32 %v4793, %v4881
      %4883 = vmatmul.bf16.gmra.mxu0 %v1660
      %v4884 = vpop.f32.mrf.mxu0
      %v4885 = vadd.f32 %v4796, %v4884
      %v4886 = vpop.f32.mrf.mxu0
      %v4887 = vadd.f32 %v4798, %v4886
      %4888 = vmatmul.bf16.gmra.mxu0 %v1672
      %v4889 = vpop.f32.mrf.mxu0
      %v4890 = vadd.f32 %v4801, %v4889
      %v4891 = vpop.f32.mrf.mxu0
      %v4892 = vadd.f32 %v4803, %v4891
      %4893 = vmatmul.bf16.gmra.mxu0 %v1684
      %v4894 = vpop.f32.mrf.mxu0
      %v4895 = vadd.f32 %v4806, %v4894
      %v4896 = vpop.f32.mrf.mxu0
      %v4897 = vadd.f32 %v4808, %v4896
      %4898 = vmatmul.bf16.gmra.mxu0 %v1696
      %v4899 = vpop.f32.mrf.mxu0
      %v4900 = vadd.f32 %v4811, %v4899
      %v4901 = vpop.f32.mrf.mxu0
      %v4902 = vadd.f32 %v4813, %v4901
      %4903 = vmatmul.bf16.gmra.mxu0 %v1708
      %v4904 = vpop.f32.mrf.mxu0
      %v4905 = vadd.f32 %v4816, %v4904
      %v4906 = vpop.f32.mrf.mxu0
      %v4907 = vadd.f32 %v4818, %v4906
      %4908 = vdwg.mxu0
      %4909 = vmatpush.bf16.msra.mxu0 %v2669
      %4910 = vmatpush.bf16.msra.mxu0 %v2667
      %4911 = vmatpush.bf16.msra.mxu0 %v2665
      %4912 = vmatpush.bf16.msra.mxu0 %v2663
      %4913 = vmatpush.bf16.msra.mxu0 %v2661
      %4914 = vmatpush.bf16.msra.mxu0 %v2659
      %4915 = vmatpush.bf16.msra.mxu0 %v2657
      %4916 = vmatpush.bf16.msra.mxu0 %v2655
      %4917 = vmatmul.bf16.gmra.mxu0 %v1529
      %v4918 = vpop.f32.mrf.mxu0
      %v4919 = vadd.f32 %v4830, %v4918
      %v4920 = vpop.f32.mrf.mxu0
      %v4921 = vadd.f32 %v4832, %v4920
      %4922 = vmatmul.bf16.gmra.mxu0 %v1541
      %v4923 = vpop.f32.mrf.mxu0
      %v4924 = vadd.f32 %v4835, %v4923
      %v4925 = vpop.f32.mrf.mxu0
      %v4926 = vadd.f32 %v4837, %v4925
      %4927 = vmatmul.bf16.gmra.mxu0 %v1553
      %v4928 = vpop.f32.mrf.mxu0
      %v4929 = vadd.f32 %v4840, %v4928
      %v4930 = vpop.f32.mrf.mxu0
      %v4931 = vadd.f32 %v4842, %v4930
      %4932 = vmatmul.bf16.gmra.mxu0 %v1565
      %v4933 = vpop.f32.mrf.mxu0
      %v4934 = vadd.f32 %v4845, %v4933
      %v4935 = vpop.f32.mrf.mxu0
      %v4936 = vadd.f32 %v4847, %v4935
      %4937 = vmatmul.bf16.gmra.mxu0 %v1577
      %v4938 = vpop.f32.mrf.mxu0
      %v4939 = vadd.f32 %v4850, %v4938
      %v4940 = vpop.f32.mrf.mxu0
      %v4941 = vadd.f32 %v4852, %v4940
      %4942 = vmatmul.bf16.gmra.mxu0 %v1589
      %v4943 = vpop.f32.mrf.mxu0
      %v4944 = vadd.f32 %v4855, %v4943
      %v4945 = vpop.f32.mrf.mxu0
      %v4946 = vadd.f32 %v4857, %v4945
      %4947 = vmatmul.bf16.gmra.mxu0 %v1601
      %v4948 = vpop.f32.mrf.mxu0
      %v4949 = vadd.f32 %v4860, %v4948
      %v4950 = vpop.f32.mrf.mxu0
      %v4951 = vadd.f32 %v4862, %v4950
      %4952 = vmatmul.bf16.gmra.mxu0 %v1613
      %v4953 = vpop.f32.mrf.mxu0
      %v4954 = vadd.f32 %v4865, %v4953
      %v4955 = vpop.f32.mrf.mxu0
      %v4956 = vadd.f32 %v4867, %v4955
      %4957 = vmatmul.bf16.gmra.mxu0 %v1625
      %v4958 = vpop.f32.mrf.mxu0
      %v4959 = vadd.f32 %v4870, %v4958
      %v4960 = vpop.f32.mrf.mxu0
      %v4961 = vadd.f32 %v4872, %v4960
      %4962 = vmatmul.bf16.gmra.mxu0 %v1637
      %v4963 = vpop.f32.mrf.mxu0
      %v4964 = vadd.f32 %v4875, %v4963
      %v4965 = vpop.f32.mrf.mxu0
      %v4966 = vadd.f32 %v4877, %v4965
      %4967 = vmatmul.bf16.gmra.mxu0 %v1649
      %v4968 = vpop.f32.mrf.mxu0
      %v4969 = vadd.f32 %v4880, %v4968
      %v4970 = vpop.f32.mrf.mxu0
      %v4971 = vadd.f32 %v4882, %v4970
      %4972 = vmatmul.bf16.gmra.mxu0 %v1661
      %v4973 = vpop.f32.mrf.mxu0
      %v4974 = vadd.f32 %v4885, %v4973
      %v4975 = vpop.f32.mrf.mxu0
      %v4976 = vadd.f32 %v4887, %v4975
      %4977 = vmatmul.bf16.gmra.mxu0 %v1673
      %v4978 = vpop.f32.mrf.mxu0
      %v4979 = vadd.f32 %v4890, %v4978
      %v4980 = vpop.f32.mrf.mxu0
      %v4981 = vadd.f32 %v4892, %v4980
      %4982 = vmatmul.bf16.gmra.mxu0 %v1685
      %v4983 = vpop.f32.mrf.mxu0
      %v4984 = vadd.f32 %v4895, %v4983
      %v4985 = vpop.f32.mrf.mxu0
      %v4986 = vadd.f32 %v4897, %v4985
      %4987 = vmatmul.bf16.gmra.mxu0 %v1697
      %v4988 = vpop.f32.mrf.mxu0
      %v4989 = vadd.f32 %v4900, %v4988
      %v4990 = vpop.f32.mrf.mxu0
      %v4991 = vadd.f32 %v4902, %v4990
      %4992 = vmatmul.bf16.gmra.mxu0 %v1709
      %v4993 = vpop.f32.mrf.mxu0
      %v4994 = vadd.f32 %v4905, %v4993
      %v4995 = vpop.f32.mrf.mxu0
      %v4996 = vadd.f32 %v4907, %v4995
      %4997 = vdwg.mxu0
      %v4998 = vmax.f32 %v3851, 0.0
      %v4999 = vmax.f32 %v4919, 0.0
      %v5000 = vmax.f32 %v3853, 0.0
      %v5001 = vmax.f32 %v4921, 0.0
      %v5002 = vmax.f32 %v3856, 0.0
      %v5003 = vmax.f32 %v4924, 0.0
      %v5004 = vmax.f32 %v3858, 0.0
      %v5005 = vmax.f32 %v4926, 0.0
      %v5006 = vmax.f32 %v3861, 0.0
      %v5007 = vmax.f32 %v4929, 0.0
      %v5008 = vmax.f32 %v3863, 0.0
      %v5009 = vmax.f32 %v4931, 0.0
      %v5010 = vmax.f32 %v3866, 0.0
      %v5011 = vmax.f32 %v4934, 0.0
      %v5012 = vmax.f32 %v3868, 0.0
      %v5013 = vmax.f32 %v4936, 0.0
      %v5014 = vmax.f32 %v3871, 0.0
      %v5015 = vmax.f32 %v4939, 0.0
      %v5016 = vmax.f32 %v3873, 0.0
      %v5017 = vmax.f32 %v4941, 0.0
      %v5018 = vmax.f32 %v3876, 0.0
      %v5019 = vmax.f32 %v4944, 0.0
      %v5020 = vmax.f32 %v3878, 0.0
      %v5021 = vmax.f32 %v4946, 0.0
      %v5022 = vmax.f32 %v3881, 0.0
      %v5023 = vmax.f32 %v4949, 0.0
      %v5024 = vmax.f32 %v3883, 0.0
      %v5025 = vmax.f32 %v4951, 0.0
      %v5026 = vmax.f32 %v3886, 0.0
      %v5027 = vmax.f32 %v4954, 0.0
      %v5028 = vmax.f32 %v3888, 0.0
      %v5029 = vmax.f32 %v4956, 0.0
      %v5030 = vmax.f32 %v3891, 0.0
      %v5031 = vmax.f32 %v4959, 0.0
      %v5032 = vmax.f32 %v3893, 0.0
      %v5033 = vmax.f32 %v4961, 0.0
      %v5034 = vmax.f32 %v3896, 0.0
      %v5035 = vmax.f32 %v4964, 0.0
      %v5036 = vmax.f32 %v3898, 0.0
      %v5037 = vmax.f32 %v4966, 0.0
      %v5038 = vmax.f32 %v3901, 0.0
      %v5039 = vmax.f32 %v4969, 0.0
      %v5040 = vmax.f32 %v3903, 0.0
      %v5041 = vmax.f32 %v4971, 0.0
      %v5042 = vmax.f32 %v3906, 0.0
      %v5043 = vmax.f32 %v4974, 0.0
      %v5044 = vmax.f32 %v3908, 0.0
      %v5045 = vmax.f32 %v4976, 0.0
      %v5046 = vmax.f32 %v3911, 0.0
      %v5047 = vmax.f32 %v4979, 0.0
      %v5048 = vmax.f32 %v3913, 0.0
      %v5049 = vmax.f32 %v4981, 0.0
      %v5050 = vmax.f32 %v3916, 0.0
      %v5051 = vmax.f32 %v4984, 0.0
      %v5052 = vmax.f32 %v3918, 0.0
      %v5053 = vmax.f32 %v4986, 0.0
      %v5054 = vmax.f32 %v3921, 0.0
      %v5055 = vmax.f32 %v4989, 0.0
      %v5056 = vmax.f32 %v3923, 0.0
      %v5057 = vmax.f32 %v4991, 0.0
      %v5058 = vmax.f32 %v3926, 0.0
      %v5059 = vmax.f32 %v4994, 0.0
      %v5060 = vmax.f32 %v3928, 0.0
      %v5061 = vmax.f32 %v4996, 0.0
      %v5062 = vmax.f32 %v4998, %v5014
      %v5063 = vmax.f32 %v4999, %v5015
      %v5064 = vmax.f32 %v5000, %v5016
      %v5065 = vmax.f32 %v5001, %v5017
      %v5066 = vmax.f32 %v5002, %v5018
      %v5067 = vmax.f32 %v5003, %v5019
      %v5068 = vmax.f32 %v5004, %v5020
      %v5069 = vmax.f32 %v5005, %v5021
      %v5070 = vmax.f32 %v5006, %v5022
      %v5071 = vmax.f32 %v5007, %v5023
      %v5072 = vmax.f32 %v5008, %v5024
      %v5073 = vmax.f32 %v5009, %v5025
      %v5074 = vmax.f32 %v5010, %v5026
      %v5075 = vmax.f32 %v5011, %v5027
      %v5076 = vmax.f32 %v5012, %v5028
      %v5077 = vmax.f32 %v5013, %v5029
      %v5078 = vmax.f32 %v5030, %v5046
      %v5079 = vmax.f32 %v5031, %v5047
      %v5080 = vmax.f32 %v5032, %v5048
      %v5081 = vmax.f32 %v5033, %v5049
      %v5082 = vmax.f32 %v5034, %v5050
      %v5083 = vmax.f32 %v5035, %v5051
      %v5084 = vmax.f32 %v5036, %v5052
      %v5085 = vmax.f32 %v5037, %v5053
      %v5086 = vmax.f32 %v5038, %v5054
      %v5087 = vmax.f32 %v5039, %v5055
      %v5088 = vmax.f32 %v5040, %v5056
      %v5089 = vmax.f32 %v5041, %v5057
      %v5090 = vmax.f32 %v5042, %v5058
      %v5091 = vmax.f32 %v5043, %v5059
      %v5092 = vmax.f32 %v5044, %v5060
      %v5093 = vmax.f32 %v5045, %v5061
      %v5094 = vrot.slane %v5078, 7
      %v5095 = vrot.slane %v5079, 7
      %v5096 = vrot.slane %v5080, 7
      %v5097 = vrot.slane %v5081, 7
      %v5098 = vrot.slane %v5082, 7
      %v5099 = vrot.slane %v5083, 7
      %v5100 = vrot.slane %v5084, 7
      %v5101 = vrot.slane %v5085, 7
      %v5102 = vrot.slane %v5086, 7
      %v5103 = vrot.slane %v5087, 7
      %v5104 = vrot.slane %v5088, 7
      %v5105 = vrot.slane %v5089, 7
      %v5106 = vrot.slane %v5090, 7
      %v5107 = vrot.slane %v5091, 7
      %v5108 = vrot.slane %v5092, 7
      %v5109 = vrot.slane %v5093, 7
      %v5110 = vlaneseq
      %v5111 = vshrl.u32 %v5110, 7
      %vm5112 = vcmp.lt.s32.totalorder %v5111, 1
      %v5113 = vsel %vm5112, %v5106, %v5108
      %v5114 = vsel %vm5112, %v5107, %v5109
      %v5115 = vsel %vm5112, %v5104, %v5106
      %v5116 = vsel %vm5112, %v5105, %v5107
      %v5117 = vsel %vm5112, %v5102, %v5104
      %v5118 = vsel %vm5112, %v5103, %v5105
      %v5119 = vsel %vm5112, %v5100, %v5102
      %v5120 = vsel %vm5112, %v5101, %v5103
      %v5121 = vsel %vm5112, %v5098, %v5100
      %v5122 = vsel %vm5112, %v5099, %v5101
      %v5123 = vsel %vm5112, %v5096, %v5098
      %v5124 = vsel %vm5112, %v5097, %v5099
      %v5125 = vsel %vm5112, %v5094, %v5096
      %v5126 = vsel %vm5112, %v5095, %v5097
      %v5127 = vsel %vm5112, %v5108, %v5094
      %v5128 = vsel %vm5112, %v5109, %v5095
      %v5129 = vld [vmem:[%s9] sm:$0xff]
      %v5130 = vld [vmem:[%s9 + $0x8] sm:$0xff]
      %v5131 = vld [vmem:[%s9 + $0x10] sm:$0xff]
      %v5132 = vld [vmem:[%s9 + $0x18] sm:$0xff]
      %v5133 = vld [vmem:[%s9 + $0x20] sm:$0xff]
      %v5134 = vld [vmem:[%s9 + $0x28] sm:$0xff]
      %v5135 = vld [vmem:[%s9 + $0x30] sm:$0xff]
      %v5136 = vld [vmem:[%s9 + $0x38] sm:$0xff]
      %5138 = vset.pattern.permute.xlu0 0
      %5139 = vperm.xlu0 %5138, %v5129
      %v5140 = vpop.permute.xlu0 %5139
      %5143 = vset.pattern.permute.xlu0 0
      %5144 = vperm.xlu0 %5143, %v5130
      %v5145 = vpop.permute.xlu0 %5144
      %5148 = vset.pattern.permute.xlu0 0
      %5149 = vperm.xlu0 %5148, %v5131
      %v5150 = vpop.permute.xlu0 %5149
      %5153 = vset.pattern.permute.xlu0 0
      %5154 = vperm.xlu0 %5153, %v5132
      %v5155 = vpop.permute.xlu0 %5154
      %5158 = vset.pattern.permute.xlu0 0
      %5159 = vperm.xlu0 %5158, %v5133
      %v5160 = vpop.permute.xlu0 %5159
      %5163 = vset.pattern.permute.xlu0 0
      %5164 = vperm.xlu0 %5163, %v5134
      %v5165 = vpop.permute.xlu0 %5164
      %5168 = vset.pattern.permute.xlu0 0
      %5169 = vperm.xlu0 %5168, %v5135
      %v5170 = vpop.permute.xlu0 %5169
      %5173 = vset.pattern.permute.xlu0 0
      %5174 = vperm.xlu0 %5173, %v5136
      %v5175 = vpop.permute.xlu0 %5174
      %v5177 = vmul.f32 %v5127, %v5140
      %v5178 = vmul.f32 %v5128, %v5140
      %v5179 = vmul.f32 %v5125, %v5145
      %v5180 = vmul.f32 %v5126, %v5145
      %v5181 = vmul.f32 %v5123, %v5150
      %v5182 = vmul.f32 %v5124, %v5150
      %v5183 = vmul.f32 %v5121, %v5155
      %v5184 = vmul.f32 %v5122, %v5155
      %v5185 = vmul.f32 %v5119, %v5160
      %v5186 = vmul.f32 %v5120, %v5160
      %v5187 = vmul.f32 %v5117, %v5165
      %v5188 = vmul.f32 %v5118, %v5165
      %v5189 = vmul.f32 %v5115, %v5170
      %v5190 = vmul.f32 %v5116, %v5170
      %v5191 = vmul.f32 %v5113, %v5175
      %v5192 = vmul.f32 %v5114, %v5175
      %v5193 = vrot.slane %v5062, 1
      %v5194 = vrot.slane %v5063, 1
      %v5195 = vrot.slane %v5064, 1
      %v5196 = vrot.slane %v5065, 1
      %v5197 = vrot.slane %v5066, 1
      %v5198 = vrot.slane %v5067, 1
      %v5199 = vrot.slane %v5068, 1
      %v5200 = vrot.slane %v5069, 1
      %v5201 = vrot.slane %v5070, 1
      %v5202 = vrot.slane %v5071, 1
      %v5203 = vrot.slane %v5072, 1
      %v5204 = vrot.slane %v5073, 1
      %v5205 = vrot.slane %v5074, 1
      %v5206 = vrot.slane %v5075, 1
      %v5207 = vrot.slane %v5076, 1
      %v5208 = vrot.slane %v5077, 1
      %vm5209 = vcmp.lt.s32.totalorder %v5111, 7
      %v5210 = vsel %vm5209, %v5205, %v5207
      %v5211 = vsel %vm5209, %v5206, %v5208
      %v5212 = vsel %vm5209, %v5203, %v5205
      %v5213 = vsel %vm5209, %v5204, %v5206
      %v5214 = vsel %vm5209, %v5201, %v5203
      %v5215 = vsel %vm5209, %v5202, %v5204
      %v5216 = vsel %vm5209, %v5199, %v5201
      %v5217 = vsel %vm5209, %v5200, %v5202
      %v5218 = vsel %vm5209, %v5197, %v5199
      %v5219 = vsel %vm5209, %v5198, %v5200
      %v5220 = vsel %vm5209, %v5195, %v5197
      %v5221 = vsel %vm5209, %v5196, %v5198
      %v5222 = vsel %vm5209, %v5193, %v5195
      %v5223 = vsel %vm5209, %v5194, %v5196
      %v5224 = vsel %vm5209, %v5207, %v5193
      %v5225 = vsel %vm5209, %v5208, %v5194
      %v5226 = vld [vmem:[%s10] sm:$0xff]
      %v5227 = vld [vmem:[%s10 + $0x8] sm:$0xff]
      %v5228 = vld [vmem:[%s10 + $0x10] sm:$0xff]
      %v5229 = vld [vmem:[%s10 + $0x18] sm:$0xff]
      %v5230 = vld [vmem:[%s10 + $0x20] sm:$0xff]
      %v5231 = vld [vmem:[%s10 + $0x28] sm:$0xff]
      %v5232 = vld [vmem:[%s10 + $0x30] sm:$0xff]
      %v5233 = vld [vmem:[%s10 + $0x38] sm:$0xff]
      %5235 = vset.pattern.permute.xlu0 0
      %5236 = vperm.xlu0 %5235, %v5226
      %v5237 = vpop.permute.xlu0 %5236
      %5240 = vset.pattern.permute.xlu0 0
      %5241 = vperm.xlu0 %5240, %v5227
      %v5242 = vpop.permute.xlu0 %5241
      %5245 = vset.pattern.permute.xlu0 0
      %5246 = vperm.xlu0 %5245, %v5228
      %v5247 = vpop.permute.xlu0 %5246
      %5250 = vset.pattern.permute.xlu0 0
      %5251 = vperm.xlu0 %5250, %v5229
      %v5252 = vpop.permute.xlu0 %5251
      %5255 = vset.pattern.permute.xlu0 0
      %5256 = vperm.xlu0 %5255, %v5230
      %v5257 = vpop.permute.xlu0 %5256
      %5260 = vset.pattern.permute.xlu0 0
      %5261 = vperm.xlu0 %5260, %v5231
      %v5262 = vpop.permute.xlu0 %5261
      %5265 = vset.pattern.permute.xlu0 0
      %5266 = vperm.xlu0 %5265, %v5232
      %v5267 = vpop.permute.xlu0 %5266
      %5270 = vset.pattern.permute.xlu0 0
      %5271 = vperm.xlu0 %5270, %v5233
      %v5272 = vpop.permute.xlu0 %5271
      %v5274 = vmul.f32 %v5222, %v5237
      %v5275 = vmul.f32 %v5223, %v5237
      %v5276 = vmul.f32 %v5220, %v5242
      %v5277 = vmul.f32 %v5221, %v5242
      %v5278 = vmul.f32 %v5218, %v5247
      %v5279 = vmul.f32 %v5219, %v5247
      %v5280 = vmul.f32 %v5216, %v5252
      %v5281 = vmul.f32 %v5217, %v5252
      %v5282 = vmul.f32 %v5214, %v5257
      %v5283 = vmul.f32 %v5215, %v5257
      %v5284 = vmul.f32 %v5212, %v5262
      %v5285 = vmul.f32 %v5213, %v5262
      %v5286 = vmul.f32 %v5210, %v5267
      %v5287 = vmul.f32 %v5211, %v5267
      %v5288 = vmul.f32 %v5224, %v5272
      %v5289 = vmul.f32 %v5225, %v5272
      %v5290 = vpack.c.bf16 %v5179, %v5177
      %v5291 = vpack.c.bf16 %v5180, %v5178
      %v5292 = vpack.c.bf16 %v5064, %v5062
      %v5293 = vpack.c.bf16 %v5065, %v5063
      %v5294 = vpack.c.bf16 %v5080, %v5078
      %v5295 = vpack.c.bf16 %v5081, %v5079
      %v5296 = vpack.c.bf16 %v5183, %v5181
      %v5297 = vpack.c.bf16 %v5184, %v5182
      %v5298 = vpack.c.bf16 %v5068, %v5066
      %v5299 = vpack.c.bf16 %v5069, %v5067
      %v5300 = vpack.c.bf16 %v5084, %v5082
      %v5301 = vpack.c.bf16 %v5085, %v5083
      %v5302 = vpack.c.bf16 %v5187, %v5185
      %v5303 = vpack.c.bf16 %v5188, %v5186
      %v5304 = vpack.c.bf16 %v5072, %v5070
      %v5305 = vpack.c.bf16 %v5073, %v5071
      %v5306 = vpack.c.bf16 %v5088, %v5086
      %v5307 = vpack.c.bf16 %v5089, %v5087
      %v5308 = vpack.c.bf16 %v5191, %v5189
      %v5309 = vpack.c.bf16 %v5192, %v5190
      %v5310 = vpack.c.bf16 %v5076, %v5074
      %v5311 = vpack.c.bf16 %v5077, %v5075
      %v5312 = vpack.c.bf16 %v5092, %v5090
      %v5313 = vpack.c.bf16 %v5093, %v5091
      %v5314 = vpack.c.bf16 %v5276, %v5274
      %v5315 = vpack.c.bf16 %v5277, %v5275
      %v5316 = vpack.c.bf16 %v5280, %v5278
      %v5317 = vpack.c.bf16 %v5281, %v5279
      %v5318 = vpack.c.bf16 %v5284, %v5282
      %v5319 = vpack.c.bf16 %v5285, %v5283
      %v5320 = vpack.c.bf16 %v5288, %v5286
      %v5321 = vpack.c.bf16 %v5289, %v5287
      %v5322 = vld [vmem:[%s521] sm:$0xff]
      %v5323 = vld [vmem:[%s521 + $0x8] sm:$0xff]
      %v5324 = vld [vmem:[%s521 + $0x10] sm:$0xff]
      %v5325 = vld [vmem:[%s521 + $0x18] sm:$0xff]
      %v5326 = vld [vmem:[%s521 + $0x20] sm:$0xff]
      %v5327 = vld [vmem:[%s521 + $0x28] sm:$0xff]
      %v5328 = vld [vmem:[%s521 + $0x30] sm:$0xff]
      %v5329 = vld [vmem:[%s521 + $0x38] sm:$0xff]
      %v5330 = vld [vmem:[%s521 + $0x40] sm:$0xff]
      %v5331 = vld [vmem:[%s521 + $0x48] sm:$0xff]
      %v5332 = vld [vmem:[%s521 + $0x50] sm:$0xff]
      %v5333 = vld [vmem:[%s521 + $0x58] sm:$0xff]
      %v5334 = vld [vmem:[%s521 + $0x60] sm:$0xff]
      %v5335 = vld [vmem:[%s521 + $0x68] sm:$0xff]
      %v5336 = vld [vmem:[%s521 + $0x70] sm:$0xff]
      %v5337 = vld [vmem:[%s521 + $0x78] sm:$0xff]
      %v5338 = vld [vmem:[%s521 + $0x80] sm:$0xff]
      %v5339 = vld [vmem:[%s521 + $0x88] sm:$0xff]
      %v5340 = vld [vmem:[%s521 + $0x90] sm:$0xff]
      %v5341 = vld [vmem:[%s521 + $0x98] sm:$0xff]
      %v5342 = vld [vmem:[%s521 + $0xa0] sm:$0xff]
      %v5343 = vld [vmem:[%s521 + $0xa8] sm:$0xff]
      %v5344 = vld [vmem:[%s521 + $0xb0] sm:$0xff]
      %v5345 = vld [vmem:[%s521 + $0xb8] sm:$0xff]
      %v5346 = vld [vmem:[%s521 + $0xc0] sm:$0xff]
      %v5347 = vld [vmem:[%s521 + $0xc8] sm:$0xff]
      %v5348 = vld [vmem:[%s521 + $0xd0] sm:$0xff]
      %v5349 = vld [vmem:[%s521 + $0xd8] sm:$0xff]
      %v5350 = vld [vmem:[%s521 + $0xe0] sm:$0xff]
      %v5351 = vld [vmem:[%s521 + $0xe8] sm:$0xff]
      %v5352 = vld [vmem:[%s521 + $0xf0] sm:$0xff]
      %v5353 = vld [vmem:[%s521 + $0xf8] sm:$0xff]
      %v5354 = vld [vmem:[%s521 + $0x100] sm:$0xff]
      %v5355 = vld [vmem:[%s521 + $0x108] sm:$0xff]
      %v5356 = vld [vmem:[%s521 + $0x110] sm:$0xff]
      %v5357 = vld [vmem:[%s521 + $0x118] sm:$0xff]
      %v5358 = vld [vmem:[%s521 + $0x120] sm:$0xff]
      %v5359 = vld [vmem:[%s521 + $0x128] sm:$0xff]
      %v5360 = vld [vmem:[%s521 + $0x130] sm:$0xff]
      %v5361 = vld [vmem:[%s521 + $0x138] sm:$0xff]
      %v5362 = vld [vmem:[%s521 + $0x140] sm:$0xff]
      %v5363 = vld [vmem:[%s521 + $0x148] sm:$0xff]
      %v5364 = vld [vmem:[%s521 + $0x150] sm:$0xff]
      %v5365 = vld [vmem:[%s521 + $0x158] sm:$0xff]
      %v5366 = vld [vmem:[%s521 + $0x160] sm:$0xff]
      %v5367 = vld [vmem:[%s521 + $0x168] sm:$0xff]
      %v5368 = vld [vmem:[%s521 + $0x170] sm:$0xff]
      %v5369 = vld [vmem:[%s521 + $0x178] sm:$0xff]
      %v5370 = vld [vmem:[%s521 + $0x180] sm:$0xff]
      %v5371 = vld [vmem:[%s521 + $0x188] sm:$0xff]
      %v5372 = vld [vmem:[%s521 + $0x190] sm:$0xff]
      %v5373 = vld [vmem:[%s521 + $0x198] sm:$0xff]
      %v5374 = vld [vmem:[%s521 + $0x1a0] sm:$0xff]
      %v5375 = vld [vmem:[%s521 + $0x1a8] sm:$0xff]
      %v5376 = vld [vmem:[%s521 + $0x1b0] sm:$0xff]
      %v5377 = vld [vmem:[%s521 + $0x1b8] sm:$0xff]
      %v5378 = vld [vmem:[%s521 + $0x1c0] sm:$0xff]
      %v5379 = vld [vmem:[%s521 + $0x1c8] sm:$0xff]
      %v5380 = vld [vmem:[%s521 + $0x1d0] sm:$0xff]
      %v5381 = vld [vmem:[%s521 + $0x1d8] sm:$0xff]
      %v5382 = vld [vmem:[%s521 + $0x1e0] sm:$0xff]
      %v5383 = vld [vmem:[%s521 + $0x1e8] sm:$0xff]
      %v5384 = vld [vmem:[%s521 + $0x1f0] sm:$0xff]
      %v5385 = vld [vmem:[%s521 + $0x1f8] sm:$0xff]
      %v5386 = vld [vmem:[%s521 + $0x200] sm:$0xff]
      %v5387 = vld [vmem:[%s521 + $0x208] sm:$0xff]
      %v5388 = vld [vmem:[%s521 + $0x210] sm:$0xff]
      %v5389 = vld [vmem:[%s521 + $0x218] sm:$0xff]
      %v5390 = vld [vmem:[%s521 + $0x220] sm:$0xff]
      %v5391 = vld [vmem:[%s521 + $0x228] sm:$0xff]
      %v5392 = vld [vmem:[%s521 + $0x230] sm:$0xff]
      %v5393 = vld [vmem:[%s521 + $0x238] sm:$0xff]
      %v5394 = vld [vmem:[%s521 + $0x240] sm:$0xff]
      %v5395 = vld [vmem:[%s521 + $0x248] sm:$0xff]
      %v5396 = vld [vmem:[%s521 + $0x250] sm:$0xff]
      %v5397 = vld [vmem:[%s521 + $0x258] sm:$0xff]
      %v5398 = vld [vmem:[%s521 + $0x260] sm:$0xff]
      %v5399 = vld [vmem:[%s521 + $0x268] sm:$0xff]
      %v5400 = vld [vmem:[%s521 + $0x270] sm:$0xff]
      %v5401 = vld [vmem:[%s521 + $0x278] sm:$0xff]
      %v5402 = vld [vmem:[%s521 + $0x280] sm:$0xff]
      %v5403 = vld [vmem:[%s521 + $0x288] sm:$0xff]
      %v5404 = vld [vmem:[%s521 + $0x290] sm:$0xff]
      %v5405 = vld [vmem:[%s521 + $0x298] sm:$0xff]
      %v5406 = vld [vmem:[%s521 + $0x2a0] sm:$0xff]
      %v5407 = vld [vmem:[%s521 + $0x2a8] sm:$0xff]
      %v5408 = vld [vmem:[%s521 + $0x2b0] sm:$0xff]
      %v5409 = vld [vmem:[%s521 + $0x2b8] sm:$0xff]
      %v5410 = vld [vmem:[%s521 + $0x2c0] sm:$0xff]
      %v5411 = vld [vmem:[%s521 + $0x2c8] sm:$0xff]
      %v5412 = vld [vmem:[%s521 + $0x2d0] sm:$0xff]
      %v5413 = vld [vmem:[%s521 + $0x2d8] sm:$0xff]
      %v5414 = vld [vmem:[%s521 + $0x2e0] sm:$0xff]
      %v5415 = vld [vmem:[%s521 + $0x2e8] sm:$0xff]
      %v5416 = vld [vmem:[%s521 + $0x2f0] sm:$0xff]
      %v5417 = vld [vmem:[%s521 + $0x2f8] sm:$0xff]
      %v5418 = vld [vmem:[%s521 + $0x300] sm:$0xff]
      %v5419 = vld [vmem:[%s521 + $0x308] sm:$0xff]
      %v5420 = vld [vmem:[%s521 + $0x310] sm:$0xff]
      %v5421 = vld [vmem:[%s521 + $0x318] sm:$0xff]
      %v5422 = vld [vmem:[%s521 + $0x320] sm:$0xff]
      %v5423 = vld [vmem:[%s521 + $0x328] sm:$0xff]
      %v5424 = vld [vmem:[%s521 + $0x330] sm:$0xff]
      %v5425 = vld [vmem:[%s521 + $0x338] sm:$0xff]
      %v5426 = vld [vmem:[%s521 + $0x340] sm:$0xff]
      %v5427 = vld [vmem:[%s521 + $0x348] sm:$0xff]
      %v5428 = vld [vmem:[%s521 + $0x350] sm:$0xff]
      %v5429 = vld [vmem:[%s521 + $0x358] sm:$0xff]
      %v5430 = vld [vmem:[%s521 + $0x360] sm:$0xff]
      %v5431 = vld [vmem:[%s521 + $0x368] sm:$0xff]
      %v5432 = vld [vmem:[%s521 + $0x370] sm:$0xff]
      %v5433 = vld [vmem:[%s521 + $0x378] sm:$0xff]
      %v5434 = vld [vmem:[%s521 + $0x380] sm:$0xff]
      %v5435 = vld [vmem:[%s521 + $0x388] sm:$0xff]
      %v5436 = vld [vmem:[%s521 + $0x390] sm:$0xff]
      %v5437 = vld [vmem:[%s521 + $0x398] sm:$0xff]
      %v5438 = vld [vmem:[%s521 + $0x3a0] sm:$0xff]
      %v5439 = vld [vmem:[%s521 + $0x3a8] sm:$0xff]
      %v5440 = vld [vmem:[%s521 + $0x3b0] sm:$0xff]
      %v5441 = vld [vmem:[%s521 + $0x3b8] sm:$0xff]
      %v5442 = vld [vmem:[%s521 + $0x3c0] sm:$0xff]
      %v5443 = vld [vmem:[%s521 + $0x3c8] sm:$0xff]
      %v5444 = vld [vmem:[%s521 + $0x3d0] sm:$0xff]
      %v5445 = vld [vmem:[%s521 + $0x3d8] sm:$0xff]
      %v5446 = vld [vmem:[%s521 + $0x3e0] sm:$0xff]
      %v5447 = vld [vmem:[%s521 + $0x3e8] sm:$0xff]
      %v5448 = vld [vmem:[%s521 + $0x3f0] sm:$0xff]
      %v5449 = vld [vmem:[%s521 + $0x3f8] sm:$0xff]
      %v5450 = vld [vmem:[%s521 + $0x400] sm:$0xff]
      %v5451 = vld [vmem:[%s521 + $0x408] sm:$0xff]
      %v5452 = vld [vmem:[%s521 + $0x410] sm:$0xff]
      %v5453 = vld [vmem:[%s521 + $0x418] sm:$0xff]
      %v5454 = vld [vmem:[%s521 + $0x420] sm:$0xff]
      %v5455 = vld [vmem:[%s521 + $0x428] sm:$0xff]
      %v5456 = vld [vmem:[%s521 + $0x430] sm:$0xff]
      %v5457 = vld [vmem:[%s521 + $0x438] sm:$0xff]
      %v5458 = vld [vmem:[%s521 + $0x440] sm:$0xff]
      %v5459 = vld [vmem:[%s521 + $0x448] sm:$0xff]
      %v5460 = vld [vmem:[%s521 + $0x450] sm:$0xff]
      %v5461 = vld [vmem:[%s521 + $0x458] sm:$0xff]
      %v5462 = vld [vmem:[%s521 + $0x460] sm:$0xff]
      %v5463 = vld [vmem:[%s521 + $0x468] sm:$0xff]
      %v5464 = vld [vmem:[%s521 + $0x470] sm:$0xff]
      %v5465 = vld [vmem:[%s521 + $0x478] sm:$0xff]
      %v5466 = vld [vmem:[%s521 + $0x480] sm:$0xff]
      %v5467 = vld [vmem:[%s521 + $0x488] sm:$0xff]
      %v5468 = vld [vmem:[%s521 + $0x490] sm:$0xff]
      %v5469 = vld [vmem:[%s521 + $0x498] sm:$0xff]
      %v5470 = vld [vmem:[%s521 + $0x4a0] sm:$0xff]
      %v5471 = vld [vmem:[%s521 + $0x4a8] sm:$0xff]
      %v5472 = vld [vmem:[%s521 + $0x4b0] sm:$0xff]
      %v5473 = vld [vmem:[%s521 + $0x4b8] sm:$0xff]
      %v5474 = vld [vmem:[%s521 + $0x4c0] sm:$0xff]
      %v5475 = vld [vmem:[%s521 + $0x4c8] sm:$0xff]
      %v5476 = vld [vmem:[%s521 + $0x4d0] sm:$0xff]
      %v5477 = vld [vmem:[%s521 + $0x4d8] sm:$0xff]
      %v5478 = vld [vmem:[%s521 + $0x4e0] sm:$0xff]
      %v5479 = vld [vmem:[%s521 + $0x4e8] sm:$0xff]
      %v5480 = vld [vmem:[%s521 + $0x4f0] sm:$0xff]
      %v5481 = vld [vmem:[%s521 + $0x4f8] sm:$0xff]
      %v5482 = vld [vmem:[%s521 + $0x500] sm:$0xff]
      %v5483 = vld [vmem:[%s521 + $0x508] sm:$0xff]
      %v5484 = vld [vmem:[%s521 + $0x510] sm:$0xff]
      %v5485 = vld [vmem:[%s521 + $0x518] sm:$0xff]
      %v5486 = vld [vmem:[%s521 + $0x520] sm:$0xff]
      %v5487 = vld [vmem:[%s521 + $0x528] sm:$0xff]
      %v5488 = vld [vmem:[%s521 + $0x530] sm:$0xff]
      %v5489 = vld [vmem:[%s521 + $0x538] sm:$0xff]
      %v5490 = vld [vmem:[%s521 + $0x540] sm:$0xff]
      %v5491 = vld [vmem:[%s521 + $0x548] sm:$0xff]
      %v5492 = vld [vmem:[%s521 + $0x550] sm:$0xff]
      %v5493 = vld [vmem:[%s521 + $0x558] sm:$0xff]
      %v5494 = vld [vmem:[%s521 + $0x560] sm:$0xff]
      %v5495 = vld [vmem:[%s521 + $0x568] sm:$0xff]
      %v5496 = vld [vmem:[%s521 + $0x570] sm:$0xff]
      %v5497 = vld [vmem:[%s521 + $0x578] sm:$0xff]
      %v5498 = vld [vmem:[%s521 + $0x580] sm:$0xff]
      %v5499 = vld [vmem:[%s521 + $0x588] sm:$0xff]
      %v5500 = vld [vmem:[%s521 + $0x590] sm:$0xff]
      %v5501 = vld [vmem:[%s521 + $0x598] sm:$0xff]
      %v5502 = vld [vmem:[%s521 + $0x5a0] sm:$0xff]
      %v5503 = vld [vmem:[%s521 + $0x5a8] sm:$0xff]
      %v5504 = vld [vmem:[%s521 + $0x5b0] sm:$0xff]
      %v5505 = vld [vmem:[%s521 + $0x5b8] sm:$0xff]
      %v5506 = vld [vmem:[%s521 + $0x5c0] sm:$0xff]
      %v5507 = vld [vmem:[%s521 + $0x5c8] sm:$0xff]
      %v5508 = vld [vmem:[%s521 + $0x5d0] sm:$0xff]
      %v5509 = vld [vmem:[%s521 + $0x5d8] sm:$0xff]
      %v5510 = vld [vmem:[%s521 + $0x5e0] sm:$0xff]
      %v5511 = vld [vmem:[%s521 + $0x5e8] sm:$0xff]
      %v5512 = vld [vmem:[%s521 + $0x5f0] sm:$0xff]
      %v5513 = vld [vmem:[%s521 + $0x5f8] sm:$0xff]
      %v5514 = vld [vmem:[%s525] sm:$0xf]
      %v5516 = vperm.slane %v5514, 0
      %v5517 = vperm.slane %v5514, 1
      %v5518 = vperm.slane %v5514, 2
      %v5519 = vperm.slane %v5514, 3
      %v5716 = vunpack.c.l.b16 %v5322
      %v5717 = vunpack.c.h.b16 %v5322
      %v5718 = vunpack.c.l.b16 %v5323
      %v5719 = vunpack.c.h.b16 %v5323
      %v5720 = vunpack.c.l.b16 %v5324
      %v5721 = vunpack.c.h.b16 %v5324
      %v5722 = vunpack.c.l.b16 %v5325
      %v5723 = vunpack.c.h.b16 %v5325
      %v5724 = vunpack.c.l.b16 %v5326
      %v5725 = vunpack.c.h.b16 %v5326
      %v5726 = vunpack.c.l.b16 %v5327
      %v5727 = vunpack.c.h.b16 %v5327
      %v5728 = vunpack.c.l.b16 %v5328
      %v5729 = vunpack.c.h.b16 %v5328
      %v5730 = vunpack.c.l.b16 %v5329
      %v5731 = vunpack.c.h.b16 %v5329
      %v5732 = vunpack.c.l.b16 %v5330
      %v5733 = vunpack.c.h.b16 %v5330
      %v5734 = vunpack.c.l.b16 %v5331
      %v5735 = vunpack.c.h.b16 %v5331
      %v5736 = vunpack.c.l.b16 %v5332
      %v5737 = vunpack.c.h.b16 %v5332
      %v5738 = vunpack.c.l.b16 %v5333
      %v5739 = vunpack.c.h.b16 %v5333
      %v5740 = vunpack.c.l.b16 %v5334
      %v5741 = vunpack.c.h.b16 %v5334
      %v5742 = vunpack.c.l.b16 %v5335
      %v5743 = vunpack.c.h.b16 %v5335
      %v5744 = vunpack.c.l.b16 %v5336
      %v5745 = vunpack.c.h.b16 %v5336
      %v5746 = vunpack.c.l.b16 %v5337
      %v5747 = vunpack.c.h.b16 %v5337
      %v5748 = vunpack.c.l.b16 %v5338
      %v5749 = vunpack.c.h.b16 %v5338
      %v5750 = vunpack.c.l.b16 %v5339
      %v5751 = vunpack.c.h.b16 %v5339
      %v5752 = vunpack.c.l.b16 %v5340
      %v5753 = vunpack.c.h.b16 %v5340
      %v5754 = vunpack.c.l.b16 %v5341
      %v5755 = vunpack.c.h.b16 %v5341
      %v5756 = vunpack.c.l.b16 %v5342
      %v5757 = vunpack.c.h.b16 %v5342
      %v5758 = vunpack.c.l.b16 %v5343
      %v5759 = vunpack.c.h.b16 %v5343
      %v5760 = vunpack.c.l.b16 %v5344
      %v5761 = vunpack.c.h.b16 %v5344
      %v5762 = vunpack.c.l.b16 %v5345
      %v5763 = vunpack.c.h.b16 %v5345
      %v5764 = vunpack.c.l.b16 %v5346
      %v5765 = vunpack.c.h.b16 %v5346
      %v5766 = vunpack.c.l.b16 %v5347
      %v5767 = vunpack.c.h.b16 %v5347
      %v5768 = vunpack.c.l.b16 %v5348
      %v5769 = vunpack.c.h.b16 %v5348
      %v5770 = vunpack.c.l.b16 %v5349
      %v5771 = vunpack.c.h.b16 %v5349
      %v5772 = vunpack.c.l.b16 %v5350
      %v5773 = vunpack.c.h.b16 %v5350
      %v5774 = vunpack.c.l.b16 %v5351
      %v5775 = vunpack.c.h.b16 %v5351
      %v5776 = vunpack.c.l.b16 %v5352
      %v5777 = vunpack.c.h.b16 %v5352
      %v5778 = vunpack.c.l.b16 %v5353
      %v5779 = vunpack.c.h.b16 %v5353
      %v5780 = vunpack.c.l.b16 %v5354
      %v5781 = vunpack.c.h.b16 %v5354
      %v5782 = vunpack.c.l.b16 %v5355
      %v5783 = vunpack.c.h.b16 %v5355
      %v5784 = vunpack.c.l.b16 %v5356
      %v5785 = vunpack.c.h.b16 %v5356
      %v5786 = vunpack.c.l.b16 %v5357
      %v5787 = vunpack.c.h.b16 %v5357
      %v5788 = vunpack.c.l.b16 %v5358
      %v5789 = vunpack.c.h.b16 %v5358
      %v5790 = vunpack.c.l.b16 %v5359
      %v5791 = vunpack.c.h.b16 %v5359
      %v5792 = vunpack.c.l.b16 %v5360
      %v5793 = vunpack.c.h.b16 %v5360
      %v5794 = vunpack.c.l.b16 %v5361
      %v5795 = vunpack.c.h.b16 %v5361
      %v5796 = vunpack.c.l.b16 %v5362
      %v5797 = vunpack.c.h.b16 %v5362
      %v5798 = vunpack.c.l.b16 %v5363
      %v5799 = vunpack.c.h.b16 %v5363
      %v5800 = vunpack.c.l.b16 %v5364
      %v5801 = vunpack.c.h.b16 %v5364
      %v5802 = vunpack.c.l.b16 %v5365
      %v5803 = vunpack.c.h.b16 %v5365
      %v5804 = vunpack.c.l.b16 %v5366
      %v5805 = vunpack.c.h.b16 %v5366
      %v5806 = vunpack.c.l.b16 %v5367
      %v5807 = vunpack.c.h.b16 %v5367
      %v5808 = vunpack.c.l.b16 %v5368
      %v5809 = vunpack.c.h.b16 %v5368
      %v5810 = vunpack.c.l.b16 %v5369
      %v5811 = vunpack.c.h.b16 %v5369
      %v5812 = vunpack.c.l.b16 %v5370
      %v5813 = vunpack.c.h.b16 %v5370
      %v5814 = vunpack.c.l.b16 %v5371
      %v5815 = vunpack.c.h.b16 %v5371
      %v5816 = vunpack.c.l.b16 %v5372
      %v5817 = vunpack.c.h.b16 %v5372
      %v5818 = vunpack.c.l.b16 %v5373
      %v5819 = vunpack.c.h.b16 %v5373
      %v5820 = vunpack.c.l.b16 %v5374
      %v5821 = vunpack.c.h.b16 %v5374
      %v5822 = vunpack.c.l.b16 %v5375
      %v5823 = vunpack.c.h.b16 %v5375
      %v5824 = vunpack.c.l.b16 %v5376
      %v5825 = vunpack.c.h.b16 %v5376
      %v5826 = vunpack.c.l.b16 %v5377
      %v5827 = vunpack.c.h.b16 %v5377
      %v5828 = vunpack.c.l.b16 %v5378
      %v5829 = vunpack.c.h.b16 %v5378
      %v5830 = vunpack.c.l.b16 %v5379
      %v5831 = vunpack.c.h.b16 %v5379
      %v5832 = vunpack.c.l.b16 %v5380
      %v5833 = vunpack.c.h.b16 %v5380
      %v5834 = vunpack.c.l.b16 %v5381
      %v5835 = vunpack.c.h.b16 %v5381
      %v5836 = vunpack.c.l.b16 %v5382
      %v5837 = vunpack.c.h.b16 %v5382
      %v5838 = vunpack.c.l.b16 %v5383
      %v5839 = vunpack.c.h.b16 %v5383
      %v5840 = vunpack.c.l.b16 %v5384
      %v5841 = vunpack.c.h.b16 %v5384
      %v5842 = vunpack.c.l.b16 %v5385
      %v5843 = vunpack.c.h.b16 %v5385
      %v5844 = vunpack.c.l.b16 %v5386
      %v5845 = vunpack.c.h.b16 %v5386
      %v5846 = vunpack.c.l.b16 %v5387
      %v5847 = vunpack.c.h.b16 %v5387
      %v5848 = vunpack.c.l.b16 %v5388
      %v5849 = vunpack.c.h.b16 %v5388
      %v5850 = vunpack.c.l.b16 %v5389
      %v5851 = vunpack.c.h.b16 %v5389
      %v5852 = vunpack.c.l.b16 %v5390
      %v5853 = vunpack.c.h.b16 %v5390
      %v5854 = vunpack.c.l.b16 %v5391
      %v5855 = vunpack.c.h.b16 %v5391
      %v5856 = vunpack.c.l.b16 %v5392
      %v5857 = vunpack.c.h.b16 %v5392
      %v5858 = vunpack.c.l.b16 %v5393
      %v5859 = vunpack.c.h.b16 %v5393
      %v5860 = vunpack.c.l.b16 %v5394
      %v5861 = vunpack.c.h.b16 %v5394
      %v5862 = vunpack.c.l.b16 %v5395
      %v5863 = vunpack.c.h.b16 %v5395
      %v5864 = vunpack.c.l.b16 %v5396
      %v5865 = vunpack.c.h.b16 %v5396
      %v5866 = vunpack.c.l.b16 %v5397
      %v5867 = vunpack.c.h.b16 %v5397
      %v5868 = vunpack.c.l.b16 %v5398
      %v5869 = vunpack.c.h.b16 %v5398
      %v5870 = vunpack.c.l.b16 %v5399
      %v5871 = vunpack.c.h.b16 %v5399
      %v5872 = vunpack.c.l.b16 %v5400
      %v5873 = vunpack.c.h.b16 %v5400
      %v5874 = vunpack.c.l.b16 %v5401
      %v5875 = vunpack.c.h.b16 %v5401
      %v5876 = vunpack.c.l.b16 %v5402
      %v5877 = vunpack.c.h.b16 %v5402
      %v5878 = vunpack.c.l.b16 %v5403
      %v5879 = vunpack.c.h.b16 %v5403
      %v5880 = vunpack.c.l.b16 %v5404
      %v5881 = vunpack.c.h.b16 %v5404
      %v5882 = vunpack.c.l.b16 %v5405
      %v5883 = vunpack.c.h.b16 %v5405
      %v5884 = vunpack.c.l.b16 %v5406
      %v5885 = vunpack.c.h.b16 %v5406
      %v5886 = vunpack.c.l.b16 %v5407
      %v5887 = vunpack.c.h.b16 %v5407
      %v5888 = vunpack.c.l.b16 %v5408
      %v5889 = vunpack.c.h.b16 %v5408
      %v5890 = vunpack.c.l.b16 %v5409
      %v5891 = vunpack.c.h.b16 %v5409
      %v5892 = vunpack.c.l.b16 %v5410
      %v5893 = vunpack.c.h.b16 %v5410
      %v5894 = vunpack.c.l.b16 %v5411
      %v5895 = vunpack.c.h.b16 %v5411
      %v5896 = vunpack.c.l.b16 %v5412
      %v5897 = vunpack.c.h.b16 %v5412
      %v5898 = vunpack.c.l.b16 %v5413
      %v5899 = vunpack.c.h.b16 %v5413
      %v5900 = vunpack.c.l.b16 %v5414
      %v5901 = vunpack.c.h.b16 %v5414
      %v5902 = vunpack.c.l.b16 %v5415
      %v5903 = vunpack.c.h.b16 %v5415
      %v5904 = vunpack.c.l.b16 %v5416
      %v5905 = vunpack.c.h.b16 %v5416
      %v5906 = vunpack.c.l.b16 %v5417
      %v5907 = vunpack.c.h.b16 %v5417
      %v5908 = vunpack.c.l.b16 %v5418
      %v5909 = vunpack.c.h.b16 %v5418
      %v5910 = vunpack.c.l.b16 %v5419
      %v5911 = vunpack.c.h.b16 %v5419
      %v5912 = vunpack.c.l.b16 %v5420
      %v5913 = vunpack.c.h.b16 %v5420
      %v5914 = vunpack.c.l.b16 %v5421
      %v5915 = vunpack.c.h.b16 %v5421
      %v5916 = vunpack.c.l.b16 %v5422
      %v5917 = vunpack.c.h.b16 %v5422
      %v5918 = vunpack.c.l.b16 %v5423
      %v5919 = vunpack.c.h.b16 %v5423
      %v5920 = vunpack.c.l.b16 %v5424
      %v5921 = vunpack.c.h.b16 %v5424
      %v5922 = vunpack.c.l.b16 %v5425
      %v5923 = vunpack.c.h.b16 %v5425
      %v5924 = vunpack.c.l.b16 %v5426
      %v5925 = vunpack.c.h.b16 %v5426
      %v5926 = vunpack.c.l.b16 %v5427
      %v5927 = vunpack.c.h.b16 %v5427
      %v5928 = vunpack.c.l.b16 %v5428
      %v5929 = vunpack.c.h.b16 %v5428
      %v5930 = vunpack.c.l.b16 %v5429
      %v5931 = vunpack.c.h.b16 %v5429
      %v5932 = vunpack.c.l.b16 %v5430
      %v5933 = vunpack.c.h.b16 %v5430
      %v5934 = vunpack.c.l.b16 %v5431
      %v5935 = vunpack.c.h.b16 %v5431
      %v5936 = vunpack.c.l.b16 %v5432
      %v5937 = vunpack.c.h.b16 %v5432
      %v5938 = vunpack.c.l.b16 %v5433
      %v5939 = vunpack.c.h.b16 %v5433
      %v5940 = vunpack.c.l.b16 %v5434
      %v5941 = vunpack.c.h.b16 %v5434
      %v5942 = vunpack.c.l.b16 %v5435
      %v5943 = vunpack.c.h.b16 %v5435
      %v5944 = vunpack.c.l.b16 %v5436
      %v5945 = vunpack.c.h.b16 %v5436
      %v5946 = vunpack.c.l.b16 %v5437
      %v5947 = vunpack.c.h.b16 %v5437
      %v5948 = vunpack.c.l.b16 %v5438
      %v5949 = vunpack.c.h.b16 %v5438
      %v5950 = vunpack.c.l.b16 %v5439
      %v5951 = vunpack.c.h.b16 %v5439
      %v5952 = vunpack.c.l.b16 %v5440
      %v5953 = vunpack.c.h.b16 %v5440
      %v5954 = vunpack.c.l.b16 %v5441
      %v5955 = vunpack.c.h.b16 %v5441
      %v5956 = vunpack.c.l.b16 %v5442
      %v5957 = vunpack.c.h.b16 %v5442
      %v5958 = vunpack.c.l.b16 %v5443
      %v5959 = vunpack.c.h.b16 %v5443
      %v5960 = vunpack.c.l.b16 %v5444
      %v5961 = vunpack.c.h.b16 %v5444
      %v5962 = vunpack.c.l.b16 %v5445
      %v5963 = vunpack.c.h.b16 %v5445
      %v5964 = vunpack.c.l.b16 %v5446
      %v5965 = vunpack.c.h.b16 %v5446
      %v5966 = vunpack.c.l.b16 %v5447
      %v5967 = vunpack.c.h.b16 %v5447
      %v5968 = vunpack.c.l.b16 %v5448
      %v5969 = vunpack.c.h.b16 %v5448
      %v5970 = vunpack.c.l.b16 %v5449
      %v5971 = vunpack.c.h.b16 %v5449
      %v5972 = vunpack.c.l.b16 %v5450
      %v5973 = vunpack.c.h.b16 %v5450
      %v5974 = vunpack.c.l.b16 %v5451
      %v5975 = vunpack.c.h.b16 %v5451
      %v5976 = vunpack.c.l.b16 %v5452
      %v5977 = vunpack.c.h.b16 %v5452
      %v5978 = vunpack.c.l.b16 %v5453
      %v5979 = vunpack.c.h.b16 %v5453
      %v5980 = vunpack.c.l.b16 %v5454
      %v5981 = vunpack.c.h.b16 %v5454
      %v5982 = vunpack.c.l.b16 %v5455
      %v5983 = vunpack.c.h.b16 %v5455
      %v5984 = vunpack.c.l.b16 %v5456
      %v5985 = vunpack.c.h.b16 %v5456
      %v5986 = vunpack.c.l.b16 %v5457
      %v5987 = vunpack.c.h.b16 %v5457
      %v5988 = vunpack.c.l.b16 %v5458
      %v5989 = vunpack.c.h.b16 %v5458
      %v5990 = vunpack.c.l.b16 %v5459
      %v5991 = vunpack.c.h.b16 %v5459
      %v5992 = vunpack.c.l.b16 %v5460
      %v5993 = vunpack.c.h.b16 %v5460
      %v5994 = vunpack.c.l.b16 %v5461
      %v5995 = vunpack.c.h.b16 %v5461
      %v5996 = vunpack.c.l.b16 %v5462
      %v5997 = vunpack.c.h.b16 %v5462
      %v5998 = vunpack.c.l.b16 %v5463
      %v5999 = vunpack.c.h.b16 %v5463
      %v6000 = vunpack.c.l.b16 %v5464
      %v6001 = vunpack.c.h.b16 %v5464
      %v6002 = vunpack.c.l.b16 %v5465
      %v6003 = vunpack.c.h.b16 %v5465
      %v6004 = vunpack.c.l.b16 %v5466
      %v6005 = vunpack.c.h.b16 %v5466
      %v6006 = vunpack.c.l.b16 %v5467
      %v6007 = vunpack.c.h.b16 %v5467
      %v6008 = vunpack.c.l.b16 %v5468
      %v6009 = vunpack.c.h.b16 %v5468
      %v6010 = vunpack.c.l.b16 %v5469
      %v6011 = vunpack.c.h.b16 %v5469
      %v6012 = vunpack.c.l.b16 %v5470
      %v6013 = vunpack.c.h.b16 %v5470
      %v6014 = vunpack.c.l.b16 %v5471
      %v6015 = vunpack.c.h.b16 %v5471
      %v6016 = vunpack.c.l.b16 %v5472
      %v6017 = vunpack.c.h.b16 %v5472
      %v6018 = vunpack.c.l.b16 %v5473
      %v6019 = vunpack.c.h.b16 %v5473
      %v6020 = vunpack.c.l.b16 %v5474
      %v6021 = vunpack.c.h.b16 %v5474
      %v6022 = vunpack.c.l.b16 %v5475
      %v6023 = vunpack.c.h.b16 %v5475
      %v6024 = vunpack.c.l.b16 %v5476
      %v6025 = vunpack.c.h.b16 %v5476
      %v6026 = vunpack.c.l.b16 %v5477
      %v6027 = vunpack.c.h.b16 %v5477
      %v6028 = vunpack.c.l.b16 %v5478
      %v6029 = vunpack.c.h.b16 %v5478
      %v6030 = vunpack.c.l.b16 %v5479
      %v6031 = vunpack.c.h.b16 %v5479
      %v6032 = vunpack.c.l.b16 %v5480
      %v6033 = vunpack.c.h.b16 %v5480
      %v6034 = vunpack.c.l.b16 %v5481
      %v6035 = vunpack.c.h.b16 %v5481
      %v6036 = vunpack.c.l.b16 %v5482
      %v6037 = vunpack.c.h.b16 %v5482
      %v6038 = vunpack.c.l.b16 %v5483
      %v6039 = vunpack.c.h.b16 %v5483
      %v6040 = vunpack.c.l.b16 %v5484
      %v6041 = vunpack.c.h.b16 %v5484
      %v6042 = vunpack.c.l.b16 %v5485
      %v6043 = vunpack.c.h.b16 %v5485
      %v6044 = vunpack.c.l.b16 %v5486
      %v6045 = vunpack.c.h.b16 %v5486
      %v6046 = vunpack.c.l.b16 %v5487
      %v6047 = vunpack.c.h.b16 %v5487
      %v6048 = vunpack.c.l.b16 %v5488
      %v6049 = vunpack.c.h.b16 %v5488
      %v6050 = vunpack.c.l.b16 %v5489
      %v6051 = vunpack.c.h.b16 %v5489
      %v6052 = vunpack.c.l.b16 %v5490
      %v6053 = vunpack.c.h.b16 %v5490
      %v6054 = vunpack.c.l.b16 %v5491
      %v6055 = vunpack.c.h.b16 %v5491
      %v6056 = vunpack.c.l.b16 %v5492
      %v6057 = vunpack.c.h.b16 %v5492
      %v6058 = vunpack.c.l.b16 %v5493
      %v6059 = vunpack.c.h.b16 %v5493
      %v6060 = vunpack.c.l.b16 %v5494
      %v6061 = vunpack.c.h.b16 %v5494
      %v6062 = vunpack.c.l.b16 %v5495
      %v6063 = vunpack.c.h.b16 %v5495
      %v6064 = vunpack.c.l.b16 %v5496
      %v6065 = vunpack.c.h.b16 %v5496
      %v6066 = vunpack.c.l.b16 %v5497
      %v6067 = vunpack.c.h.b16 %v5497
      %v6068 = vunpack.c.l.b16 %v5498
      %v6069 = vunpack.c.h.b16 %v5498
      %v6070 = vunpack.c.l.b16 %v5499
      %v6071 = vunpack.c.h.b16 %v5499
      %v6072 = vunpack.c.l.b16 %v5500
      %v6073 = vunpack.c.h.b16 %v5500
      %v6074 = vunpack.c.l.b16 %v5501
      %v6075 = vunpack.c.h.b16 %v5501
      %v6076 = vunpack.c.l.b16 %v5502
      %v6077 = vunpack.c.h.b16 %v5502
      %v6078 = vunpack.c.l.b16 %v5503
      %v6079 = vunpack.c.h.b16 %v5503
      %v6080 = vunpack.c.l.b16 %v5504
      %v6081 = vunpack.c.h.b16 %v5504
      %v6082 = vunpack.c.l.b16 %v5505
      %v6083 = vunpack.c.h.b16 %v5505
      %v6084 = vunpack.c.l.b16 %v5506
      %v6085 = vunpack.c.h.b16 %v5506
      %v6086 = vunpack.c.l.b16 %v5507
      %v6087 = vunpack.c.h.b16 %v5507
      %v6088 = vunpack.c.l.b16 %v5508
      %v6089 = vunpack.c.h.b16 %v5508
      %v6090 = vunpack.c.l.b16 %v5509
      %v6091 = vunpack.c.h.b16 %v5509
      %v6092 = vunpack.c.l.b16 %v5510
      %v6093 = vunpack.c.h.b16 %v5510
      %v6094 = vunpack.c.l.b16 %v5511
      %v6095 = vunpack.c.h.b16 %v5511
      %v6096 = vunpack.c.l.b16 %v5512
      %v6097 = vunpack.c.h.b16 %v5512
      %v6098 = vunpack.c.l.b16 %v5513
      %v6099 = vunpack.c.h.b16 %v5513
      %v6100 = vpack.c.b16 %v5720, %v5716
      %v6101 = vpack.c.b16 %v5721, %v5717
      %v6102 = vpack.c.b16 %v5722, %v5718
      %v6103 = vpack.c.b16 %v5723, %v5719
      %v6104 = vpack.c.b16 %v5728, %v5724
      %v6105 = vpack.c.b16 %v5729, %v5725
      %v6106 = vpack.c.b16 %v5730, %v5726
      %v6107 = vpack.c.b16 %v5731, %v5727
      %v6108 = vpack.c.b16 %v5736, %v5732
      %v6109 = vpack.c.b16 %v5737, %v5733
      %v6110 = vpack.c.b16 %v5738, %v5734
      %v6111 = vpack.c.b16 %v5739, %v5735
      %v6112 = vpack.c.b16 %v5744, %v5740
      %v6113 = vpack.c.b16 %v5745, %v5741
      %v6114 = vpack.c.b16 %v5746, %v5742
      %v6115 = vpack.c.b16 %v5747, %v5743
      %v6116 = vpack.c.b16 %v5752, %v5748
      %v6117 = vpack.c.b16 %v5753, %v5749
      %v6118 = vpack.c.b16 %v5754, %v5750
      %v6119 = vpack.c.b16 %v5755, %v5751
      %v6120 = vpack.c.b16 %v5760, %v5756
      %v6121 = vpack.c.b16 %v5761, %v5757
      %v6122 = vpack.c.b16 %v5762, %v5758
      %v6123 = vpack.c.b16 %v5763, %v5759
      %v6124 = vpack.c.b16 %v5768, %v5764
      %v6125 = vpack.c.b16 %v5769, %v5765
      %v6126 = vpack.c.b16 %v5770, %v5766
      %v6127 = vpack.c.b16 %v5771, %v5767
      %v6128 = vpack.c.b16 %v5776, %v5772
      %v6129 = vpack.c.b16 %v5777, %v5773
      %v6130 = vpack.c.b16 %v5778, %v5774
      %v6131 = vpack.c.b16 %v5779, %v5775
      %v6132 = vpack.c.b16 %v5784, %v5780
      %v6133 = vpack.c.b16 %v5785, %v5781
      %v6134 = vpack.c.b16 %v5786, %v5782
      %v6135 = vpack.c.b16 %v5787, %v5783
      %v6136 = vpack.c.b16 %v5792, %v5788
      %v6137 = vpack.c.b16 %v5793, %v5789
      %v6138 = vpack.c.b16 %v5794, %v5790
      %v6139 = vpack.c.b16 %v5795, %v5791
      %v6140 = vpack.c.b16 %v5800, %v5796
      %v6141 = vpack.c.b16 %v5801, %v5797
      %v6142 = vpack.c.b16 %v5802, %v5798
      %v6143 = vpack.c.b16 %v5803, %v5799
      %v6144 = vpack.c.b16 %v5808, %v5804
      %v6145 = vpack.c.b16 %v5809, %v5805
      %v6146 = vpack.c.b16 %v5810, %v5806
      %v6147 = vpack.c.b16 %v5811, %v5807
      %v6148 = vpack.c.b16 %v5816, %v5812
      %v6149 = vpack.c.b16 %v5817, %v5813
      %v6150 = vpack.c.b16 %v5818, %v5814
      %v6151 = vpack.c.b16 %v5819, %v5815
      %v6152 = vpack.c.b16 %v5824, %v5820
      %v6153 = vpack.c.b16 %v5825, %v5821
      %v6154 = vpack.c.b16 %v5826, %v5822
      %v6155 = vpack.c.b16 %v5827, %v5823
      %v6156 = vpack.c.b16 %v5832, %v5828
      %v6157 = vpack.c.b16 %v5833, %v5829
      %v6158 = vpack.c.b16 %v5834, %v5830
      %v6159 = vpack.c.b16 %v5835, %v5831
      %v6160 = vpack.c.b16 %v5840, %v5836
      %v6161 = vpack.c.b16 %v5841, %v5837
      %v6162 = vpack.c.b16 %v5842, %v5838
      %v6163 = vpack.c.b16 %v5843, %v5839
      %v6164 = vpack.c.b16 %v5848, %v5844
      %v6165 = vpack.c.b16 %v5849, %v5845
      %v6166 = vpack.c.b16 %v5850, %v5846
      %v6167 = vpack.c.b16 %v5851, %v5847
      %v6168 = vpack.c.b16 %v5856, %v5852
      %v6169 = vpack.c.b16 %v5857, %v5853
      %v6170 = vpack.c.b16 %v5858, %v5854
      %v6171 = vpack.c.b16 %v5859, %v5855
      %v6172 = vpack.c.b16 %v5864, %v5860
      %v6173 = vpack.c.b16 %v5865, %v5861
      %v6174 = vpack.c.b16 %v5866, %v5862
      %v6175 = vpack.c.b16 %v5867, %v5863
      %v6176 = vpack.c.b16 %v5872, %v5868
      %v6177 = vpack.c.b16 %v5873, %v5869
      %v6178 = vpack.c.b16 %v5874, %v5870
      %v6179 = vpack.c.b16 %v5875, %v5871
      %v6180 = vpack.c.b16 %v5880, %v5876
      %v6181 = vpack.c.b16 %v5881, %v5877
      %v6182 = vpack.c.b16 %v5882, %v5878
      %v6183 = vpack.c.b16 %v5883, %v5879
      %v6184 = vpack.c.b16 %v5888, %v5884
      %v6185 = vpack.c.b16 %v5889, %v5885
      %v6186 = vpack.c.b16 %v5890, %v5886
      %v6187 = vpack.c.b16 %v5891, %v5887
      %v6188 = vpack.c.b16 %v5896, %v5892
      %v6189 = vpack.c.b16 %v5897, %v5893
      %v6190 = vpack.c.b16 %v5898, %v5894
      %v6191 = vpack.c.b16 %v5899, %v5895
      %v6192 = vpack.c.b16 %v5904, %v5900
      %v6193 = vpack.c.b16 %v5905, %v5901
      %v6194 = vpack.c.b16 %v5906, %v5902
      %v6195 = vpack.c.b16 %v5907, %v5903
      %v6196 = vpack.c.b16 %v5912, %v5908
      %v6197 = vpack.c.b16 %v5913, %v5909
      %v6198 = vpack.c.b16 %v5914, %v5910
      %v6199 = vpack.c.b16 %v5915, %v5911
      %v6200 = vpack.c.b16 %v5920, %v5916
      %v6201 = vpack.c.b16 %v5921, %v5917
      %v6202 = vpack.c.b16 %v5922, %v5918
      %v6203 = vpack.c.b16 %v5923, %v5919
      %v6204 = vpack.c.b16 %v5928, %v5924
      %v6205 = vpack.c.b16 %v5929, %v5925
      %v6206 = vpack.c.b16 %v5930, %v5926
      %v6207 = vpack.c.b16 %v5931, %v5927
      %v6208 = vpack.c.b16 %v5936, %v5932
      %v6209 = vpack.c.b16 %v5937, %v5933
      %v6210 = vpack.c.b16 %v5938, %v5934
      %v6211 = vpack.c.b16 %v5939, %v5935
      %v6212 = vpack.c.b16 %v5944, %v5940
      %v6213 = vpack.c.b16 %v5945, %v5941
      %v6214 = vpack.c.b16 %v5946, %v5942
      %v6215 = vpack.c.b16 %v5947, %v5943
      %v6216 = vpack.c.b16 %v5952, %v5948
      %v6217 = vpack.c.b16 %v5953, %v5949
      %v6218 = vpack.c.b16 %v5954, %v5950
      %v6219 = vpack.c.b16 %v5955, %v5951
      %v6220 = vpack.c.b16 %v5960, %v5956
      %v6221 = vpack.c.b16 %v5961, %v5957
      %v6222 = vpack.c.b16 %v5962, %v5958
      %v6223 = vpack.c.b16 %v5963, %v5959
      %v6224 = vpack.c.b16 %v5968, %v5964
      %v6225 = vpack.c.b16 %v5969, %v5965
      %v6226 = vpack.c.b16 %v5970, %v5966
      %v6227 = vpack.c.b16 %v5971, %v5967
      %v6228 = vpack.c.b16 %v5976, %v5972
      %v6229 = vpack.c.b16 %v5977, %v5973
      %v6230 = vpack.c.b16 %v5978, %v5974
      %v6231 = vpack.c.b16 %v5979, %v5975
      %v6232 = vpack.c.b16 %v5984, %v5980
      %v6233 = vpack.c.b16 %v5985, %v5981
      %v6234 = vpack.c.b16 %v5986, %v5982
      %v6235 = vpack.c.b16 %v5987, %v5983
      %v6236 = vpack.c.b16 %v5992, %v5988
      %v6237 = vpack.c.b16 %v5993, %v5989
      %v6238 = vpack.c.b16 %v5994, %v5990
      %v6239 = vpack.c.b16 %v5995, %v5991
      %v6240 = vpack.c.b16 %v6000, %v5996
      %v6241 = vpack.c.b16 %v6001, %v5997
      %v6242 = vpack.c.b16 %v6002, %v5998
      %v6243 = vpack.c.b16 %v6003, %v5999
      %v6244 = vpack.c.b16 %v6008, %v6004
      %v6245 = vpack.c.b16 %v6009, %v6005
      %v6246 = vpack.c.b16 %v6010, %v6006
      %v6247 = vpack.c.b16 %v6011, %v6007
      %v6248 = vpack.c.b16 %v6016, %v6012
      %v6249 = vpack.c.b16 %v6017, %v6013
      %v6250 = vpack.c.b16 %v6018, %v6014
      %v6251 = vpack.c.b16 %v6019, %v6015
      %v6252 = vpack.c.b16 %v6024, %v6020
      %v6253 = vpack.c.b16 %v6025, %v6021
      %v6254 = vpack.c.b16 %v6026, %v6022
      %v6255 = vpack.c.b16 %v6027, %v6023
      %v6256 = vpack.c.b16 %v6032, %v6028
      %v6257 = vpack.c.b16 %v6033, %v6029
      %v6258 = vpack.c.b16 %v6034, %v6030
      %v6259 = vpack.c.b16 %v6035, %v6031
      %v6260 = vpack.c.b16 %v6040, %v6036
      %v6261 = vpack.c.b16 %v6041, %v6037
      %v6262 = vpack.c.b16 %v6042, %v6038
      %v6263 = vpack.c.b16 %v6043, %v6039
      %v6264 = vpack.c.b16 %v6048, %v6044
      %v6265 = vpack.c.b16 %v6049, %v6045
      %v6266 = vpack.c.b16 %v6050, %v6046
      %v6267 = vpack.c.b16 %v6051, %v6047
      %v6268 = vpack.c.b16 %v6056, %v6052
      %v6269 = vpack.c.b16 %v6057, %v6053
      %v6270 = vpack.c.b16 %v6058, %v6054
      %v6271 = vpack.c.b16 %v6059, %v6055
      %v6272 = vpack.c.b16 %v6064, %v6060
      %v6273 = vpack.c.b16 %v6065, %v6061
      %v6274 = vpack.c.b16 %v6066, %v6062
      %v6275 = vpack.c.b16 %v6067, %v6063
      %v6276 = vpack.c.b16 %v6072, %v6068
      %v6277 = vpack.c.b16 %v6073, %v6069
      %v6278 = vpack.c.b16 %v6074, %v6070
      %v6279 = vpack.c.b16 %v6075, %v6071
      %v6280 = vpack.c.b16 %v6080, %v6076
      %v6281 = vpack.c.b16 %v6081, %v6077
      %v6282 = vpack.c.b16 %v6082, %v6078
      %v6283 = vpack.c.b16 %v6083, %v6079
      %v6284 = vpack.c.b16 %v6088, %v6084
      %v6285 = vpack.c.b16 %v6089, %v6085
      %v6286 = vpack.c.b16 %v6090, %v6086
      %v6287 = vpack.c.b16 %v6091, %v6087
      %v6288 = vpack.c.b16 %v6096, %v6092
      %v6289 = vpack.c.b16 %v6097, %v6093
      %v6290 = vpack.c.b16 %v6098, %v6094
      %v6291 = vpack.c.b16 %v6099, %v6095
      %6484 = vmatpush.bf16.msra.mxu0 %v6128
      %6485 = vmatpush.bf16.msra.mxu0 %v6124
      %6486 = vmatpush.bf16.msra.mxu0 %v6120
      %6487 = vmatpush.bf16.msra.mxu0 %v6116
      %6488 = vmatpush.bf16.msra.mxu0 %v6112
      %6489 = vmatpush.bf16.msra.mxu0 %v6108
      %6490 = vmatpush.bf16.msra.mxu0 %v6104
      %6491 = vmatpush.bf16.msra.mxu0 %v6100
      %6492 = vmatmul.bf16.gmra.mxu0 %v5290
      %v6493 = vpop.f32.mrf.mxu0
      %v6494 = vadd.f32 %v5516, %v6493
      %v6495 = vpop.f32.mrf.mxu0
      %v6496 = vadd.f32 %v5516, %v6495
      %6497 = vmatmul.bf16.gmra.mxu0 %v5296
      %v6498 = vpop.f32.mrf.mxu0
      %v6499 = vadd.f32 %v5516, %v6498
      %v6500 = vpop.f32.mrf.mxu0
      %v6501 = vadd.f32 %v5516, %v6500
      %6502 = vmatmul.bf16.gmra.mxu0 %v5302
      %v6503 = vpop.f32.mrf.mxu0
      %v6504 = vadd.f32 %v5516, %v6503
      %v6505 = vpop.f32.mrf.mxu0
      %v6506 = vadd.f32 %v5516, %v6505
      %6507 = vmatmul.bf16.gmra.mxu0 %v5308
      %v6508 = vpop.f32.mrf.mxu0
      %v6509 = vadd.f32 %v5516, %v6508
      %v6510 = vpop.f32.mrf.mxu0
      %v6511 = vadd.f32 %v5516, %v6510
      %6512 = vmatmul.bf16.gmra.mxu0 %v5292
      %v6513 = vpop.f32.mrf.mxu0
      %v6514 = vadd.f32 %v5516, %v6513
      %v6515 = vpop.f32.mrf.mxu0
      %v6516 = vadd.f32 %v5516, %v6515
      %6517 = vmatmul.bf16.gmra.mxu0 %v5298
      %v6518 = vpop.f32.mrf.mxu0
      %v6519 = vadd.f32 %v5516, %v6518
      %v6520 = vpop.f32.mrf.mxu0
      %v6521 = vadd.f32 %v5516, %v6520
      %6522 = vmatmul.bf16.gmra.mxu0 %v5304
      %v6523 = vpop.f32.mrf.mxu0
      %v6524 = vadd.f32 %v5516, %v6523
      %v6525 = vpop.f32.mrf.mxu0
      %v6526 = vadd.f32 %v5516, %v6525
      %6527 = vmatmul.bf16.gmra.mxu0 %v5310
      %v6528 = vpop.f32.mrf.mxu0
      %v6529 = vadd.f32 %v5516, %v6528
      %v6530 = vpop.f32.mrf.mxu0
      %v6531 = vadd.f32 %v5516, %v6530
      %6532 = vdwg.mxu0
      %6533 = vmatpush.bf16.msra.mxu0 %v6160
      %6534 = vmatpush.bf16.msra.mxu0 %v6156
      %6535 = vmatpush.bf16.msra.mxu0 %v6152
      %6536 = vmatpush.bf16.msra.mxu0 %v6148
      %6537 = vmatpush.bf16.msra.mxu0 %v6144
      %6538 = vmatpush.bf16.msra.mxu0 %v6140
      %6539 = vmatpush.bf16.msra.mxu0 %v6136
      %6540 = vmatpush.bf16.msra.mxu0 %v6132
      %6541 = vmatmul.bf16.gmra.mxu0 %v5291
      %v6542 = vpop.f32.mrf.mxu0
      %v6543 = vadd.f32 %v6494, %v6542
      %v6544 = vpop.f32.mrf.mxu0
      %v6545 = vadd.f32 %v6496, %v6544
      %6546 = vmatmul.bf16.gmra.mxu0 %v5297
      %v6547 = vpop.f32.mrf.mxu0
      %v6548 = vadd.f32 %v6499, %v6547
      %v6549 = vpop.f32.mrf.mxu0
      %v6550 = vadd.f32 %v6501, %v6549
      %6551 = vmatmul.bf16.gmra.mxu0 %v5303
      %v6552 = vpop.f32.mrf.mxu0
      %v6553 = vadd.f32 %v6504, %v6552
      %v6554 = vpop.f32.mrf.mxu0
      %v6555 = vadd.f32 %v6506, %v6554
      %6556 = vmatmul.bf16.gmra.mxu0 %v5309
      %v6557 = vpop.f32.mrf.mxu0
      %v6558 = vadd.f32 %v6509, %v6557
      %v6559 = vpop.f32.mrf.mxu0
      %v6560 = vadd.f32 %v6511, %v6559
      %6561 = vmatmul.bf16.gmra.mxu0 %v5293
      %v6562 = vpop.f32.mrf.mxu0
      %v6563 = vadd.f32 %v6514, %v6562
      %v6564 = vpop.f32.mrf.mxu0
      %v6565 = vadd.f32 %v6516, %v6564
      %6566 = vmatmul.bf16.gmra.mxu0 %v5299
      %v6567 = vpop.f32.mrf.mxu0
      %v6568 = vadd.f32 %v6519, %v6567
      %v6569 = vpop.f32.mrf.mxu0
      %v6570 = vadd.f32 %v6521, %v6569
      %6571 = vmatmul.bf16.gmra.mxu0 %v5305
      %v6572 = vpop.f32.mrf.mxu0
      %v6573 = vadd.f32 %v6524, %v6572
      %v6574 = vpop.f32.mrf.mxu0
      %v6575 = vadd.f32 %v6526, %v6574
      %6576 = vmatmul.bf16.gmra.mxu0 %v5311
      %v6577 = vpop.f32.mrf.mxu0
      %v6578 = vadd.f32 %v6529, %v6577
      %v6579 = vpop.f32.mrf.mxu0
      %v6580 = vadd.f32 %v6531, %v6579
      %6581 = vdwg.mxu0
      %6582 = vmatpush.bf16.msra.mxu0 %v6192
      %6583 = vmatpush.bf16.msra.mxu0 %v6188
      %6584 = vmatpush.bf16.msra.mxu0 %v6184
      %6585 = vmatpush.bf16.msra.mxu0 %v6180
      %6586 = vmatpush.bf16.msra.mxu0 %v6176
      %6587 = vmatpush.bf16.msra.mxu0 %v6172
      %6588 = vmatpush.bf16.msra.mxu0 %v6168
      %6589 = vmatpush.bf16.msra.mxu0 %v6164
      %6590 = vmatmul.bf16.gmra.mxu0 %v5292
      %v6591 = vpop.f32.mrf.mxu0
      %v6592 = vadd.f32 %v6543, %v6591
      %v6593 = vpop.f32.mrf.mxu0
      %v6594 = vadd.f32 %v6545, %v6593
      %6595 = vmatmul.bf16.gmra.mxu0 %v5298
      %v6596 = vpop.f32.mrf.mxu0
      %v6597 = vadd.f32 %v6548, %v6596
      %v6598 = vpop.f32.mrf.mxu0
      %v6599 = vadd.f32 %v6550, %v6598
      %6600 = vmatmul.bf16.gmra.mxu0 %v5304
      %v6601 = vpop.f32.mrf.mxu0
      %v6602 = vadd.f32 %v6553, %v6601
      %v6603 = vpop.f32.mrf.mxu0
      %v6604 = vadd.f32 %v6555, %v6603
      %6605 = vmatmul.bf16.gmra.mxu0 %v5310
      %v6606 = vpop.f32.mrf.mxu0
      %v6607 = vadd.f32 %v6558, %v6606
      %v6608 = vpop.f32.mrf.mxu0
      %v6609 = vadd.f32 %v6560, %v6608
      %6610 = vmatmul.bf16.gmra.mxu0 %v5294
      %v6611 = vpop.f32.mrf.mxu0
      %v6612 = vadd.f32 %v6563, %v6611
      %v6613 = vpop.f32.mrf.mxu0
      %v6614 = vadd.f32 %v6565, %v6613
      %6615 = vmatmul.bf16.gmra.mxu0 %v5300
      %v6616 = vpop.f32.mrf.mxu0
      %v6617 = vadd.f32 %v6568, %v6616
      %v6618 = vpop.f32.mrf.mxu0
      %v6619 = vadd.f32 %v6570, %v6618
      %6620 = vmatmul.bf16.gmra.mxu0 %v5306
      %v6621 = vpop.f32.mrf.mxu0
      %v6622 = vadd.f32 %v6573, %v6621
      %v6623 = vpop.f32.mrf.mxu0
      %v6624 = vadd.f32 %v6575, %v6623
      %6625 = vmatmul.bf16.gmra.mxu0 %v5312
      %v6626 = vpop.f32.mrf.mxu0
      %v6627 = vadd.f32 %v6578, %v6626
      %v6628 = vpop.f32.mrf.mxu0
      %v6629 = vadd.f32 %v6580, %v6628
      %6630 = vdwg.mxu0
      %6631 = vmatpush.bf16.msra.mxu0 %v6224
      %6632 = vmatpush.bf16.msra.mxu0 %v6220
      %6633 = vmatpush.bf16.msra.mxu0 %v6216
      %6634 = vmatpush.bf16.msra.mxu0 %v6212
      %6635 = vmatpush.bf16.msra.mxu0 %v6208
      %6636 = vmatpush.bf16.msra.mxu0 %v6204
      %6637 = vmatpush.bf16.msra.mxu0 %v6200
      %6638 = vmatpush.bf16.msra.mxu0 %v6196
      %6639 = vmatmul.bf16.gmra.mxu0 %v5293
      %v6640 = vpop.f32.mrf.mxu0
      %v6641 = vadd.f32 %v6592, %v6640
      %v6642 = vpop.f32.mrf.mxu0
      %v6643 = vadd.f32 %v6594, %v6642
      %6644 = vmatmul.bf16.gmra.mxu0 %v5299
      %v6645 = vpop.f32.mrf.mxu0
      %v6646 = vadd.f32 %v6597, %v6645
      %v6647 = vpop.f32.mrf.mxu0
      %v6648 = vadd.f32 %v6599, %v6647
      %6649 = vmatmul.bf16.gmra.mxu0 %v5305
      %v6650 = vpop.f32.mrf.mxu0
      %v6651 = vadd.f32 %v6602, %v6650
      %v6652 = vpop.f32.mrf.mxu0
      %v6653 = vadd.f32 %v6604, %v6652
      %6654 = vmatmul.bf16.gmra.mxu0 %v5311
      %v6655 = vpop.f32.mrf.mxu0
      %v6656 = vadd.f32 %v6607, %v6655
      %v6657 = vpop.f32.mrf.mxu0
      %v6658 = vadd.f32 %v6609, %v6657
      %6659 = vmatmul.bf16.gmra.mxu0 %v5295
      %v6660 = vpop.f32.mrf.mxu0
      %v6661 = vadd.f32 %v6612, %v6660
      %v6662 = vpop.f32.mrf.mxu0
      %v6663 = vadd.f32 %v6614, %v6662
      %6664 = vmatmul.bf16.gmra.mxu0 %v5301
      %v6665 = vpop.f32.mrf.mxu0
      %v6666 = vadd.f32 %v6617, %v6665
      %v6667 = vpop.f32.mrf.mxu0
      %v6668 = vadd.f32 %v6619, %v6667
      %6669 = vmatmul.bf16.gmra.mxu0 %v5307
      %v6670 = vpop.f32.mrf.mxu0
      %v6671 = vadd.f32 %v6622, %v6670
      %v6672 = vpop.f32.mrf.mxu0
      %v6673 = vadd.f32 %v6624, %v6672
      %6674 = vmatmul.bf16.gmra.mxu0 %v5313
      %v6675 = vpop.f32.mrf.mxu0
      %v6676 = vadd.f32 %v6627, %v6675
      %v6677 = vpop.f32.mrf.mxu0
      %v6678 = vadd.f32 %v6629, %v6677
      %6679 = vdwg.mxu0
      %6680 = vmatpush.bf16.msra.mxu0 %v6256
      %6681 = vmatpush.bf16.msra.mxu0 %v6252
      %6682 = vmatpush.bf16.msra.mxu0 %v6248
      %6683 = vmatpush.bf16.msra.mxu0 %v6244
      %6684 = vmatpush.bf16.msra.mxu0 %v6240
      %6685 = vmatpush.bf16.msra.mxu0 %v6236
      %6686 = vmatpush.bf16.msra.mxu0 %v6232
      %6687 = vmatpush.bf16.msra.mxu0 %v6228
      %6688 = vmatmul.bf16.gmra.mxu0 %v5294
      %v6689 = vpop.f32.mrf.mxu0
      %v6690 = vadd.f32 %v6641, %v6689
      %v6691 = vpop.f32.mrf.mxu0
      %v6692 = vadd.f32 %v6643, %v6691
      %6693 = vmatmul.bf16.gmra.mxu0 %v5300
      %v6694 = vpop.f32.mrf.mxu0
      %v6695 = vadd.f32 %v6646, %v6694
      %v6696 = vpop.f32.mrf.mxu0
      %v6697 = vadd.f32 %v6648, %v6696
      %6698 = vmatmul.bf16.gmra.mxu0 %v5306
      %v6699 = vpop.f32.mrf.mxu0
      %v6700 = vadd.f32 %v6651, %v6699
      %v6701 = vpop.f32.mrf.mxu0
      %v6702 = vadd.f32 %v6653, %v6701
      %6703 = vmatmul.bf16.gmra.mxu0 %v5312
      %v6704 = vpop.f32.mrf.mxu0
      %v6705 = vadd.f32 %v6656, %v6704
      %v6706 = vpop.f32.mrf.mxu0
      %v6707 = vadd.f32 %v6658, %v6706
      %6708 = vmatmul.bf16.gmra.mxu0 %v5314
      %v6709 = vpop.f32.mrf.mxu0
      %v6710 = vadd.f32 %v6661, %v6709
      %v6711 = vpop.f32.mrf.mxu0
      %v6712 = vadd.f32 %v6663, %v6711
      %6713 = vmatmul.bf16.gmra.mxu0 %v5316
      %v6714 = vpop.f32.mrf.mxu0
      %v6715 = vadd.f32 %v6666, %v6714
      %v6716 = vpop.f32.mrf.mxu0
      %v6717 = vadd.f32 %v6668, %v6716
      %6718 = vmatmul.bf16.gmra.mxu0 %v5318
      %v6719 = vpop.f32.mrf.mxu0
      %v6720 = vadd.f32 %v6671, %v6719
      %v6721 = vpop.f32.mrf.mxu0
      %v6722 = vadd.f32 %v6673, %v6721
      %6723 = vmatmul.bf16.gmra.mxu0 %v5320
      %v6724 = vpop.f32.mrf.mxu0
      %v6725 = vadd.f32 %v6676, %v6724
      %v6726 = vpop.f32.mrf.mxu0
      %v6727 = vadd.f32 %v6678, %v6726
      %6728 = vdwg.mxu0
      %6729 = vmatpush.bf16.msra.mxu0 %v6288
      %6730 = vmatpush.bf16.msra.mxu0 %v6284
      %6731 = vmatpush.bf16.msra.mxu0 %v6280
      %6732 = vmatpush.bf16.msra.mxu0 %v6276
      %6733 = vmatpush.bf16.msra.mxu0 %v6272
      %6734 = vmatpush.bf16.msra.mxu0 %v6268
      %6735 = vmatpush.bf16.msra.mxu0 %v6264
      %6736 = vmatpush.bf16.msra.mxu0 %v6260
      %6737 = vmatmul.bf16.gmra.mxu0 %v5295
      %v6738 = vpop.f32.mrf.mxu0
      %v6739 = vadd.f32 %v6690, %v6738
      %v6740 = vpop.f32.mrf.mxu0
      %v6741 = vadd.f32 %v6692, %v6740
      %6742 = vmatmul.bf16.gmra.mxu0 %v5301
      %v6743 = vpop.f32.mrf.mxu0
      %v6744 = vadd.f32 %v6695, %v6743
      %v6745 = vpop.f32.mrf.mxu0
      %v6746 = vadd.f32 %v6697, %v6745
      %6747 = vmatmul.bf16.gmra.mxu0 %v5307
      %v6748 = vpop.f32.mrf.mxu0
      %v6749 = vadd.f32 %v6700, %v6748
      %v6750 = vpop.f32.mrf.mxu0
      %v6751 = vadd.f32 %v6702, %v6750
      %6752 = vmatmul.bf16.gmra.mxu0 %v5313
      %v6753 = vpop.f32.mrf.mxu0
      %v6754 = vadd.f32 %v6705, %v6753
      %v6755 = vpop.f32.mrf.mxu0
      %v6756 = vadd.f32 %v6707, %v6755
      %6757 = vmatmul.bf16.gmra.mxu0 %v5315
      %v6758 = vpop.f32.mrf.mxu0
      %v6759 = vadd.f32 %v6710, %v6758
      %v6760 = vpop.f32.mrf.mxu0
      %v6761 = vadd.f32 %v6712, %v6760
      %6762 = vmatmul.bf16.gmra.mxu0 %v5317
      %v6763 = vpop.f32.mrf.mxu0
      %v6764 = vadd.f32 %v6715, %v6763
      %v6765 = vpop.f32.mrf.mxu0
      %v6766 = vadd.f32 %v6717, %v6765
      %6767 = vmatmul.bf16.gmra.mxu0 %v5319
      %v6768 = vpop.f32.mrf.mxu0
      %v6769 = vadd.f32 %v6720, %v6768
      %v6770 = vpop.f32.mrf.mxu0
      %v6771 = vadd.f32 %v6722, %v6770
      %6772 = vmatmul.bf16.gmra.mxu0 %v5321
      %v6773 = vpop.f32.mrf.mxu0
      %v6774 = vadd.f32 %v6725, %v6773
      %v6775 = vpop.f32.mrf.mxu0
      %v6776 = vadd.f32 %v6727, %v6775
      %6777 = vdwg.mxu0
      %6778 = vmatpush.bf16.msra.mxu0 %v6129
      %6779 = vmatpush.bf16.msra.mxu0 %v6125
      %6780 = vmatpush.bf16.msra.mxu0 %v6121
      %6781 = vmatpush.bf16.msra.mxu0 %v6117
      %6782 = vmatpush.bf16.msra.mxu0 %v6113
      %6783 = vmatpush.bf16.msra.mxu0 %v6109
      %6784 = vmatpush.bf16.msra.mxu0 %v6105
      %6785 = vmatpush.bf16.msra.mxu0 %v6101
      %6786 = vmatmul.bf16.gmra.mxu0 %v5290
      %v6787 = vpop.f32.mrf.mxu0
      %v6788 = vadd.f32 %v5517, %v6787
      %v6789 = vpop.f32.mrf.mxu0
      %v6790 = vadd.f32 %v5517, %v6789
      %6791 = vmatmul.bf16.gmra.mxu0 %v5296
      %v6792 = vpop.f32.mrf.mxu0
      %v6793 = vadd.f32 %v5517, %v6792
      %v6794 = vpop.f32.mrf.mxu0
      %v6795 = vadd.f32 %v5517, %v6794
      %6796 = vmatmul.bf16.gmra.mxu0 %v5302
      %v6797 = vpop.f32.mrf.mxu0
      %v6798 = vadd.f32 %v5517, %v6797
      %v6799 = vpop.f32.mrf.mxu0
      %v6800 = vadd.f32 %v5517, %v6799
      %6801 = vmatmul.bf16.gmra.mxu0 %v5308
      %v6802 = vpop.f32.mrf.mxu0
      %v6803 = vadd.f32 %v5517, %v6802
      %v6804 = vpop.f32.mrf.mxu0
      %v6805 = vadd.f32 %v5517, %v6804
      %6806 = vmatmul.bf16.gmra.mxu0 %v5292
      %v6807 = vpop.f32.mrf.mxu0
      %v6808 = vadd.f32 %v5517, %v6807
      %v6809 = vpop.f32.mrf.mxu0
      %v6810 = vadd.f32 %v5517, %v6809
      %6811 = vmatmul.bf16.gmra.mxu0 %v5298
      %v6812 = vpop.f32.mrf.mxu0
      %v6813 = vadd.f32 %v5517, %v6812
      %v6814 = vpop.f32.mrf.mxu0
      %v6815 = vadd.f32 %v5517, %v6814
      %6816 = vmatmul.bf16.gmra.mxu0 %v5304
      %v6817 = vpop.f32.mrf.mxu0
      %v6818 = vadd.f32 %v5517, %v6817
      %v6819 = vpop.f32.mrf.mxu0
      %v6820 = vadd.f32 %v5517, %v6819
      %6821 = vmatmul.bf16.gmra.mxu0 %v5310
      %v6822 = vpop.f32.mrf.mxu0
      %v6823 = vadd.f32 %v5517, %v6822
      %v6824 = vpop.f32.mrf.mxu0
      %v6825 = vadd.f32 %v5517, %v6824
      %6826 = vdwg.mxu0
      %6827 = vmatpush.bf16.msra.mxu0 %v6161
      %6828 = vmatpush.bf16.msra.mxu0 %v6157
      %6829 = vmatpush.bf16.msra.mxu0 %v6153
      %6830 = vmatpush.bf16.msra.mxu0 %v6149
      %6831 = vmatpush.bf16.msra.mxu0 %v6145
      %6832 = vmatpush.bf16.msra.mxu0 %v6141
      %6833 = vmatpush.bf16.msra.mxu0 %v6137
      %6834 = vmatpush.bf16.msra.mxu0 %v6133
      %6835 = vmatmul.bf16.gmra.mxu0 %v5291
      %v6836 = vpop.f32.mrf.mxu0
      %v6837 = vadd.f32 %v6788, %v6836
      %v6838 = vpop.f32.mrf.mxu0
      %v6839 = vadd.f32 %v6790, %v6838
      %6840 = vmatmul.bf16.gmra.mxu0 %v5297
      %v6841 = vpop.f32.mrf.mxu0
      %v6842 = vadd.f32 %v6793, %v6841
      %v6843 = vpop.f32.mrf.mxu0
      %v6844 = vadd.f32 %v6795, %v6843
      %6845 = vmatmul.bf16.gmra.mxu0 %v5303
      %v6846 = vpop.f32.mrf.mxu0
      %v6847 = vadd.f32 %v6798, %v6846
      %v6848 = vpop.f32.mrf.mxu0
      %v6849 = vadd.f32 %v6800, %v6848
      %6850 = vmatmul.bf16.gmra.mxu0 %v5309
      %v6851 = vpop.f32.mrf.mxu0
      %v6852 = vadd.f32 %v6803, %v6851
      %v6853 = vpop.f32.mrf.mxu0
      %v6854 = vadd.f32 %v6805, %v6853
      %6855 = vmatmul.bf16.gmra.mxu0 %v5293
      %v6856 = vpop.f32.mrf.mxu0
      %v6857 = vadd.f32 %v6808, %v6856
      %v6858 = vpop.f32.mrf.mxu0
      %v6859 = vadd.f32 %v6810, %v6858
      %6860 = vmatmul.bf16.gmra.mxu0 %v5299
      %v6861 = vpop.f32.mrf.mxu0
      %v6862 = vadd.f32 %v6813, %v6861
      %v6863 = vpop.f32.mrf.mxu0
      %v6864 = vadd.f32 %v6815, %v6863
      %6865 = vmatmul.bf16.gmra.mxu0 %v5305
      %v6866 = vpop.f32.mrf.mxu0
      %v6867 = vadd.f32 %v6818, %v6866
      %v6868 = vpop.f32.mrf.mxu0
      %v6869 = vadd.f32 %v6820, %v6868
      %6870 = vmatmul.bf16.gmra.mxu0 %v5311
      %v6871 = vpop.f32.mrf.mxu0
      %v6872 = vadd.f32 %v6823, %v6871
      %v6873 = vpop.f32.mrf.mxu0
      %v6874 = vadd.f32 %v6825, %v6873
      %6875 = vdwg.mxu0
      %6876 = vmatpush.bf16.msra.mxu0 %v6193
      %6877 = vmatpush.bf16.msra.mxu0 %v6189
      %6878 = vmatpush.bf16.msra.mxu0 %v6185
      %6879 = vmatpush.bf16.msra.mxu0 %v6181
      %6880 = vmatpush.bf16.msra.mxu0 %v6177
      %6881 = vmatpush.bf16.msra.mxu0 %v6173
      %6882 = vmatpush.bf16.msra.mxu0 %v6169
      %6883 = vmatpush.bf16.msra.mxu0 %v6165
      %6884 = vmatmul.bf16.gmra.mxu0 %v5292
      %v6885 = vpop.f32.mrf.mxu0
      %v6886 = vadd.f32 %v6837, %v6885
      %v6887 = vpop.f32.mrf.mxu0
      %v6888 = vadd.f32 %v6839, %v6887
      %6889 = vmatmul.bf16.gmra.mxu0 %v5298
      %v6890 = vpop.f32.mrf.mxu0
      %v6891 = vadd.f32 %v6842, %v6890
      %v6892 = vpop.f32.mrf.mxu0
      %v6893 = vadd.f32 %v6844, %v6892
      %6894 = vmatmul.bf16.gmra.mxu0 %v5304
      %v6895 = vpop.f32.mrf.mxu0
      %v6896 = vadd.f32 %v6847, %v6895
      %v6897 = vpop.f32.mrf.mxu0
      %v6898 = vadd.f32 %v6849, %v6897
      %6899 = vmatmul.bf16.gmra.mxu0 %v5310
      %v6900 = vpop.f32.mrf.mxu0
      %v6901 = vadd.f32 %v6852, %v6900
      %v6902 = vpop.f32.mrf.mxu0
      %v6903 = vadd.f32 %v6854, %v6902
      %6904 = vmatmul.bf16.gmra.mxu0 %v5294
      %v6905 = vpop.f32.mrf.mxu0
      %v6906 = vadd.f32 %v6857, %v6905
      %v6907 = vpop.f32.mrf.mxu0
      %v6908 = vadd.f32 %v6859, %v6907
      %6909 = vmatmul.bf16.gmra.mxu0 %v5300
      %v6910 = vpop.f32.mrf.mxu0
      %v6911 = vadd.f32 %v6862, %v6910
      %v6912 = vpop.f32.mrf.mxu0
      %v6913 = vadd.f32 %v6864, %v6912
      %6914 = vmatmul.bf16.gmra.mxu0 %v5306
      %v6915 = vpop.f32.mrf.mxu0
      %v6916 = vadd.f32 %v6867, %v6915
      %v6917 = vpop.f32.mrf.mxu0
      %v6918 = vadd.f32 %v6869, %v6917
      %6919 = vmatmul.bf16.gmra.mxu0 %v5312
      %v6920 = vpop.f32.mrf.mxu0
      %v6921 = vadd.f32 %v6872, %v6920
      %v6922 = vpop.f32.mrf.mxu0
      %v6923 = vadd.f32 %v6874, %v6922
      %6924 = vdwg.mxu0
      %6925 = vmatpush.bf16.msra.mxu0 %v6225
      %6926 = vmatpush.bf16.msra.mxu0 %v6221
      %6927 = vmatpush.bf16.msra.mxu0 %v6217
      %6928 = vmatpush.bf16.msra.mxu0 %v6213
      %6929 = vmatpush.bf16.msra.mxu0 %v6209
      %6930 = vmatpush.bf16.msra.mxu0 %v6205
      %6931 = vmatpush.bf16.msra.mxu0 %v6201
      %6932 = vmatpush.bf16.msra.mxu0 %v6197
      %6933 = vmatmul.bf16.gmra.mxu0 %v5293
      %v6934 = vpop.f32.mrf.mxu0
      %v6935 = vadd.f32 %v6886, %v6934
      %v6936 = vpop.f32.mrf.mxu0
      %v6937 = vadd.f32 %v6888, %v6936
      %6938 = vmatmul.bf16.gmra.mxu0 %v5299
      %v6939 = vpop.f32.mrf.mxu0
      %v6940 = vadd.f32 %v6891, %v6939
      %v6941 = vpop.f32.mrf.mxu0
      %v6942 = vadd.f32 %v6893, %v6941
      %6943 = vmatmul.bf16.gmra.mxu0 %v5305
      %v6944 = vpop.f32.mrf.mxu0
      %v6945 = vadd.f32 %v6896, %v6944
      %v6946 = vpop.f32.mrf.mxu0
      %v6947 = vadd.f32 %v6898, %v6946
      %6948 = vmatmul.bf16.gmra.mxu0 %v5311
      %v6949 = vpop.f32.mrf.mxu0
      %v6950 = vadd.f32 %v6901, %v6949
      %v6951 = vpop.f32.mrf.mxu0
      %v6952 = vadd.f32 %v6903, %v6951
      %6953 = vmatmul.bf16.gmra.mxu0 %v5295
      %v6954 = vpop.f32.mrf.mxu0
      %v6955 = vadd.f32 %v6906, %v6954
      %v6956 = vpop.f32.mrf.mxu0
      %v6957 = vadd.f32 %v6908, %v6956
      %6958 = vmatmul.bf16.gmra.mxu0 %v5301
      %v6959 = vpop.f32.mrf.mxu0
      %v6960 = vadd.f32 %v6911, %v6959
      %v6961 = vpop.f32.mrf.mxu0
      %v6962 = vadd.f32 %v6913, %v6961
      %6963 = vmatmul.bf16.gmra.mxu0 %v5307
      %v6964 = vpop.f32.mrf.mxu0
      %v6965 = vadd.f32 %v6916, %v6964
      %v6966 = vpop.f32.mrf.mxu0
      %v6967 = vadd.f32 %v6918, %v6966
      %6968 = vmatmul.bf16.gmra.mxu0 %v5313
      %v6969 = vpop.f32.mrf.mxu0
      %v6970 = vadd.f32 %v6921, %v6969
      %v6971 = vpop.f32.mrf.mxu0
      %v6972 = vadd.f32 %v6923, %v6971
      %6973 = vdwg.mxu0
      %6974 = vmatpush.bf16.msra.mxu0 %v6257
      %6975 = vmatpush.bf16.msra.mxu0 %v6253
      %6976 = vmatpush.bf16.msra.mxu0 %v6249
      %6977 = vmatpush.bf16.msra.mxu0 %v6245
      %6978 = vmatpush.bf16.msra.mxu0 %v6241
      %6979 = vmatpush.bf16.msra.mxu0 %v6237
      %6980 = vmatpush.bf16.msra.mxu0 %v6233
      %6981 = vmatpush.bf16.msra.mxu0 %v6229
      %6982 = vmatmul.bf16.gmra.mxu0 %v5294
      %v6983 = vpop.f32.mrf.mxu0
      %v6984 = vadd.f32 %v6935, %v6983
      %v6985 = vpop.f32.mrf.mxu0
      %v6986 = vadd.f32 %v6937, %v6985
      %6987 = vmatmul.bf16.gmra.mxu0 %v5300
      %v6988 = vpop.f32.mrf.mxu0
      %v6989 = vadd.f32 %v6940, %v6988
      %v6990 = vpop.f32.mrf.mxu0
      %v6991 = vadd.f32 %v6942, %v6990
      %6992 = vmatmul.bf16.gmra.mxu0 %v5306
      %v6993 = vpop.f32.mrf.mxu0
      %v6994 = vadd.f32 %v6945, %v6993
      %v6995 = vpop.f32.mrf.mxu0
      %v6996 = vadd.f32 %v6947, %v6995
      %6997 = vmatmul.bf16.gmra.mxu0 %v5312
      %v6998 = vpop.f32.mrf.mxu0
      %v6999 = vadd.f32 %v6950, %v6998
      %v7000 = vpop.f32.mrf.mxu0
      %v7001 = vadd.f32 %v6952, %v7000
      %7002 = vmatmul.bf16.gmra.mxu0 %v5314
      %v7003 = vpop.f32.mrf.mxu0
      %v7004 = vadd.f32 %v6955, %v7003
      %v7005 = vpop.f32.mrf.mxu0
      %v7006 = vadd.f32 %v6957, %v7005
      %7007 = vmatmul.bf16.gmra.mxu0 %v5316
      %v7008 = vpop.f32.mrf.mxu0
      %v7009 = vadd.f32 %v6960, %v7008
      %v7010 = vpop.f32.mrf.mxu0
      %v7011 = vadd.f32 %v6962, %v7010
      %7012 = vmatmul.bf16.gmra.mxu0 %v5318
      %v7013 = vpop.f32.mrf.mxu0
      %v7014 = vadd.f32 %v6965, %v7013
      %v7015 = vpop.f32.mrf.mxu0
      %v7016 = vadd.f32 %v6967, %v7015
      %7017 = vmatmul.bf16.gmra.mxu0 %v5320
      %v7018 = vpop.f32.mrf.mxu0
      %v7019 = vadd.f32 %v6970, %v7018
      %v7020 = vpop.f32.mrf.mxu0
      %v7021 = vadd.f32 %v6972, %v7020
      %7022 = vdwg.mxu0
      %7023 = vmatpush.bf16.msra.mxu0 %v6289
      %7024 = vmatpush.bf16.msra.mxu0 %v6285
      %7025 = vmatpush.bf16.msra.mxu0 %v6281
      %7026 = vmatpush.bf16.msra.mxu0 %v6277
      %7027 = vmatpush.bf16.msra.mxu0 %v6273
      %7028 = vmatpush.bf16.msra.mxu0 %v6269
      %7029 = vmatpush.bf16.msra.mxu0 %v6265
      %7030 = vmatpush.bf16.msra.mxu0 %v6261
      %7031 = vmatmul.bf16.gmra.mxu0 %v5295
      %v7032 = vpop.f32.mrf.mxu0
      %v7033 = vadd.f32 %v6984, %v7032
      %v7034 = vpop.f32.mrf.mxu0
      %v7035 = vadd.f32 %v6986, %v7034
      %7036 = vmatmul.bf16.gmra.mxu0 %v5301
      %v7037 = vpop.f32.mrf.mxu0
      %v7038 = vadd.f32 %v6989, %v7037
      %v7039 = vpop.f32.mrf.mxu0
      %v7040 = vadd.f32 %v6991, %v7039
      %7041 = vmatmul.bf16.gmra.mxu0 %v5307
      %v7042 = vpop.f32.mrf.mxu0
      %v7043 = vadd.f32 %v6994, %v7042
      %v7044 = vpop.f32.mrf.mxu0
      %v7045 = vadd.f32 %v6996, %v7044
      %7046 = vmatmul.bf16.gmra.mxu0 %v5313
      %v7047 = vpop.f32.mrf.mxu0
      %v7048 = vadd.f32 %v6999, %v7047
      %v7049 = vpop.f32.mrf.mxu0
      %v7050 = vadd.f32 %v7001, %v7049
      %7051 = vmatmul.bf16.gmra.mxu0 %v5315
      %v7052 = vpop.f32.mrf.mxu0
      %v7053 = vadd.f32 %v7004, %v7052
      %v7054 = vpop.f32.mrf.mxu0
      %v7055 = vadd.f32 %v7006, %v7054
      %7056 = vmatmul.bf16.gmra.mxu0 %v5317
      %v7057 = vpop.f32.mrf.mxu0
      %v7058 = vadd.f32 %v7009, %v7057
      %v7059 = vpop.f32.mrf.mxu0
      %v7060 = vadd.f32 %v7011, %v7059
      %7061 = vmatmul.bf16.gmra.mxu0 %v5319
      %v7062 = vpop.f32.mrf.mxu0
      %v7063 = vadd.f32 %v7014, %v7062
      %v7064 = vpop.f32.mrf.mxu0
      %v7065 = vadd.f32 %v7016, %v7064
      %7066 = vmatmul.bf16.gmra.mxu0 %v5321
      %v7067 = vpop.f32.mrf.mxu0
      %v7068 = vadd.f32 %v7019, %v7067
      %v7069 = vpop.f32.mrf.mxu0
      %v7070 = vadd.f32 %v7021, %v7069
      %7071 = vdwg.mxu0
      %7072 = vmatpush.bf16.msra.mxu0 %v6130
      %7073 = vmatpush.bf16.msra.mxu0 %v6126
      %7074 = vmatpush.bf16.msra.mxu0 %v6122
      %7075 = vmatpush.bf16.msra.mxu0 %v6118
      %7076 = vmatpush.bf16.msra.mxu0 %v6114
      %7077 = vmatpush.bf16.msra.mxu0 %v6110
      %7078 = vmatpush.bf16.msra.mxu0 %v6106
      %7079 = vmatpush.bf16.msra.mxu0 %v6102
      %7080 = vmatmul.bf16.gmra.mxu0 %v5290
      %v7081 = vpop.f32.mrf.mxu0
      %v7082 = vadd.f32 %v5518, %v7081
      %v7083 = vpop.f32.mrf.mxu0
      %v7084 = vadd.f32 %v5518, %v7083
      %7085 = vmatmul.bf16.gmra.mxu0 %v5296
      %v7086 = vpop.f32.mrf.mxu0
      %v7087 = vadd.f32 %v5518, %v7086
      %v7088 = vpop.f32.mrf.mxu0
      %v7089 = vadd.f32 %v5518, %v7088
      %7090 = vmatmul.bf16.gmra.mxu0 %v5302
      %v7091 = vpop.f32.mrf.mxu0
      %v7092 = vadd.f32 %v5518, %v7091
      %v7093 = vpop.f32.mrf.mxu0
      %v7094 = vadd.f32 %v5518, %v7093
      %7095 = vmatmul.bf16.gmra.mxu0 %v5308
      %v7096 = vpop.f32.mrf.mxu0
      %v7097 = vadd.f32 %v5518, %v7096
      %v7098 = vpop.f32.mrf.mxu0
      %v7099 = vadd.f32 %v5518, %v7098
      %7100 = vmatmul.bf16.gmra.mxu0 %v5292
      %v7101 = vpop.f32.mrf.mxu0
      %v7102 = vadd.f32 %v5518, %v7101
      %v7103 = vpop.f32.mrf.mxu0
      %v7104 = vadd.f32 %v5518, %v7103
      %7105 = vmatmul.bf16.gmra.mxu0 %v5298
      %v7106 = vpop.f32.mrf.mxu0
      %v7107 = vadd.f32 %v5518, %v7106
      %v7108 = vpop.f32.mrf.mxu0
      %v7109 = vadd.f32 %v5518, %v7108
      %7110 = vmatmul.bf16.gmra.mxu0 %v5304
      %v7111 = vpop.f32.mrf.mxu0
      %v7112 = vadd.f32 %v5518, %v7111
      %v7113 = vpop.f32.mrf.mxu0
      %v7114 = vadd.f32 %v5518, %v7113
      %7115 = vmatmul.bf16.gmra.mxu0 %v5310
      %v7116 = vpop.f32.mrf.mxu0
      %v7117 = vadd.f32 %v5518, %v7116
      %v7118 = vpop.f32.mrf.mxu0
      %v7119 = vadd.f32 %v5518, %v7118
      %7120 = vdwg.mxu0
      %7121 = vmatpush.bf16.msra.mxu0 %v6162
      %7122 = vmatpush.bf16.msra.mxu0 %v6158
      %7123 = vmatpush.bf16.msra.mxu0 %v6154
      %7124 = vmatpush.bf16.msra.mxu0 %v6150
      %7125 = vmatpush.bf16.msra.mxu0 %v6146
      %7126 = vmatpush.bf16.msra.mxu0 %v6142
      %7127 = vmatpush.bf16.msra.mxu0 %v6138
      %7128 = vmatpush.bf16.msra.mxu0 %v6134
      %7129 = vmatmul.bf16.gmra.mxu0 %v5291
      %v7130 = vpop.f32.mrf.mxu0
      %v7131 = vadd.f32 %v7082, %v7130
      %v7132 = vpop.f32.mrf.mxu0
      %v7133 = vadd.f32 %v7084, %v7132
      %7134 = vmatmul.bf16.gmra.mxu0 %v5297
      %v7135 = vpop.f32.mrf.mxu0
      %v7136 = vadd.f32 %v7087, %v7135
      %v7137 = vpop.f32.mrf.mxu0
      %v7138 = vadd.f32 %v7089, %v7137
      %7139 = vmatmul.bf16.gmra.mxu0 %v5303
      %v7140 = vpop.f32.mrf.mxu0
      %v7141 = vadd.f32 %v7092, %v7140
      %v7142 = vpop.f32.mrf.mxu0
      %v7143 = vadd.f32 %v7094, %v7142
      %7144 = vmatmul.bf16.gmra.mxu0 %v5309
      %v7145 = vpop.f32.mrf.mxu0
      %v7146 = vadd.f32 %v7097, %v7145
      %v7147 = vpop.f32.mrf.mxu0
      %v7148 = vadd.f32 %v7099, %v7147
      %7149 = vmatmul.bf16.gmra.mxu0 %v5293
      %v7150 = vpop.f32.mrf.mxu0
      %v7151 = vadd.f32 %v7102, %v7150
      %v7152 = vpop.f32.mrf.mxu0
      %v7153 = vadd.f32 %v7104, %v7152
      %7154 = vmatmul.bf16.gmra.mxu0 %v5299
      %v7155 = vpop.f32.mrf.mxu0
      %v7156 = vadd.f32 %v7107, %v7155
      %v7157 = vpop.f32.mrf.mxu0
      %v7158 = vadd.f32 %v7109, %v7157
      %7159 = vmatmul.bf16.gmra.mxu0 %v5305
      %v7160 = vpop.f32.mrf.mxu0
      %v7161 = vadd.f32 %v7112, %v7160
      %v7162 = vpop.f32.mrf.mxu0
      %v7163 = vadd.f32 %v7114, %v7162
      %7164 = vmatmul.bf16.gmra.mxu0 %v5311
      %v7165 = vpop.f32.mrf.mxu0
      %v7166 = vadd.f32 %v7117, %v7165
      %v7167 = vpop.f32.mrf.mxu0
      %v7168 = vadd.f32 %v7119, %v7167
      %7169 = vdwg.mxu0
      %7170 = vmatpush.bf16.msra.mxu0 %v6194
      %7171 = vmatpush.bf16.msra.mxu0 %v6190
      %7172 = vmatpush.bf16.msra.mxu0 %v6186
      %7173 = vmatpush.bf16.msra.mxu0 %v6182
      %7174 = vmatpush.bf16.msra.mxu0 %v6178
      %7175 = vmatpush.bf16.msra.mxu0 %v6174
      %7176 = vmatpush.bf16.msra.mxu0 %v6170
      %7177 = vmatpush.bf16.msra.mxu0 %v6166
      %7178 = vmatmul.bf16.gmra.mxu0 %v5292
      %v7179 = vpop.f32.mrf.mxu0
      %v7180 = vadd.f32 %v7131, %v7179
      %v7181 = vpop.f32.mrf.mxu0
      %v7182 = vadd.f32 %v7133, %v7181
      %7183 = vmatmul.bf16.gmra.mxu0 %v5298
      %v7184 = vpop.f32.mrf.mxu0
      %v7185 = vadd.f32 %v7136, %v7184
      %v7186 = vpop.f32.mrf.mxu0
      %v7187 = vadd.f32 %v7138, %v7186
      %7188 = vmatmul.bf16.gmra.mxu0 %v5304
      %v7189 = vpop.f32.mrf.mxu0
      %v7190 = vadd.f32 %v7141, %v7189
      %v7191 = vpop.f32.mrf.mxu0
      %v7192 = vadd.f32 %v7143, %v7191
      %7193 = vmatmul.bf16.gmra.mxu0 %v5310
      %v7194 = vpop.f32.mrf.mxu0
      %v7195 = vadd.f32 %v7146, %v7194
      %v7196 = vpop.f32.mrf.mxu0
      %v7197 = vadd.f32 %v7148, %v7196
      %7198 = vmatmul.bf16.gmra.mxu0 %v5294
      %v7199 = vpop.f32.mrf.mxu0
      %v7200 = vadd.f32 %v7151, %v7199
      %v7201 = vpop.f32.mrf.mxu0
      %v7202 = vadd.f32 %v7153, %v7201
      %7203 = vmatmul.bf16.gmra.mxu0 %v5300
      %v7204 = vpop.f32.mrf.mxu0
      %v7205 = vadd.f32 %v7156, %v7204
      %v7206 = vpop.f32.mrf.mxu0
      %v7207 = vadd.f32 %v7158, %v7206
      %7208 = vmatmul.bf16.gmra.mxu0 %v5306
      %v7209 = vpop.f32.mrf.mxu0
      %v7210 = vadd.f32 %v7161, %v7209
      %v7211 = vpop.f32.mrf.mxu0
      %v7212 = vadd.f32 %v7163, %v7211
      %7213 = vmatmul.bf16.gmra.mxu0 %v5312
      %v7214 = vpop.f32.mrf.mxu0
      %v7215 = vadd.f32 %v7166, %v7214
      %v7216 = vpop.f32.mrf.mxu0
      %v7217 = vadd.f32 %v7168, %v7216
      %7218 = vdwg.mxu0
      %7219 = vmatpush.bf16.msra.mxu0 %v6226
      %7220 = vmatpush.bf16.msra.mxu0 %v6222
      %7221 = vmatpush.bf16.msra.mxu0 %v6218
      %7222 = vmatpush.bf16.msra.mxu0 %v6214
      %7223 = vmatpush.bf16.msra.mxu0 %v6210
      %7224 = vmatpush.bf16.msra.mxu0 %v6206
      %7225 = vmatpush.bf16.msra.mxu0 %v6202
      %7226 = vmatpush.bf16.msra.mxu0 %v6198
      %7227 = vmatmul.bf16.gmra.mxu0 %v5293
      %v7228 = vpop.f32.mrf.mxu0
      %v7229 = vadd.f32 %v7180, %v7228
      %v7230 = vpop.f32.mrf.mxu0
      %v7231 = vadd.f32 %v7182, %v7230
      %7232 = vmatmul.bf16.gmra.mxu0 %v5299
      %v7233 = vpop.f32.mrf.mxu0
      %v7234 = vadd.f32 %v7185, %v7233
      %v7235 = vpop.f32.mrf.mxu0
      %v7236 = vadd.f32 %v7187, %v7235
      %7237 = vmatmul.bf16.gmra.mxu0 %v5305
      %v7238 = vpop.f32.mrf.mxu0
      %v7239 = vadd.f32 %v7190, %v7238
      %v7240 = vpop.f32.mrf.mxu0
      %v7241 = vadd.f32 %v7192, %v7240
      %7242 = vmatmul.bf16.gmra.mxu0 %v5311
      %v7243 = vpop.f32.mrf.mxu0
      %v7244 = vadd.f32 %v7195, %v7243
      %v7245 = vpop.f32.mrf.mxu0
      %v7246 = vadd.f32 %v7197, %v7245
      %7247 = vmatmul.bf16.gmra.mxu0 %v5295
      %v7248 = vpop.f32.mrf.mxu0
      %v7249 = vadd.f32 %v7200, %v7248
      %v7250 = vpop.f32.mrf.mxu0
      %v7251 = vadd.f32 %v7202, %v7250
      %7252 = vmatmul.bf16.gmra.mxu0 %v5301
      %v7253 = vpop.f32.mrf.mxu0
      %v7254 = vadd.f32 %v7205, %v7253
      %v7255 = vpop.f32.mrf.mxu0
      %v7256 = vadd.f32 %v7207, %v7255
      %7257 = vmatmul.bf16.gmra.mxu0 %v5307
      %v7258 = vpop.f32.mrf.mxu0
      %v7259 = vadd.f32 %v7210, %v7258
      %v7260 = vpop.f32.mrf.mxu0
      %v7261 = vadd.f32 %v7212, %v7260
      %7262 = vmatmul.bf16.gmra.mxu0 %v5313
      %v7263 = vpop.f32.mrf.mxu0
      %v7264 = vadd.f32 %v7215, %v7263
      %v7265 = vpop.f32.mrf.mxu0
      %v7266 = vadd.f32 %v7217, %v7265
      %7267 = vdwg.mxu0
      %7268 = vmatpush.bf16.msra.mxu0 %v6258
      %7269 = vmatpush.bf16.msra.mxu0 %v6254
      %7270 = vmatpush.bf16.msra.mxu0 %v6250
      %7271 = vmatpush.bf16.msra.mxu0 %v6246
      %7272 = vmatpush.bf16.msra.mxu0 %v6242
      %7273 = vmatpush.bf16.msra.mxu0 %v6238
      %7274 = vmatpush.bf16.msra.mxu0 %v6234
      %7275 = vmatpush.bf16.msra.mxu0 %v6230
      %7276 = vmatmul.bf16.gmra.mxu0 %v5294
      %v7277 = vpop.f32.mrf.mxu0
      %v7278 = vadd.f32 %v7229, %v7277
      %v7279 = vpop.f32.mrf.mxu0
      %v7280 = vadd.f32 %v7231, %v7279
      %7281 = vmatmul.bf16.gmra.mxu0 %v5300
      %v7282 = vpop.f32.mrf.mxu0
      %v7283 = vadd.f32 %v7234, %v7282
      %v7284 = vpop.f32.mrf.mxu0
      %v7285 = vadd.f32 %v7236, %v7284
      %7286 = vmatmul.bf16.gmra.mxu0 %v5306
      %v7287 = vpop.f32.mrf.mxu0
      %v7288 = vadd.f32 %v7239, %v7287
      %v7289 = vpop.f32.mrf.mxu0
      %v7290 = vadd.f32 %v7241, %v7289
      %7291 = vmatmul.bf16.gmra.mxu0 %v5312
      %v7292 = vpop.f32.mrf.mxu0
      %v7293 = vadd.f32 %v7244, %v7292
      %v7294 = vpop.f32.mrf.mxu0
      %v7295 = vadd.f32 %v7246, %v7294
      %7296 = vmatmul.bf16.gmra.mxu0 %v5314
      %v7297 = vpop.f32.mrf.mxu0
      %v7298 = vadd.f32 %v7249, %v7297
      %v7299 = vpop.f32.mrf.mxu0
      %v7300 = vadd.f32 %v7251, %v7299
      %7301 = vmatmul.bf16.gmra.mxu0 %v5316
      %v7302 = vpop.f32.mrf.mxu0
      %v7303 = vadd.f32 %v7254, %v7302
      %v7304 = vpop.f32.mrf.mxu0
      %v7305 = vadd.f32 %v7256, %v7304
      %7306 = vmatmul.bf16.gmra.mxu0 %v5318
      %v7307 = vpop.f32.mrf.mxu0
      %v7308 = vadd.f32 %v7259, %v7307
      %v7309 = vpop.f32.mrf.mxu0
      %v7310 = vadd.f32 %v7261, %v7309
      %7311 = vmatmul.bf16.gmra.mxu0 %v5320
      %v7312 = vpop.f32.mrf.mxu0
      %v7313 = vadd.f32 %v7264, %v7312
      %v7314 = vpop.f32.mrf.mxu0
      %v7315 = vadd.f32 %v7266, %v7314
      %7316 = vdwg.mxu0
      %7317 = vmatpush.bf16.msra.mxu0 %v6290
      %7318 = vmatpush.bf16.msra.mxu0 %v6286
      %7319 = vmatpush.bf16.msra.mxu0 %v6282
      %7320 = vmatpush.bf16.msra.mxu0 %v6278
      %7321 = vmatpush.bf16.msra.mxu0 %v6274
      %7322 = vmatpush.bf16.msra.mxu0 %v6270
      %7323 = vmatpush.bf16.msra.mxu0 %v6266
      %7324 = vmatpush.bf16.msra.mxu0 %v6262
      %7325 = vmatmul.bf16.gmra.mxu0 %v5295
      %v7326 = vpop.f32.mrf.mxu0
      %v7327 = vadd.f32 %v7278, %v7326
      %v7328 = vpop.f32.mrf.mxu0
      %v7329 = vadd.f32 %v7280, %v7328
      %7330 = vmatmul.bf16.gmra.mxu0 %v5301
      %v7331 = vpop.f32.mrf.mxu0
      %v7332 = vadd.f32 %v7283, %v7331
      %v7333 = vpop.f32.mrf.mxu0
      %v7334 = vadd.f32 %v7285, %v7333
      %7335 = vmatmul.bf16.gmra.mxu0 %v5307
      %v7336 = vpop.f32.mrf.mxu0
      %v7337 = vadd.f32 %v7288, %v7336
      %v7338 = vpop.f32.mrf.mxu0
      %v7339 = vadd.f32 %v7290, %v7338
      %7340 = vmatmul.bf16.gmra.mxu0 %v5313
      %v7341 = vpop.f32.mrf.mxu0
      %v7342 = vadd.f32 %v7293, %v7341
      %v7343 = vpop.f32.mrf.mxu0
      %v7344 = vadd.f32 %v7295, %v7343
      %7345 = vmatmul.bf16.gmra.mxu0 %v5315
      %v7346 = vpop.f32.mrf.mxu0
      %v7347 = vadd.f32 %v7298, %v7346
      %v7348 = vpop.f32.mrf.mxu0
      %v7349 = vadd.f32 %v7300, %v7348
      %7350 = vmatmul.bf16.gmra.mxu0 %v5317
      %v7351 = vpop.f32.mrf.mxu0
      %v7352 = vadd.f32 %v7303, %v7351
      %v7353 = vpop.f32.mrf.mxu0
      %v7354 = vadd.f32 %v7305, %v7353
      %7355 = vmatmul.bf16.gmra.mxu0 %v5319
      %v7356 = vpop.f32.mrf.mxu0
      %v7357 = vadd.f32 %v7308, %v7356
      %v7358 = vpop.f32.mrf.mxu0
      %v7359 = vadd.f32 %v7310, %v7358
      %7360 = vmatmul.bf16.gmra.mxu0 %v5321
      %v7361 = vpop.f32.mrf.mxu0
      %v7362 = vadd.f32 %v7313, %v7361
      %v7363 = vpop.f32.mrf.mxu0
      %v7364 = vadd.f32 %v7315, %v7363
      %7365 = vdwg.mxu0
      %7366 = vmatpush.bf16.msra.mxu0 %v6131
      %7367 = vmatpush.bf16.msra.mxu0 %v6127
      %7368 = vmatpush.bf16.msra.mxu0 %v6123
      %7369 = vmatpush.bf16.msra.mxu0 %v6119
      %7370 = vmatpush.bf16.msra.mxu0 %v6115
      %7371 = vmatpush.bf16.msra.mxu0 %v6111
      %7372 = vmatpush.bf16.msra.mxu0 %v6107
      %7373 = vmatpush.bf16.msra.mxu0 %v6103
      %7374 = vmatmul.bf16.gmra.mxu0 %v5290
      %v7375 = vpop.f32.mrf.mxu0
      %v7376 = vadd.f32 %v5519, %v7375
      %v7377 = vpop.f32.mrf.mxu0
      %v7378 = vadd.f32 %v5519, %v7377
      %7379 = vmatmul.bf16.gmra.mxu0 %v5296
      %v7380 = vpop.f32.mrf.mxu0
      %v7381 = vadd.f32 %v5519, %v7380
      %v7382 = vpop.f32.mrf.mxu0
      %v7383 = vadd.f32 %v5519, %v7382
      %7384 = vmatmul.bf16.gmra.mxu0 %v5302
      %v7385 = vpop.f32.mrf.mxu0
      %v7386 = vadd.f32 %v5519, %v7385
      %v7387 = vpop.f32.mrf.mxu0
      %v7388 = vadd.f32 %v5519, %v7387
      %7389 = vmatmul.bf16.gmra.mxu0 %v5308
      %v7390 = vpop.f32.mrf.mxu0
      %v7391 = vadd.f32 %v5519, %v7390
      %v7392 = vpop.f32.mrf.mxu0
      %v7393 = vadd.f32 %v5519, %v7392
      %7394 = vmatmul.bf16.gmra.mxu0 %v5292
      %v7395 = vpop.f32.mrf.mxu0
      %v7396 = vadd.f32 %v5519, %v7395
      %v7397 = vpop.f32.mrf.mxu0
      %v7398 = vadd.f32 %v5519, %v7397
      %7399 = vmatmul.bf16.gmra.mxu0 %v5298
      %v7400 = vpop.f32.mrf.mxu0
      %v7401 = vadd.f32 %v5519, %v7400
      %v7402 = vpop.f32.mrf.mxu0
      %v7403 = vadd.f32 %v5519, %v7402
      %7404 = vmatmul.bf16.gmra.mxu0 %v5304
      %v7405 = vpop.f32.mrf.mxu0
      %v7406 = vadd.f32 %v5519, %v7405
      %v7407 = vpop.f32.mrf.mxu0
      %v7408 = vadd.f32 %v5519, %v7407
      %7409 = vmatmul.bf16.gmra.mxu0 %v5310
      %v7410 = vpop.f32.mrf.mxu0
      %v7411 = vadd.f32 %v5519, %v7410
      %v7412 = vpop.f32.mrf.mxu0
      %v7413 = vadd.f32 %v5519, %v7412
      %7414 = vdwg.mxu0
      %7415 = vmatpush.bf16.msra.mxu0 %v6163
      %7416 = vmatpush.bf16.msra.mxu0 %v6159
      %7417 = vmatpush.bf16.msra.mxu0 %v6155
      %7418 = vmatpush.bf16.msra.mxu0 %v6151
      %7419 = vmatpush.bf16.msra.mxu0 %v6147
      %7420 = vmatpush.bf16.msra.mxu0 %v6143
      %7421 = vmatpush.bf16.msra.mxu0 %v6139
      %7422 = vmatpush.bf16.msra.mxu0 %v6135
      %7423 = vmatmul.bf16.gmra.mxu0 %v5291
      %v7424 = vpop.f32.mrf.mxu0
      %v7425 = vadd.f32 %v7376, %v7424
      %v7426 = vpop.f32.mrf.mxu0
      %v7427 = vadd.f32 %v7378, %v7426
      %7428 = vmatmul.bf16.gmra.mxu0 %v5297
      %v7429 = vpop.f32.mrf.mxu0
      %v7430 = vadd.f32 %v7381, %v7429
      %v7431 = vpop.f32.mrf.mxu0
      %v7432 = vadd.f32 %v7383, %v7431
      %7433 = vmatmul.bf16.gmra.mxu0 %v5303
      %v7434 = vpop.f32.mrf.mxu0
      %v7435 = vadd.f32 %v7386, %v7434
      %v7436 = vpop.f32.mrf.mxu0
      %v7437 = vadd.f32 %v7388, %v7436
      %7438 = vmatmul.bf16.gmra.mxu0 %v5309
      %v7439 = vpop.f32.mrf.mxu0
      %v7440 = vadd.f32 %v7391, %v7439
      %v7441 = vpop.f32.mrf.mxu0
      %v7442 = vadd.f32 %v7393, %v7441
      %7443 = vmatmul.bf16.gmra.mxu0 %v5293
      %v7444 = vpop.f32.mrf.mxu0
      %v7445 = vadd.f32 %v7396, %v7444
      %v7446 = vpop.f32.mrf.mxu0
      %v7447 = vadd.f32 %v7398, %v7446
      %7448 = vmatmul.bf16.gmra.mxu0 %v5299
      %v7449 = vpop.f32.mrf.mxu0
      %v7450 = vadd.f32 %v7401, %v7449
      %v7451 = vpop.f32.mrf.mxu0
      %v7452 = vadd.f32 %v7403, %v7451
      %7453 = vmatmul.bf16.gmra.mxu0 %v5305
      %v7454 = vpop.f32.mrf.mxu0
      %v7455 = vadd.f32 %v7406, %v7454
      %v7456 = vpop.f32.mrf.mxu0
      %v7457 = vadd.f32 %v7408, %v7456
      %7458 = vmatmul.bf16.gmra.mxu0 %v5311
      %v7459 = vpop.f32.mrf.mxu0
      %v7460 = vadd.f32 %v7411, %v7459
      %v7461 = vpop.f32.mrf.mxu0
      %v7462 = vadd.f32 %v7413, %v7461
      %7463 = vdwg.mxu0
      %7464 = vmatpush.bf16.msra.mxu0 %v6195
      %7465 = vmatpush.bf16.msra.mxu0 %v6191
      %7466 = vmatpush.bf16.msra.mxu0 %v6187
      %7467 = vmatpush.bf16.msra.mxu0 %v6183
      %7468 = vmatpush.bf16.msra.mxu0 %v6179
      %7469 = vmatpush.bf16.msra.mxu0 %v6175
      %7470 = vmatpush.bf16.msra.mxu0 %v6171
      %7471 = vmatpush.bf16.msra.mxu0 %v6167
      %7472 = vmatmul.bf16.gmra.mxu0 %v5292
      %v7473 = vpop.f32.mrf.mxu0
      %v7474 = vadd.f32 %v7425, %v7473
      %v7475 = vpop.f32.mrf.mxu0
      %v7476 = vadd.f32 %v7427, %v7475
      %7477 = vmatmul.bf16.gmra.mxu0 %v5298
      %v7478 = vpop.f32.mrf.mxu0
      %v7479 = vadd.f32 %v7430, %v7478
      %v7480 = vpop.f32.mrf.mxu0
      %v7481 = vadd.f32 %v7432, %v7480
      %7482 = vmatmul.bf16.gmra.mxu0 %v5304
      %v7483 = vpop.f32.mrf.mxu0
      %v7484 = vadd.f32 %v7435, %v7483
      %v7485 = vpop.f32.mrf.mxu0
      %v7486 = vadd.f32 %v7437, %v7485
      %7487 = vmatmul.bf16.gmra.mxu0 %v5310
      %v7488 = vpop.f32.mrf.mxu0
      %v7489 = vadd.f32 %v7440, %v7488
      %v7490 = vpop.f32.mrf.mxu0
      %v7491 = vadd.f32 %v7442, %v7490
      %7492 = vmatmul.bf16.gmra.mxu0 %v5294
      %v7493 = vpop.f32.mrf.mxu0
      %v7494 = vadd.f32 %v7445, %v7493
      %v7495 = vpop.f32.mrf.mxu0
      %v7496 = vadd.f32 %v7447, %v7495
      %7497 = vmatmul.bf16.gmra.mxu0 %v5300
      %v7498 = vpop.f32.mrf.mxu0
      %v7499 = vadd.f32 %v7450, %v7498
      %v7500 = vpop.f32.mrf.mxu0
      %v7501 = vadd.f32 %v7452, %v7500
      %7502 = vmatmul.bf16.gmra.mxu0 %v5306
      %v7503 = vpop.f32.mrf.mxu0
      %v7504 = vadd.f32 %v7455, %v7503
      %v7505 = vpop.f32.mrf.mxu0
      %v7506 = vadd.f32 %v7457, %v7505
      %7507 = vmatmul.bf16.gmra.mxu0 %v5312
      %v7508 = vpop.f32.mrf.mxu0
      %v7509 = vadd.f32 %v7460, %v7508
      %v7510 = vpop.f32.mrf.mxu0
      %v7511 = vadd.f32 %v7462, %v7510
      %7512 = vdwg.mxu0
      %7513 = vmatpush.bf16.msra.mxu0 %v6227
      %7514 = vmatpush.bf16.msra.mxu0 %v6223
      %7515 = vmatpush.bf16.msra.mxu0 %v6219
      %7516 = vmatpush.bf16.msra.mxu0 %v6215
      %7517 = vmatpush.bf16.msra.mxu0 %v6211
      %7518 = vmatpush.bf16.msra.mxu0 %v6207
      %7519 = vmatpush.bf16.msra.mxu0 %v6203
      %7520 = vmatpush.bf16.msra.mxu0 %v6199
      %7521 = vmatmul.bf16.gmra.mxu0 %v5293
      %v7522 = vpop.f32.mrf.mxu0
      %v7523 = vadd.f32 %v7474, %v7522
      %v7524 = vpop.f32.mrf.mxu0
      %v7525 = vadd.f32 %v7476, %v7524
      %7526 = vmatmul.bf16.gmra.mxu0 %v5299
      %v7527 = vpop.f32.mrf.mxu0
      %v7528 = vadd.f32 %v7479, %v7527
      %v7529 = vpop.f32.mrf.mxu0
      %v7530 = vadd.f32 %v7481, %v7529
      %7531 = vmatmul.bf16.gmra.mxu0 %v5305
      %v7532 = vpop.f32.mrf.mxu0
      %v7533 = vadd.f32 %v7484, %v7532
      %v7534 = vpop.f32.mrf.mxu0
      %v7535 = vadd.f32 %v7486, %v7534
      %7536 = vmatmul.bf16.gmra.mxu0 %v5311
      %v7537 = vpop.f32.mrf.mxu0
      %v7538 = vadd.f32 %v7489, %v7537
      %v7539 = vpop.f32.mrf.mxu0
      %v7540 = vadd.f32 %v7491, %v7539
      %7541 = vmatmul.bf16.gmra.mxu0 %v5295
      %v7542 = vpop.f32.mrf.mxu0
      %v7543 = vadd.f32 %v7494, %v7542
      %v7544 = vpop.f32.mrf.mxu0
      %v7545 = vadd.f32 %v7496, %v7544
      %7546 = vmatmul.bf16.gmra.mxu0 %v5301
      %v7547 = vpop.f32.mrf.mxu0
      %v7548 = vadd.f32 %v7499, %v7547
      %v7549 = vpop.f32.mrf.mxu0
      %v7550 = vadd.f32 %v7501, %v7549
      %7551 = vmatmul.bf16.gmra.mxu0 %v5307
      %v7552 = vpop.f32.mrf.mxu0
      %v7553 = vadd.f32 %v7504, %v7552
      %v7554 = vpop.f32.mrf.mxu0
      %v7555 = vadd.f32 %v7506, %v7554
      %7556 = vmatmul.bf16.gmra.mxu0 %v5313
      %v7557 = vpop.f32.mrf.mxu0
      %v7558 = vadd.f32 %v7509, %v7557
      %v7559 = vpop.f32.mrf.mxu0
      %v7560 = vadd.f32 %v7511, %v7559
      %7561 = vdwg.mxu0
      %7562 = vmatpush.bf16.msra.mxu0 %v6259
      %7563 = vmatpush.bf16.msra.mxu0 %v6255
      %7564 = vmatpush.bf16.msra.mxu0 %v6251
      %7565 = vmatpush.bf16.msra.mxu0 %v6247
      %7566 = vmatpush.bf16.msra.mxu0 %v6243
      %7567 = vmatpush.bf16.msra.mxu0 %v6239
      %7568 = vmatpush.bf16.msra.mxu0 %v6235
      %7569 = vmatpush.bf16.msra.mxu0 %v6231
      %7570 = vmatmul.bf16.gmra.mxu0 %v5294
      %v7571 = vpop.f32.mrf.mxu0
      %v7572 = vadd.f32 %v7523, %v7571
      %v7573 = vpop.f32.mrf.mxu0
      %v7574 = vadd.f32 %v7525, %v7573
      %7575 = vmatmul.bf16.gmra.mxu0 %v5300
      %v7576 = vpop.f32.mrf.mxu0
      %v7577 = vadd.f32 %v7528, %v7576
      %v7578 = vpop.f32.mrf.mxu0
      %v7579 = vadd.f32 %v7530, %v7578
      %7580 = vmatmul.bf16.gmra.mxu0 %v5306
      %v7581 = vpop.f32.mrf.mxu0
      %v7582 = vadd.f32 %v7533, %v7581
      %v7583 = vpop.f32.mrf.mxu0
      %v7584 = vadd.f32 %v7535, %v7583
      %7585 = vmatmul.bf16.gmra.mxu0 %v5312
      %v7586 = vpop.f32.mrf.mxu0
      %v7587 = vadd.f32 %v7538, %v7586
      %v7588 = vpop.f32.mrf.mxu0
      %v7589 = vadd.f32 %v7540, %v7588
      %7590 = vmatmul.bf16.gmra.mxu0 %v5314
      %v7591 = vpop.f32.mrf.mxu0
      %v7592 = vadd.f32 %v7543, %v7591
      %v7593 = vpop.f32.mrf.mxu0
      %v7594 = vadd.f32 %v7545, %v7593
      %7595 = vmatmul.bf16.gmra.mxu0 %v5316
      %v7596 = vpop.f32.mrf.mxu0
      %v7597 = vadd.f32 %v7548, %v7596
      %v7598 = vpop.f32.mrf.mxu0
      %v7599 = vadd.f32 %v7550, %v7598
      %7600 = vmatmul.bf16.gmra.mxu0 %v5318
      %v7601 = vpop.f32.mrf.mxu0
      %v7602 = vadd.f32 %v7553, %v7601
      %v7603 = vpop.f32.mrf.mxu0
      %v7604 = vadd.f32 %v7555, %v7603
      %7605 = vmatmul.bf16.gmra.mxu0 %v5320
      %v7606 = vpop.f32.mrf.mxu0
      %v7607 = vadd.f32 %v7558, %v7606
      %v7608 = vpop.f32.mrf.mxu0
      %v7609 = vadd.f32 %v7560, %v7608
      %7610 = vdwg.mxu0
      %7611 = vmatpush.bf16.msra.mxu0 %v6291
      %7612 = vmatpush.bf16.msra.mxu0 %v6287
      %7613 = vmatpush.bf16.msra.mxu0 %v6283
      %7614 = vmatpush.bf16.msra.mxu0 %v6279
      %7615 = vmatpush.bf16.msra.mxu0 %v6275
      %7616 = vmatpush.bf16.msra.mxu0 %v6271
      %7617 = vmatpush.bf16.msra.mxu0 %v6267
      %7618 = vmatpush.bf16.msra.mxu0 %v6263
      %7619 = vmatmul.bf16.gmra.mxu0 %v5295
      %v7620 = vpop.f32.mrf.mxu0
      %v7621 = vadd.f32 %v7572, %v7620
      %v7622 = vpop.f32.mrf.mxu0
      %v7623 = vadd.f32 %v7574, %v7622
      %7624 = vmatmul.bf16.gmra.mxu0 %v5301
      %v7625 = vpop.f32.mrf.mxu0
      %v7626 = vadd.f32 %v7577, %v7625
      %v7627 = vpop.f32.mrf.mxu0
      %v7628 = vadd.f32 %v7579, %v7627
      %7629 = vmatmul.bf16.gmra.mxu0 %v5307
      %v7630 = vpop.f32.mrf.mxu0
      %v7631 = vadd.f32 %v7582, %v7630
      %v7632 = vpop.f32.mrf.mxu0
      %v7633 = vadd.f32 %v7584, %v7632
      %7634 = vmatmul.bf16.gmra.mxu0 %v5313
      %v7635 = vpop.f32.mrf.mxu0
      %v7636 = vadd.f32 %v7587, %v7635
      %v7637 = vpop.f32.mrf.mxu0
      %v7638 = vadd.f32 %v7589, %v7637
      %7639 = vmatmul.bf16.gmra.mxu0 %v5315
      %v7640 = vpop.f32.mrf.mxu0
      %v7641 = vadd.f32 %v7592, %v7640
      %v7642 = vpop.f32.mrf.mxu0
      %v7643 = vadd.f32 %v7594, %v7642
      %7644 = vmatmul.bf16.gmra.mxu0 %v5317
      %v7645 = vpop.f32.mrf.mxu0
      %v7646 = vadd.f32 %v7597, %v7645
      %v7647 = vpop.f32.mrf.mxu0
      %v7648 = vadd.f32 %v7599, %v7647
      %7649 = vmatmul.bf16.gmra.mxu0 %v5319
      %v7650 = vpop.f32.mrf.mxu0
      %v7651 = vadd.f32 %v7602, %v7650
      %v7652 = vpop.f32.mrf.mxu0
      %v7653 = vadd.f32 %v7604, %v7652
      %7654 = vmatmul.bf16.gmra.mxu0 %v5321
      %v7655 = vpop.f32.mrf.mxu0
      %v7656 = vadd.f32 %v7607, %v7655
      %v7657 = vpop.f32.mrf.mxu0
      %v7658 = vadd.f32 %v7609, %v7657
      %7659 = vdwg.mxu0
      %v7660 = vmax.f32 %v6739, 0.0
      %v7661 = vmax.f32 %v7033, 0.0
      %v7662 = vmax.f32 %v7327, 0.0
      %v7663 = vmax.f32 %v7621, 0.0
      %v7664 = vmax.f32 %v6741, 0.0
      %v7665 = vmax.f32 %v7035, 0.0
      %v7666 = vmax.f32 %v7329, 0.0
      %v7667 = vmax.f32 %v7623, 0.0
      %v7668 = vmax.f32 %v6744, 0.0
      %v7669 = vmax.f32 %v7038, 0.0
      %v7670 = vmax.f32 %v7332, 0.0
      %v7671 = vmax.f32 %v7626, 0.0
      %v7672 = vmax.f32 %v6746, 0.0
      %v7673 = vmax.f32 %v7040, 0.0
      %v7674 = vmax.f32 %v7334, 0.0
      %v7675 = vmax.f32 %v7628, 0.0
      %v7676 = vmax.f32 %v6749, 0.0
      %v7677 = vmax.f32 %v7043, 0.0
      %v7678 = vmax.f32 %v7337, 0.0
      %v7679 = vmax.f32 %v7631, 0.0
      %v7680 = vmax.f32 %v6751, 0.0
      %v7681 = vmax.f32 %v7045, 0.0
      %v7682 = vmax.f32 %v7339, 0.0
      %v7683 = vmax.f32 %v7633, 0.0
      %v7684 = vmax.f32 %v6754, 0.0
      %v7685 = vmax.f32 %v7048, 0.0
      %v7686 = vmax.f32 %v7342, 0.0
      %v7687 = vmax.f32 %v7636, 0.0
      %v7688 = vmax.f32 %v6756, 0.0
      %v7689 = vmax.f32 %v7050, 0.0
      %v7690 = vmax.f32 %v7344, 0.0
      %v7691 = vmax.f32 %v7638, 0.0
      %v7692 = vmax.f32 %v6759, 0.0
      %v7693 = vmax.f32 %v7053, 0.0
      %v7694 = vmax.f32 %v7347, 0.0
      %v7695 = vmax.f32 %v7641, 0.0
      %v7696 = vmax.f32 %v6761, 0.0
      %v7697 = vmax.f32 %v7055, 0.0
      %v7698 = vmax.f32 %v7349, 0.0
      %v7699 = vmax.f32 %v7643, 0.0
      %v7700 = vmax.f32 %v6764, 0.0
      %v7701 = vmax.f32 %v7058, 0.0
      %v7702 = vmax.f32 %v7352, 0.0
      %v7703 = vmax.f32 %v7646, 0.0
      %v7704 = vmax.f32 %v6766, 0.0
      %v7705 = vmax.f32 %v7060, 0.0
      %v7706 = vmax.f32 %v7354, 0.0
      %v7707 = vmax.f32 %v7648, 0.0
      %v7708 = vmax.f32 %v6769, 0.0
      %v7709 = vmax.f32 %v7063, 0.0
      %v7710 = vmax.f32 %v7357, 0.0
      %v7711 = vmax.f32 %v7651, 0.0
      %v7712 = vmax.f32 %v6771, 0.0
      %v7713 = vmax.f32 %v7065, 0.0
      %v7714 = vmax.f32 %v7359, 0.0
      %v7715 = vmax.f32 %v7653, 0.0
      %v7716 = vmax.f32 %v6774, 0.0
      %v7717 = vmax.f32 %v7068, 0.0
      %v7718 = vmax.f32 %v7362, 0.0
      %v7719 = vmax.f32 %v7656, 0.0
      %v7720 = vmax.f32 %v6776, 0.0
      %v7721 = vmax.f32 %v7070, 0.0
      %v7722 = vmax.f32 %v7364, 0.0
      %v7723 = vmax.f32 %v7658, 0.0
      %v7724 = vmax.f32 %v7660, %v7692
      %v7725 = vmax.f32 %v7661, %v7693
      %v7726 = vmax.f32 %v7662, %v7694
      %v7727 = vmax.f32 %v7663, %v7695
      %v7728 = vmax.f32 %v7664, %v7696
      %v7729 = vmax.f32 %v7665, %v7697
      %v7730 = vmax.f32 %v7666, %v7698
      %v7731 = vmax.f32 %v7667, %v7699
      %v7732 = vmax.f32 %v7668, %v7700
      %v7733 = vmax.f32 %v7669, %v7701
      %v7734 = vmax.f32 %v7670, %v7702
      %v7735 = vmax.f32 %v7671, %v7703
      %v7736 = vmax.f32 %v7672, %v7704
      %v7737 = vmax.f32 %v7673, %v7705
      %v7738 = vmax.f32 %v7674, %v7706
      %v7739 = vmax.f32 %v7675, %v7707
      %v7740 = vmax.f32 %v7676, %v7708
      %v7741 = vmax.f32 %v7677, %v7709
      %v7742 = vmax.f32 %v7678, %v7710
      %v7743 = vmax.f32 %v7679, %v7711
      %v7744 = vmax.f32 %v7680, %v7712
      %v7745 = vmax.f32 %v7681, %v7713
      %v7746 = vmax.f32 %v7682, %v7714
      %v7747 = vmax.f32 %v7683, %v7715
      %v7748 = vmax.f32 %v7684, %v7716
      %v7749 = vmax.f32 %v7685, %v7717
      %v7750 = vmax.f32 %v7686, %v7718
      %v7751 = vmax.f32 %v7687, %v7719
      %v7752 = vmax.f32 %v7688, %v7720
      %v7753 = vmax.f32 %v7689, %v7721
      %v7754 = vmax.f32 %v7690, %v7722
      %v7755 = vmax.f32 %v7691, %v7723
      %v7756 = vpack.c.bf16 %v7728, %v7724
      %v7757 = vpack.c.bf16 %v7729, %v7725
      %v7758 = vpack.c.bf16 %v7730, %v7726
      %v7759 = vpack.c.bf16 %v7731, %v7727
      %v7760 = vpack.c.bf16 %v7736, %v7732
      %v7761 = vpack.c.bf16 %v7737, %v7733
      %v7762 = vpack.c.bf16 %v7738, %v7734
      %v7763 = vpack.c.bf16 %v7739, %v7735
      %v7764 = vpack.c.bf16 %v7744, %v7740
      %v7765 = vpack.c.bf16 %v7745, %v7741
      %v7766 = vpack.c.bf16 %v7746, %v7742
      %v7767 = vpack.c.bf16 %v7747, %v7743
      %v7768 = vpack.c.bf16 %v7752, %v7748
      %v7769 = vpack.c.bf16 %v7753, %v7749
      %v7770 = vpack.c.bf16 %v7754, %v7750
      %v7771 = vpack.c.bf16 %v7755, %v7751
      %v7772 = vld [vmem:[%s530] sm:$0xf]
      %v7773 = vld [vmem:[%s530 + $0x4] sm:$0xf]
      %v7774 = vld [vmem:[%s530 + $0x8] sm:$0xf]
      %v7775 = vld [vmem:[%s530 + $0xc] sm:$0xf]
      %v7776 = vld [vmem:[%s530 + $0x10] sm:$0xf]
      %v7777 = vld [vmem:[%s530 + $0x14] sm:$0xf]
      %v7778 = vld [vmem:[%s530 + $0x18] sm:$0xf]
      %v7779 = vld [vmem:[%s530 + $0x1c] sm:$0xf]
      %v7780 = vld [vmem:[%s530 + $0x20] sm:$0xf]
      %v7781 = vld [vmem:[%s530 + $0x24] sm:$0xf]
      %v7782 = vld [vmem:[%s530 + $0x28] sm:$0xf]
      %v7783 = vld [vmem:[%s530 + $0x2c] sm:$0xf]
      %v7784 = vld [vmem:[%s530 + $0x30] sm:$0xf]
      %v7785 = vld [vmem:[%s530 + $0x34] sm:$0xf]
      %v7786 = vld [vmem:[%s530 + $0x38] sm:$0xf]
      %v7787 = vld [vmem:[%s530 + $0x3c] sm:$0xf]
      %v7788 = vld [vmem:[%s530 + $0x40] sm:$0xf]
      %v7789 = vld [vmem:[%s530 + $0x44] sm:$0xf]
      %v7790 = vld [vmem:[%s530 + $0x48] sm:$0xf]
      %v7791 = vld [vmem:[%s530 + $0x4c] sm:$0xf]
      %v7792 = vld [vmem:[%s530 + $0x50] sm:$0xf]
      %v7793 = vld [vmem:[%s530 + $0x54] sm:$0xf]
      %v7794 = vld [vmem:[%s530 + $0x58] sm:$0xf]
      %v7795 = vld [vmem:[%s530 + $0x5c] sm:$0xf]
      %v7796 = vld [vmem:[%s530 + $0x60] sm:$0xf]
      %v7797 = vld [vmem:[%s530 + $0x64] sm:$0xf]
      %v7798 = vld [vmem:[%s530 + $0x68] sm:$0xf]
      %v7799 = vld [vmem:[%s530 + $0x6c] sm:$0xf]
      %v7800 = vld [vmem:[%s530 + $0x70] sm:$0xf]
      %v7801 = vld [vmem:[%s530 + $0x74] sm:$0xf]
      %v7802 = vld [vmem:[%s530 + $0x78] sm:$0xf]
      %v7803 = vld [vmem:[%s530 + $0x7c] sm:$0xf]
      %v7804 = vld [vmem:[%s530 + $0x80] sm:$0xf]
      %v7805 = vld [vmem:[%s530 + $0x84] sm:$0xf]
      %v7806 = vld [vmem:[%s530 + $0x88] sm:$0xf]
      %v7807 = vld [vmem:[%s530 + $0x8c] sm:$0xf]
      %v7808 = vld [vmem:[%s530 + $0x90] sm:$0xf]
      %v7809 = vld [vmem:[%s530 + $0x94] sm:$0xf]
      %v7810 = vld [vmem:[%s530 + $0x98] sm:$0xf]
      %v7811 = vld [vmem:[%s530 + $0x9c] sm:$0xf]
      %v7812 = vld [vmem:[%s530 + $0xa0] sm:$0xf]
      %v7813 = vld [vmem:[%s530 + $0xa4] sm:$0xf]
      %v7814 = vld [vmem:[%s530 + $0xa8] sm:$0xf]
      %v7815 = vld [vmem:[%s530 + $0xac] sm:$0xf]
      %v7816 = vld [vmem:[%s530 + $0xb0] sm:$0xf]
      %v7817 = vld [vmem:[%s530 + $0xb4] sm:$0xf]
      %v7818 = vld [vmem:[%s530 + $0xb8] sm:$0xf]
      %v7819 = vld [vmem:[%s530 + $0xbc] sm:$0xf]
      %v7820 = vld [vmem:[%s530 + $0xc0] sm:$0xf]
      %v7821 = vld [vmem:[%s530 + $0xc4] sm:$0xf]
      %v7822 = vld [vmem:[%s530 + $0xc8] sm:$0xf]
      %v7823 = vld [vmem:[%s530 + $0xcc] sm:$0xf]
      %v7824 = vld [vmem:[%s530 + $0xd0] sm:$0xf]
      %v7825 = vld [vmem:[%s530 + $0xd4] sm:$0xf]
      %v7826 = vld [vmem:[%s530 + $0xd8] sm:$0xf]
      %v7827 = vld [vmem:[%s530 + $0xdc] sm:$0xf]
      %v7828 = vld [vmem:[%s530 + $0xe0] sm:$0xf]
      %v7829 = vld [vmem:[%s530 + $0xe4] sm:$0xf]
      %v7830 = vld [vmem:[%s530 + $0xe8] sm:$0xf]
      %v7831 = vld [vmem:[%s530 + $0xec] sm:$0xf]
      %v7832 = vld [vmem:[%s530 + $0xf0] sm:$0xf]
      %v7833 = vld [vmem:[%s530 + $0xf4] sm:$0xf]
      %v7834 = vld [vmem:[%s530 + $0xf8] sm:$0xf]
      %v7835 = vld [vmem:[%s530 + $0xfc] sm:$0xf]
      %v7836 = vld [vmem:[%s533] sm:$0x1]
      %v7838 = vperm.slane %v7836, 0
      %v7904 = vunpack.c.l.b16 %v7772
      %v7905 = vunpack.c.l.b16 %v7773
      %v7906 = vunpack.c.l.b16 %v7774
      %v7907 = vunpack.c.l.b16 %v7775
      %v7908 = vunpack.c.l.b16 %v7776
      %v7909 = vunpack.c.l.b16 %v7777
      %v7910 = vunpack.c.l.b16 %v7778
      %v7911 = vunpack.c.l.b16 %v7779
      %v7912 = vunpack.c.l.b16 %v7780
      %v7913 = vunpack.c.l.b16 %v7781
      %v7914 = vunpack.c.l.b16 %v7782
      %v7915 = vunpack.c.l.b16 %v7783
      %v7916 = vunpack.c.l.b16 %v7784
      %v7917 = vunpack.c.l.b16 %v7785
      %v7918 = vunpack.c.l.b16 %v7786
      %v7919 = vunpack.c.l.b16 %v7787
      %v7920 = vunpack.c.l.b16 %v7788
      %v7921 = vunpack.c.l.b16 %v7789
      %v7922 = vunpack.c.l.b16 %v7790
      %v7923 = vunpack.c.l.b16 %v7791
      %v7924 = vunpack.c.l.b16 %v7792
      %v7925 = vunpack.c.l.b16 %v7793
      %v7926 = vunpack.c.l.b16 %v7794
      %v7927 = vunpack.c.l.b16 %v7795
      %v7928 = vunpack.c.l.b16 %v7796
      %v7929 = vunpack.c.l.b16 %v7797
      %v7930 = vunpack.c.l.b16 %v7798
      %v7931 = vunpack.c.l.b16 %v7799
      %v7932 = vunpack.c.l.b16 %v7800
      %v7933 = vunpack.c.l.b16 %v7801
      %v7934 = vunpack.c.l.b16 %v7802
      %v7935 = vunpack.c.l.b16 %v7803
      %v7936 = vunpack.c.l.b16 %v7804
      %v7937 = vunpack.c.l.b16 %v7805
      %v7938 = vunpack.c.l.b16 %v7806
      %v7939 = vunpack.c.l.b16 %v7807
      %v7940 = vunpack.c.l.b16 %v7808
      %v7941 = vunpack.c.l.b16 %v7809
      %v7942 = vunpack.c.l.b16 %v7810
      %v7943 = vunpack.c.l.b16 %v7811
      %v7944 = vunpack.c.l.b16 %v7812
      %v7945 = vunpack.c.l.b16 %v7813
      %v7946 = vunpack.c.l.b16 %v7814
      %v7947 = vunpack.c.l.b16 %v7815
      %v7948 = vunpack.c.l.b16 %v7816
      %v7949 = vunpack.c.l.b16 %v7817
      %v7950 = vunpack.c.l.b16 %v7818
      %v7951 = vunpack.c.l.b16 %v7819
      %v7952 = vunpack.c.l.b16 %v7820
      %v7953 = vunpack.c.l.b16 %v7821
      %v7954 = vunpack.c.l.b16 %v7822
      %v7955 = vunpack.c.l.b16 %v7823
      %v7956 = vunpack.c.l.b16 %v7824
      %v7957 = vunpack.c.l.b16 %v7825
      %v7958 = vunpack.c.l.b16 %v7826
      %v7959 = vunpack.c.l.b16 %v7827
      %v7960 = vunpack.c.l.b16 %v7828
      %v7961 = vunpack.c.l.b16 %v7829
      %v7962 = vunpack.c.l.b16 %v7830
      %v7963 = vunpack.c.l.b16 %v7831
      %v7964 = vunpack.c.l.b16 %v7832
      %v7965 = vunpack.c.l.b16 %v7833
      %v7966 = vunpack.c.l.b16 %v7834
      %v7967 = vunpack.c.l.b16 %v7835
      %v7968 = vpack.c.b16 %v7905, %v7904
      %v7969 = vpack.c.b16 %v7907, %v7906
      %v7970 = vpack.c.b16 %v7909, %v7908
      %v7971 = vpack.c.b16 %v7911, %v7910
      %v7972 = vpack.c.b16 %v7913, %v7912
      %v7973 = vpack.c.b16 %v7915, %v7914
      %v7974 = vpack.c.b16 %v7917, %v7916
      %v7975 = vpack.c.b16 %v7919, %v7918
      %v7976 = vpack.c.b16 %v7921, %v7920
      %v7977 = vpack.c.b16 %v7923, %v7922
      %v7978 = vpack.c.b16 %v7925, %v7924
      %v7979 = vpack.c.b16 %v7927, %v7926
      %v7980 = vpack.c.b16 %v7929, %v7928
      %v7981 = vpack.c.b16 %v7931, %v7930
      %v7982 = vpack.c.b16 %v7933, %v7932
      %v7983 = vpack.c.b16 %v7935, %v7934
      %v7984 = vpack.c.b16 %v7937, %v7936
      %v7985 = vpack.c.b16 %v7939, %v7938
      %v7986 = vpack.c.b16 %v7941, %v7940
      %v7987 = vpack.c.b16 %v7943, %v7942
      %v7988 = vpack.c.b16 %v7945, %v7944
      %v7989 = vpack.c.b16 %v7947, %v7946
      %v7990 = vpack.c.b16 %v7949, %v7948
      %v7991 = vpack.c.b16 %v7951, %v7950
      %v7992 = vpack.c.b16 %v7953, %v7952
      %v7993 = vpack.c.b16 %v7955, %v7954
      %v7994 = vpack.c.b16 %v7957, %v7956
      %v7995 = vpack.c.b16 %v7959, %v7958
      %v7996 = vpack.c.b16 %v7961, %v7960
      %v7997 = vpack.c.b16 %v7963, %v7962
      %v7998 = vpack.c.b16 %v7965, %v7964
      %v7999 = vpack.c.b16 %v7967, %v7966
      %8032 = vmatpush.bf16.msra.mxu0 %v7975
      %8033 = vmatpush.bf16.msra.mxu0 %v7974
      %8034 = vmatpush.bf16.msra.mxu0 %v7973
      %8035 = vmatpush.bf16.msra.mxu0 %v7972
      %8036 = vmatpush.bf16.msra.mxu0 %v7971
      %8037 = vmatpush.bf16.msra.mxu0 %v7970
      %8038 = vmatpush.bf16.msra.mxu0 %v7969
      %8039 = vmatpush.bf16.msra.mxu0 %v7968
      %8040 = vmatmul.bf16.gmra.mxu0 %v7756
      %v8041 = vpop.f32.mrf.mxu0
      %v8042 = vadd.f32 %v7838, %v8041
      %v8043 = vpop.f32.mrf.mxu0
      %v8044 = vadd.f32 %v7838, %v8043
      %8045 = vmatmul.bf16.gmra.mxu0 %v7760
      %v8046 = vpop.f32.mrf.mxu0
      %v8047 = vadd.f32 %v7838, %v8046
      %v8048 = vpop.f32.mrf.mxu0
      %v8049 = vadd.f32 %v7838, %v8048
      %8050 = vmatmul.bf16.gmra.mxu0 %v7764
      %v8051 = vpop.f32.mrf.mxu0
      %v8052 = vadd.f32 %v7838, %v8051
      %v8053 = vpop.f32.mrf.mxu0
      %v8054 = vadd.f32 %v7838, %v8053
      %8055 = vmatmul.bf16.gmra.mxu0 %v7768
      %v8056 = vpop.f32.mrf.mxu0
      %v8057 = vadd.f32 %v7838, %v8056
      %v8058 = vpop.f32.mrf.mxu0
      %v8059 = vadd.f32 %v7838, %v8058
      %8060 = vdwg.mxu0
      %8061 = vmatpush.bf16.msra.mxu0 %v7983
      %8062 = vmatpush.bf16.msra.mxu0 %v7982
      %8063 = vmatpush.bf16.msra.mxu0 %v7981
      %8064 = vmatpush.bf16.msra.mxu0 %v7980
      %8065 = vmatpush.bf16.msra.mxu0 %v7979
      %8066 = vmatpush.bf16.msra.mxu0 %v7978
      %8067 = vmatpush.bf16.msra.mxu0 %v7977
      %8068 = vmatpush.bf16.msra.mxu0 %v7976
      %8069 = vmatmul.bf16.gmra.mxu0 %v7757
      %v8070 = vpop.f32.mrf.mxu0
      %v8071 = vadd.f32 %v8042, %v8070
      %v8072 = vpop.f32.mrf.mxu0
      %v8073 = vadd.f32 %v8044, %v8072
      %8074 = vmatmul.bf16.gmra.mxu0 %v7761
      %v8075 = vpop.f32.mrf.mxu0
      %v8076 = vadd.f32 %v8047, %v8075
      %v8077 = vpop.f32.mrf.mxu0
      %v8078 = vadd.f32 %v8049, %v8077
      %8079 = vmatmul.bf16.gmra.mxu0 %v7765
      %v8080 = vpop.f32.mrf.mxu0
      %v8081 = vadd.f32 %v8052, %v8080
      %v8082 = vpop.f32.mrf.mxu0
      %v8083 = vadd.f32 %v8054, %v8082
      %8084 = vmatmul.bf16.gmra.mxu0 %v7769
      %v8085 = vpop.f32.mrf.mxu0
      %v8086 = vadd.f32 %v8057, %v8085
      %v8087 = vpop.f32.mrf.mxu0
      %v8088 = vadd.f32 %v8059, %v8087
      %8089 = vdwg.mxu0
      %8090 = vmatpush.bf16.msra.mxu0 %v7991
      %8091 = vmatpush.bf16.msra.mxu0 %v7990
      %8092 = vmatpush.bf16.msra.mxu0 %v7989
      %8093 = vmatpush.bf16.msra.mxu0 %v7988
      %8094 = vmatpush.bf16.msra.mxu0 %v7987
      %8095 = vmatpush.bf16.msra.mxu0 %v7986
      %8096 = vmatpush.bf16.msra.mxu0 %v7985
      %8097 = vmatpush.bf16.msra.mxu0 %v7984
      %8098 = vmatmul.bf16.gmra.mxu0 %v7758
      %v8099 = vpop.f32.mrf.mxu0
      %v8100 = vadd.f32 %v8071, %v8099
      %v8101 = vpop.f32.mrf.mxu0
      %v8102 = vadd.f32 %v8073, %v8101
      %8103 = vmatmul.bf16.gmra.mxu0 %v7762
      %v8104 = vpop.f32.mrf.mxu0
      %v8105 = vadd.f32 %v8076, %v8104
      %v8106 = vpop.f32.mrf.mxu0
      %v8107 = vadd.f32 %v8078, %v8106
      %8108 = vmatmul.bf16.gmra.mxu0 %v7766
      %v8109 = vpop.f32.mrf.mxu0
      %v8110 = vadd.f32 %v8081, %v8109
      %v8111 = vpop.f32.mrf.mxu0
      %v8112 = vadd.f32 %v8083, %v8111
      %8113 = vmatmul.bf16.gmra.mxu0 %v7770
      %v8114 = vpop.f32.mrf.mxu0
      %v8115 = vadd.f32 %v8086, %v8114
      %v8116 = vpop.f32.mrf.mxu0
      %v8117 = vadd.f32 %v8088, %v8116
      %8118 = vdwg.mxu0
      %8119 = vmatpush.bf16.msra.mxu0 %v7999
      %8120 = vmatpush.bf16.msra.mxu0 %v7998
      %8121 = vmatpush.bf16.msra.mxu0 %v7997
      %8122 = vmatpush.bf16.msra.mxu0 %v7996
      %8123 = vmatpush.bf16.msra.mxu0 %v7995
      %8124 = vmatpush.bf16.msra.mxu0 %v7994
      %8125 = vmatpush.bf16.msra.mxu0 %v7993
      %8126 = vmatpush.bf16.msra.mxu0 %v7992
      %8127 = vmatmul.bf16.gmra.mxu0 %v7759
      %v8128 = vpop.f32.mrf.mxu0
      %v8129 = vadd.f32 %v8100, %v8128
      %v8130 = vpop.f32.mrf.mxu0
      %v8131 = vadd.f32 %v8102, %v8130
      %8132 = vmatmul.bf16.gmra.mxu0 %v7763
      %v8133 = vpop.f32.mrf.mxu0
      %v8134 = vadd.f32 %v8105, %v8133
      %v8135 = vpop.f32.mrf.mxu0
      %v8136 = vadd.f32 %v8107, %v8135
      %8137 = vmatmul.bf16.gmra.mxu0 %v7767
      %v8138 = vpop.f32.mrf.mxu0
      %v8139 = vadd.f32 %v8110, %v8138
      %v8140 = vpop.f32.mrf.mxu0
      %v8141 = vadd.f32 %v8112, %v8140
      %8142 = vmatmul.bf16.gmra.mxu0 %v7771
      %v8143 = vpop.f32.mrf.mxu0
      %v8144 = vadd.f32 %v8115, %v8143
      %v8145 = vpop.f32.mrf.mxu0
      %v8146 = vadd.f32 %v8117, %v8145
      %8147 = vdwg.mxu0
      %v8148 = vld [vmem:[%s537] sm:$0x7]
      %v8149 = vld [vmem:[%s541] sm:$0x7]
      %8151 = vset.pattern.permute.xlu0 0
      %8152 = vperm.xlu0 %8151, %v8149
      %v8153 = vpop.permute.xlu0 %8152
      %vm8155 = vcmask 64512
      %v8157 = vsel %vm8155, %v8148, 0
      %8159 = vmatpush.msra.mxu0 0.0
      %8160 = vmatpush.msra.mxu0 0.0
      %8161 = vmatpush.msra.mxu0 0.0
      %8162 = vmatpush.msra.mxu0 0.0
      %8163 = vmatpush.msra.mxu0 0.0
      %8164 = vmatpush.msra.mxu0 0.0
      %8165 = vmatpush.msra.mxu0 0.0
      %8166 = vmatpush.msra.mxu0 0.0
      %8167 = vmatpush.msra.mxu0 0.0
      %8168 = vmatpush.msra.mxu0 0.0
      %8169 = vmatpush.msra.mxu0 0.0
      %8170 = vmatpush.msra.mxu0 0.0
      %8171 = vmatpush.msra.mxu0 0.0
      %8172 = vmatpush.msra.mxu0 0.0
      %8173 = vmatpush.msra.mxu0 0.0
      %8174 = vmatpush.msra.mxu0 %v8129
      %8175 = vmatmul.f32.gmra.mxu0 %v8157
      %v8176 = vpop.f32.mrf.mxu0
      %v8177 = vadd.f32 %v8153, %v8176
      %8178 = vdwg.mxu0
      %vm8179 = vcmask 59392
      %8180 = vst.msk [vmem:[%s550] sm:$0x7] %vm8179, %v8177
      %8181 = vmatpush.msra.mxu0 0.0
      %8182 = vmatpush.msra.mxu0 0.0
      %8183 = vmatpush.msra.mxu0 0.0
      %8184 = vmatpush.msra.mxu0 0.0
      %8185 = vmatpush.msra.mxu0 0.0
      %8186 = vmatpush.msra.mxu0 0.0
      %8187 = vmatpush.msra.mxu0 0.0
      %8188 = vmatpush.msra.mxu0 0.0
      %8189 = vmatpush.msra.mxu0 0.0
      %8190 = vmatpush.msra.mxu0 0.0
      %8191 = vmatpush.msra.mxu0 0.0
      %8192 = vmatpush.msra.mxu0 0.0
      %8193 = vmatpush.msra.mxu0 0.0
      %8194 = vmatpush.msra.mxu0 0.0
      %8195 = vmatpush.msra.mxu0 0.0
      %8196 = vmatpush.msra.mxu0 %v8131
      %8197 = vmatmul.f32.gmra.mxu0 %v8157
      %v8198 = vpop.f32.mrf.mxu0
      %v8199 = vadd.f32 %v8153, %v8198
      %8200 = vdwg.mxu0
      %s8201 = scalar_lea.vmem %s550, 4
      %8202 = vst.msk [vmem:[%s8201] sm:$0x7] %vm8179, %v8199
      %8203 = vmatpush.msra.mxu0 0.0
      %8204 = vmatpush.msra.mxu0 0.0
      %8205 = vmatpush.msra.mxu0 0.0
      %8206 = vmatpush.msra.mxu0 0.0
      %8207 = vmatpush.msra.mxu0 0.0
      %8208 = vmatpush.msra.mxu0 0.0
      %8209 = vmatpush.msra.mxu0 0.0
      %8210 = vmatpush.msra.mxu0 0.0
      %8211 = vmatpush.msra.mxu0 0.0
      %8212 = vmatpush.msra.mxu0 0.0
      %8213 = vmatpush.msra.mxu0 0.0
      %8214 = vmatpush.msra.mxu0 0.0
      %8215 = vmatpush.msra.mxu0 0.0
      %8216 = vmatpush.msra.mxu0 0.0
      %8217 = vmatpush.msra.mxu0 0.0
      %8218 = vmatpush.msra.mxu0 %v8134
      %8219 = vmatmul.f32.gmra.mxu0 %v8157
      %v8220 = vpop.f32.mrf.mxu0
      %v8221 = vadd.f32 %v8153, %v8220
      %8222 = vdwg.mxu0
      %s8223 = scalar_lea.vmem %s550, 8
      %8224 = vst.msk [vmem:[%s8223] sm:$0x7] %vm8179, %v8221
      %8225 = vmatpush.msra.mxu0 0.0
      %8226 = vmatpush.msra.mxu0 0.0
      %8227 = vmatpush.msra.mxu0 0.0
      %8228 = vmatpush.msra.mxu0 0.0
      %8229 = vmatpush.msra.mxu0 0.0
      %8230 = vmatpush.msra.mxu0 0.0
      %8231 = vmatpush.msra.mxu0 0.0
      %8232 = vmatpush.msra.mxu0 0.0
      %8233 = vmatpush.msra.mxu0 0.0
      %8234 = vmatpush.msra.mxu0 0.0
      %8235 = vmatpush.msra.mxu0 0.0
      %8236 = vmatpush.msra.mxu0 0.0
      %8237 = vmatpush.msra.mxu0 0.0
      %8238 = vmatpush.msra.mxu0 0.0
      %8239 = vmatpush.msra.mxu0 0.0
      %8240 = vmatpush.msra.mxu0 %v8136
      %8241 = vmatmul.f32.gmra.mxu0 %v8157
      %v8242 = vpop.f32.mrf.mxu0
      %v8243 = vadd.f32 %v8153, %v8242
      %8244 = vdwg.mxu0
      %s8245 = scalar_lea.vmem %s550, 12
      %8246 = vst.msk [vmem:[%s8245] sm:$0x7] %vm8179, %v8243
      %8247 = vmatpush.msra.mxu0 0.0
      %8248 = vmatpush.msra.mxu0 0.0
      %8249 = vmatpush.msra.mxu0 0.0
      %8250 = vmatpush.msra.mxu0 0.0
      %8251 = vmatpush.msra.mxu0 0.0
      %8252 = vmatpush.msra.mxu0 0.0
      %8253 = vmatpush.msra.mxu0 0.0
      %8254 = vmatpush.msra.mxu0 0.0
      %8255 = vmatpush.msra.mxu0 0.0
      %8256 = vmatpush.msra.mxu0 0.0
      %8257 = vmatpush.msra.mxu0 0.0
      %8258 = vmatpush.msra.mxu0 0.0
      %8259 = vmatpush.msra.mxu0 0.0
      %8260 = vmatpush.msra.mxu0 0.0
      %8261 = vmatpush.msra.mxu0 0.0
      %8262 = vmatpush.msra.mxu0 %v8139
      %8263 = vmatmul.f32.gmra.mxu0 %v8157
      %v8264 = vpop.f32.mrf.mxu0
      %v8265 = vadd.f32 %v8153, %v8264
      %8266 = vdwg.mxu0
      %s8267 = scalar_lea.vmem %s550, 16
      %8268 = vst.msk [vmem:[%s8267] sm:$0x7] %vm8179, %v8265
      %8269 = vmatpush.msra.mxu0 0.0
      %8270 = vmatpush.msra.mxu0 0.0
      %8271 = vmatpush.msra.mxu0 0.0
      %8272 = vmatpush.msra.mxu0 0.0
      %8273 = vmatpush.msra.mxu0 0.0
      %8274 = vmatpush.msra.mxu0 0.0
      %8275 = vmatpush.msra.mxu0 0.0
      %8276 = vmatpush.msra.mxu0 0.0
      %8277 = vmatpush.msra.mxu0 0.0
      %8278 = vmatpush.msra.mxu0 0.0
      %8279 = vmatpush.msra.mxu0 0.0
      %8280 = vmatpush.msra.mxu0 0.0
      %8281 = vmatpush.msra.mxu0 0.0
      %8282 = vmatpush.msra.mxu0 0.0
      %8283 = vmatpush.msra.mxu0 0.0
      %8284 = vmatpush.msra.mxu0 %v8141
      %8285 = vmatmul.f32.gmra.mxu0 %v8157
      %v8286 = vpop.f32.mrf.mxu0
      %v8287 = vadd.f32 %v8153, %v8286
      %8288 = vdwg.mxu0
      %s8289 = scalar_lea.vmem %s550, 20
      %8290 = vst.msk [vmem:[%s8289] sm:$0x7] %vm8179, %v8287
      %8291 = vmatpush.msra.mxu0 0.0
      %8292 = vmatpush.msra.mxu0 0.0
      %8293 = vmatpush.msra.mxu0 0.0
      %8294 = vmatpush.msra.mxu0 0.0
      %8295 = vmatpush.msra.mxu0 0.0
      %8296 = vmatpush.msra.mxu0 0.0
      %8297 = vmatpush.msra.mxu0 0.0
      %8298 = vmatpush.msra.mxu0 0.0
      %8299 = vmatpush.msra.mxu0 0.0
      %8300 = vmatpush.msra.mxu0 0.0
      %8301 = vmatpush.msra.mxu0 0.0
      %8302 = vmatpush.msra.mxu0 0.0
      %8303 = vmatpush.msra.mxu0 0.0
      %8304 = vmatpush.msra.mxu0 0.0
      %8305 = vmatpush.msra.mxu0 0.0
      %8306 = vmatpush.msra.mxu0 %v8144
      %8307 = vmatmul.f32.gmra.mxu0 %v8157
      %v8308 = vpop.f32.mrf.mxu0
      %v8309 = vadd.f32 %v8153, %v8308
      %8310 = vdwg.mxu0
      %s8311 = scalar_lea.vmem %s550, 24
      %8312 = vst.msk [vmem:[%s8311] sm:$0x7] %vm8179, %v8309
      %8313 = vmatpush.msra.mxu0 0.0
      %8314 = vmatpush.msra.mxu0 0.0
      %8315 = vmatpush.msra.mxu0 0.0
      %8316 = vmatpush.msra.mxu0 0.0
      %8317 = vmatpush.msra.mxu0 0.0
      %8318 = vmatpush.msra.mxu0 0.0
      %8319 = vmatpush.msra.mxu0 0.0
      %8320 = vmatpush.msra.mxu0 0.0
      %8321 = vmatpush.msra.mxu0 0.0
      %8322 = vmatpush.msra.mxu0 0.0
      %8323 = vmatpush.msra.mxu0 0.0
      %8324 = vmatpush.msra.mxu0 0.0
      %8325 = vmatpush.msra.mxu0 0.0
      %8326 = vmatpush.msra.mxu0 0.0
      %8327 = vmatpush.msra.mxu0 0.0
      %8328 = vmatpush.msra.mxu0 %v8146
      %8329 = vmatmul.f32.gmra.mxu0 %v8157
      %v8330 = vpop.f32.mrf.mxu0
      %v8331 = vadd.f32 %v8153, %v8330
      %8332 = vdwg.mxu0
      %s8333 = scalar_lea.vmem %s550, 28
      %8334 = vst.msk [vmem:[%s8333] sm:$0x7] %vm8179, %v8331
      %s8335 = smul.u32 8, %s27
      %p8336 = scmp.lt.s32.totalorder %s26, 3
      %s8337 = scalar_select %p8336, %s26, 3
      %p8338 = scmp.lt.s32.totalorder %s8335, 15
      %s8339 = scalar_select %p8338, %s8335, 15
      %s8340 = smul.addr %s8337, 16
      %s8341 = sadd.s32 %s8339, %s8340
      %s8342 = smul.addr %s8341, 4
      %s8343 = scalar_lea.vmem %s11, %s8342
      // Predicated region
      $region65: #{classifiers_forward.1} parent=63 // pred_check
        %p8344 = pneg %p330
      $region66: #{classifiers_forward.1} parent=63 // pred_check_branch
        %8346 = sbr.rel (%p8344) target = $region68
      $region67: #{classifiers_forward.1} parent=63 // pred_region
        %s8347 = smul.u32 8, %s27
      $region68: #{classifiers_forward.1} parent=63 // pred_fallthru
        _
    $region64: #{classifiers_forward.1} parent=5 // pred_fallthru
      _
    %p8348 = scmp.le.s32.totalorder 2, %s17
    // Predicated region
    $region69: #{classifiers_forward.1} parent=5 // pred_check
      %p8349 = pneg %p8348
    $region70: #{classifiers_forward.1} parent=5 // pred_check_branch
      %8351 = sbr.rel (%p8349) target = $region72
    $region71: #{classifiers_forward.1} parent=5 // pred_region
      %s8352 = ssub.s32 %s17, 2
      // Predicated region
      $region73: #{classifiers_forward.1} parent=71 // pred_check
        %p8353 = pneg %p336
      $region74: #{classifiers_forward.1} parent=71 // pred_check_branch
        %8355 = sbr.rel (%p8353) target = $region76
      $region75: #{classifiers_forward.1} parent=71 // pred_region
        %s8356 = smul.u32 8, %s29
        %p8357 = scmp.lt.s32.totalorder %s28, 3
        %s8358 = scalar_select %p8357, %s28, 3
        %p8359 = scmp.lt.s32.totalorder %s8356, 15
        %s8360 = scalar_select %p8359, %s8356, 15
        %s8361 = smul.addr %s8358, 16
        %s8362 = sadd.s32 %s8360, %s8361
        %s8363 = smul.addr %s8362, 4
        %s8364 = scalar_lea.vmem %s11, %s8363
      $region76: #{classifiers_forward.1} parent=71 // pred_fallthru
        _
    $region72: #{classifiers_forward.1} parent=5 // pred_fallthru
      _
  $region6: #{classifiers_forward.1} parent=0 // loop_footer
    %s21 = sadd.s32 1, %s17
  $region7: #{classifiers_forward.1} parent=0 // loop_footer_branch
    %16 = sbr.rel target = $region3
  $region8: #{classifiers_forward.1} parent=0 // loop_exit
    _

</llo_original>
